<compile_context>
chip_gen: v7x
topology: tpu7x:2x2x1
jax: 0.10.0
libtpu: 0.0.40
codegen_flags: <defaults>
</compile_context>

<pallas_src>
import functools

import jax
import jax.numpy as jnp
from jax.experimental import pallas as pl
from jax.experimental.pallas import tpu as pltpu

_MASK_VALUE = -1e30   # kept in f32 everywhere (bf16 cannot represent it)


def _transformer_lm_kernel(num_layers, num_heads, chunk_size,
                           ids_ref, tok_ref, pos_ref,
                           wqkv_ref, wo_ref, ff1_ref, ff2_ref, small_ref,
                           outw_ref, outb_ref, o_ref):
    """Forward pass for one batch_tile of chunks, fully resident in VMEM."""
    N = ids_ref.shape[1]                  # batch_tile * chunk_size token rows
    T = chunk_size
    Bt = N // T
    Vp, D = tok_ref.shape                 # lane-padded vocab, model dim
    H = num_heads
    hd = D // H
    scale = 1.0 / float(hd) ** 0.5
    f32, bf16 = jnp.float32, jnp.bfloat16

    # ---- embedding: one-hot matmul against the lane-padded table (MXU) ----
    # TODO(synk): for realistic vocab sizes replace the one-hot matmul with a
    # scalar-prefetch row gather (PrefetchScalarGridSpec + pl.Element).
    ids = ids_ref[0]                                               # (N, 1) int32
    onehot = (jax.lax.broadcasted_iota(jnp.int32, (N, Vp), 1) == ids).astype(bf16)
    x = jnp.dot(onehot, tok_ref[...], preferred_element_type=f32)  # (N, D) f32
    x = (x.reshape(Bt, T, D) + pos_ref[...]).reshape(N, D)         # learned positions

    # ---- causal mask bias: masked (j > i) -> -1e30 (matches the module's loop) ----
    row = jax.lax.broadcasted_iota(jnp.int32, (T, T), 0)
    col = jax.lax.broadcasted_iota(jnp.int32, (T, T), 1)
    causal = jnp.where(col > row, jnp.float32(_MASK_VALUE), jnp.float32(0.0))

    def layer_norm(h, w, b):                                       # PyTorch eps=1e-5, biased var
        mu = jnp.mean(h, axis=-1, keepdims=True)
        var = jnp.mean((h - mu) ** 2, axis=-1, keepdims=True)
        return (h - mu) * jax.lax.rsqrt(var + 1e-5) * w + b

    # TODO(synk): switch to lax.fori_loop over the stacked layer axis if
    # num_layers grows enough for code size / vreg live ranges to matter.
    for l in range(num_layers):
        small = small_ref[l]               # (8, 4D) f32: all tiny per-layer params
        b_qkv = small[0:1, :3 * D]
        ob = small[1:2, :D]
        ln1_w = small[2:3, :D]
        ln1_b = small[3:4, :D]
        ln2_w = small[4:5, :D]
        ln2_b = small[5:6, :D]
        ff1_b = small[6:7, :]
        ff2_b = small[7:8, :D]

        # --- multi-head self-attention: fused QKV dot, per-head lane slices ---
        x_bf = x.astype(bf16)
        qkv = jnp.dot(x_bf, wqkv_ref[l], preferred_element_type=f32) + b_qkv   # (N, 3D)
        qkv3 = qkv.reshape(Bt, T, 3 * D)

        head_outs = []
        for h in range(H):
            qh = qkv3[:, :, h * hd:(h + 1) * hd].astype(bf16)
            kh = qkv3[:, :, D + h * hd:D + (h + 1) * hd].astype(bf16)
            vh = qkv3[:, :, 2 * D + h * hd:2 * D + (h + 1) * hd].astype(bf16)
            s = jnp.einsum("btk,bsk->bts", qh, kh,
                           preferred_element_type=f32) * scale + causal
            m = jnp.max(s, axis=-1, keepdims=True)                 # f32 softmax
            e = jnp.exp(s - m)
            p = e * pl.reciprocal(jnp.sum(e, axis=-1, keepdims=True), approx=True)
            oh = jnp.einsum("bts,bsk->btk", p.astype(bf16), vh,
                            preferred_element_type=f32)            # (Bt, T, hd)
            head_outs.append(oh.reshape(N, hd))

        # single lane-concat + one (N, D) x (D, D) out-proj dot, bias added once
        attn_heads = jnp.concatenate(head_outs, axis=-1)           # (N, D) f32
        attn = jnp.dot(attn_heads.astype(bf16), wo_ref[l],
                       preferred_element_type=f32) + ob

        x = layer_norm(x + attn, ln1_w, ln1_b)                     # post-LN (norm_first=False)

        # --- feed-forward: ReLU(x W1 + b1) W2 + b2 ---
        ff = jnp.dot(x.astype(bf16), ff1_ref[l], preferred_element_type=f32) + ff1_b
        ff = jnp.maximum(ff, 0.0)
        ff = jnp.dot(ff.astype(bf16), ff2_ref[l], preferred_element_type=f32) + ff2_b
        x = layer_norm(x + ff, ln2_w, ln2_b)

    # ---- output head (lane-padded vocab, padded cols biased to -1e30) + log-softmax ----
    # TODO(synk): add a vocab-tile grid axis ("arbitrary") before scaling V / N so the
    # f32 logits block stays within v7x's 64 MiB VMEM.
    logits = jnp.dot(x.astype(bf16), outw_ref[...],
                     preferred_element_type=f32) + outb_ref[...]
    m = jnp.max(logits, axis=-1, keepdims=True)
    lse = m + jnp.log(jnp.sum(jnp.exp(logits - m), axis=-1, keepdims=True))
    o_ref[0] = logits - lse                                        # (N, Vp) lane-dense store


def init_transformer_params(key, vocab_size, chunk_size, d_model, num_head, num_layers):
    """Deterministic synthetic parameters, PyTorch shape conventions (weights pre-transposed)."""
    def norm(k, shape, scale=0.02):
        return scale * jax.random.normal(k, shape, dtype=jnp.float32)

    keys = jax.random.split(key, 3 + num_layers)
    params = {
        "num_heads": num_head,
        "tok_emb": norm(keys[0], (vocab_size, d_model)),           # nn.Embedding
        "pos_emb": norm(keys[1], (chunk_size, d_model)),           # PositionalEncoding table
        "out_wt": norm(keys[2], (vocab_size, d_model)).T,          # Linear(d_model, vocab).weight^T
        "out_b": jnp.zeros((1, vocab_size), jnp.float32),
        "layers": [],
    }
    for l in range(num_layers):
        lk = jax.random.split(keys[3 + l], 4)
        params["layers"].append({
            "in_wt": norm(lk[0], (3 * d_model, d_model)).T,        # in_proj_weight^T (D, 3D)
            "in_b": jnp.zeros((1, 3 * d_model), jnp.float32),
            "attn_out_wt": norm(lk[1], (d_model, d_model)).T,      # out_proj.weight^T (D, D)
            "attn_out_b": jnp.zeros((1, d_model), jnp.float32),
            "ln1_w": jnp.ones((1, d_model), jnp.float32),
            "ln1_b": jnp.zeros((1, d_model), jnp.float32),
            "ln2_w": jnp.ones((1, d_model), jnp.float32),
            "ln2_b": jnp.zeros((1, d_model), jnp.float32),
            "ff1_wt": norm(lk[2], (4 * d_model, d_model)).T,       # linear1.weight^T (D, 4D)
            "ff1_b": jnp.zeros((1, 4 * d_model), jnp.float32),
            "ff2_wt": norm(lk[3], (d_model, 4 * d_model)).T,       # linear2.weight^T (4D, D)
            "ff2_b": jnp.zeros((1, d_model), jnp.float32),
        })
    return params


def _stack_layer_params(layers, d_model):
    """Consolidate per-layer params: bf16 weight stacks + one f32 (L, 8, 4D) small-param stack."""
    f32, bf16 = jnp.float32, jnp.bfloat16
    D = d_model
    wqkv = jnp.stack([lp["in_wt"] for lp in layers]).astype(bf16)         # (L, D, 3D)
    wo = jnp.stack([lp["attn_out_wt"] for lp in layers]).astype(bf16)     # (L, D, D)
    ff1 = jnp.stack([lp["ff1_wt"] for lp in layers]).astype(bf16)         # (L, D, 4D)
    ff2 = jnp.stack([lp["ff2_wt"] for lp in layers]).astype(bf16)         # (L, 4D, D)

    def pad_row(v):
        v = jnp.asarray(v, f32).reshape(-1)
        return jnp.zeros((4 * D,), f32).at[:v.shape[0]].set(v)

    def small_rows(lp):
        rows = [lp["in_b"], lp["attn_out_b"], lp["ln1_w"], lp["ln1_b"],
                lp["ln2_w"], lp["ln2_b"], lp["ff1_b"], lp["ff2_b"]]
        return jnp.stack([pad_row(r) for r in rows])                      # (8, 4D)

    small = jnp.stack([small_rows(lp) for lp in layers])                  # (L, 8, 4D)
    return wqkv, wo, ff1, ff2, small


def _default_batch_tile(B, T, target_rows=256):
    """Largest batch_tile with batch_tile*T <= target_rows, preferring grid >= 2 (v7x megacore)."""
    divisors = [d for d in range(1, B + 1) if B % d == 0]
    fits = [d for d in divisors if d * T <= target_rows] or [1]
    multi = [d for d in fits if B // d >= 2]
    return max(multi) if multi else max(fits)


def transformer_forward_batched(indexed_chunks, params, *, batch_tile=None):
    """indexed_chunks: (B, T) int32 token ids. Returns (B, T, vocab) log-probs."""
    B, T = indexed_chunks.shape
    V, D = params["tok_emb"].shape
    num_layers = len(params["layers"])
    num_heads = params["num_heads"]
    if batch_tile is None:
        batch_tile = _default_batch_tile(B, T)
    assert B % batch_tile == 0, "batch must be a multiple of batch_tile"
    nb = B // batch_tile
    N = batch_tile * T
    Vp = ((V + 127) // 128) * 128                                  # lane-dense padded vocab
    f32, bf16 = jnp.float32, jnp.bfloat16

    # ---- wrapper glue: pad / stack / cast parameters once ----
    tok_pad = jnp.zeros((Vp, D), f32).at[:V].set(params["tok_emb"]).astype(bf16)
    pos = params["pos_emb"][:T].astype(f32)                        # (T, D), broadcast in-kernel
    out_w_pad = jnp.zeros((D, Vp), f32).at[:, :V].set(params["out_wt"]).astype(bf16)
    out_b_pad = jnp.full((1, Vp), _MASK_VALUE, f32).at[:, :V].set(params["out_b"])
    wqkv, wo, ff1, ff2, small = _stack_layer_params(params["layers"], D)

    inputs = [indexed_chunks.reshape(nb, N, 1).astype(jnp.int32),
              tok_pad, pos, wqkv, wo, ff1, ff2, small, out_w_pad, out_b_pad]

    def resident(arr):   # whole-array block, constant index_map -> stays in VMEM across grid
        return pl.BlockSpec(arr.shape, lambda i, n=arr.ndim: (0,) * n)

    in_specs = ([pl.BlockSpec((1, N, 1), lambda i: (i, 0, 0))]
                + [resident(a) for a in inputs[1:]])
    out_spec = pl.BlockSpec((1, N, Vp), lambda i: (i, 0, 0))

    # VMEM budget from actual sizes (resident weights + double-buffered blocks + activations).
    resident_bytes = sum(int(a.size) * a.dtype.itemsize for a in inputs[1:])
    block_bytes = 2 * (N * 4 + N * Vp * 4)
    act_bytes = 16 * N * max(4 * D, Vp) * 4
    vmem_limit = int(min(64 << 20,
                         max(16 << 20, 2 * (resident_bytes + block_bytes + act_bytes))))

    # Advisory cost estimate for the whole call.
    mm_flops = 2 * B * T * (2 * Vp * D + num_layers * (12 * D * D + 4 * T * D))
    transcendentals = B * T * (num_layers * (num_heads * T + 4) + Vp)
    bytes_accessed = (sum(int(a.size) * a.dtype.itemsize for a in inputs)
                      + nb * N * Vp * 4)

    kernel = functools.partial(_transformer_lm_kernel, num_layers, num_heads, T)
    out = pl.pallas_call(
        kernel,
        out_shape=jax.ShapeDtypeStruct((nb, N, Vp), f32),
        grid_spec=pltpu.PrefetchScalarGridSpec(
            num_scalar_prefetch=0,
            grid=(nb,),
            in_specs=in_specs,
            out_specs=out_spec,
        ),
        compiler_params=pltpu.CompilerParams(
            dimension_semantics=("parallel",),       # chunk-batch axis -> megacore on v7x
            vmem_limit_bytes=vmem_limit,
        ),
        cost_estimate=pl.CostEstimate(
            flops=int(mm_flops),
            transcendentals=int(transcendentals),
            bytes_accessed=int(bytes_accessed)),
    )(*inputs)
    return out.reshape(B, T, Vp)[:, :, :V]           # drop lane padding


def transformer_forward(indexed_context, params):
    """Matches the PyTorch module: (T,) int ids -> (T, 1, vocab) log-probs."""
    T = int(indexed_context.shape[0])
    V = params["tok_emb"].shape[0]
    logp = transformer_forward_batched(indexed_context.reshape(1, T), params, batch_tile=1)
    return logp.reshape(T, 1, V)


if __name__ == "__main__":
    chunk_size = 8       # T
    d_model = 32
    num_head = 2
    num_layers = 2
    vocab_size = 27      # e.g. lowercase letters + space
    num_chunks = 32      # chunks per call
    batch_tile = 16      # N = 128 token rows per grid step, grid = (2,)

    key = jax.random.PRNGKey(0)
    k_params, k_ids = jax.random.split(key)
    params = init_transformer_params(k_params, vocab_size, chunk_size,
                                     d_model, num_head, num_layers)
    chunks = jax.random.randint(k_ids, (num_chunks, chunk_size), 0, vocab_size,
                                dtype=jnp.int32)

    # batched path (grid over chunk batches, 128 token rows per grid step)
    out_batched = jax.block_until_ready(
        transformer_forward_batched(chunks, params, batch_tile=batch_tile))
    assert out_batched.shape == (num_chunks, chunk_size, vocab_size)
    assert bool(jnp.all(jnp.isfinite(out_batched)))
    assert bool(jnp.allclose(jnp.exp(out_batched).sum(axis=-1), 1.0, atol=1e-3))

    # single-chunk path, identical interface/semantics to the PyTorch module
    out_single = jax.block_until_ready(transformer_forward(chunks[0], params))
    assert out_single.shape == (chunk_size, 1, vocab_size)
    assert bool(jnp.all(jnp.isfinite(out_single)))
    assert bool(jnp.allclose(out_single[:, 0, :], out_batched[0], atol=1e-2, rtol=1e-2))

    print("KERNEL_OK")
</pallas_src>

<mosaic_0001>
module attributes {stable_mosaic.version = 11 : i64} {
  func.func @_transformer_lm_kernel(%arg0: i32, %arg1: memref<1x128x1xi32, #tpu.memory_space<vmem>>, %arg2: memref<128x32xbf16, #tpu.memory_space<vmem>>, %arg3: memref<8x32xf32, #tpu.memory_space<vmem>>, %arg4: memref<2x32x96xbf16, #tpu.memory_space<vmem>>, %arg5: memref<2x32x32xbf16, #tpu.memory_space<vmem>>, %arg6: memref<2x32x128xbf16, #tpu.memory_space<vmem>>, %arg7: memref<2x128x32xbf16, #tpu.memory_space<vmem>>, %arg8: memref<2x8x128xf32, #tpu.memory_space<vmem>>, %arg9: memref<32x128xbf16, #tpu.memory_space<vmem>>, %arg10: memref<1x128xf32, #tpu.memory_space<vmem>>, %arg11: memref<1x128x128xf32, #tpu.memory_space<vmem>>) attributes {dimension_semantics = [#tpu.dimension_semantics<parallel>], iteration_bounds = array<i64: 2>, scalar_prefetch = 0 : i64, scratch_operands = 0 : i64, tpu.core_type = #tpu.core_type<tc>, window_params = [{transform_indices = @transform_0, window_bounds = array<i64: 1, 128, 1>}, {pipeline_mode = #tpu.pipeline_mode<synchronous>, transform_indices = @transform_1, window_bounds = array<i64: 128, 32>}, {pipeline_mode = #tpu.pipeline_mode<synchronous>, transform_indices = @transform_2, window_bounds = array<i64: 8, 32>}, {pipeline_mode = #tpu.pipeline_mode<synchronous>, transform_indices = @transform_3, window_bounds = array<i64: 2, 32, 96>}, {pipeline_mode = #tpu.pipeline_mode<synchronous>, transform_indices = @transform_4, window_bounds = array<i64: 2, 32, 32>}, {pipeline_mode = #tpu.pipeline_mode<synchronous>, transform_indices = @transform_5, window_bounds = array<i64: 2, 32, 128>}, {pipeline_mode = #tpu.pipeline_mode<synchronous>, transform_indices = @transform_6, window_bounds = array<i64: 2, 128, 32>}, {pipeline_mode = #tpu.pipeline_mode<synchronous>, transform_indices = @transform_7, window_bounds = array<i64: 2, 8, 128>}, {pipeline_mode = #tpu.pipeline_mode<synchronous>, transform_indices = @transform_8, window_bounds = array<i64: 32, 128>}, {pipeline_mode = #tpu.pipeline_mode<synchronous>, transform_indices = @transform_9, window_bounds = array<i64: 1, 128>}, {transform_indices = @transform_10, window_bounds = array<i64: 1, 128, 128>}]} {
    %c0 = arith.constant 0 : index
    %c0_0 = arith.constant 0 : index
    %c0_1 = arith.constant 0 : index
    %0 = vector.load %arg1[%c0, %c0_0, %c0_1] : memref<1x128x1xi32, #tpu.memory_space<vmem>>, vector<1x128x1xi32>
    %1 = vector.shape_cast %0 : vector<1x128x1xi32> to vector<128x1xi32>
    %2 = tpu.iota {dimensions = array<i32: 1>} : vector<128x128xi32>
    %3 = vector.broadcast %1 : vector<128x1xi32> to vector<128x128xi32>
    %4 = arith.cmpi eq, %2, %3 : vector<128x128xi32>
    %5 = arith.extui %4 : vector<128x128xi1> to vector<128x128xi32>
    %6 = arith.sitofp %5 : vector<128x128xi32> to vector<128x128xf32>
    %7 = arith.truncf %6 : vector<128x128xf32> to vector<128x128xbf16>
    %c0_2 = arith.constant 0 : index
    %c0_3 = arith.constant 0 : index
    %8 = vector.load %arg2[%c0_2, %c0_3] : memref<128x32xbf16, #tpu.memory_space<vmem>>, vector<128x32xbf16>
    %cst = arith.constant dense<0.000000e+00> : vector<128x32xf32>
    %9 = tpu.matmul %7, %8, %cst {dimension_numbers = #tpu.dot_dimension_numbers<[1], [0], [0], [1], [0, 0, 1, 1], [], []>} : vector<128x128xbf16>, vector<128x32xbf16>, vector<128x32xf32> -> vector<128x32xf32>
    %10 = vector.shape_cast %9 : vector<128x32xf32> to vector<16x8x32xf32>
    %c0_4 = arith.constant 0 : index
    %c0_5 = arith.constant 0 : index
    %11 = vector.load %arg3[%c0_4, %c0_5] : memref<8x32xf32, #tpu.memory_space<vmem>>, vector<8x32xf32>
    %12 = vector.shape_cast %11 : vector<8x32xf32> to vector<1x8x32xf32>
    %13 = vector.broadcast %12 : vector<1x8x32xf32> to vector<16x8x32xf32>
    %14 = arith.addf %10, %13 : vector<16x8x32xf32>
    %15 = vector.shape_cast %14 : vector<16x8x32xf32> to vector<128x32xf32>
    %16 = tpu.iota {dimensions = array<i32: 0>} : vector<8x8xi32>
    %17 = tpu.iota {dimensions = array<i32: 1>} : vector<8x8xi32>
    %18 = arith.cmpi sgt, %17, %16 : vector<8x8xi32>
    %cst_6 = arith.constant -1.000000e+30 : f32
    %cst_7 = arith.constant 0.000000e+00 : f32
    %19 = vector.broadcast %cst_6 : f32 to vector<8x8xf32>
    %20 = vector.broadcast %cst_7 : f32 to vector<8x8xf32>
    %21 = arith.select %18, %19, %20 : vector<8x8xi1>, vector<8x8xf32>
    %c0_8 = arith.constant 0 : index
    %c0_9 = arith.constant 0 : index
    %c0_10 = arith.constant 0 : index
    %22 = vector.load %arg8[%c0_8, %c0_9, %c0_10] : memref<2x8x128xf32, #tpu.memory_space<vmem>>, vector<1x8x128xf32>
    %23 = vector.shape_cast %22 : vector<1x8x128xf32> to vector<8x128xf32>
    %24 = vector.extract_strided_slice %23 {offsets = [0, 0], sizes = [1, 96], strides = [1, 1]} : vector<8x128xf32> to vector<1x96xf32>
    %25 = vector.extract_strided_slice %23 {offsets = [1, 0], sizes = [1, 32], strides = [1, 1]} : vector<8x128xf32> to vector<1x32xf32>
    %26 = vector.extract_strided_slice %23 {offsets = [2, 0], sizes = [1, 32], strides = [1, 1]} : vector<8x128xf32> to vector<1x32xf32>
    %27 = vector.extract_strided_slice %23 {offsets = [3, 0], sizes = [1, 32], strides = [1, 1]} : vector<8x128xf32> to vector<1x32xf32>
    %28 = vector.extract_strided_slice %23 {offsets = [4, 0], sizes = [1, 32], strides = [1, 1]} : vector<8x128xf32> to vector<1x32xf32>
    %29 = vector.extract_strided_slice %23 {offsets = [5, 0], sizes = [1, 32], strides = [1, 1]} : vector<8x128xf32> to vector<1x32xf32>
    %30 = vector.extract_strided_slice %23 {offsets = [6, 0], sizes = [1, 128], strides = [1, 1]} : vector<8x128xf32> to vector<1x128xf32>
    %31 = vector.extract_strided_slice %23 {offsets = [7, 0], sizes = [1, 32], strides = [1, 1]} : vector<8x128xf32> to vector<1x32xf32>
    %32 = arith.truncf %15 : vector<128x32xf32> to vector<128x32xbf16>
    %c0_11 = arith.constant 0 : index
    %c0_12 = arith.constant 0 : index
    %c0_13 = arith.constant 0 : index
    %33 = vector.load %arg4[%c0_11, %c0_12, %c0_13] : memref<2x32x96xbf16, #tpu.memory_space<vmem>>, vector<1x32x96xbf16>
    %34 = vector.shape_cast %33 : vector<1x32x96xbf16> to vector<32x96xbf16>
    %cst_14 = arith.constant dense<0.000000e+00> : vector<128x96xf32>
    %35 = tpu.matmul %32, %34, %cst_14 {dimension_numbers = #tpu.dot_dimension_numbers<[1], [0], [0], [1], [0, 0, 1, 1], [], []>} : vector<128x32xbf16>, vector<32x96xbf16>, vector<128x96xf32> -> vector<128x96xf32>
    %36 = vector.broadcast %24 : vector<1x96xf32> to vector<128x96xf32>
    %37 = arith.addf %35, %36 : vector<128x96xf32>
    %38 = vector.shape_cast %37 : vector<128x96xf32> to vector<16x8x96xf32>
    %39 = vector.extract_strided_slice %38 {offsets = [0, 0, 0], sizes = [16, 8, 16], strides = [1, 1, 1]} : vector<16x8x96xf32> to vector<16x8x16xf32>
    %40 = arith.truncf %39 : vector<16x8x16xf32> to vector<16x8x16xbf16>
    %41 = vector.extract_strided_slice %38 {offsets = [0, 0, 32], sizes = [16, 8, 16], strides = [1, 1, 1]} : vector<16x8x96xf32> to vector<16x8x16xf32>
    %42 = arith.truncf %41 : vector<16x8x16xf32> to vector<16x8x16xbf16>
    %43 = vector.extract_strided_slice %38 {offsets = [0, 0, 64], sizes = [16, 8, 16], strides = [1, 1, 1]} : vector<16x8x96xf32> to vector<16x8x16xf32>
    %44 = arith.truncf %43 : vector<16x8x16xf32> to vector<16x8x16xbf16>
    "tpu.trace_start"() <{level = 10 : i32, message = "btk,bsk->bts"}> : () -> ()
    %cst_15 = arith.constant dense<0.000000e+00> : vector<16x8x8xf32>
    %45 = tpu.matmul %40, %42, %cst_15 {dimension_numbers = #tpu.dot_dimension_numbers<[2], [2], [1], [1], [0, 0, 0, 1, 1, 1], [0], [0]>} : vector<16x8x16xbf16>, vector<16x8x16xbf16>, vector<16x8x8xf32> -> vector<16x8x8xf32>
    "tpu.trace_stop"() : () -> ()
    %cst_16 = arith.constant 2.500000e-01 : f32
    %46 = vector.broadcast %cst_16 : f32 to vector<16x8x8xf32>
    %47 = arith.mulf %45, %46 : vector<16x8x8xf32>
    %48 = vector.shape_cast %21 : vector<8x8xf32> to vector<1x8x8xf32>
    %49 = vector.broadcast %48 : vector<1x8x8xf32> to vector<16x8x8xf32>
    %50 = arith.addf %47, %49 : vector<16x8x8xf32>
    %cst_17 = arith.constant dense<0xFF800000> : vector<16x8xf32>
    %51 = vector.multi_reduction <maximumf>, %50, %cst_17 [2] : vector<16x8x8xf32> to vector<16x8xf32>
    %52 = vector.shape_cast %51 : vector<16x8xf32> to vector<16x8x1xf32>
    %53 = vector.broadcast %52 : vector<16x8x1xf32> to vector<16x8x8xf32>
    %54 = arith.subf %50, %53 : vector<16x8x8xf32>
    %55 = math.exp %54 : vector<16x8x8xf32>
    %cst_18 = arith.constant dense<0.000000e+00> : vector<16x8xf32>
    %56 = vector.multi_reduction <add>, %55, %cst_18 [2] : vector<16x8x8xf32> to vector<16x8xf32>
    %57 = vector.shape_cast %56 : vector<16x8xf32> to vector<16x8x1xf32>
    %58 = tpu.reciprocal %57 {approx = true} : vector<16x8x1xf32> -> vector<16x8x1xf32>
    %59 = vector.broadcast %58 : vector<16x8x1xf32> to vector<16x8x8xf32>
    %60 = arith.mulf %55, %59 : vector<16x8x8xf32>
    %61 = arith.truncf %60 : vector<16x8x8xf32> to vector<16x8x8xbf16>
    "tpu.trace_start"() <{level = 10 : i32, message = "bts,bsk->btk"}> : () -> ()
    %cst_19 = arith.constant dense<0.000000e+00> : vector<16x8x16xf32>
    %62 = tpu.matmul %61, %44, %cst_19 {dimension_numbers = #tpu.dot_dimension_numbers<[2], [1], [1], [2], [0, 0, 0, 1, 1, 2], [0], [0]>} : vector<16x8x8xbf16>, vector<16x8x16xbf16>, vector<16x8x16xf32> -> vector<16x8x16xf32>
    "tpu.trace_stop"() : () -> ()
    %63 = vector.shape_cast %62 : vector<16x8x16xf32> to vector<128x16xf32>
    %64 = vector.extract_strided_slice %38 {offsets = [0, 0, 16], sizes = [16, 8, 16], strides = [1, 1, 1]} : vector<16x8x96xf32> to vector<16x8x16xf32>
    %65 = arith.truncf %64 : vector<16x8x16xf32> to vector<16x8x16xbf16>
    %66 = vector.extract_strided_slice %38 {offsets = [0, 0, 48], sizes = [16, 8, 16], strides = [1, 1, 1]} : vector<16x8x96xf32> to vector<16x8x16xf32>
    %67 = arith.truncf %66 : vector<16x8x16xf32> to vector<16x8x16xbf16>
    %68 = vector.extract_strided_slice %38 {offsets = [0, 0, 80], sizes = [16, 8, 16], strides = [1, 1, 1]} : vector<16x8x96xf32> to vector<16x8x16xf32>
    %69 = arith.truncf %68 : vector<16x8x16xf32> to vector<16x8x16xbf16>
    "tpu.trace_start"() <{level = 10 : i32, message = "btk,bsk->bts"}> : () -> ()
    %cst_20 = arith.constant dense<0.000000e+00> : vector<16x8x8xf32>
    %70 = tpu.matmul %65, %67, %cst_20 {dimension_numbers = #tpu.dot_dimension_numbers<[2], [2], [1], [1], [0, 0, 0, 1, 1, 1], [0], [0]>} : vector<16x8x16xbf16>, vector<16x8x16xbf16>, vector<16x8x8xf32> -> vector<16x8x8xf32>
    "tpu.trace_stop"() : () -> ()
    %cst_21 = arith.constant 2.500000e-01 : f32
    %71 = vector.broadcast %cst_21 : f32 to vector<16x8x8xf32>
    %72 = arith.mulf %70, %71 : vector<16x8x8xf32>
    %73 = vector.shape_cast %21 : vector<8x8xf32> to vector<1x8x8xf32>
    %74 = vector.broadcast %73 : vector<1x8x8xf32> to vector<16x8x8xf32>
    %75 = arith.addf %72, %74 : vector<16x8x8xf32>
    %cst_22 = arith.constant dense<0xFF800000> : vector<16x8xf32>
    %76 = vector.multi_reduction <maximumf>, %75, %cst_22 [2] : vector<16x8x8xf32> to vector<16x8xf32>
    %77 = vector.shape_cast %76 : vector<16x8xf32> to vector<16x8x1xf32>
    %78 = vector.broadcast %77 : vector<16x8x1xf32> to vector<16x8x8xf32>
    %79 = arith.subf %75, %78 : vector<16x8x8xf32>
    %80 = math.exp %79 : vector<16x8x8xf32>
    %cst_23 = arith.constant dense<0.000000e+00> : vector<16x8xf32>
    %81 = vector.multi_reduction <add>, %80, %cst_23 [2] : vector<16x8x8xf32> to vector<16x8xf32>
    %82 = vector.shape_cast %81 : vector<16x8xf32> to vector<16x8x1xf32>
    %83 = tpu.reciprocal %82 {approx = true} : vector<16x8x1xf32> -> vector<16x8x1xf32>
    %84 = vector.broadcast %83 : vector<16x8x1xf32> to vector<16x8x8xf32>
    %85 = arith.mulf %80, %84 : vector<16x8x8xf32>
    %86 = arith.truncf %85 : vector<16x8x8xf32> to vector<16x8x8xbf16>
    "tpu.trace_start"() <{level = 10 : i32, message = "bts,bsk->btk"}> : () -> ()
    %cst_24 = arith.constant dense<0.000000e+00> : vector<16x8x16xf32>
    %87 = tpu.matmul %86, %69, %cst_24 {dimension_numbers = #tpu.dot_dimension_numbers<[2], [1], [1], [2], [0, 0, 0, 1, 1, 2], [0], [0]>} : vector<16x8x8xbf16>, vector<16x8x16xbf16>, vector<16x8x16xf32> -> vector<16x8x16xf32>
    "tpu.trace_stop"() : () -> ()
    %88 = vector.shape_cast %87 : vector<16x8x16xf32> to vector<128x16xf32>
    %89 = tpu.concatenate %63, %88 in 1 : vector<128x16xf32>, vector<128x16xf32> -> vector<128x32xf32>
    %90 = arith.truncf %89 : vector<128x32xf32> to vector<128x32xbf16>
    %c0_25 = arith.constant 0 : index
    %c0_26 = arith.constant 0 : index
    %c0_27 = arith.constant 0 : index
    %91 = vector.load %arg5[%c0_25, %c0_26, %c0_27] : memref<2x32x32xbf16, #tpu.memory_space<vmem>>, vector<1x32x32xbf16>
    %92 = vector.shape_cast %91 : vector<1x32x32xbf16> to vector<32x32xbf16>
    %cst_28 = arith.constant dense<0.000000e+00> : vector<128x32xf32>
    %93 = tpu.matmul %90, %92, %cst_28 {dimension_numbers = #tpu.dot_dimension_numbers<[1], [0], [0], [1], [0, 0, 1, 1], [], []>} : vector<128x32xbf16>, vector<32x32xbf16>, vector<128x32xf32> -> vector<128x32xf32>
    %94 = vector.broadcast %25 : vector<1x32xf32> to vector<128x32xf32>
    %95 = arith.addf %93, %94 : vector<128x32xf32>
    %96 = arith.addf %15, %95 : vector<128x32xf32>
    %cst_29 = arith.constant dense<0.000000e+00> : vector<128xf32>
    %97 = vector.multi_reduction <add>, %96, %cst_29 [1] : vector<128x32xf32> to vector<128xf32>
    %98 = vector.shape_cast %97 : vector<128xf32> to vector<128x1xf32>
    %cst_30 = arith.constant 3.200000e+01 : f32
    %99 = vector.broadcast %cst_30 : f32 to vector<128x1xf32>
    %100 = arith.divf %98, %99 : vector<128x1xf32>
    %101 = vector.broadcast %100 : vector<128x1xf32> to vector<128x32xf32>
    %102 = arith.subf %96, %101 : vector<128x32xf32>
    %103 = arith.mulf %102, %102 : vector<128x32xf32>
    %cst_31 = arith.constant dense<0.000000e+00> : vector<128xf32>
    %104 = vector.multi_reduction <add>, %103, %cst_31 [1] : vector<128x32xf32> to vector<128xf32>
    %105 = vector.shape_cast %104 : vector<128xf32> to vector<128x1xf32>
    %cst_32 = arith.constant 3.200000e+01 : f32
    %106 = vector.broadcast %cst_32 : f32 to vector<128x1xf32>
    %107 = arith.divf %105, %106 : vector<128x1xf32>
    %108 = vector.broadcast %100 : vector<128x1xf32> to vector<128x32xf32>
    %109 = arith.subf %96, %108 : vector<128x32xf32>
    %cst_33 = arith.constant 9.99999974E-6 : f32
    %110 = vector.broadcast %cst_33 : f32 to vector<128x1xf32>
    %111 = arith.addf %107, %110 : vector<128x1xf32>
    %112 = math.rsqrt %111 : vector<128x1xf32>
    %113 = vector.broadcast %112 : vector<128x1xf32> to vector<128x32xf32>
    %114 = arith.mulf %109, %113 : vector<128x32xf32>
    %115 = vector.broadcast %26 : vector<1x32xf32> to vector<128x32xf32>
    %116 = arith.mulf %114, %115 : vector<128x32xf32>
    %117 = vector.broadcast %27 : vector<1x32xf32> to vector<128x32xf32>
    %118 = arith.addf %116, %117 : vector<128x32xf32>
    %119 = arith.truncf %118 : vector<128x32xf32> to vector<128x32xbf16>
    %c0_34 = arith.constant 0 : index
    %c0_35 = arith.constant 0 : index
    %c0_36 = arith.constant 0 : index
    %120 = vector.load %arg6[%c0_34, %c0_35, %c0_36] : memref<2x32x128xbf16, #tpu.memory_space<vmem>>, vector<1x32x128xbf16>
    %121 = vector.shape_cast %120 : vector<1x32x128xbf16> to vector<32x128xbf16>
    %cst_37 = arith.constant dense<0.000000e+00> : vector<128x128xf32>
    %122 = tpu.matmul %119, %121, %cst_37 {dimension_numbers = #tpu.dot_dimension_numbers<[1], [0], [0], [1], [0, 0, 1, 1], [], []>} : vector<128x32xbf16>, vector<32x128xbf16>, vector<128x128xf32> -> vector<128x128xf32>
    %123 = vector.broadcast %30 : vector<1x128xf32> to vector<128x128xf32>
    %124 = arith.addf %122, %123 : vector<128x128xf32>
    %cst_38 = arith.constant 0.000000e+00 : f32
    %125 = vector.broadcast %cst_38 : f32 to vector<128x128xf32>
    %126 = arith.maximumf %124, %125 : vector<128x128xf32>
    %127 = arith.truncf %126 : vector<128x128xf32> to vector<128x128xbf16>
    %c0_39 = arith.constant 0 : index
    %c0_40 = arith.constant 0 : index
    %c0_41 = arith.constant 0 : index
    %128 = vector.load %arg7[%c0_39, %c0_40, %c0_41] : memref<2x128x32xbf16, #tpu.memory_space<vmem>>, vector<1x128x32xbf16>
    %129 = vector.shape_cast %128 : vector<1x128x32xbf16> to vector<128x32xbf16>
    %cst_42 = arith.constant dense<0.000000e+00> : vector<128x32xf32>
    %130 = tpu.matmul %127, %129, %cst_42 {dimension_numbers = #tpu.dot_dimension_numbers<[1], [0], [0], [1], [0, 0, 1, 1], [], []>} : vector<128x128xbf16>, vector<128x32xbf16>, vector<128x32xf32> -> vector<128x32xf32>
    %131 = vector.broadcast %31 : vector<1x32xf32> to vector<128x32xf32>
    %132 = arith.addf %130, %131 : vector<128x32xf32>
    %133 = arith.addf %118, %132 : vector<128x32xf32>
    %cst_43 = arith.constant dense<0.000000e+00> : vector<128xf32>
    %134 = vector.multi_reduction <add>, %133, %cst_43 [1] : vector<128x32xf32> to vector<128xf32>
    %135 = vector.shape_cast %134 : vector<128xf32> to vector<128x1xf32>
    %cst_44 = arith.constant 3.200000e+01 : f32
    %136 = vector.broadcast %cst_44 : f32 to vector<128x1xf32>
    %137 = arith.divf %135, %136 : vector<128x1xf32>
    %138 = vector.broadcast %137 : vector<128x1xf32> to vector<128x32xf32>
    %139 = arith.subf %133, %138 : vector<128x32xf32>
    %140 = arith.mulf %139, %139 : vector<128x32xf32>
    %cst_45 = arith.constant dense<0.000000e+00> : vector<128xf32>
    %141 = vector.multi_reduction <add>, %140, %cst_45 [1] : vector<128x32xf32> to vector<128xf32>
    %142 = vector.shape_cast %141 : vector<128xf32> to vector<128x1xf32>
    %cst_46 = arith.constant 3.200000e+01 : f32
    %143 = vector.broadcast %cst_46 : f32 to vector<128x1xf32>
    %144 = arith.divf %142, %143 : vector<128x1xf32>
    %145 = vector.broadcast %137 : vector<128x1xf32> to vector<128x32xf32>
    %146 = arith.subf %133, %145 : vector<128x32xf32>
    %cst_47 = arith.constant 9.99999974E-6 : f32
    %147 = vector.broadcast %cst_47 : f32 to vector<128x1xf32>
    %148 = arith.addf %144, %147 : vector<128x1xf32>
    %149 = math.rsqrt %148 : vector<128x1xf32>
    %150 = vector.broadcast %149 : vector<128x1xf32> to vector<128x32xf32>
    %151 = arith.mulf %146, %150 : vector<128x32xf32>
    %152 = vector.broadcast %28 : vector<1x32xf32> to vector<128x32xf32>
    %153 = arith.mulf %151, %152 : vector<128x32xf32>
    %154 = vector.broadcast %29 : vector<1x32xf32> to vector<128x32xf32>
    %155 = arith.addf %153, %154 : vector<128x32xf32>
    %c1 = arith.constant 1 : index
    %c0_48 = arith.constant 0 : index
    %c0_49 = arith.constant 0 : index
    %156 = vector.load %arg8[%c1, %c0_48, %c0_49] : memref<2x8x128xf32, #tpu.memory_space<vmem>>, vector<1x8x128xf32>
    %157 = vector.shape_cast %156 : vector<1x8x128xf32> to vector<8x128xf32>
    %158 = vector.extract_strided_slice %157 {offsets = [0, 0], sizes = [1, 96], strides = [1, 1]} : vector<8x128xf32> to vector<1x96xf32>
    %159 = vector.extract_strided_slice %157 {offsets = [1, 0], sizes = [1, 32], strides = [1, 1]} : vector<8x128xf32> to vector<1x32xf32>
    %160 = vector.extract_strided_slice %157 {offsets = [2, 0], sizes = [1, 32], strides = [1, 1]} : vector<8x128xf32> to vector<1x32xf32>
    %161 = vector.extract_strided_slice %157 {offsets = [3, 0], sizes = [1, 32], strides = [1, 1]} : vector<8x128xf32> to vector<1x32xf32>
    %162 = vector.extract_strided_slice %157 {offsets = [4, 0], sizes = [1, 32], strides = [1, 1]} : vector<8x128xf32> to vector<1x32xf32>
    %163 = vector.extract_strided_slice %157 {offsets = [5, 0], sizes = [1, 32], strides = [1, 1]} : vector<8x128xf32> to vector<1x32xf32>
    %164 = vector.extract_strided_slice %157 {offsets = [6, 0], sizes = [1, 128], strides = [1, 1]} : vector<8x128xf32> to vector<1x128xf32>
    %165 = vector.extract_strided_slice %157 {offsets = [7, 0], sizes = [1, 32], strides = [1, 1]} : vector<8x128xf32> to vector<1x32xf32>
    %166 = arith.truncf %155 : vector<128x32xf32> to vector<128x32xbf16>
    %c1_50 = arith.constant 1 : index
    %c0_51 = arith.constant 0 : index
    %c0_52 = arith.constant 0 : index
    %167 = vector.load %arg4[%c1_50, %c0_51, %c0_52] : memref<2x32x96xbf16, #tpu.memory_space<vmem>>, vector<1x32x96xbf16>
    %168 = vector.shape_cast %167 : vector<1x32x96xbf16> to vector<32x96xbf16>
    %cst_53 = arith.constant dense<0.000000e+00> : vector<128x96xf32>
    %169 = tpu.matmul %166, %168, %cst_53 {dimension_numbers = #tpu.dot_dimension_numbers<[1], [0], [0], [1], [0, 0, 1, 1], [], []>} : vector<128x32xbf16>, vector<32x96xbf16>, vector<128x96xf32> -> vector<128x96xf32>
    %170 = vector.broadcast %158 : vector<1x96xf32> to vector<128x96xf32>
    %171 = arith.addf %169, %170 : vector<128x96xf32>
    %172 = vector.shape_cast %171 : vector<128x96xf32> to vector<16x8x96xf32>
    %173 = vector.extract_strided_slice %172 {offsets = [0, 0, 0], sizes = [16, 8, 16], strides = [1, 1, 1]} : vector<16x8x96xf32> to vector<16x8x16xf32>
    %174 = arith.truncf %173 : vector<16x8x16xf32> to vector<16x8x16xbf16>
    %175 = vector.extract_strided_slice %172 {offsets = [0, 0, 32], sizes = [16, 8, 16], strides = [1, 1, 1]} : vector<16x8x96xf32> to vector<16x8x16xf32>
    %176 = arith.truncf %175 : vector<16x8x16xf32> to vector<16x8x16xbf16>
    %177 = vector.extract_strided_slice %172 {offsets = [0, 0, 64], sizes = [16, 8, 16], strides = [1, 1, 1]} : vector<16x8x96xf32> to vector<16x8x16xf32>
    %178 = arith.truncf %177 : vector<16x8x16xf32> to vector<16x8x16xbf16>
    "tpu.trace_start"() <{level = 10 : i32, message = "btk,bsk->bts"}> : () -> ()
    %cst_54 = arith.constant dense<0.000000e+00> : vector<16x8x8xf32>
    %179 = tpu.matmul %174, %176, %cst_54 {dimension_numbers = #tpu.dot_dimension_numbers<[2], [2], [1], [1], [0, 0, 0, 1, 1, 1], [0], [0]>} : vector<16x8x16xbf16>, vector<16x8x16xbf16>, vector<16x8x8xf32> -> vector<16x8x8xf32>
    "tpu.trace_stop"() : () -> ()
    %cst_55 = arith.constant 2.500000e-01 : f32
    %180 = vector.broadcast %cst_55 : f32 to vector<16x8x8xf32>
    %181 = arith.mulf %179, %180 : vector<16x8x8xf32>
    %182 = vector.shape_cast %21 : vector<8x8xf32> to vector<1x8x8xf32>
    %183 = vector.broadcast %182 : vector<1x8x8xf32> to vector<16x8x8xf32>
    %184 = arith.addf %181, %183 : vector<16x8x8xf32>
    %cst_56 = arith.constant dense<0xFF800000> : vector<16x8xf32>
    %185 = vector.multi_reduction <maximumf>, %184, %cst_56 [2] : vector<16x8x8xf32> to vector<16x8xf32>
    %186 = vector.shape_cast %185 : vector<16x8xf32> to vector<16x8x1xf32>
    %187 = vector.broadcast %186 : vector<16x8x1xf32> to vector<16x8x8xf32>
    %188 = arith.subf %184, %187 : vector<16x8x8xf32>
    %189 = math.exp %188 : vector<16x8x8xf32>
    %cst_57 = arith.constant dense<0.000000e+00> : vector<16x8xf32>
    %190 = vector.multi_reduction <add>, %189, %cst_57 [2] : vector<16x8x8xf32> to vector<16x8xf32>
    %191 = vector.shape_cast %190 : vector<16x8xf32> to vector<16x8x1xf32>
    %192 = tpu.reciprocal %191 {approx = true} : vector<16x8x1xf32> -> vector<16x8x1xf32>
    %193 = vector.broadcast %192 : vector<16x8x1xf32> to vector<16x8x8xf32>
    %194 = arith.mulf %189, %193 : vector<16x8x8xf32>
    %195 = arith.truncf %194 : vector<16x8x8xf32> to vector<16x8x8xbf16>
    "tpu.trace_start"() <{level = 10 : i32, message = "bts,bsk->btk"}> : () -> ()
    %cst_58 = arith.constant dense<0.000000e+00> : vector<16x8x16xf32>
    %196 = tpu.matmul %195, %178, %cst_58 {dimension_numbers = #tpu.dot_dimension_numbers<[2], [1], [1], [2], [0, 0, 0, 1, 1, 2], [0], [0]>} : vector<16x8x8xbf16>, vector<16x8x16xbf16>, vector<16x8x16xf32> -> vector<16x8x16xf32>
    "tpu.trace_stop"() : () -> ()
    %197 = vector.shape_cast %196 : vector<16x8x16xf32> to vector<128x16xf32>
    %198 = vector.extract_strided_slice %172 {offsets = [0, 0, 16], sizes = [16, 8, 16], strides = [1, 1, 1]} : vector<16x8x96xf32> to vector<16x8x16xf32>
    %199 = arith.truncf %198 : vector<16x8x16xf32> to vector<16x8x16xbf16>
    %200 = vector.extract_strided_slice %172 {offsets = [0, 0, 48], sizes = [16, 8, 16], strides = [1, 1, 1]} : vector<16x8x96xf32> to vector<16x8x16xf32>
    %201 = arith.truncf %200 : vector<16x8x16xf32> to vector<16x8x16xbf16>
    %202 = vector.extract_strided_slice %172 {offsets = [0, 0, 80], sizes = [16, 8, 16], strides = [1, 1, 1]} : vector<16x8x96xf32> to vector<16x8x16xf32>
    %203 = arith.truncf %202 : vector<16x8x16xf32> to vector<16x8x16xbf16>
    "tpu.trace_start"() <{level = 10 : i32, message = "btk,bsk->bts"}> : () -> ()
    %cst_59 = arith.constant dense<0.000000e+00> : vector<16x8x8xf32>
    %204 = tpu.matmul %199, %201, %cst_59 {dimension_numbers = #tpu.dot_dimension_numbers<[2], [2], [1], [1], [0, 0, 0, 1, 1, 1], [0], [0]>} : vector<16x8x16xbf16>, vector<16x8x16xbf16>, vector<16x8x8xf32> -> vector<16x8x8xf32>
    "tpu.trace_stop"() : () -> ()
    %cst_60 = arith.constant 2.500000e-01 : f32
    %205 = vector.broadcast %cst_60 : f32 to vector<16x8x8xf32>
    %206 = arith.mulf %204, %205 : vector<16x8x8xf32>
    %207 = vector.shape_cast %21 : vector<8x8xf32> to vector<1x8x8xf32>
    %208 = vector.broadcast %207 : vector<1x8x8xf32> to vector<16x8x8xf32>
    %209 = arith.addf %206, %208 : vector<16x8x8xf32>
    %cst_61 = arith.constant dense<0xFF800000> : vector<16x8xf32>
    %210 = vector.multi_reduction <maximumf>, %209, %cst_61 [2] : vector<16x8x8xf32> to vector<16x8xf32>
    %211 = vector.shape_cast %210 : vector<16x8xf32> to vector<16x8x1xf32>
    %212 = vector.broadcast %211 : vector<16x8x1xf32> to vector<16x8x8xf32>
    %213 = arith.subf %209, %212 : vector<16x8x8xf32>
    %214 = math.exp %213 : vector<16x8x8xf32>
    %cst_62 = arith.constant dense<0.000000e+00> : vector<16x8xf32>
    %215 = vector.multi_reduction <add>, %214, %cst_62 [2] : vector<16x8x8xf32> to vector<16x8xf32>
    %216 = vector.shape_cast %215 : vector<16x8xf32> to vector<16x8x1xf32>
    %217 = tpu.reciprocal %216 {approx = true} : vector<16x8x1xf32> -> vector<16x8x1xf32>
    %218 = vector.broadcast %217 : vector<16x8x1xf32> to vector<16x8x8xf32>
    %219 = arith.mulf %214, %218 : vector<16x8x8xf32>
    %220 = arith.truncf %219 : vector<16x8x8xf32> to vector<16x8x8xbf16>
    "tpu.trace_start"() <{level = 10 : i32, message = "bts,bsk->btk"}> : () -> ()
    %cst_63 = arith.constant dense<0.000000e+00> : vector<16x8x16xf32>
    %221 = tpu.matmul %220, %203, %cst_63 {dimension_numbers = #tpu.dot_dimension_numbers<[2], [1], [1], [2], [0, 0, 0, 1, 1, 2], [0], [0]>} : vector<16x8x8xbf16>, vector<16x8x16xbf16>, vector<16x8x16xf32> -> vector<16x8x16xf32>
    "tpu.trace_stop"() : () -> ()
    %222 = vector.shape_cast %221 : vector<16x8x16xf32> to vector<128x16xf32>
    %223 = tpu.concatenate %197, %222 in 1 : vector<128x16xf32>, vector<128x16xf32> -> vector<128x32xf32>
    %224 = arith.truncf %223 : vector<128x32xf32> to vector<128x32xbf16>
    %c1_64 = arith.constant 1 : index
    %c0_65 = arith.constant 0 : index
    %c0_66 = arith.constant 0 : index
    %225 = vector.load %arg5[%c1_64, %c0_65, %c0_66] : memref<2x32x32xbf16, #tpu.memory_space<vmem>>, vector<1x32x32xbf16>
    %226 = vector.shape_cast %225 : vector<1x32x32xbf16> to vector<32x32xbf16>
    %cst_67 = arith.constant dense<0.000000e+00> : vector<128x32xf32>
    %227 = tpu.matmul %224, %226, %cst_67 {dimension_numbers = #tpu.dot_dimension_numbers<[1], [0], [0], [1], [0, 0, 1, 1], [], []>} : vector<128x32xbf16>, vector<32x32xbf16>, vector<128x32xf32> -> vector<128x32xf32>
    %228 = vector.broadcast %159 : vector<1x32xf32> to vector<128x32xf32>
    %229 = arith.addf %227, %228 : vector<128x32xf32>
    %230 = arith.addf %155, %229 : vector<128x32xf32>
    %cst_68 = arith.constant dense<0.000000e+00> : vector<128xf32>
    %231 = vector.multi_reduction <add>, %230, %cst_68 [1] : vector<128x32xf32> to vector<128xf32>
    %232 = vector.shape_cast %231 : vector<128xf32> to vector<128x1xf32>
    %cst_69 = arith.constant 3.200000e+01 : f32
    %233 = vector.broadcast %cst_69 : f32 to vector<128x1xf32>
    %234 = arith.divf %232, %233 : vector<128x1xf32>
    %235 = vector.broadcast %234 : vector<128x1xf32> to vector<128x32xf32>
    %236 = arith.subf %230, %235 : vector<128x32xf32>
    %237 = arith.mulf %236, %236 : vector<128x32xf32>
    %cst_70 = arith.constant dense<0.000000e+00> : vector<128xf32>
    %238 = vector.multi_reduction <add>, %237, %cst_70 [1] : vector<128x32xf32> to vector<128xf32>
    %239 = vector.shape_cast %238 : vector<128xf32> to vector<128x1xf32>
    %cst_71 = arith.constant 3.200000e+01 : f32
    %240 = vector.broadcast %cst_71 : f32 to vector<128x1xf32>
    %241 = arith.divf %239, %240 : vector<128x1xf32>
    %242 = vector.broadcast %234 : vector<128x1xf32> to vector<128x32xf32>
    %243 = arith.subf %230, %242 : vector<128x32xf32>
    %cst_72 = arith.constant 9.99999974E-6 : f32
    %244 = vector.broadcast %cst_72 : f32 to vector<128x1xf32>
    %245 = arith.addf %241, %244 : vector<128x1xf32>
    %246 = math.rsqrt %245 : vector<128x1xf32>
    %247 = vector.broadcast %246 : vector<128x1xf32> to vector<128x32xf32>
    %248 = arith.mulf %243, %247 : vector<128x32xf32>
    %249 = vector.broadcast %160 : vector<1x32xf32> to vector<128x32xf32>
    %250 = arith.mulf %248, %249 : vector<128x32xf32>
    %251 = vector.broadcast %161 : vector<1x32xf32> to vector<128x32xf32>
    %252 = arith.addf %250, %251 : vector<128x32xf32>
    %253 = arith.truncf %252 : vector<128x32xf32> to vector<128x32xbf16>
    %c1_73 = arith.constant 1 : index
    %c0_74 = arith.constant 0 : index
    %c0_75 = arith.constant 0 : index
    %254 = vector.load %arg6[%c1_73, %c0_74, %c0_75] : memref<2x32x128xbf16, #tpu.memory_space<vmem>>, vector<1x32x128xbf16>
    %255 = vector.shape_cast %254 : vector<1x32x128xbf16> to vector<32x128xbf16>
    %cst_76 = arith.constant dense<0.000000e+00> : vector<128x128xf32>
    %256 = tpu.matmul %253, %255, %cst_76 {dimension_numbers = #tpu.dot_dimension_numbers<[1], [0], [0], [1], [0, 0, 1, 1], [], []>} : vector<128x32xbf16>, vector<32x128xbf16>, vector<128x128xf32> -> vector<128x128xf32>
    %257 = vector.broadcast %164 : vector<1x128xf32> to vector<128x128xf32>
    %258 = arith.addf %256, %257 : vector<128x128xf32>
    %cst_77 = arith.constant 0.000000e+00 : f32
    %259 = vector.broadcast %cst_77 : f32 to vector<128x128xf32>
    %260 = arith.maximumf %258, %259 : vector<128x128xf32>
    %261 = arith.truncf %260 : vector<128x128xf32> to vector<128x128xbf16>
    %c1_78 = arith.constant 1 : index
    %c0_79 = arith.constant 0 : index
    %c0_80 = arith.constant 0 : index
    %262 = vector.load %arg7[%c1_78, %c0_79, %c0_80] : memref<2x128x32xbf16, #tpu.memory_space<vmem>>, vector<1x128x32xbf16>
    %263 = vector.shape_cast %262 : vector<1x128x32xbf16> to vector<128x32xbf16>
    %cst_81 = arith.constant dense<0.000000e+00> : vector<128x32xf32>
    %264 = tpu.matmul %261, %263, %cst_81 {dimension_numbers = #tpu.dot_dimension_numbers<[1], [0], [0], [1], [0, 0, 1, 1], [], []>} : vector<128x128xbf16>, vector<128x32xbf16>, vector<128x32xf32> -> vector<128x32xf32>
    %265 = vector.broadcast %165 : vector<1x32xf32> to vector<128x32xf32>
    %266 = arith.addf %264, %265 : vector<128x32xf32>
    %267 = arith.addf %252, %266 : vector<128x32xf32>
    %cst_82 = arith.constant dense<0.000000e+00> : vector<128xf32>
    %268 = vector.multi_reduction <add>, %267, %cst_82 [1] : vector<128x32xf32> to vector<128xf32>
    %269 = vector.shape_cast %268 : vector<128xf32> to vector<128x1xf32>
    %cst_83 = arith.constant 3.200000e+01 : f32
    %270 = vector.broadcast %cst_83 : f32 to vector<128x1xf32>
    %271 = arith.divf %269, %270 : vector<128x1xf32>
    %272 = vector.broadcast %271 : vector<128x1xf32> to vector<128x32xf32>
    %273 = arith.subf %267, %272 : vector<128x32xf32>
    %274 = arith.mulf %273, %273 : vector<128x32xf32>
    %cst_84 = arith.constant dense<0.000000e+00> : vector<128xf32>
    %275 = vector.multi_reduction <add>, %274, %cst_84 [1] : vector<128x32xf32> to vector<128xf32>
    %276 = vector.shape_cast %275 : vector<128xf32> to vector<128x1xf32>
    %cst_85 = arith.constant 3.200000e+01 : f32
    %277 = vector.broadcast %cst_85 : f32 to vector<128x1xf32>
    %278 = arith.divf %276, %277 : vector<128x1xf32>
    %279 = vector.broadcast %271 : vector<128x1xf32> to vector<128x32xf32>
    %280 = arith.subf %267, %279 : vector<128x32xf32>
    %cst_86 = arith.constant 9.99999974E-6 : f32
    %281 = vector.broadcast %cst_86 : f32 to vector<128x1xf32>
    %282 = arith.addf %278, %281 : vector<128x1xf32>
    %283 = math.rsqrt %282 : vector<128x1xf32>
    %284 = vector.broadcast %283 : vector<128x1xf32> to vector<128x32xf32>
    %285 = arith.mulf %280, %284 : vector<128x32xf32>
    %286 = vector.broadcast %162 : vector<1x32xf32> to vector<128x32xf32>
    %287 = arith.mulf %285, %286 : vector<128x32xf32>
    %288 = vector.broadcast %163 : vector<1x32xf32> to vector<128x32xf32>
    %289 = arith.addf %287, %288 : vector<128x32xf32>
    %290 = arith.truncf %289 : vector<128x32xf32> to vector<128x32xbf16>
    %c0_87 = arith.constant 0 : index
    %c0_88 = arith.constant 0 : index
    %291 = vector.load %arg9[%c0_87, %c0_88] : memref<32x128xbf16, #tpu.memory_space<vmem>>, vector<32x128xbf16>
    %cst_89 = arith.constant dense<0.000000e+00> : vector<128x128xf32>
    %292 = tpu.matmul %290, %291, %cst_89 {dimension_numbers = #tpu.dot_dimension_numbers<[1], [0], [0], [1], [0, 0, 1, 1], [], []>} : vector<128x32xbf16>, vector<32x128xbf16>, vector<128x128xf32> -> vector<128x128xf32>
    %c0_90 = arith.constant 0 : index
    %c0_91 = arith.constant 0 : index
    %293 = vector.load %arg10[%c0_90, %c0_91] : memref<1x128xf32, #tpu.memory_space<vmem>>, vector<1x128xf32>
    %294 = vector.broadcast %293 : vector<1x128xf32> to vector<128x128xf32>
    %295 = arith.addf %292, %294 : vector<128x128xf32>
    %cst_92 = arith.constant dense<0xFF800000> : vector<128xf32>
    %296 = vector.multi_reduction <maximumf>, %295, %cst_92 [1] : vector<128x128xf32> to vector<128xf32>
    %297 = vector.shape_cast %296 : vector<128xf32> to vector<128x1xf32>
    %298 = vector.broadcast %297 : vector<128x1xf32> to vector<128x128xf32>
    %299 = arith.subf %295, %298 : vector<128x128xf32>
    %300 = math.exp %299 : vector<128x128xf32>
    %cst_93 = arith.constant dense<0.000000e+00> : vector<128xf32>
    %301 = vector.multi_reduction <add>, %300, %cst_93 [1] : vector<128x128xf32> to vector<128xf32>
    %302 = vector.shape_cast %301 : vector<128xf32> to vector<128x1xf32>
    %303 = math.log %302 : vector<128x1xf32>
    %304 = arith.addf %297, %303 : vector<128x1xf32>
    %305 = vector.broadcast %304 : vector<128x1xf32> to vector<128x128xf32>
    %306 = arith.subf %295, %305 : vector<128x128xf32>
    %c0_94 = arith.constant 0 : index
    %c0_95 = arith.constant 0 : index
    %c0_96 = arith.constant 0 : index
    %307 = vector.load %arg11[%c0_94, %c0_95, %c0_96] : memref<1x128x128xf32, #tpu.memory_space<vmem>>, vector<1x128x128xf32>
    %308 = vector.shape_cast %307 : vector<1x128x128xf32> to vector<128x128xf32>
    %309 = vector.shape_cast %306 : vector<128x128xf32> to vector<1x128x128xf32>
    tpu.vector_store %arg11[%c0_94, %c0_95, %c0_96], %309 {strides = array<i32>} : memref<1x128x128xf32, #tpu.memory_space<vmem>>, vector<1x128x128xf32>,
    return
  }
  func.func @transform_0(%arg0: i32) -> (i32, i32, i32) {
    %c0_i32 = arith.constant 0 : i32
    %c0_i32_0 = arith.constant 0 : i32
    %c0_i32_1 = arith.constant 0 : i32
    return %arg0, %c0_i32, %c0_i32_0 : i32, i32, i32
  }
  func.func @transform_1(%arg0: i32) -> (i32, i32) {
    %c0_i32 = arith.constant 0 : i32
    %c0_i32_0 = arith.constant 0 : i32
    %c0_i32_1 = arith.constant 0 : i32
    return %c0_i32, %c0_i32_0 : i32, i32
  }
  func.func @transform_2(%arg0: i32) -> (i32, i32) {
    %c0_i32 = arith.constant 0 : i32
    %c0_i32_0 = arith.constant 0 : i32
    %c0_i32_1 = arith.constant 0 : i32
    return %c0_i32, %c0_i32_0 : i32, i32
  }
  func.func @transform_3(%arg0: i32) -> (i32, i32, i32) {
    %c0_i32 = arith.constant 0 : i32
    %c0_i32_0 = arith.constant 0 : i32
    %c0_i32_1 = arith.constant 0 : i32
    %c0_i32_2 = arith.constant 0 : i32
    return %c0_i32, %c0_i32_0, %c0_i32_1 : i32, i32, i32
  }
  func.func @transform_4(%arg0: i32) -> (i32, i32, i32) {
    %c0_i32 = arith.constant 0 : i32
    %c0_i32_0 = arith.constant 0 : i32
    %c0_i32_1 = arith.constant 0 : i32
    %c0_i32_2 = arith.constant 0 : i32
    return %c0_i32, %c0_i32_0, %c0_i32_1 : i32, i32, i32
  }
  func.func @transform_5(%arg0: i32) -> (i32, i32, i32) {
    %c0_i32 = arith.constant 0 : i32
    %c0_i32_0 = arith.constant 0 : i32
    %c0_i32_1 = arith.constant 0 : i32
    %c0_i32_2 = arith.constant 0 : i32
    return %c0_i32, %c0_i32_0, %c0_i32_1 : i32, i32, i32
  }
  func.func @transform_6(%arg0: i32) -> (i32, i32, i32) {
    %c0_i32 = arith.constant 0 : i32
    %c0_i32_0 = arith.constant 0 : i32
    %c0_i32_1 = arith.constant 0 : i32
    %c0_i32_2 = arith.constant 0 : i32
    return %c0_i32, %c0_i32_0, %c0_i32_1 : i32, i32, i32
  }
  func.func @transform_7(%arg0: i32) -> (i32, i32, i32) {
    %c0_i32 = arith.constant 0 : i32
    %c0_i32_0 = arith.constant 0 : i32
    %c0_i32_1 = arith.constant 0 : i32
    %c0_i32_2 = arith.constant 0 : i32
    return %c0_i32, %c0_i32_0, %c0_i32_1 : i32, i32, i32
  }
  func.func @transform_8(%arg0: i32) -> (i32, i32) {
    %c0_i32 = arith.constant 0 : i32
    %c0_i32_0 = arith.constant 0 : i32
    %c0_i32_1 = arith.constant 0 : i32
    return %c0_i32, %c0_i32_0 : i32, i32
  }
  func.func @transform_9(%arg0: i32) -> (i32, i32) {
    %c0_i32 = arith.constant 0 : i32
    %c0_i32_0 = arith.constant 0 : i32
    %c0_i32_1 = arith.constant 0 : i32
    return %c0_i32, %c0_i32_0 : i32, i32
  }
  func.func @transform_10(%arg0: i32) -> (i32, i32, i32) {
    %c0_i32 = arith.constant 0 : i32
    %c0_i32_0 = arith.constant 0 : i32
    %c0_i32_1 = arith.constant 0 : i32
    return %arg0, %c0_i32, %c0_i32_0 : i32, i32, i32
  }
}

</mosaic_0001>

<llo_original>
// kernel: tpu_custom_call.1
$region0: #{tpu_custom_call.1}
  #allocation0 [shape = 'u32[]', space=smem, size = 0x4, offset = 0x4, fixed_abs, tag = 'smem constant byte address 0x4 - core index']
  #allocation1 [shape = 'u32[144,128]{1,0:T(1,128)}', space=vmem, size = 0x12000, scoped, tag = 'internal scratch']
  %s0 = inlined_call_operand.vmem [shape: s32[2,128,1], index: 0, kind: input, shape index: {}]
  %s1 = inlined_call_operand.vmem [shape: bf16[128,32], index: 1, kind: input, shape index: {}]
  %s2 = inlined_call_operand.vmem [shape: f32[8,32], index: 2, kind: input, shape index: {}]
  %s3 = inlined_call_operand.vmem [shape: bf16[2,32,96], index: 3, kind: input, shape index: {}]
  %s4 = inlined_call_operand.vmem [shape: bf16[2,32,32], index: 4, kind: input, shape index: {}]
  %s5 = inlined_call_operand.vmem [shape: bf16[2,32,128], index: 5, kind: input, shape index: {}]
  %s6 = inlined_call_operand.vmem [shape: bf16[2,128,32], index: 6, kind: input, shape index: {}]
  %s7 = inlined_call_operand.vmem [shape: f32[2,8,128], index: 7, kind: input, shape index: {}]
  %s8 = inlined_call_operand.vmem [shape: bf16[32,128], index: 8, kind: input, shape index: {}]
  %s9 = inlined_call_operand.vmem [shape: f32[1,128], index: 9, kind: input, shape index: {}]
  %s10 = inlined_call_operand.hbm [shape: f32[2,128,128], index: 10, kind: output, shape index: {}]
  %s11 = sld [smem:[#allocation0]]
  $region73: #{tpu_custom_call.1} parent=0
    _
  %s13 = ssub.s32 1, %s11
  %s14 = scalar_select 0, %s13, %s11
  $region1: #{tpu_custom_call.1} parent=0
    #allocation2 [shape = 'u8[131072]{0}', space=vmem, size = 0x20000, scoped, tag = 'output window, operand 0']
    #allocation3 [shape = 's32[2]{0}', space=sflag, size = 0x8, scoped, tag = 'scoped memory for tpu_custom_call.1']
    %15 = vsyncpa [#allocation3], 0
    %s16 = scalar_lea.sflag [#allocation3], 1
    %17 = vsyncpa %s16, 0
    loop: start=0, step=1, limit=4
    $region2: #{tpu_custom_call.1} parent=1 // loop_pre_header
      _
    $region3: #{tpu_custom_call.1} parent=1 // loop_header
      %s19 = sphi 0, %s23
      %p20 = scmp.ge.s32.totalorder %s19, 4
      %s29 = sphi 0, %s31
      %s32 = sphi 0, %s29
      %s33 = sphi 0, %s32
      %s49 = sphi 0, %s33
      %s53 = sphi 0, %s53
      %s55 = sphi 0, %s53
      %s56 = sphi 0, %s55
      %s70 = sphi 0, %s56
      %s74 = sphi 0, %s74
      %s76 = sphi 0, %s74
      %s77 = sphi 0, %s76
      %s91 = sphi 0, %s77
      %s95 = sphi 0, %s95
      %s97 = sphi 0, %s95
      %s98 = sphi 0, %s97
      %s112 = sphi 0, %s98
      %s116 = sphi 0, %s116
      %s118 = sphi 0, %s116
      %s119 = sphi 0, %s118
      %s133 = sphi 0, %s119
      %s137 = sphi 0, %s137
      %s139 = sphi 0, %s137
      %s140 = sphi 0, %s139
      %s154 = sphi 0, %s140
      %s158 = sphi 0, %s158
      %s160 = sphi 0, %s158
      %s161 = sphi 0, %s160
      %s175 = sphi 0, %s161
      %s179 = sphi 0, %s179
      %s181 = sphi 0, %s179
      %s182 = sphi 0, %s181
      %s196 = sphi 0, %s182
      %s200 = sphi 0, %s200
      %s202 = sphi 0, %s200
      %s203 = sphi 0, %s202
      %s217 = sphi 0, %s203
      %s221 = sphi 0, %s221
      %s223 = sphi 0, %s221
      %s224 = sphi 0, %s223
      %s238 = sphi 0, %s224
      %s244 = sphi 0, %s246
      %s247 = sphi 0, %s244
      %s248 = sphi 0, %s247
      %s264 = sphi 0, %s248
    $region4: #{tpu_custom_call.1} parent=1 // loop_header_branch
      %22 = sbr.rel (%p20) target = $region8
    $region5: #{tpu_custom_call.1} parent=1 // loop_body
      %s24 = ssub.s32 %s19, 1
      %s25 = ssub.s32 %s19, 2
      %s26 = sadd.s32 %s19, 1
      %s27 = ssub.s32 %s19, %s26
      %p28 = scmp.eq.s32.totalorder %s27, 0
      %s30 = sadd.s32 %s29, 1
      %s31 = scalar_select %p28, %s29, %s30
      %p34 = pneg %p28
      %p35 = scmp.eq.s32.totalorder %s19, 1
      %p36 = por %p34, %p35
      %p37 = scmp.ne.s32.totalorder %s29, %s32
      %p38 = scmp.eq.s32.totalorder %s19, 0
      %p39 = por %p37, %p38
      %p40 = scmp.ne.s32.totalorder %s29, %s32
      %p41 = scmp.eq.s32.totalorder %s24, 1
      %p42 = por %p40, %p41
      %p43 = scmp.ne.s32.totalorder %s32, %s33
      %p44 = scmp.eq.s32.totalorder %s24, 0
      %p45 = por %p43, %p44
      %p46 = scmp.ne.s32.totalorder %s32, %s33
      %p47 = scmp.eq.s32.totalorder %s25, 1
      %p48 = por %p46, %p47
      %p50 = scmp.ne.s32.totalorder %s33, %s49
      %p51 = scmp.eq.s32.totalorder %s25, 0
      %p52 = por %p50, %p51
      %s54 = sadd.s32 %s53, 1
      %p57 = scmp.eq.s32.totalorder %s19, 1
      %p58 = scmp.ne.s32.totalorder %s53, %s55
      %p59 = scmp.eq.s32.totalorder %s19, 0
      %p60 = por %p58, %p59
      %p61 = scmp.ne.s32.totalorder %s53, %s55
      %p62 = scmp.eq.s32.totalorder %s24, 1
      %p63 = por %p61, %p62
      %p64 = scmp.ne.s32.totalorder %s55, %s56
      %p65 = scmp.eq.s32.totalorder %s24, 0
      %p66 = por %p64, %p65
      %p67 = scmp.ne.s32.totalorder %s55, %s56
      %p68 = scmp.eq.s32.totalorder %s25, 1
      %p69 = por %p67, %p68
      %p71 = scmp.ne.s32.totalorder %s56, %s70
      %p72 = scmp.eq.s32.totalorder %s25, 0
      %p73 = por %p71, %p72
      %s75 = sadd.s32 %s74, 1
      %p78 = scmp.eq.s32.totalorder %s19, 1
      %p79 = scmp.ne.s32.totalorder %s74, %s76
      %p80 = scmp.eq.s32.totalorder %s19, 0
      %p81 = por %p79, %p80
      %p82 = scmp.ne.s32.totalorder %s74, %s76
      %p83 = scmp.eq.s32.totalorder %s24, 1
      %p84 = por %p82, %p83
      %p85 = scmp.ne.s32.totalorder %s76, %s77
      %p86 = scmp.eq.s32.totalorder %s24, 0
      %p87 = por %p85, %p86
      %p88 = scmp.ne.s32.totalorder %s76, %s77
      %p89 = scmp.eq.s32.totalorder %s25, 1
      %p90 = por %p88, %p89
      %p92 = scmp.ne.s32.totalorder %s77, %s91
      %p93 = scmp.eq.s32.totalorder %s25, 0
      %p94 = por %p92, %p93
      %s96 = sadd.s32 %s95, 1
      %p99 = scmp.eq.s32.totalorder %s19, 1
      %p100 = scmp.ne.s32.totalorder %s95, %s97
      %p101 = scmp.eq.s32.totalorder %s19, 0
      %p102 = por %p100, %p101
      %p103 = scmp.ne.s32.totalorder %s95, %s97
      %p104 = scmp.eq.s32.totalorder %s24, 1
      %p105 = por %p103, %p104
      %p106 = scmp.ne.s32.totalorder %s97, %s98
      %p107 = scmp.eq.s32.totalorder %s24, 0
      %p108 = por %p106, %p107
      %p109 = scmp.ne.s32.totalorder %s97, %s98
      %p110 = scmp.eq.s32.totalorder %s25, 1
      %p111 = por %p109, %p110
      %p113 = scmp.ne.s32.totalorder %s98, %s112
      %p114 = scmp.eq.s32.totalorder %s25, 0
      %p115 = por %p113, %p114
      %s117 = sadd.s32 %s116, 1
      %p120 = scmp.eq.s32.totalorder %s19, 1
      %p121 = scmp.ne.s32.totalorder %s116, %s118
      %p122 = scmp.eq.s32.totalorder %s19, 0
      %p123 = por %p121, %p122
      %p124 = scmp.ne.s32.totalorder %s116, %s118
      %p125 = scmp.eq.s32.totalorder %s24, 1
      %p126 = por %p124, %p125
      %p127 = scmp.ne.s32.totalorder %s118, %s119
      %p128 = scmp.eq.s32.totalorder %s24, 0
      %p129 = por %p127, %p128
      %p130 = scmp.ne.s32.totalorder %s118, %s119
      %p131 = scmp.eq.s32.totalorder %s25, 1
      %p132 = por %p130, %p131
      %p134 = scmp.ne.s32.totalorder %s119, %s133
      %p135 = scmp.eq.s32.totalorder %s25, 0
      %p136 = por %p134, %p135
      %s138 = sadd.s32 %s137, 1
      %p141 = scmp.eq.s32.totalorder %s19, 1
      %p142 = scmp.ne.s32.totalorder %s137, %s139
      %p143 = scmp.eq.s32.totalorder %s19, 0
      %p144 = por %p142, %p143
      %p145 = scmp.ne.s32.totalorder %s137, %s139
      %p146 = scmp.eq.s32.totalorder %s24, 1
      %p147 = por %p145, %p146
      %p148 = scmp.ne.s32.totalorder %s139, %s140
      %p149 = scmp.eq.s32.totalorder %s24, 0
      %p150 = por %p148, %p149
      %p151 = scmp.ne.s32.totalorder %s139, %s140
      %p152 = scmp.eq.s32.totalorder %s25, 1
      %p153 = por %p151, %p152
      %p155 = scmp.ne.s32.totalorder %s140, %s154
      %p156 = scmp.eq.s32.totalorder %s25, 0
      %p157 = por %p155, %p156
      %s159 = sadd.s32 %s158, 1
      %p162 = scmp.eq.s32.totalorder %s19, 1
      %p163 = scmp.ne.s32.totalorder %s158, %s160
      %p164 = scmp.eq.s32.totalorder %s19, 0
      %p165 = por %p163, %p164
      %p166 = scmp.ne.s32.totalorder %s158, %s160
      %p167 = scmp.eq.s32.totalorder %s24, 1
      %p168 = por %p166, %p167
      %p169 = scmp.ne.s32.totalorder %s160, %s161
      %p170 = scmp.eq.s32.totalorder %s24, 0
      %p171 = por %p169, %p170
      %p172 = scmp.ne.s32.totalorder %s160, %s161
      %p173 = scmp.eq.s32.totalorder %s25, 1
      %p174 = por %p172, %p173
      %p176 = scmp.ne.s32.totalorder %s161, %s175
      %p177 = scmp.eq.s32.totalorder %s25, 0
      %p178 = por %p176, %p177
      %s180 = sadd.s32 %s179, 1
      %p183 = scmp.eq.s32.totalorder %s19, 1
      %p184 = scmp.ne.s32.totalorder %s179, %s181
      %p185 = scmp.eq.s32.totalorder %s19, 0
      %p186 = por %p184, %p185
      %p187 = scmp.ne.s32.totalorder %s179, %s181
      %p188 = scmp.eq.s32.totalorder %s24, 1
      %p189 = por %p187, %p188
      %p190 = scmp.ne.s32.totalorder %s181, %s182
      %p191 = scmp.eq.s32.totalorder %s24, 0
      %p192 = por %p190, %p191
      %p193 = scmp.ne.s32.totalorder %s181, %s182
      %p194 = scmp.eq.s32.totalorder %s25, 1
      %p195 = por %p193, %p194
      %p197 = scmp.ne.s32.totalorder %s182, %s196
      %p198 = scmp.eq.s32.totalorder %s25, 0
      %p199 = por %p197, %p198
      %s201 = sadd.s32 %s200, 1
      %p204 = scmp.eq.s32.totalorder %s19, 1
      %p205 = scmp.ne.s32.totalorder %s200, %s202
      %p206 = scmp.eq.s32.totalorder %s19, 0
      %p207 = por %p205, %p206
      %p208 = scmp.ne.s32.totalorder %s200, %s202
      %p209 = scmp.eq.s32.totalorder %s24, 1
      %p210 = por %p208, %p209
      %p211 = scmp.ne.s32.totalorder %s202, %s203
      %p212 = scmp.eq.s32.totalorder %s24, 0
      %p213 = por %p211, %p212
      %p214 = scmp.ne.s32.totalorder %s202, %s203
      %p215 = scmp.eq.s32.totalorder %s25, 1
      %p216 = por %p214, %p215
      %p218 = scmp.ne.s32.totalorder %s203, %s217
      %p219 = scmp.eq.s32.totalorder %s25, 0
      %p220 = por %p218, %p219
      %s222 = sadd.s32 %s221, 1
      %p225 = scmp.eq.s32.totalorder %s19, 1
      %p226 = scmp.ne.s32.totalorder %s221, %s223
      %p227 = scmp.eq.s32.totalorder %s19, 0
      %p228 = por %p226, %p227
      %p229 = scmp.ne.s32.totalorder %s221, %s223
      %p230 = scmp.eq.s32.totalorder %s24, 1
      %p231 = por %p229, %p230
      %p232 = scmp.ne.s32.totalorder %s223, %s224
      %p233 = scmp.eq.s32.totalorder %s24, 0
      %p234 = por %p232, %p233
      %p235 = scmp.ne.s32.totalorder %s223, %s224
      %p236 = scmp.eq.s32.totalorder %s25, 1
      %p237 = por %p235, %p236
      %p239 = scmp.ne.s32.totalorder %s224, %s238
      %p240 = scmp.eq.s32.totalorder %s25, 0
      %p241 = por %p239, %p240
      %s242 = ssub.s32 %s19, %s26
      %p243 = scmp.eq.s32.totalorder %s242, 0
      %s245 = sadd.s32 %s244, 1
      %s246 = scalar_select %p243, %s244, %s245
      %p249 = pneg %p243
      %p250 = scmp.eq.s32.totalorder %s19, 1
      %p251 = por %p249, %p250
      %p252 = scmp.ne.s32.totalorder %s244, %s247
      %p253 = scmp.eq.s32.totalorder %s19, 0
      %p254 = por %p252, %p253
      %p255 = scmp.ne.s32.totalorder %s244, %s247
      %p256 = scmp.eq.s32.totalorder %s24, 1
      %p257 = por %p255, %p256
      %p258 = scmp.ne.s32.totalorder %s247, %s248
      %p259 = scmp.eq.s32.totalorder %s24, 0
      %p260 = por %p258, %p259
      %p261 = scmp.ne.s32.totalorder %s247, %s248
      %p262 = scmp.eq.s32.totalorder %s25, 1
      %p263 = por %p261, %p262
      %p265 = scmp.ne.s32.totalorder %s248, %s264
      %p266 = scmp.eq.s32.totalorder %s25, 0
      %p267 = por %p265, %p266
      %p268 = scmp.le.s32.totalorder 1, %s19
      %p269 = scmp.lt.s32.totalorder %s19, 3
      %p270 = pnand %p268, %p269
      %p271 = pneg %p270
      // Predicated region
      $region9: #{tpu_custom_call.1} parent=5 // pred_check
        _
      $region10: #{tpu_custom_call.1} parent=5 // pred_check_branch
        %273 = sbr.rel (%p270) target = $region12
      $region11: #{tpu_custom_call.1} parent=5 // pred_region
        %s274 = ssub.s32 %s19, 1
        // Predicated region
        $region13: #{tpu_custom_call.1} parent=11 // pred_check
          %p275 = pneg %p66
        $region14: #{tpu_custom_call.1} parent=11 // pred_check_branch
          %277 = sbr.rel (%p275) target = $region16
        $region15: #{tpu_custom_call.1} parent=11 // pred_region
          _
        $region16: #{tpu_custom_call.1} parent=11 // pred_fallthru
          _
        // Predicated region
        $region17: #{tpu_custom_call.1} parent=11 // pred_check
          %p278 = pneg %p87
        $region18: #{tpu_custom_call.1} parent=11 // pred_check_branch
          %280 = sbr.rel (%p278) target = $region20
        $region19: #{tpu_custom_call.1} parent=11 // pred_region
          _
        $region20: #{tpu_custom_call.1} parent=11 // pred_fallthru
          _
        // Predicated region
        $region21: #{tpu_custom_call.1} parent=11 // pred_check
          %p281 = pneg %p108
        $region22: #{tpu_custom_call.1} parent=11 // pred_check_branch
          %283 = sbr.rel (%p281) target = $region24
        $region23: #{tpu_custom_call.1} parent=11 // pred_region
          _
        $region24: #{tpu_custom_call.1} parent=11 // pred_fallthru
          _
        // Predicated region
        $region25: #{tpu_custom_call.1} parent=11 // pred_check
          %p284 = pneg %p129
        $region26: #{tpu_custom_call.1} parent=11 // pred_check_branch
          %286 = sbr.rel (%p284) target = $region28
        $region27: #{tpu_custom_call.1} parent=11 // pred_region
          _
        $region28: #{tpu_custom_call.1} parent=11 // pred_fallthru
          _
        // Predicated region
        $region29: #{tpu_custom_call.1} parent=11 // pred_check
          %p287 = pneg %p150
        $region30: #{tpu_custom_call.1} parent=11 // pred_check_branch
          %289 = sbr.rel (%p287) target = $region32
        $region31: #{tpu_custom_call.1} parent=11 // pred_region
          _
        $region32: #{tpu_custom_call.1} parent=11 // pred_fallthru
          _
        // Predicated region
        $region33: #{tpu_custom_call.1} parent=11 // pred_check
          %p290 = pneg %p171
        $region34: #{tpu_custom_call.1} parent=11 // pred_check_branch
          %292 = sbr.rel (%p290) target = $region36
        $region35: #{tpu_custom_call.1} parent=11 // pred_region
          _
        $region36: #{tpu_custom_call.1} parent=11 // pred_fallthru
          _
        // Predicated region
        $region37: #{tpu_custom_call.1} parent=11 // pred_check
          %p293 = pneg %p192
        $region38: #{tpu_custom_call.1} parent=11 // pred_check_branch
          %295 = sbr.rel (%p293) target = $region40
        $region39: #{tpu_custom_call.1} parent=11 // pred_region
          _
        $region40: #{tpu_custom_call.1} parent=11 // pred_fallthru
          _
        // Predicated region
        $region41: #{tpu_custom_call.1} parent=11 // pred_check
          %p296 = pneg %p213
        $region42: #{tpu_custom_call.1} parent=11 // pred_check_branch
          %298 = sbr.rel (%p296) target = $region44
        $region43: #{tpu_custom_call.1} parent=11 // pred_region
          _
        $region44: #{tpu_custom_call.1} parent=11 // pred_fallthru
          _
        // Predicated region
        $region45: #{tpu_custom_call.1} parent=11 // pred_check
          %p299 = pneg %p234
        $region46: #{tpu_custom_call.1} parent=11 // pred_check_branch
          %301 = sbr.rel (%p299) target = $region48
        $region47: #{tpu_custom_call.1} parent=11 // pred_region
          _
        $region48: #{tpu_custom_call.1} parent=11 // pred_fallthru
          _
      $region12: #{tpu_custom_call.1} parent=5 // pred_fallthru
        _
      %p302 = scmp.lt.s32.totalorder %s19, 2
      // Predicated region
      $region49: #{tpu_custom_call.1} parent=5 // pred_check
        %p303 = pneg %p302
      $region50: #{tpu_custom_call.1} parent=5 // pred_check_branch
        %305 = sbr.rel (%p303) target = $region52
      $region51: #{tpu_custom_call.1} parent=5 // pred_region
        // Predicated region
        $region53: #{tpu_custom_call.1} parent=51 // pred_check
          %p306 = pneg %p39
        $region54: #{tpu_custom_call.1} parent=51 // pred_check_branch
          %308 = sbr.rel (%p306) target = $region56
        $region55: #{tpu_custom_call.1} parent=51 // pred_region
          %p309 = scmp.lt.s32.totalorder %s19, 1
          %s310 = scalar_select %p309, %s19, 1
          %s311 = smul.addr %s310, 16
          %s312 = smul.addr %s311, 8
          %s313 = scalar_lea.vmem %s0, %s312
        $region56: #{tpu_custom_call.1} parent=51 // pred_fallthru
          _
      $region52: #{tpu_custom_call.1} parent=5 // pred_fallthru
        _
      %p314 = scmp.le.s32.totalorder 1, %s19
      %p315 = scmp.lt.s32.totalorder %s19, 3
      %p316 = pnand %p314, %p315
      %p317 = pneg %p316
      // Predicated region
      $region57: #{tpu_custom_call.1} parent=5 // pred_check
        _
      $region58: #{tpu_custom_call.1} parent=5 // pred_check_branch
        %319 = sbr.rel (%p316) target = $region60
      $region59: #{tpu_custom_call.1} parent=5 // pred_region
        %s320 = ssub.s32 %s19, 1
        %p321 = scmp.lt.s32.totalorder %s24, 1
        %s322 = scalar_select %p321, %s24, 1
        %s323 = smul.addr %s322, 16
        %s324 = smul.addr %s323, 8
        %s325 = scalar_lea.vmem %s0, %s324
        %p326 = pneg %p45
        %p327 = pneg %p42
        %p328 = pneg %p66
        %p329 = pneg %p63
        %p330 = pneg %p87
        %p331 = pneg %p84
        %p332 = pneg %p108
        %p333 = pneg %p105
        %p334 = pneg %p129
        %p335 = pneg %p126
        %p336 = pneg %p150
        %p337 = pneg %p147
        %p338 = pneg %p171
        %p339 = pneg %p168
        %p340 = pneg %p192
        %p341 = pneg %p189
        %p342 = pneg %p213
        %p343 = pneg %p210
        %p344 = pneg %p234
        %p345 = pneg %p231
        %p346 = pneg %p260
        %p347 = pneg %p257
        %s348 = sand.u32 %s247, 1
        %s349 = scalar_lea.sflag [#allocation3], %s348
        %s350 = sand.u32 %s247, 1
        %s351 = smul.addr %s350, 128
        %s352 = scalar_lea.vmem [#allocation2], %s351
        %p353 = scmp.lt.s32.totalorder %s24, 1
        %s354 = scalar_select %p353, %s24, 1
        %s355 = smul.addr %s354, 16
        %s356 = smul.addr %s355, 8
        %s357 = scalar_lea.vmem %s0, %s356
        %v359 = vld [vmem:[%s357] sm:$0xff]
        %v360 = vld [vmem:[%s357 + $0x8] sm:$0xff]
        %v361 = vld [vmem:[%s357 + $0x10] sm:$0xff]
        %v362 = vld [vmem:[%s357 + $0x18] sm:$0xff]
        %v363 = vld [vmem:[%s357 + $0x20] sm:$0xff]
        %v364 = vld [vmem:[%s357 + $0x28] sm:$0xff]
        %v365 = vld [vmem:[%s357 + $0x30] sm:$0xff]
        %v366 = vld [vmem:[%s357 + $0x38] sm:$0xff]
        %v367 = vld [vmem:[%s357 + $0x40] sm:$0xff]
        %v368 = vld [vmem:[%s357 + $0x48] sm:$0xff]
        %v369 = vld [vmem:[%s357 + $0x50] sm:$0xff]
        %v370 = vld [vmem:[%s357 + $0x58] sm:$0xff]
        %v371 = vld [vmem:[%s357 + $0x60] sm:$0xff]
        %v372 = vld [vmem:[%s357 + $0x68] sm:$0xff]
        %v373 = vld [vmem:[%s357 + $0x70] sm:$0xff]
        %v374 = vld [vmem:[%s357 + $0x78] sm:$0xff]
        %v375 = vlaneseq
        %v376 = vand.u32 %v375, 127
        %377 = vset.pattern.permute.xlu0 0
        %378 = vperm.xlu0 %377, %v359
        %v379 = vpop.permute.xlu0 %378
        %380 = vset.pattern.permute.xlu0 0
        %381 = vperm.xlu0 %380, %v360
        %v382 = vpop.permute.xlu0 %381
        %383 = vset.pattern.permute.xlu0 0
        %384 = vperm.xlu0 %383, %v361
        %v385 = vpop.permute.xlu0 %384
        %386 = vset.pattern.permute.xlu0 0
        %387 = vperm.xlu0 %386, %v362
        %v388 = vpop.permute.xlu0 %387
        %389 = vset.pattern.permute.xlu0 0
        %390 = vperm.xlu0 %389, %v363
        %v391 = vpop.permute.xlu0 %390
        %392 = vset.pattern.permute.xlu0 0
        %393 = vperm.xlu0 %392, %v364
        %v394 = vpop.permute.xlu0 %393
        %395 = vset.pattern.permute.xlu0 0
        %396 = vperm.xlu0 %395, %v365
        %v397 = vpop.permute.xlu0 %396
        %398 = vset.pattern.permute.xlu0 0
        %399 = vperm.xlu0 %398, %v366
        %v400 = vpop.permute.xlu0 %399
        %401 = vset.pattern.permute.xlu0 0
        %402 = vperm.xlu0 %401, %v367
        %v403 = vpop.permute.xlu0 %402
        %404 = vset.pattern.permute.xlu0 0
        %405 = vperm.xlu0 %404, %v368
        %v406 = vpop.permute.xlu0 %405
        %407 = vset.pattern.permute.xlu0 0
        %408 = vperm.xlu0 %407, %v369
        %v409 = vpop.permute.xlu0 %408
        %410 = vset.pattern.permute.xlu0 0
        %411 = vperm.xlu0 %410, %v370
        %v412 = vpop.permute.xlu0 %411
        %413 = vset.pattern.permute.xlu0 0
        %414 = vperm.xlu0 %413, %v371
        %v415 = vpop.permute.xlu0 %414
        %416 = vset.pattern.permute.xlu0 0
        %417 = vperm.xlu0 %416, %v372
        %v418 = vpop.permute.xlu0 %417
        %419 = vset.pattern.permute.xlu0 0
        %420 = vperm.xlu0 %419, %v373
        %v421 = vpop.permute.xlu0 %420
        %422 = vset.pattern.permute.xlu0 0
        %423 = vperm.xlu0 %422, %v374
        %v424 = vpop.permute.xlu0 %423
        %vm425 = vcmp.eq.s32.totalorder %v376, %v379
        %vm426 = vcmp.eq.s32.totalorder %v376, %v382
        %vm427 = vcmp.eq.s32.totalorder %v376, %v385
        %vm428 = vcmp.eq.s32.totalorder %v376, %v388
        %vm429 = vcmp.eq.s32.totalorder %v376, %v391
        %vm430 = vcmp.eq.s32.totalorder %v376, %v394
        %vm431 = vcmp.eq.s32.totalorder %v376, %v397
        %vm432 = vcmp.eq.s32.totalorder %v376, %v400
        %vm433 = vcmp.eq.s32.totalorder %v376, %v403
        %vm434 = vcmp.eq.s32.totalorder %v376, %v406
        %vm435 = vcmp.eq.s32.totalorder %v376, %v409
        %vm436 = vcmp.eq.s32.totalorder %v376, %v412
        %vm437 = vcmp.eq.s32.totalorder %v376, %v415
        %vm438 = vcmp.eq.s32.totalorder %v376, %v418
        %vm439 = vcmp.eq.s32.totalorder %v376, %v421
        %vm440 = vcmp.eq.s32.totalorder %v376, %v424
        %v441 = vsel %vm425, 1, 0
        %v442 = vsel %vm426, 1, 0
        %v443 = vsel %vm427, 1, 0
        %v444 = vsel %vm428, 1, 0
        %v445 = vsel %vm429, 1, 0
        %v446 = vsel %vm430, 1, 0
        %v447 = vsel %vm431, 1, 0
        %v448 = vsel %vm432, 1, 0
        %v449 = vsel %vm433, 1, 0
        %v450 = vsel %vm434, 1, 0
        %v451 = vsel %vm435, 1, 0
        %v452 = vsel %vm436, 1, 0
        %v453 = vsel %vm437, 1, 0
        %v454 = vsel %vm438, 1, 0
        %v455 = vsel %vm439, 1, 0
        %v456 = vsel %vm440, 1, 0
        %v457 = vcvt.s32.f32 %v441
        %v458 = vcvt.s32.f32 %v442
        %v459 = vcvt.s32.f32 %v443
        %v460 = vcvt.s32.f32 %v444
        %v461 = vcvt.s32.f32 %v445
        %v462 = vcvt.s32.f32 %v446
        %v463 = vcvt.s32.f32 %v447
        %v464 = vcvt.s32.f32 %v448
        %v465 = vcvt.s32.f32 %v449
        %v466 = vcvt.s32.f32 %v450
        %v467 = vcvt.s32.f32 %v451
        %v468 = vcvt.s32.f32 %v452
        %v469 = vcvt.s32.f32 %v453
        %v470 = vcvt.s32.f32 %v454
        %v471 = vcvt.s32.f32 %v455
        %v472 = vcvt.s32.f32 %v456
        %v473 = vpack.c.bf16 %v458, %v457
        %v474 = vpack.c.bf16 %v460, %v459
        %v475 = vpack.c.bf16 %v462, %v461
        %v476 = vpack.c.bf16 %v464, %v463
        %v477 = vpack.c.bf16 %v466, %v465
        %v478 = vpack.c.bf16 %v468, %v467
        %v479 = vpack.c.bf16 %v470, %v469
        %v480 = vpack.c.bf16 %v472, %v471
        %v481 = vld [vmem:[%s1] sm:$0xf]
        %v482 = vld [vmem:[%s1 + $0x4] sm:$0xf]
        %v483 = vld [vmem:[%s1 + $0x8] sm:$0xf]
        %v484 = vld [vmem:[%s1 + $0xc] sm:$0xf]
        %v485 = vld [vmem:[%s1 + $0x10] sm:$0xf]
        %v486 = vld [vmem:[%s1 + $0x14] sm:$0xf]
        %v487 = vld [vmem:[%s1 + $0x18] sm:$0xf]
        %v488 = vld [vmem:[%s1 + $0x1c] sm:$0xf]
        %v489 = vld [vmem:[%s1 + $0x20] sm:$0xf]
        %v490 = vld [vmem:[%s1 + $0x24] sm:$0xf]
        %v491 = vld [vmem:[%s1 + $0x28] sm:$0xf]
        %v492 = vld [vmem:[%s1 + $0x2c] sm:$0xf]
        %v493 = vld [vmem:[%s1 + $0x30] sm:$0xf]
        %v494 = vld [vmem:[%s1 + $0x34] sm:$0xf]
        %v495 = vld [vmem:[%s1 + $0x38] sm:$0xf]
        %v496 = vld [vmem:[%s1 + $0x3c] sm:$0xf]
        %v513 = vunpack.c.l.b16 %v481
        %v514 = vunpack.c.l.b16 %v482
        %v515 = vunpack.c.l.b16 %v483
        %v516 = vunpack.c.l.b16 %v484
        %v517 = vunpack.c.l.b16 %v485
        %v518 = vunpack.c.l.b16 %v486
        %v519 = vunpack.c.l.b16 %v487
        %v520 = vunpack.c.l.b16 %v488
        %v521 = vunpack.c.l.b16 %v489
        %v522 = vunpack.c.l.b16 %v490
        %v523 = vunpack.c.l.b16 %v491
        %v524 = vunpack.c.l.b16 %v492
        %v525 = vunpack.c.l.b16 %v493
        %v526 = vunpack.c.l.b16 %v494
        %v527 = vunpack.c.l.b16 %v495
        %v528 = vunpack.c.l.b16 %v496
        %v529 = vpack.c.b16 %v514, %v513
        %v530 = vpack.c.b16 %v516, %v515
        %v531 = vpack.c.b16 %v518, %v517
        %v532 = vpack.c.b16 %v520, %v519
        %v533 = vpack.c.b16 %v522, %v521
        %v534 = vpack.c.b16 %v524, %v523
        %v535 = vpack.c.b16 %v526, %v525
        %v536 = vpack.c.b16 %v528, %v527
        %545 = vmatprep.subr.bf16.mxu0 0
        %546 = vmatpush1.bf16.msra.mxu0 %v529
        %547 = vmatprep.subr.bf16.mxu0 0
        %548 = vmatpush1.bf16.msra.mxu0 %v530
        %549 = vmatprep.subr.bf16.mxu0 0
        %550 = vmatpush1.bf16.msra.mxu0 %v531
        %551 = vmatprep.subr.bf16.mxu0 0
        %552 = vmatpush1.bf16.msra.mxu0 %v532
        %553 = vmatprep.subr.bf16.mxu0 0
        %554 = vmatpush1.bf16.msra.mxu0 %v533
        %555 = vmatprep.subr.bf16.mxu0 0
        %556 = vmatpush1.bf16.msra.mxu0 %v534
        %557 = vmatprep.subr.bf16.mxu0 0
        %558 = vmatpush1.bf16.msra.mxu0 %v535
        %559 = vmatprep.subr.bf16.mxu0 0
        %560 = vmatpush1.bf16.msra.mxu0 %v536
        %561 = vmatprep.subr.bf16.mxu0 0
        %562 = vmatpush1.bf16.msra.mxu0 0
        %563 = vmatprep.subr.bf16.mxu0 0
        %564 = vmatpush1.bf16.msra.mxu0 0
        %565 = vmatprep.subr.bf16.mxu0 0
        %566 = vmatpush1.bf16.msra.mxu0 0
        %567 = vmatprep.subr.bf16.mxu0 0
        %568 = vmatpush1.bf16.msra.mxu0 0
        %569 = vmatprep.subr.bf16.mxu0 0
        %570 = vmatpush1.bf16.msra.mxu0 0
        %571 = vmatprep.subr.bf16.mxu0 0
        %572 = vmatpush1.bf16.msra.mxu0 0
        %573 = vmatprep.subr.bf16.mxu0 0
        %574 = vmatpush1.bf16.msra.mxu0 0
        %575 = vmatprep.subr.bf16.mxu0 0
        %576 = vmatpush1.bf16.msra.mxu0 0
        %577 = vmatprep.mubr.bf16.mxu0 0
        %578 = vmatmul.mubr.bf16.gmra.mrb[0].mxu0 %v473
        %v579 = vpop.f32.mrb[0].mxu0
        %v580 = vadd.f32 0.0, %v579
        %v581 = vpop.f32.mrb[0].mxu0
        %v582 = vpop.f32.mrb[0].mxu0
        %v583 = vadd.f32 0.0, %v582
        %v584 = vpop.f32.mrb[0].mxu0
        %585 = vmatprep.mubr.bf16.mxu0 0
        %586 = vmatmul.mubr.bf16.gmra.mrb[0].mxu0 %v474
        %v587 = vpop.f32.mrb[0].mxu0
        %v588 = vadd.f32 0.0, %v587
        %v589 = vpop.f32.mrb[0].mxu0
        %v590 = vpop.f32.mrb[0].mxu0
        %v591 = vadd.f32 0.0, %v590
        %v592 = vpop.f32.mrb[0].mxu0
        %593 = vmatprep.mubr.bf16.mxu0 0
        %594 = vmatmul.mubr.bf16.gmra.mrb[0].mxu0 %v475
        %v595 = vpop.f32.mrb[0].mxu0
        %v596 = vadd.f32 0.0, %v595
        %v597 = vpop.f32.mrb[0].mxu0
        %v598 = vpop.f32.mrb[0].mxu0
        %v599 = vadd.f32 0.0, %v598
        %v600 = vpop.f32.mrb[0].mxu0
        %601 = vmatprep.mubr.bf16.mxu0 0
        %602 = vmatmul.mubr.bf16.gmra.mrb[0].mxu0 %v476
        %v603 = vpop.f32.mrb[0].mxu0
        %v604 = vadd.f32 0.0, %v603
        %v605 = vpop.f32.mrb[0].mxu0
        %v606 = vpop.f32.mrb[0].mxu0
        %v607 = vadd.f32 0.0, %v606
        %v608 = vpop.f32.mrb[0].mxu0
        %609 = vmatprep.mubr.bf16.mxu0 0
        %610 = vmatmul.mubr.bf16.gmra.mrb[0].mxu0 %v477
        %v611 = vpop.f32.mrb[0].mxu0
        %v612 = vadd.f32 0.0, %v611
        %v613 = vpop.f32.mrb[0].mxu0
        %v614 = vpop.f32.mrb[0].mxu0
        %v615 = vadd.f32 0.0, %v614
        %v616 = vpop.f32.mrb[0].mxu0
        %617 = vmatprep.mubr.bf16.mxu0 0
        %618 = vmatmul.mubr.bf16.gmra.mrb[0].mxu0 %v478
        %v619 = vpop.f32.mrb[0].mxu0
        %v620 = vadd.f32 0.0, %v619
        %v621 = vpop.f32.mrb[0].mxu0
        %v622 = vpop.f32.mrb[0].mxu0
        %v623 = vadd.f32 0.0, %v622
        %v624 = vpop.f32.mrb[0].mxu0
        %625 = vmatprep.mubr.bf16.mxu0 0
        %626 = vmatmul.mubr.bf16.gmra.mrb[0].mxu0 %v479
        %v627 = vpop.f32.mrb[0].mxu0
        %v628 = vadd.f32 0.0, %v627
        %v629 = vpop.f32.mrb[0].mxu0
        %v630 = vpop.f32.mrb[0].mxu0
        %v631 = vadd.f32 0.0, %v630
        %v632 = vpop.f32.mrb[0].mxu0
        %633 = vmatprep.mubr.bf16.mxu0 0
        %634 = vmatmul.mubr.bf16.gmra.mrb[0].mxu0 %v480
        %v635 = vpop.f32.mrb[0].mxu0
        %v636 = vadd.f32 0.0, %v635
        %v637 = vpop.f32.mrb[0].mxu0
        %v638 = vpop.f32.mrb[0].mxu0
        %v639 = vadd.f32 0.0, %v638
        %v640 = vpop.f32.mrb[0].mxu0
        %641 = vdwg.mxu0
        %v642 = vld [vmem:[%s2] sm:$0xff]
        %v643 = vadd.f32 %v580, %v642
        %v644 = vadd.f32 %v583, %v642
        %v645 = vadd.f32 %v588, %v642
        %v646 = vadd.f32 %v591, %v642
        %v647 = vadd.f32 %v596, %v642
        %v648 = vadd.f32 %v599, %v642
        %v649 = vadd.f32 %v604, %v642
        %v650 = vadd.f32 %v607, %v642
        %v651 = vadd.f32 %v612, %v642
        %v652 = vadd.f32 %v615, %v642
        %v653 = vadd.f32 %v620, %v642
        %v654 = vadd.f32 %v623, %v642
        %v655 = vadd.f32 %v628, %v642
        %v656 = vadd.f32 %v631, %v642
        %v657 = vadd.f32 %v636, %v642
        %v658 = vadd.f32 %v639, %v642
        %v659 = vlaneseq
        %v660 = vshrl.u32 %v659, 7
        %vm661 = vcmp.gt.s32.totalorder %v376, %v660
        %v662 = vsel %vm661, -1e+30, 0.0
        %v663 = vld [vmem:[%s7] sm:$0xff]
        %v664 = vpack.c.bf16 %v644, %v643
        %v665 = vpack.c.bf16 %v646, %v645
        %v666 = vpack.c.bf16 %v648, %v647
        %v667 = vpack.c.bf16 %v650, %v649
        %v668 = vpack.c.bf16 %v652, %v651
        %v669 = vpack.c.bf16 %v654, %v653
        %v670 = vpack.c.bf16 %v656, %v655
        %v671 = vpack.c.bf16 %v658, %v657
        %v672 = vld [vmem:[%s3] sm:$0xf]
        %v673 = vld [vmem:[%s3 + $0x4] sm:$0xf]
        %v674 = vld [vmem:[%s3 + $0x8] sm:$0xf]
        %v675 = vld [vmem:[%s3 + $0xc] sm:$0xf]
        %v676 = vlaneseq
        %v677 = vshrl.u32 %v676, 7
        %v678 = vsub.s32 0, %v677
        %v679 = vrot.slane %v663, %v678
        %v684 = vunpack.c.l.b16 %v672
        %v685 = vunpack.c.l.b16 %v673
        %v686 = vunpack.c.l.b16 %v674
        %v687 = vunpack.c.l.b16 %v675
        %v688 = vpack.c.b16 %v685, %v684
        %v689 = vpack.c.b16 %v687, %v686
        %vm692 = vcmask 261120
        %v694 = vsel %vm692, %v664, 0
        %v697 = vsel %vm692, %v665, 0
        %v700 = vsel %vm692, %v666, 0
        %v703 = vsel %vm692, %v667, 0
        %v706 = vsel %vm692, %v668, 0
        %v709 = vsel %vm692, %v669, 0
        %v712 = vsel %vm692, %v670, 0
        %v715 = vsel %vm692, %v671, 0
        %717 = vmatprep.subr.bf16.mxu0 0
        %718 = vmatpush1.bf16.msra.mxu0 %v688
        %719 = vmatprep.subr.bf16.mxu0 0
        %720 = vmatpush1.bf16.msra.mxu0 %v689
        %721 = vmatprep.subr.bf16.mxu0 0
        %722 = vmatpush1.bf16.msra.mxu0 0
        %723 = vmatprep.subr.bf16.mxu0 0
        %724 = vmatpush1.bf16.msra.mxu0 0
        %725 = vmatprep.subr.bf16.mxu0 0
        %726 = vmatpush1.bf16.msra.mxu0 0
        %727 = vmatprep.subr.bf16.mxu0 0
        %728 = vmatpush1.bf16.msra.mxu0 0
        %729 = vmatprep.subr.bf16.mxu0 0
        %730 = vmatpush1.bf16.msra.mxu0 0
        %731 = vmatprep.subr.bf16.mxu0 0
        %732 = vmatpush1.bf16.msra.mxu0 0
        %733 = vmatprep.subr.bf16.mxu0 0
        %734 = vmatpush1.bf16.msra.mxu0 0
        %735 = vmatprep.subr.bf16.mxu0 0
        %736 = vmatpush1.bf16.msra.mxu0 0
        %737 = vmatprep.subr.bf16.mxu0 0
        %738 = vmatpush1.bf16.msra.mxu0 0
        %739 = vmatprep.subr.bf16.mxu0 0
        %740 = vmatpush1.bf16.msra.mxu0 0
        %741 = vmatprep.subr.bf16.mxu0 0
        %742 = vmatpush1.bf16.msra.mxu0 0
        %743 = vmatprep.subr.bf16.mxu0 0
        %744 = vmatpush1.bf16.msra.mxu0 0
        %745 = vmatprep.subr.bf16.mxu0 0
        %746 = vmatpush1.bf16.msra.mxu0 0
        %747 = vmatprep.subr.bf16.mxu0 0
        %748 = vmatpush1.bf16.msra.mxu0 0
        %749 = vmatprep.mubr.bf16.mxu0 0
        %750 = vmatmul.mubr.bf16.gmra.mrb[0].mxu0 %v694
        %v751 = vpop.f32.mrb[0].mxu0
        %v752 = vadd.f32 %v679, %v751
        %v753 = vpop.f32.mrb[0].mxu0
        %v754 = vpop.f32.mrb[0].mxu0
        %v755 = vadd.f32 %v679, %v754
        %v756 = vpop.f32.mrb[0].mxu0
        %757 = vmatprep.mubr.bf16.mxu0 0
        %758 = vmatmul.mubr.bf16.gmra.mrb[0].mxu0 %v697
        %v759 = vpop.f32.mrb[0].mxu0
        %v760 = vadd.f32 %v679, %v759
        %v761 = vpop.f32.mrb[0].mxu0
        %v762 = vpop.f32.mrb[0].mxu0
        %v763 = vadd.f32 %v679, %v762
        %v764 = vpop.f32.mrb[0].mxu0
        %765 = vmatprep.mubr.bf16.mxu0 0
        %766 = vmatmul.mubr.bf16.gmra.mrb[0].mxu0 %v700
        %v767 = vpop.f32.mrb[0].mxu0
        %v768 = vadd.f32 %v679, %v767
        %v769 = vpop.f32.mrb[0].mxu0
        %v770 = vpop.f32.mrb[0].mxu0
        %v771 = vadd.f32 %v679, %v770
        %v772 = vpop.f32.mrb[0].mxu0
        %773 = vmatprep.mubr.bf16.mxu0 0
        %774 = vmatmul.mubr.bf16.gmra.mrb[0].mxu0 %v703
        %v775 = vpop.f32.mrb[0].mxu0
        %v776 = vadd.f32 %v679, %v775
        %v777 = vpop.f32.mrb[0].mxu0
        %v778 = vpop.f32.mrb[0].mxu0
        %v779 = vadd.f32 %v679, %v778
        %v780 = vpop.f32.mrb[0].mxu0
        %781 = vmatprep.mubr.bf16.mxu0 0
        %782 = vmatmul.mubr.bf16.gmra.mrb[0].mxu0 %v706
        %v783 = vpop.f32.mrb[0].mxu0
        %v784 = vadd.f32 %v679, %v783
        %v785 = vpop.f32.mrb[0].mxu0
        %v786 = vpop.f32.mrb[0].mxu0
        %v787 = vadd.f32 %v679, %v786
        %v788 = vpop.f32.mrb[0].mxu0
        %789 = vmatprep.mubr.bf16.mxu0 0
        %790 = vmatmul.mubr.bf16.gmra.mrb[0].mxu0 %v709
        %v791 = vpop.f32.mrb[0].mxu0
        %v792 = vadd.f32 %v679, %v791
        %v793 = vpop.f32.mrb[0].mxu0
        %v794 = vpop.f32.mrb[0].mxu0
        %v795 = vadd.f32 %v679, %v794
        %v796 = vpop.f32.mrb[0].mxu0
        %797 = vmatprep.mubr.bf16.mxu0 0
        %798 = vmatmul.mubr.bf16.gmra.mrb[0].mxu0 %v712
        %v799 = vpop.f32.mrb[0].mxu0
        %v800 = vadd.f32 %v679, %v799
        %v801 = vpop.f32.mrb[0].mxu0
        %v802 = vpop.f32.mrb[0].mxu0
        %v803 = vadd.f32 %v679, %v802
        %v804 = vpop.f32.mrb[0].mxu0
        %805 = vmatprep.mubr.bf16.mxu0 0
        %806 = vmatmul.mubr.bf16.gmra.mrb[0].mxu0 %v715
        %v807 = vpop.f32.mrb[0].mxu0
        %v808 = vadd.f32 %v679, %v807
        %v809 = vpop.f32.mrb[0].mxu0
        %v810 = vpop.f32.mrb[0].mxu0
        %v811 = vadd.f32 %v679, %v810
        %v812 = vpop.f32.mrb[0].mxu0
        %813 = vdwg.mxu0
        %v814 = vpack.c.bf16 %v752, %v752
        %v815 = vpack.c.bf16 %v755, %v755
        %v816 = vpack.c.bf16 %v760, %v760
        %v817 = vpack.c.bf16 %v763, %v763
        %v818 = vpack.c.bf16 %v768, %v768
        %v819 = vpack.c.bf16 %v771, %v771
        %v820 = vpack.c.bf16 %v776, %v776
        %v821 = vpack.c.bf16 %v779, %v779
        %v822 = vpack.c.bf16 %v784, %v784
        %v823 = vpack.c.bf16 %v787, %v787
        %v824 = vpack.c.bf16 %v792, %v792
        %v825 = vpack.c.bf16 %v795, %v795
        %v826 = vpack.c.bf16 %v800, %v800
        %v827 = vpack.c.bf16 %v803, %v803
        %v828 = vpack.c.bf16 %v808, %v808
        %v829 = vpack.c.bf16 %v811, %v811
        %831 = vrot.lane.b32.xlu0 %v814, 96
        %v832 = vpop.permute.xlu0 %831
        %vm833 = vcmask 130048
        %v835 = vsel %vm833, %v814, 0
        %v838 = vsel %vm833, %v832, 0
        %840 = vmatprep.subr.bf16.mxu0 0
        %841 = vmatpush1.bf16.xpose.msra.mxu0 %v838
        %842 = vmatprep.subr.bf16.mxu0 0
        %843 = vmatpush1.bf16.xpose.msra.mxu0 0
        %844 = vmatprep.subr.bf16.mxu0 0
        %845 = vmatpush1.bf16.xpose.msra.mxu0 0
        %846 = vmatprep.subr.bf16.mxu0 0
        %847 = vmatpush1.bf16.xpose.msra.mxu0 0
        %848 = vmatprep.subr.bf16.mxu0 0
        %849 = vmatpush1.bf16.xpose.msra.mxu0 0
        %850 = vmatprep.subr.bf16.mxu0 0
        %851 = vmatpush1.bf16.xpose.msra.mxu0 0
        %852 = vmatprep.subr.bf16.mxu0 0
        %853 = vmatpush1.bf16.xpose.msra.mxu0 0
        %854 = vmatprep.subr.bf16.mxu0 0
        %855 = vmatpush1.bf16.xpose.msra.mxu0 0
        %856 = vmatprep.subr.bf16.mxu0 0
        %857 = vmatpush1.bf16.xpose.msra.mxu0 0
        %858 = vmatprep.subr.bf16.mxu0 0
        %859 = vmatpush1.bf16.xpose.msra.mxu0 0
        %860 = vmatprep.subr.bf16.mxu0 0
        %861 = vmatpush1.bf16.xpose.msra.mxu0 0
        %862 = vmatprep.subr.bf16.mxu0 0
        %863 = vmatpush1.bf16.xpose.msra.mxu0 0
        %864 = vmatprep.subr.bf16.mxu0 0
        %865 = vmatpush1.bf16.xpose.msra.mxu0 0
        %866 = vmatprep.subr.bf16.mxu0 0
        %867 = vmatpush1.bf16.xpose.msra.mxu0 0
        %868 = vmatprep.subr.bf16.mxu0 0
        %869 = vmatpush1.bf16.xpose.msra.mxu0 0
        %870 = vmatprep.subr.bf16.mxu0 0
        %871 = vmatpush1.bf16.xpose.msra.mxu0 0
        %872 = vmatprep.mubr.bf16.mxu0 0
        %873 = vmatmul.mubr.bf16.gmra.mrb[0].mxu0 %v835
        %v874 = vpop.f32.mrb[0].mxu0
        %v875 = vadd.f32 0.0, %v874
        %v876 = vpop.f32.mrb[0].mxu0
        %v877 = vpop.f32.mrb[0].mxu0
        %v878 = vpop.f32.mrb[0].mxu0
        %879 = vdwg.mxu0
        %881 = vrot.lane.b32.xlu0 %v815, 96
        %v882 = vpop.permute.xlu0 %881
        %v884 = vsel %vm833, %v815, 0
        %v887 = vsel %vm833, %v882, 0
        %889 = vmatprep.subr.bf16.mxu0 0
        %890 = vmatpush1.bf16.xpose.msra.mxu0 %v887
        %891 = vmatprep.subr.bf16.mxu0 0
        %892 = vmatpush1.bf16.xpose.msra.mxu0 0
        %893 = vmatprep.subr.bf16.mxu0 0
        %894 = vmatpush1.bf16.xpose.msra.mxu0 0
        %895 = vmatprep.subr.bf16.mxu0 0
        %896 = vmatpush1.bf16.xpose.msra.mxu0 0
        %897 = vmatprep.subr.bf16.mxu0 0
        %898 = vmatpush1.bf16.xpose.msra.mxu0 0
        %899 = vmatprep.subr.bf16.mxu0 0
        %900 = vmatpush1.bf16.xpose.msra.mxu0 0
        %901 = vmatprep.subr.bf16.mxu0 0
        %902 = vmatpush1.bf16.xpose.msra.mxu0 0
        %903 = vmatprep.subr.bf16.mxu0 0
        %904 = vmatpush1.bf16.xpose.msra.mxu0 0
        %905 = vmatprep.subr.bf16.mxu0 0
        %906 = vmatpush1.bf16.xpose.msra.mxu0 0
        %907 = vmatprep.subr.bf16.mxu0 0
        %908 = vmatpush1.bf16.xpose.msra.mxu0 0
        %909 = vmatprep.subr.bf16.mxu0 0
        %910 = vmatpush1.bf16.xpose.msra.mxu0 0
        %911 = vmatprep.subr.bf16.mxu0 0
        %912 = vmatpush1.bf16.xpose.msra.mxu0 0
        %913 = vmatprep.subr.bf16.mxu0 0
        %914 = vmatpush1.bf16.xpose.msra.mxu0 0
        %915 = vmatprep.subr.bf16.mxu0 0
        %916 = vmatpush1.bf16.xpose.msra.mxu0 0
        %917 = vmatprep.subr.bf16.mxu0 0
        %918 = vmatpush1.bf16.xpose.msra.mxu0 0
        %919 = vmatprep.subr.bf16.mxu0 0
        %920 = vmatpush1.bf16.xpose.msra.mxu0 0
        %921 = vmatprep.mubr.bf16.mxu0 0
        %922 = vmatmul.mubr.bf16.gmra.mrb[0].mxu0 %v884
        %v923 = vpop.f32.mrb[0].mxu0
        %v924 = vadd.f32 0.0, %v923
        %v925 = vpop.f32.mrb[0].mxu0
        %v926 = vpop.f32.mrb[0].mxu0
        %v927 = vpop.f32.mrb[0].mxu0
        %928 = vdwg.mxu0
        %930 = vrot.lane.b32.xlu0 %v816, 96
        %v931 = vpop.permute.xlu0 %930
        %v933 = vsel %vm833, %v816, 0
        %v936 = vsel %vm833, %v931, 0
        %938 = vmatprep.subr.bf16.mxu0 0
        %939 = vmatpush1.bf16.xpose.msra.mxu0 %v936
        %940 = vmatprep.subr.bf16.mxu0 0
        %941 = vmatpush1.bf16.xpose.msra.mxu0 0
        %942 = vmatprep.subr.bf16.mxu0 0
        %943 = vmatpush1.bf16.xpose.msra.mxu0 0
        %944 = vmatprep.subr.bf16.mxu0 0
        %945 = vmatpush1.bf16.xpose.msra.mxu0 0
        %946 = vmatprep.subr.bf16.mxu0 0
        %947 = vmatpush1.bf16.xpose.msra.mxu0 0
        %948 = vmatprep.subr.bf16.mxu0 0
        %949 = vmatpush1.bf16.xpose.msra.mxu0 0
        %950 = vmatprep.subr.bf16.mxu0 0
        %951 = vmatpush1.bf16.xpose.msra.mxu0 0
        %952 = vmatprep.subr.bf16.mxu0 0
        %953 = vmatpush1.bf16.xpose.msra.mxu0 0
        %954 = vmatprep.subr.bf16.mxu0 0
        %955 = vmatpush1.bf16.xpose.msra.mxu0 0
        %956 = vmatprep.subr.bf16.mxu0 0
        %957 = vmatpush1.bf16.xpose.msra.mxu0 0
        %958 = vmatprep.subr.bf16.mxu0 0
        %959 = vmatpush1.bf16.xpose.msra.mxu0 0
        %960 = vmatprep.subr.bf16.mxu0 0
        %961 = vmatpush1.bf16.xpose.msra.mxu0 0
        %962 = vmatprep.subr.bf16.mxu0 0
        %963 = vmatpush1.bf16.xpose.msra.mxu0 0
        %964 = vmatprep.subr.bf16.mxu0 0
        %965 = vmatpush1.bf16.xpose.msra.mxu0 0
        %966 = vmatprep.subr.bf16.mxu0 0
        %967 = vmatpush1.bf16.xpose.msra.mxu0 0
        %968 = vmatprep.subr.bf16.mxu0 0
        %969 = vmatpush1.bf16.xpose.msra.mxu0 0
        %970 = vmatprep.mubr.bf16.mxu0 0
        %971 = vmatmul.mubr.bf16.gmra.mrb[0].mxu0 %v933
        %v972 = vpop.f32.mrb[0].mxu0
        %v973 = vadd.f32 0.0, %v972
        %v974 = vpop.f32.mrb[0].mxu0
        %v975 = vpop.f32.mrb[0].mxu0
        %v976 = vpop.f32.mrb[0].mxu0
        %977 = vdwg.mxu0
        %979 = vrot.lane.b32.xlu0 %v817, 96
        %v980 = vpop.permute.xlu0 %979
        %v982 = vsel %vm833, %v817, 0
        %v985 = vsel %vm833, %v980, 0
        %987 = vmatprep.subr.bf16.mxu0 0
        %988 = vmatpush1.bf16.xpose.msra.mxu0 %v985
        %989 = vmatprep.subr.bf16.mxu0 0
        %990 = vmatpush1.bf16.xpose.msra.mxu0 0
        %991 = vmatprep.subr.bf16.mxu0 0
        %992 = vmatpush1.bf16.xpose.msra.mxu0 0
        %993 = vmatprep.subr.bf16.mxu0 0
        %994 = vmatpush1.bf16.xpose.msra.mxu0 0
        %995 = vmatprep.subr.bf16.mxu0 0
        %996 = vmatpush1.bf16.xpose.msra.mxu0 0
        %997 = vmatprep.subr.bf16.mxu0 0
        %998 = vmatpush1.bf16.xpose.msra.mxu0 0
        %999 = vmatprep.subr.bf16.mxu0 0
        %1000 = vmatpush1.bf16.xpose.msra.mxu0 0
        %1001 = vmatprep.subr.bf16.mxu0 0
        %1002 = vmatpush1.bf16.xpose.msra.mxu0 0
        %1003 = vmatprep.subr.bf16.mxu0 0
        %1004 = vmatpush1.bf16.xpose.msra.mxu0 0
        %1005 = vmatprep.subr.bf16.mxu0 0
        %1006 = vmatpush1.bf16.xpose.msra.mxu0 0
        %1007 = vmatprep.subr.bf16.mxu0 0
        %1008 = vmatpush1.bf16.xpose.msra.mxu0 0
        %1009 = vmatprep.subr.bf16.mxu0 0
        %1010 = vmatpush1.bf16.xpose.msra.mxu0 0
        %1011 = vmatprep.subr.bf16.mxu0 0
        %1012 = vmatpush1.bf16.xpose.msra.mxu0 0
        %1013 = vmatprep.subr.bf16.mxu0 0
        %1014 = vmatpush1.bf16.xpose.msra.mxu0 0
        %1015 = vmatprep.subr.bf16.mxu0 0
        %1016 = vmatpush1.bf16.xpose.msra.mxu0 0
        %1017 = vmatprep.subr.bf16.mxu0 0
        %1018 = vmatpush1.bf16.xpose.msra.mxu0 0
        %1019 = vmatprep.mubr.bf16.mxu0 0
        %1020 = vmatmul.mubr.bf16.gmra.mrb[0].mxu0 %v982
        %v1021 = vpop.f32.mrb[0].mxu0
        %v1022 = vadd.f32 0.0, %v1021
        %v1023 = vpop.f32.mrb[0].mxu0
        %v1024 = vpop.f32.mrb[0].mxu0
        %v1025 = vpop.f32.mrb[0].mxu0
        %1026 = vdwg.mxu0
        %1028 = vrot.lane.b32.xlu0 %v818, 96
        %v1029 = vpop.permute.xlu0 %1028
        %v1031 = vsel %vm833, %v818, 0
        %v1034 = vsel %vm833, %v1029, 0
        %1036 = vmatprep.subr.bf16.mxu0 0
        %1037 = vmatpush1.bf16.xpose.msra.mxu0 %v1034
        %1038 = vmatprep.subr.bf16.mxu0 0
        %1039 = vmatpush1.bf16.xpose.msra.mxu0 0
        %1040 = vmatprep.subr.bf16.mxu0 0
        %1041 = vmatpush1.bf16.xpose.msra.mxu0 0
        %1042 = vmatprep.subr.bf16.mxu0 0
        %1043 = vmatpush1.bf16.xpose.msra.mxu0 0
        %1044 = vmatprep.subr.bf16.mxu0 0
        %1045 = vmatpush1.bf16.xpose.msra.mxu0 0
        %1046 = vmatprep.subr.bf16.mxu0 0
        %1047 = vmatpush1.bf16.xpose.msra.mxu0 0
        %1048 = vmatprep.subr.bf16.mxu0 0
        %1049 = vmatpush1.bf16.xpose.msra.mxu0 0
        %1050 = vmatprep.subr.bf16.mxu0 0
        %1051 = vmatpush1.bf16.xpose.msra.mxu0 0
        %1052 = vmatprep.subr.bf16.mxu0 0
        %1053 = vmatpush1.bf16.xpose.msra.mxu0 0
        %1054 = vmatprep.subr.bf16.mxu0 0
        %1055 = vmatpush1.bf16.xpose.msra.mxu0 0
        %1056 = vmatprep.subr.bf16.mxu0 0
        %1057 = vmatpush1.bf16.xpose.msra.mxu0 0
        %1058 = vmatprep.subr.bf16.mxu0 0
        %1059 = vmatpush1.bf16.xpose.msra.mxu0 0
        %1060 = vmatprep.subr.bf16.mxu0 0
        %1061 = vmatpush1.bf16.xpose.msra.mxu0 0
        %1062 = vmatprep.subr.bf16.mxu0 0
        %1063 = vmatpush1.bf16.xpose.msra.mxu0 0
        %1064 = vmatprep.subr.bf16.mxu0 0
        %1065 = vmatpush1.bf16.xpose.msra.mxu0 0
        %1066 = vmatprep.subr.bf16.mxu0 0
        %1067 = vmatpush1.bf16.xpose.msra.mxu0 0
        %1068 = vmatprep.mubr.bf16.mxu0 0
        %1069 = vmatmul.mubr.bf16.gmra.mrb[0].mxu0 %v1031
        %v1070 = vpop.f32.mrb[0].mxu0
        %v1071 = vadd.f32 0.0, %v1070
        %v1072 = vpop.f32.mrb[0].mxu0
        %v1073 = vpop.f32.mrb[0].mxu0
        %v1074 = vpop.f32.mrb[0].mxu0
        %1075 = vdwg.mxu0
        %1077 = vrot.lane.b32.xlu0 %v819, 96
        %v1078 = vpop.permute.xlu0 %1077
        %v1080 = vsel %vm833, %v819, 0
        %v1083 = vsel %vm833, %v1078, 0
        %1085 = vmatprep.subr.bf16.mxu0 0
        %1086 = vmatpush1.bf16.xpose.msra.mxu0 %v1083
        %1087 = vmatprep.subr.bf16.mxu0 0
        %1088 = vmatpush1.bf16.xpose.msra.mxu0 0
        %1089 = vmatprep.subr.bf16.mxu0 0
        %1090 = vmatpush1.bf16.xpose.msra.mxu0 0
        %1091 = vmatprep.subr.bf16.mxu0 0
        %1092 = vmatpush1.bf16.xpose.msra.mxu0 0
        %1093 = vmatprep.subr.bf16.mxu0 0
        %1094 = vmatpush1.bf16.xpose.msra.mxu0 0
        %1095 = vmatprep.subr.bf16.mxu0 0
        %1096 = vmatpush1.bf16.xpose.msra.mxu0 0
        %1097 = vmatprep.subr.bf16.mxu0 0
        %1098 = vmatpush1.bf16.xpose.msra.mxu0 0
        %1099 = vmatprep.subr.bf16.mxu0 0
        %1100 = vmatpush1.bf16.xpose.msra.mxu0 0
        %1101 = vmatprep.subr.bf16.mxu0 0
        %1102 = vmatpush1.bf16.xpose.msra.mxu0 0
        %1103 = vmatprep.subr.bf16.mxu0 0
        %1104 = vmatpush1.bf16.xpose.msra.mxu0 0
        %1105 = vmatprep.subr.bf16.mxu0 0
        %1106 = vmatpush1.bf16.xpose.msra.mxu0 0
        %1107 = vmatprep.subr.bf16.mxu0 0
        %1108 = vmatpush1.bf16.xpose.msra.mxu0 0
        %1109 = vmatprep.subr.bf16.mxu0 0
        %1110 = vmatpush1.bf16.xpose.msra.mxu0 0
        %1111 = vmatprep.subr.bf16.mxu0 0
        %1112 = vmatpush1.bf16.xpose.msra.mxu0 0
        %1113 = vmatprep.subr.bf16.mxu0 0
        %1114 = vmatpush1.bf16.xpose.msra.mxu0 0
        %1115 = vmatprep.subr.bf16.mxu0 0
        %1116 = vmatpush1.bf16.xpose.msra.mxu0 0
        %1117 = vmatprep.mubr.bf16.mxu0 0
        %1118 = vmatmul.mubr.bf16.gmra.mrb[0].mxu0 %v1080
        %v1119 = vpop.f32.mrb[0].mxu0
        %v1120 = vadd.f32 0.0, %v1119
        %v1121 = vpop.f32.mrb[0].mxu0
        %v1122 = vpop.f32.mrb[0].mxu0
        %v1123 = vpop.f32.mrb[0].mxu0
        %1124 = vdwg.mxu0
        %1126 = vrot.lane.b32.xlu0 %v820, 96
        %v1127 = vpop.permute.xlu0 %1126
        %v1129 = vsel %vm833, %v820, 0
        %v1132 = vsel %vm833, %v1127, 0
        %1134 = vmatprep.subr.bf16.mxu0 0
        %1135 = vmatpush1.bf16.xpose.msra.mxu0 %v1132
        %1136 = vmatprep.subr.bf16.mxu0 0
        %1137 = vmatpush1.bf16.xpose.msra.mxu0 0
        %1138 = vmatprep.subr.bf16.mxu0 0
        %1139 = vmatpush1.bf16.xpose.msra.mxu0 0
        %1140 = vmatprep.subr.bf16.mxu0 0
        %1141 = vmatpush1.bf16.xpose.msra.mxu0 0
        %1142 = vmatprep.subr.bf16.mxu0 0
        %1143 = vmatpush1.bf16.xpose.msra.mxu0 0
        %1144 = vmatprep.subr.bf16.mxu0 0
        %1145 = vmatpush1.bf16.xpose.msra.mxu0 0
        %1146 = vmatprep.subr.bf16.mxu0 0
        %1147 = vmatpush1.bf16.xpose.msra.mxu0 0
        %1148 = vmatprep.subr.bf16.mxu0 0
        %1149 = vmatpush1.bf16.xpose.msra.mxu0 0
        %1150 = vmatprep.subr.bf16.mxu0 0
        %1151 = vmatpush1.bf16.xpose.msra.mxu0 0
        %1152 = vmatprep.subr.bf16.mxu0 0
        %1153 = vmatpush1.bf16.xpose.msra.mxu0 0
        %1154 = vmatprep.subr.bf16.mxu0 0
        %1155 = vmatpush1.bf16.xpose.msra.mxu0 0
        %1156 = vmatprep.subr.bf16.mxu0 0
        %1157 = vmatpush1.bf16.xpose.msra.mxu0 0
        %1158 = vmatprep.subr.bf16.mxu0 0
        %1159 = vmatpush1.bf16.xpose.msra.mxu0 0
        %1160 = vmatprep.subr.bf16.mxu0 0
        %1161 = vmatpush1.bf16.xpose.msra.mxu0 0
        %1162 = vmatprep.subr.bf16.mxu0 0
        %1163 = vmatpush1.bf16.xpose.msra.mxu0 0
        %1164 = vmatprep.subr.bf16.mxu0 0
        %1165 = vmatpush1.bf16.xpose.msra.mxu0 0
        %1166 = vmatprep.mubr.bf16.mxu0 0
        %1167 = vmatmul.mubr.bf16.gmra.mrb[0].mxu0 %v1129
        %v1168 = vpop.f32.mrb[0].mxu0
        %v1169 = vadd.f32 0.0, %v1168
        %v1170 = vpop.f32.mrb[0].mxu0
        %v1171 = vpop.f32.mrb[0].mxu0
        %v1172 = vpop.f32.mrb[0].mxu0
        %1173 = vdwg.mxu0
        %1175 = vrot.lane.b32.xlu0 %v821, 96
        %v1176 = vpop.permute.xlu0 %1175
        %v1178 = vsel %vm833, %v821, 0
        %v1181 = vsel %vm833, %v1176, 0
        %1183 = vmatprep.subr.bf16.mxu0 0
        %1184 = vmatpush1.bf16.xpose.msra.mxu0 %v1181
        %1185 = vmatprep.subr.bf16.mxu0 0
        %1186 = vmatpush1.bf16.xpose.msra.mxu0 0
        %1187 = vmatprep.subr.bf16.mxu0 0
        %1188 = vmatpush1.bf16.xpose.msra.mxu0 0
        %1189 = vmatprep.subr.bf16.mxu0 0
        %1190 = vmatpush1.bf16.xpose.msra.mxu0 0
        %1191 = vmatprep.subr.bf16.mxu0 0
        %1192 = vmatpush1.bf16.xpose.msra.mxu0 0
        %1193 = vmatprep.subr.bf16.mxu0 0
        %1194 = vmatpush1.bf16.xpose.msra.mxu0 0
        %1195 = vmatprep.subr.bf16.mxu0 0
        %1196 = vmatpush1.bf16.xpose.msra.mxu0 0
        %1197 = vmatprep.subr.bf16.mxu0 0
        %1198 = vmatpush1.bf16.xpose.msra.mxu0 0
        %1199 = vmatprep.subr.bf16.mxu0 0
        %1200 = vmatpush1.bf16.xpose.msra.mxu0 0
        %1201 = vmatprep.subr.bf16.mxu0 0
        %1202 = vmatpush1.bf16.xpose.msra.mxu0 0
        %1203 = vmatprep.subr.bf16.mxu0 0
        %1204 = vmatpush1.bf16.xpose.msra.mxu0 0
        %1205 = vmatprep.subr.bf16.mxu0 0
        %1206 = vmatpush1.bf16.xpose.msra.mxu0 0
        %1207 = vmatprep.subr.bf16.mxu0 0
        %1208 = vmatpush1.bf16.xpose.msra.mxu0 0
        %1209 = vmatprep.subr.bf16.mxu0 0
        %1210 = vmatpush1.bf16.xpose.msra.mxu0 0
        %1211 = vmatprep.subr.bf16.mxu0 0
        %1212 = vmatpush1.bf16.xpose.msra.mxu0 0
        %1213 = vmatprep.subr.bf16.mxu0 0
        %1214 = vmatpush1.bf16.xpose.msra.mxu0 0
        %1215 = vmatprep.mubr.bf16.mxu0 0
        %1216 = vmatmul.mubr.bf16.gmra.mrb[0].mxu0 %v1178
        %v1217 = vpop.f32.mrb[0].mxu0
        %v1218 = vadd.f32 0.0, %v1217
        %v1219 = vpop.f32.mrb[0].mxu0
        %v1220 = vpop.f32.mrb[0].mxu0
        %v1221 = vpop.f32.mrb[0].mxu0
        %1222 = vdwg.mxu0
        %1224 = vrot.lane.b32.xlu0 %v822, 96
        %v1225 = vpop.permute.xlu0 %1224
        %v1227 = vsel %vm833, %v822, 0
        %v1230 = vsel %vm833, %v1225, 0
        %1232 = vmatprep.subr.bf16.mxu0 0
        %1233 = vmatpush1.bf16.xpose.msra.mxu0 %v1230
        %1234 = vmatprep.subr.bf16.mxu0 0
        %1235 = vmatpush1.bf16.xpose.msra.mxu0 0
        %1236 = vmatprep.subr.bf16.mxu0 0
        %1237 = vmatpush1.bf16.xpose.msra.mxu0 0
        %1238 = vmatprep.subr.bf16.mxu0 0
        %1239 = vmatpush1.bf16.xpose.msra.mxu0 0
        %1240 = vmatprep.subr.bf16.mxu0 0
        %1241 = vmatpush1.bf16.xpose.msra.mxu0 0
        %1242 = vmatprep.subr.bf16.mxu0 0
        %1243 = vmatpush1.bf16.xpose.msra.mxu0 0
        %1244 = vmatprep.subr.bf16.mxu0 0
        %1245 = vmatpush1.bf16.xpose.msra.mxu0 0
        %1246 = vmatprep.subr.bf16.mxu0 0
        %1247 = vmatpush1.bf16.xpose.msra.mxu0 0
        %1248 = vmatprep.subr.bf16.mxu0 0
        %1249 = vmatpush1.bf16.xpose.msra.mxu0 0
        %1250 = vmatprep.subr.bf16.mxu0 0
        %1251 = vmatpush1.bf16.xpose.msra.mxu0 0
        %1252 = vmatprep.subr.bf16.mxu0 0
        %1253 = vmatpush1.bf16.xpose.msra.mxu0 0
        %1254 = vmatprep.subr.bf16.mxu0 0
        %1255 = vmatpush1.bf16.xpose.msra.mxu0 0
        %1256 = vmatprep.subr.bf16.mxu0 0
        %1257 = vmatpush1.bf16.xpose.msra.mxu0 0
        %1258 = vmatprep.subr.bf16.mxu0 0
        %1259 = vmatpush1.bf16.xpose.msra.mxu0 0
        %1260 = vmatprep.subr.bf16.mxu0 0
        %1261 = vmatpush1.bf16.xpose.msra.mxu0 0
        %1262 = vmatprep.subr.bf16.mxu0 0
        %1263 = vmatpush1.bf16.xpose.msra.mxu0 0
        %1264 = vmatprep.mubr.bf16.mxu0 0
        %1265 = vmatmul.mubr.bf16.gmra.mrb[0].mxu0 %v1227
        %v1266 = vpop.f32.mrb[0].mxu0
        %v1267 = vadd.f32 0.0, %v1266
        %v1268 = vpop.f32.mrb[0].mxu0
        %v1269 = vpop.f32.mrb[0].mxu0
        %v1270 = vpop.f32.mrb[0].mxu0
        %1271 = vdwg.mxu0
        %1273 = vrot.lane.b32.xlu0 %v823, 96
        %v1274 = vpop.permute.xlu0 %1273
        %v1276 = vsel %vm833, %v823, 0
        %v1279 = vsel %vm833, %v1274, 0
        %1281 = vmatprep.subr.bf16.mxu0 0
        %1282 = vmatpush1.bf16.xpose.msra.mxu0 %v1279
        %1283 = vmatprep.subr.bf16.mxu0 0
        %1284 = vmatpush1.bf16.xpose.msra.mxu0 0
        %1285 = vmatprep.subr.bf16.mxu0 0
        %1286 = vmatpush1.bf16.xpose.msra.mxu0 0
        %1287 = vmatprep.subr.bf16.mxu0 0
        %1288 = vmatpush1.bf16.xpose.msra.mxu0 0
        %1289 = vmatprep.subr.bf16.mxu0 0
        %1290 = vmatpush1.bf16.xpose.msra.mxu0 0
        %1291 = vmatprep.subr.bf16.mxu0 0
        %1292 = vmatpush1.bf16.xpose.msra.mxu0 0
        %1293 = vmatprep.subr.bf16.mxu0 0
        %1294 = vmatpush1.bf16.xpose.msra.mxu0 0
        %1295 = vmatprep.subr.bf16.mxu0 0
        %1296 = vmatpush1.bf16.xpose.msra.mxu0 0
        %1297 = vmatprep.subr.bf16.mxu0 0
        %1298 = vmatpush1.bf16.xpose.msra.mxu0 0
        %1299 = vmatprep.subr.bf16.mxu0 0
        %1300 = vmatpush1.bf16.xpose.msra.mxu0 0
        %1301 = vmatprep.subr.bf16.mxu0 0
        %1302 = vmatpush1.bf16.xpose.msra.mxu0 0
        %1303 = vmatprep.subr.bf16.mxu0 0
        %1304 = vmatpush1.bf16.xpose.msra.mxu0 0
        %1305 = vmatprep.subr.bf16.mxu0 0
        %1306 = vmatpush1.bf16.xpose.msra.mxu0 0
        %1307 = vmatprep.subr.bf16.mxu0 0
        %1308 = vmatpush1.bf16.xpose.msra.mxu0 0
        %1309 = vmatprep.subr.bf16.mxu0 0
        %1310 = vmatpush1.bf16.xpose.msra.mxu0 0
        %1311 = vmatprep.subr.bf16.mxu0 0
        %1312 = vmatpush1.bf16.xpose.msra.mxu0 0
        %1313 = vmatprep.mubr.bf16.mxu0 0
        %1314 = vmatmul.mubr.bf16.gmra.mrb[0].mxu0 %v1276
        %v1315 = vpop.f32.mrb[0].mxu0
        %v1316 = vadd.f32 0.0, %v1315
        %v1317 = vpop.f32.mrb[0].mxu0
        %v1318 = vpop.f32.mrb[0].mxu0
        %v1319 = vpop.f32.mrb[0].mxu0
        %1320 = vdwg.mxu0
        %1322 = vrot.lane.b32.xlu0 %v824, 96
        %v1323 = vpop.permute.xlu0 %1322
        %v1325 = vsel %vm833, %v824, 0
        %v1328 = vsel %vm833, %v1323, 0
        %1330 = vmatprep.subr.bf16.mxu0 0
        %1331 = vmatpush1.bf16.xpose.msra.mxu0 %v1328
        %1332 = vmatprep.subr.bf16.mxu0 0
        %1333 = vmatpush1.bf16.xpose.msra.mxu0 0
        %1334 = vmatprep.subr.bf16.mxu0 0
        %1335 = vmatpush1.bf16.xpose.msra.mxu0 0
        %1336 = vmatprep.subr.bf16.mxu0 0
        %1337 = vmatpush1.bf16.xpose.msra.mxu0 0
        %1338 = vmatprep.subr.bf16.mxu0 0
        %1339 = vmatpush1.bf16.xpose.msra.mxu0 0
        %1340 = vmatprep.subr.bf16.mxu0 0
        %1341 = vmatpush1.bf16.xpose.msra.mxu0 0
        %1342 = vmatprep.subr.bf16.mxu0 0
        %1343 = vmatpush1.bf16.xpose.msra.mxu0 0
        %1344 = vmatprep.subr.bf16.mxu0 0
        %1345 = vmatpush1.bf16.xpose.msra.mxu0 0
        %1346 = vmatprep.subr.bf16.mxu0 0
        %1347 = vmatpush1.bf16.xpose.msra.mxu0 0
        %1348 = vmatprep.subr.bf16.mxu0 0
        %1349 = vmatpush1.bf16.xpose.msra.mxu0 0
        %1350 = vmatprep.subr.bf16.mxu0 0
        %1351 = vmatpush1.bf16.xpose.msra.mxu0 0
        %1352 = vmatprep.subr.bf16.mxu0 0
        %1353 = vmatpush1.bf16.xpose.msra.mxu0 0
        %1354 = vmatprep.subr.bf16.mxu0 0
        %1355 = vmatpush1.bf16.xpose.msra.mxu0 0
        %1356 = vmatprep.subr.bf16.mxu0 0
        %1357 = vmatpush1.bf16.xpose.msra.mxu0 0
        %1358 = vmatprep.subr.bf16.mxu0 0
        %1359 = vmatpush1.bf16.xpose.msra.mxu0 0
        %1360 = vmatprep.subr.bf16.mxu0 0
        %1361 = vmatpush1.bf16.xpose.msra.mxu0 0
        %1362 = vmatprep.mubr.bf16.mxu0 0
        %1363 = vmatmul.mubr.bf16.gmra.mrb[0].mxu0 %v1325
        %v1364 = vpop.f32.mrb[0].mxu0
        %v1365 = vadd.f32 0.0, %v1364
        %v1366 = vpop.f32.mrb[0].mxu0
        %v1367 = vpop.f32.mrb[0].mxu0
        %v1368 = vpop.f32.mrb[0].mxu0
        %1369 = vdwg.mxu0
        %1371 = vrot.lane.b32.xlu0 %v825, 96
        %v1372 = vpop.permute.xlu0 %1371
        %v1374 = vsel %vm833, %v825, 0
        %v1377 = vsel %vm833, %v1372, 0
        %1379 = vmatprep.subr.bf16.mxu0 0
        %1380 = vmatpush1.bf16.xpose.msra.mxu0 %v1377
        %1381 = vmatprep.subr.bf16.mxu0 0
        %1382 = vmatpush1.bf16.xpose.msra.mxu0 0
        %1383 = vmatprep.subr.bf16.mxu0 0
        %1384 = vmatpush1.bf16.xpose.msra.mxu0 0
        %1385 = vmatprep.subr.bf16.mxu0 0
        %1386 = vmatpush1.bf16.xpose.msra.mxu0 0
        %1387 = vmatprep.subr.bf16.mxu0 0
        %1388 = vmatpush1.bf16.xpose.msra.mxu0 0
        %1389 = vmatprep.subr.bf16.mxu0 0
        %1390 = vmatpush1.bf16.xpose.msra.mxu0 0
        %1391 = vmatprep.subr.bf16.mxu0 0
        %1392 = vmatpush1.bf16.xpose.msra.mxu0 0
        %1393 = vmatprep.subr.bf16.mxu0 0
        %1394 = vmatpush1.bf16.xpose.msra.mxu0 0
        %1395 = vmatprep.subr.bf16.mxu0 0
        %1396 = vmatpush1.bf16.xpose.msra.mxu0 0
        %1397 = vmatprep.subr.bf16.mxu0 0
        %1398 = vmatpush1.bf16.xpose.msra.mxu0 0
        %1399 = vmatprep.subr.bf16.mxu0 0
        %1400 = vmatpush1.bf16.xpose.msra.mxu0 0
        %1401 = vmatprep.subr.bf16.mxu0 0
        %1402 = vmatpush1.bf16.xpose.msra.mxu0 0
        %1403 = vmatprep.subr.bf16.mxu0 0
        %1404 = vmatpush1.bf16.xpose.msra.mxu0 0
        %1405 = vmatprep.subr.bf16.mxu0 0
        %1406 = vmatpush1.bf16.xpose.msra.mxu0 0
        %1407 = vmatprep.subr.bf16.mxu0 0
        %1408 = vmatpush1.bf16.xpose.msra.mxu0 0
        %1409 = vmatprep.subr.bf16.mxu0 0
        %1410 = vmatpush1.bf16.xpose.msra.mxu0 0
        %1411 = vmatprep.mubr.bf16.mxu0 0
        %1412 = vmatmul.mubr.bf16.gmra.mrb[0].mxu0 %v1374
        %v1413 = vpop.f32.mrb[0].mxu0
        %v1414 = vadd.f32 0.0, %v1413
        %v1415 = vpop.f32.mrb[0].mxu0
        %v1416 = vpop.f32.mrb[0].mxu0
        %v1417 = vpop.f32.mrb[0].mxu0
        %1418 = vdwg.mxu0
        %1420 = vrot.lane.b32.xlu0 %v826, 96
        %v1421 = vpop.permute.xlu0 %1420
        %v1423 = vsel %vm833, %v826, 0
        %v1426 = vsel %vm833, %v1421, 0
        %1428 = vmatprep.subr.bf16.mxu0 0
        %1429 = vmatpush1.bf16.xpose.msra.mxu0 %v1426
        %1430 = vmatprep.subr.bf16.mxu0 0
        %1431 = vmatpush1.bf16.xpose.msra.mxu0 0
        %1432 = vmatprep.subr.bf16.mxu0 0
        %1433 = vmatpush1.bf16.xpose.msra.mxu0 0
        %1434 = vmatprep.subr.bf16.mxu0 0
        %1435 = vmatpush1.bf16.xpose.msra.mxu0 0
        %1436 = vmatprep.subr.bf16.mxu0 0
        %1437 = vmatpush1.bf16.xpose.msra.mxu0 0
        %1438 = vmatprep.subr.bf16.mxu0 0
        %1439 = vmatpush1.bf16.xpose.msra.mxu0 0
        %1440 = vmatprep.subr.bf16.mxu0 0
        %1441 = vmatpush1.bf16.xpose.msra.mxu0 0
        %1442 = vmatprep.subr.bf16.mxu0 0
        %1443 = vmatpush1.bf16.xpose.msra.mxu0 0
        %1444 = vmatprep.subr.bf16.mxu0 0
        %1445 = vmatpush1.bf16.xpose.msra.mxu0 0
        %1446 = vmatprep.subr.bf16.mxu0 0
        %1447 = vmatpush1.bf16.xpose.msra.mxu0 0
        %1448 = vmatprep.subr.bf16.mxu0 0
        %1449 = vmatpush1.bf16.xpose.msra.mxu0 0
        %1450 = vmatprep.subr.bf16.mxu0 0
        %1451 = vmatpush1.bf16.xpose.msra.mxu0 0
        %1452 = vmatprep.subr.bf16.mxu0 0
        %1453 = vmatpush1.bf16.xpose.msra.mxu0 0
        %1454 = vmatprep.subr.bf16.mxu0 0
        %1455 = vmatpush1.bf16.xpose.msra.mxu0 0
        %1456 = vmatprep.subr.bf16.mxu0 0
        %1457 = vmatpush1.bf16.xpose.msra.mxu0 0
        %1458 = vmatprep.subr.bf16.mxu0 0
        %1459 = vmatpush1.bf16.xpose.msra.mxu0 0
        %1460 = vmatprep.mubr.bf16.mxu0 0
        %1461 = vmatmul.mubr.bf16.gmra.mrb[0].mxu0 %v1423
        %v1462 = vpop.f32.mrb[0].mxu0
        %v1463 = vadd.f32 0.0, %v1462
        %v1464 = vpop.f32.mrb[0].mxu0
        %v1465 = vpop.f32.mrb[0].mxu0
        %v1466 = vpop.f32.mrb[0].mxu0
        %1467 = vdwg.mxu0
        %1469 = vrot.lane.b32.xlu0 %v827, 96
        %v1470 = vpop.permute.xlu0 %1469
        %v1472 = vsel %vm833, %v827, 0
        %v1475 = vsel %vm833, %v1470, 0
        %1477 = vmatprep.subr.bf16.mxu0 0
        %1478 = vmatpush1.bf16.xpose.msra.mxu0 %v1475
        %1479 = vmatprep.subr.bf16.mxu0 0
        %1480 = vmatpush1.bf16.xpose.msra.mxu0 0
        %1481 = vmatprep.subr.bf16.mxu0 0
        %1482 = vmatpush1.bf16.xpose.msra.mxu0 0
        %1483 = vmatprep.subr.bf16.mxu0 0
        %1484 = vmatpush1.bf16.xpose.msra.mxu0 0
        %1485 = vmatprep.subr.bf16.mxu0 0
        %1486 = vmatpush1.bf16.xpose.msra.mxu0 0
        %1487 = vmatprep.subr.bf16.mxu0 0
        %1488 = vmatpush1.bf16.xpose.msra.mxu0 0
        %1489 = vmatprep.subr.bf16.mxu0 0
        %1490 = vmatpush1.bf16.xpose.msra.mxu0 0
        %1491 = vmatprep.subr.bf16.mxu0 0
        %1492 = vmatpush1.bf16.xpose.msra.mxu0 0
        %1493 = vmatprep.subr.bf16.mxu0 0
        %1494 = vmatpush1.bf16.xpose.msra.mxu0 0
        %1495 = vmatprep.subr.bf16.mxu0 0
        %1496 = vmatpush1.bf16.xpose.msra.mxu0 0
        %1497 = vmatprep.subr.bf16.mxu0 0
        %1498 = vmatpush1.bf16.xpose.msra.mxu0 0
        %1499 = vmatprep.subr.bf16.mxu0 0
        %1500 = vmatpush1.bf16.xpose.msra.mxu0 0
        %1501 = vmatprep.subr.bf16.mxu0 0
        %1502 = vmatpush1.bf16.xpose.msra.mxu0 0
        %1503 = vmatprep.subr.bf16.mxu0 0
        %1504 = vmatpush1.bf16.xpose.msra.mxu0 0
        %1505 = vmatprep.subr.bf16.mxu0 0
        %1506 = vmatpush1.bf16.xpose.msra.mxu0 0
        %1507 = vmatprep.subr.bf16.mxu0 0
        %1508 = vmatpush1.bf16.xpose.msra.mxu0 0
        %1509 = vmatprep.mubr.bf16.mxu0 0
        %1510 = vmatmul.mubr.bf16.gmra.mrb[0].mxu0 %v1472
        %v1511 = vpop.f32.mrb[0].mxu0
        %v1512 = vadd.f32 0.0, %v1511
        %v1513 = vpop.f32.mrb[0].mxu0
        %v1514 = vpop.f32.mrb[0].mxu0
        %v1515 = vpop.f32.mrb[0].mxu0
        %1516 = vdwg.mxu0
        %1518 = vrot.lane.b32.xlu0 %v828, 96
        %v1519 = vpop.permute.xlu0 %1518
        %v1521 = vsel %vm833, %v828, 0
        %v1524 = vsel %vm833, %v1519, 0
        %1526 = vmatprep.subr.bf16.mxu0 0
        %1527 = vmatpush1.bf16.xpose.msra.mxu0 %v1524
        %1528 = vmatprep.subr.bf16.mxu0 0
        %1529 = vmatpush1.bf16.xpose.msra.mxu0 0
        %1530 = vmatprep.subr.bf16.mxu0 0
        %1531 = vmatpush1.bf16.xpose.msra.mxu0 0
        %1532 = vmatprep.subr.bf16.mxu0 0
        %1533 = vmatpush1.bf16.xpose.msra.mxu0 0
        %1534 = vmatprep.subr.bf16.mxu0 0
        %1535 = vmatpush1.bf16.xpose.msra.mxu0 0
        %1536 = vmatprep.subr.bf16.mxu0 0
        %1537 = vmatpush1.bf16.xpose.msra.mxu0 0
        %1538 = vmatprep.subr.bf16.mxu0 0
        %1539 = vmatpush1.bf16.xpose.msra.mxu0 0
        %1540 = vmatprep.subr.bf16.mxu0 0
        %1541 = vmatpush1.bf16.xpose.msra.mxu0 0
        %1542 = vmatprep.subr.bf16.mxu0 0
        %1543 = vmatpush1.bf16.xpose.msra.mxu0 0
        %1544 = vmatprep.subr.bf16.mxu0 0
        %1545 = vmatpush1.bf16.xpose.msra.mxu0 0
        %1546 = vmatprep.subr.bf16.mxu0 0
        %1547 = vmatpush1.bf16.xpose.msra.mxu0 0
        %1548 = vmatprep.subr.bf16.mxu0 0
        %1549 = vmatpush1.bf16.xpose.msra.mxu0 0
        %1550 = vmatprep.subr.bf16.mxu0 0
        %1551 = vmatpush1.bf16.xpose.msra.mxu0 0
        %1552 = vmatprep.subr.bf16.mxu0 0
        %1553 = vmatpush1.bf16.xpose.msra.mxu0 0
        %1554 = vmatprep.subr.bf16.mxu0 0
        %1555 = vmatpush1.bf16.xpose.msra.mxu0 0
        %1556 = vmatprep.subr.bf16.mxu0 0
        %1557 = vmatpush1.bf16.xpose.msra.mxu0 0
        %1558 = vmatprep.mubr.bf16.mxu0 0
        %1559 = vmatmul.mubr.bf16.gmra.mrb[0].mxu0 %v1521
        %v1560 = vpop.f32.mrb[0].mxu0
        %v1561 = vadd.f32 0.0, %v1560
        %v1562 = vpop.f32.mrb[0].mxu0
        %v1563 = vpop.f32.mrb[0].mxu0
        %v1564 = vpop.f32.mrb[0].mxu0
        %1565 = vdwg.mxu0
        %1567 = vrot.lane.b32.xlu0 %v829, 96
        %v1568 = vpop.permute.xlu0 %1567
        %v1570 = vsel %vm833, %v829, 0
        %v1573 = vsel %vm833, %v1568, 0
        %1575 = vmatprep.subr.bf16.mxu0 0
        %1576 = vmatpush1.bf16.xpose.msra.mxu0 %v1573
        %1577 = vmatprep.subr.bf16.mxu0 0
        %1578 = vmatpush1.bf16.xpose.msra.mxu0 0
        %1579 = vmatprep.subr.bf16.mxu0 0
        %1580 = vmatpush1.bf16.xpose.msra.mxu0 0
        %1581 = vmatprep.subr.bf16.mxu0 0
        %1582 = vmatpush1.bf16.xpose.msra.mxu0 0
        %1583 = vmatprep.subr.bf16.mxu0 0
        %1584 = vmatpush1.bf16.xpose.msra.mxu0 0
        %1585 = vmatprep.subr.bf16.mxu0 0
        %1586 = vmatpush1.bf16.xpose.msra.mxu0 0
        %1587 = vmatprep.subr.bf16.mxu0 0
        %1588 = vmatpush1.bf16.xpose.msra.mxu0 0
        %1589 = vmatprep.subr.bf16.mxu0 0
        %1590 = vmatpush1.bf16.xpose.msra.mxu0 0
        %1591 = vmatprep.subr.bf16.mxu0 0
        %1592 = vmatpush1.bf16.xpose.msra.mxu0 0
        %1593 = vmatprep.subr.bf16.mxu0 0
        %1594 = vmatpush1.bf16.xpose.msra.mxu0 0
        %1595 = vmatprep.subr.bf16.mxu0 0
        %1596 = vmatpush1.bf16.xpose.msra.mxu0 0
        %1597 = vmatprep.subr.bf16.mxu0 0
        %1598 = vmatpush1.bf16.xpose.msra.mxu0 0
        %1599 = vmatprep.subr.bf16.mxu0 0
        %1600 = vmatpush1.bf16.xpose.msra.mxu0 0
        %1601 = vmatprep.subr.bf16.mxu0 0
        %1602 = vmatpush1.bf16.xpose.msra.mxu0 0
        %1603 = vmatprep.subr.bf16.mxu0 0
        %1604 = vmatpush1.bf16.xpose.msra.mxu0 0
        %1605 = vmatprep.subr.bf16.mxu0 0
        %1606 = vmatpush1.bf16.xpose.msra.mxu0 0
        %1607 = vmatprep.mubr.bf16.mxu0 0
        %1608 = vmatmul.mubr.bf16.gmra.mrb[0].mxu0 %v1570
        %v1609 = vpop.f32.mrb[0].mxu0
        %v1610 = vadd.f32 0.0, %v1609
        %v1611 = vpop.f32.mrb[0].mxu0
        %v1612 = vpop.f32.mrb[0].mxu0
        %v1613 = vpop.f32.mrb[0].mxu0
        %1614 = vdwg.mxu0
        %v1615 = vmul.f32 %v875, 0.25
        %v1616 = vmul.f32 %v924, 0.25
        %v1617 = vmul.f32 %v973, 0.25
        %v1618 = vmul.f32 %v1022, 0.25
        %v1619 = vmul.f32 %v1071, 0.25
        %v1620 = vmul.f32 %v1120, 0.25
        %v1621 = vmul.f32 %v1169, 0.25
        %v1622 = vmul.f32 %v1218, 0.25
        %v1623 = vmul.f32 %v1267, 0.25
        %v1624 = vmul.f32 %v1316, 0.25
        %v1625 = vmul.f32 %v1365, 0.25
        %v1626 = vmul.f32 %v1414, 0.25
        %v1627 = vmul.f32 %v1463, 0.25
        %v1628 = vmul.f32 %v1512, 0.25
        %v1629 = vmul.f32 %v1561, 0.25
        %v1630 = vmul.f32 %v1610, 0.25
        %v1631 = vadd.f32 %v1615, %v662
        %v1632 = vadd.f32 %v1616, %v662
        %v1633 = vadd.f32 %v1617, %v662
        %v1634 = vadd.f32 %v1618, %v662
        %v1635 = vadd.f32 %v1619, %v662
        %v1636 = vadd.f32 %v1620, %v662
        %v1637 = vadd.f32 %v1621, %v662
        %v1638 = vadd.f32 %v1622, %v662
        %v1639 = vadd.f32 %v1623, %v662
        %v1640 = vadd.f32 %v1624, %v662
        %v1641 = vadd.f32 %v1625, %v662
        %v1642 = vadd.f32 %v1626, %v662
        %v1643 = vadd.f32 %v1627, %v662
        %v1644 = vadd.f32 %v1628, %v662
        %v1645 = vadd.f32 %v1629, %v662
        %v1646 = vadd.f32 %v1630, %v662
        %vm1647 = vcmask 64512
        %v1648 = vsel %vm1647, %v1631, -inf
        %1649 = vmax.xlane.f32.xlu0 %v1648
        %v1650 = vpop.xlane.xlu0 %1649
        %v1651 = vsel %vm1647, %v1632, -inf
        %1652 = vmax.xlane.f32.xlu0 %v1651
        %v1653 = vpop.xlane.xlu0 %1652
        %v1654 = vsel %vm1647, %v1633, -inf
        %1655 = vmax.xlane.f32.xlu0 %v1654
        %v1656 = vpop.xlane.xlu0 %1655
        %v1657 = vsel %vm1647, %v1634, -inf
        %1658 = vmax.xlane.f32.xlu0 %v1657
        %v1659 = vpop.xlane.xlu0 %1658
        %v1660 = vsel %vm1647, %v1635, -inf
        %1661 = vmax.xlane.f32.xlu0 %v1660
        %v1662 = vpop.xlane.xlu0 %1661
        %v1663 = vsel %vm1647, %v1636, -inf
        %1664 = vmax.xlane.f32.xlu0 %v1663
        %v1665 = vpop.xlane.xlu0 %1664
        %v1666 = vsel %vm1647, %v1637, -inf
        %1667 = vmax.xlane.f32.xlu0 %v1666
        %v1668 = vpop.xlane.xlu0 %1667
        %v1669 = vsel %vm1647, %v1638, -inf
        %1670 = vmax.xlane.f32.xlu0 %v1669
        %v1671 = vpop.xlane.xlu0 %1670
        %v1672 = vsel %vm1647, %v1639, -inf
        %1673 = vmax.xlane.f32.xlu0 %v1672
        %v1674 = vpop.xlane.xlu0 %1673
        %v1675 = vsel %vm1647, %v1640, -inf
        %1676 = vmax.xlane.f32.xlu0 %v1675
        %v1677 = vpop.xlane.xlu0 %1676
        %v1678 = vsel %vm1647, %v1641, -inf
        %1679 = vmax.xlane.f32.xlu0 %v1678
        %v1680 = vpop.xlane.xlu0 %1679
        %v1681 = vsel %vm1647, %v1642, -inf
        %1682 = vmax.xlane.f32.xlu0 %v1681
        %v1683 = vpop.xlane.xlu0 %1682
        %v1684 = vsel %vm1647, %v1643, -inf
        %1685 = vmax.xlane.f32.xlu0 %v1684
        %v1686 = vpop.xlane.xlu0 %1685
        %v1687 = vsel %vm1647, %v1644, -inf
        %1688 = vmax.xlane.f32.xlu0 %v1687
        %v1689 = vpop.xlane.xlu0 %1688
        %v1690 = vsel %vm1647, %v1645, -inf
        %1691 = vmax.xlane.f32.xlu0 %v1690
        %v1692 = vpop.xlane.xlu0 %1691
        %v1693 = vsel %vm1647, %v1646, -inf
        %1694 = vmax.xlane.f32.xlu0 %v1693
        %v1695 = vpop.xlane.xlu0 %1694
        %v1696 = vsub.f32 %v1631, %v1650
        %v1697 = vsub.f32 %v1632, %v1653
        %v1698 = vsub.f32 %v1633, %v1656
        %v1699 = vsub.f32 %v1634, %v1659
        %v1700 = vsub.f32 %v1635, %v1662
        %v1701 = vsub.f32 %v1636, %v1665
        %v1702 = vsub.f32 %v1637, %v1668
        %v1703 = vsub.f32 %v1638, %v1671
        %v1704 = vsub.f32 %v1639, %v1674
        %v1705 = vsub.f32 %v1640, %v1677
        %v1706 = vsub.f32 %v1641, %v1680
        %v1707 = vsub.f32 %v1642, %v1683
        %v1708 = vsub.f32 %v1643, %v1686
        %v1709 = vsub.f32 %v1644, %v1689
        %v1710 = vsub.f32 %v1645, %v1692
        %v1711 = vsub.f32 %v1646, %v1695
        %v1712 = vmul.f32 %v1696, 1.442695
        %v1713 = vpow.pop %v1712
        %v1714 = vmul.f32 %v1697, 1.442695
        %v1715 = vpow.pop %v1714
        %v1716 = vmul.f32 %v1698, 1.442695
        %v1717 = vpow.pop %v1716
        %v1718 = vmul.f32 %v1699, 1.442695
        %v1719 = vpow.pop %v1718
        %v1720 = vmul.f32 %v1700, 1.442695
        %v1721 = vpow.pop %v1720
        %v1722 = vmul.f32 %v1701, 1.442695
        %v1723 = vpow.pop %v1722
        %v1724 = vmul.f32 %v1702, 1.442695
        %v1725 = vpow.pop %v1724
        %v1726 = vmul.f32 %v1703, 1.442695
        %v1727 = vpow.pop %v1726
        %v1728 = vmul.f32 %v1704, 1.442695
        %v1729 = vpow.pop %v1728
        %v1730 = vmul.f32 %v1705, 1.442695
        %v1731 = vpow.pop %v1730
        %v1732 = vmul.f32 %v1706, 1.442695
        %v1733 = vpow.pop %v1732
        %v1734 = vmul.f32 %v1707, 1.442695
        %v1735 = vpow.pop %v1734
        %v1736 = vmul.f32 %v1708, 1.442695
        %v1737 = vpow.pop %v1736
        %v1738 = vmul.f32 %v1709, 1.442695
        %v1739 = vpow.pop %v1738
        %v1740 = vmul.f32 %v1710, 1.442695
        %v1741 = vpow.pop %v1740
        %v1742 = vmul.f32 %v1711, 1.442695
        %v1743 = vpow.pop %v1742
        %v1744 = vsel %vm1647, %v1713, 0.0
        %1745 = vadd.xlane.f32.xlu0 %v1744
        %v1746 = vpop.xlane.xlu0 %1745
        %v1747 = vsel %vm1647, %v1715, 0.0
        %1748 = vadd.xlane.f32.xlu0 %v1747
        %v1749 = vpop.xlane.xlu0 %1748
        %v1750 = vsel %vm1647, %v1717, 0.0
        %1751 = vadd.xlane.f32.xlu0 %v1750
        %v1752 = vpop.xlane.xlu0 %1751
        %v1753 = vsel %vm1647, %v1719, 0.0
        %1754 = vadd.xlane.f32.xlu0 %v1753
        %v1755 = vpop.xlane.xlu0 %1754
        %v1756 = vsel %vm1647, %v1721, 0.0
        %1757 = vadd.xlane.f32.xlu0 %v1756
        %v1758 = vpop.xlane.xlu0 %1757
        %v1759 = vsel %vm1647, %v1723, 0.0
        %1760 = vadd.xlane.f32.xlu0 %v1759
        %v1761 = vpop.xlane.xlu0 %1760
        %v1762 = vsel %vm1647, %v1725, 0.0
        %1763 = vadd.xlane.f32.xlu0 %v1762
        %v1764 = vpop.xlane.xlu0 %1763
        %v1765 = vsel %vm1647, %v1727, 0.0
        %1766 = vadd.xlane.f32.xlu0 %v1765
        %v1767 = vpop.xlane.xlu0 %1766
        %v1768 = vsel %vm1647, %v1729, 0.0
        %1769 = vadd.xlane.f32.xlu0 %v1768
        %v1770 = vpop.xlane.xlu0 %1769
        %v1771 = vsel %vm1647, %v1731, 0.0
        %1772 = vadd.xlane.f32.xlu0 %v1771
        %v1773 = vpop.xlane.xlu0 %1772
        %v1774 = vsel %vm1647, %v1733, 0.0
        %1775 = vadd.xlane.f32.xlu0 %v1774
        %v1776 = vpop.xlane.xlu0 %1775
        %v1777 = vsel %vm1647, %v1735, 0.0
        %1778 = vadd.xlane.f32.xlu0 %v1777
        %v1779 = vpop.xlane.xlu0 %1778
        %v1780 = vsel %vm1647, %v1737, 0.0
        %1781 = vadd.xlane.f32.xlu0 %v1780
        %v1782 = vpop.xlane.xlu0 %1781
        %v1783 = vsel %vm1647, %v1739, 0.0
        %1784 = vadd.xlane.f32.xlu0 %v1783
        %v1785 = vpop.xlane.xlu0 %1784
        %v1786 = vsel %vm1647, %v1741, 0.0
        %1787 = vadd.xlane.f32.xlu0 %v1786
        %v1788 = vpop.xlane.xlu0 %1787
        %v1789 = vsel %vm1647, %v1743, 0.0
        %1790 = vadd.xlane.f32.xlu0 %v1789
        %v1791 = vpop.xlane.xlu0 %1790
        %v1792 = vrcp.pop %v1746
        %v1793 = vrcp.pop %v1749
        %v1794 = vrcp.pop %v1752
        %v1795 = vrcp.pop %v1755
        %v1796 = vrcp.pop %v1758
        %v1797 = vrcp.pop %v1761
        %v1798 = vrcp.pop %v1764
        %v1799 = vrcp.pop %v1767
        %v1800 = vrcp.pop %v1770
        %v1801 = vrcp.pop %v1773
        %v1802 = vrcp.pop %v1776
        %v1803 = vrcp.pop %v1779
        %v1804 = vrcp.pop %v1782
        %v1805 = vrcp.pop %v1785
        %v1806 = vrcp.pop %v1788
        %v1807 = vrcp.pop %v1791
        %v1808 = vmul.f32 %v1713, %v1792
        %v1809 = vmul.f32 %v1715, %v1793
        %v1810 = vmul.f32 %v1717, %v1794
        %v1811 = vmul.f32 %v1719, %v1795
        %v1812 = vmul.f32 %v1721, %v1796
        %v1813 = vmul.f32 %v1723, %v1797
        %v1814 = vmul.f32 %v1725, %v1798
        %v1815 = vmul.f32 %v1727, %v1799
        %v1816 = vmul.f32 %v1729, %v1800
        %v1817 = vmul.f32 %v1731, %v1801
        %v1818 = vmul.f32 %v1733, %v1802
        %v1819 = vmul.f32 %v1735, %v1803
        %v1820 = vmul.f32 %v1737, %v1804
        %v1821 = vmul.f32 %v1739, %v1805
        %v1822 = vmul.f32 %v1741, %v1806
        %v1823 = vmul.f32 %v1743, %v1807
        %v1824 = vpack.c.bf16 %v1808, %v1808
        %v1825 = vpack.c.bf16 %v1809, %v1809
        %v1826 = vpack.c.bf16 %v1810, %v1810
        %v1827 = vpack.c.bf16 %v1811, %v1811
        %v1828 = vpack.c.bf16 %v1812, %v1812
        %v1829 = vpack.c.bf16 %v1813, %v1813
        %v1830 = vpack.c.bf16 %v1814, %v1814
        %v1831 = vpack.c.bf16 %v1815, %v1815
        %v1832 = vpack.c.bf16 %v1816, %v1816
        %v1833 = vpack.c.bf16 %v1817, %v1817
        %v1834 = vpack.c.bf16 %v1818, %v1818
        %v1835 = vpack.c.bf16 %v1819, %v1819
        %v1836 = vpack.c.bf16 %v1820, %v1820
        %v1837 = vpack.c.bf16 %v1821, %v1821
        %v1838 = vpack.c.bf16 %v1822, %v1822
        %v1839 = vpack.c.bf16 %v1823, %v1823
        %1840 = vrot.lane.b32.xlu0 %v814, 64
        %v1841 = vpop.permute.xlu0 %1840
        %v1843 = vsel %vm1647, %v1824, 0
        %vm1845 = vcmask 1043456
        %v1847 = vsel %vm1845, %v1841, 0
        %1849 = vmatprep.subr.bf16.mxu0 0
        %1850 = vmatpush1.bf16.msra.mxu0 %v1847
        %1851 = vmatprep.subr.bf16.mxu0 0
        %1852 = vmatpush1.bf16.msra.mxu0 0
        %1853 = vmatprep.subr.bf16.mxu0 0
        %1854 = vmatpush1.bf16.msra.mxu0 0
        %1855 = vmatprep.subr.bf16.mxu0 0
        %1856 = vmatpush1.bf16.msra.mxu0 0
        %1857 = vmatprep.subr.bf16.mxu0 0
        %1858 = vmatpush1.bf16.msra.mxu0 0
        %1859 = vmatprep.subr.bf16.mxu0 0
        %1860 = vmatpush1.bf16.msra.mxu0 0
        %1861 = vmatprep.subr.bf16.mxu0 0
        %1862 = vmatpush1.bf16.msra.mxu0 0
        %1863 = vmatprep.subr.bf16.mxu0 0
        %1864 = vmatpush1.bf16.msra.mxu0 0
        %1865 = vmatprep.subr.bf16.mxu0 0
        %1866 = vmatpush1.bf16.msra.mxu0 0
        %1867 = vmatprep.subr.bf16.mxu0 0
        %1868 = vmatpush1.bf16.msra.mxu0 0
        %1869 = vmatprep.subr.bf16.mxu0 0
        %1870 = vmatpush1.bf16.msra.mxu0 0
        %1871 = vmatprep.subr.bf16.mxu0 0
        %1872 = vmatpush1.bf16.msra.mxu0 0
        %1873 = vmatprep.subr.bf16.mxu0 0
        %1874 = vmatpush1.bf16.msra.mxu0 0
        %1875 = vmatprep.subr.bf16.mxu0 0
        %1876 = vmatpush1.bf16.msra.mxu0 0
        %1877 = vmatprep.subr.bf16.mxu0 0
        %1878 = vmatpush1.bf16.msra.mxu0 0
        %1879 = vmatprep.subr.bf16.mxu0 0
        %1880 = vmatpush1.bf16.msra.mxu0 0
        %1881 = vmatprep.mubr.bf16.mxu0 0
        %1882 = vmatmul.mubr.bf16.gmra.mrb[0].mxu0 %v1843
        %v1883 = vpop.f32.mrb[0].mxu0
        %v1884 = vadd.f32 0.0, %v1883
        %v1885 = vpop.f32.mrb[0].mxu0
        %v1886 = vpop.f32.mrb[0].mxu0
        %v1887 = vpop.f32.mrb[0].mxu0
        %1888 = vdwg.mxu0
        %1889 = vrot.lane.b32.xlu0 %v815, 64
        %v1890 = vpop.permute.xlu0 %1889
        %v1892 = vsel %vm1647, %v1825, 0
        %v1895 = vsel %vm1845, %v1890, 0
        %1897 = vmatprep.subr.bf16.mxu0 0
        %1898 = vmatpush1.bf16.msra.mxu0 %v1895
        %1899 = vmatprep.subr.bf16.mxu0 0
        %1900 = vmatpush1.bf16.msra.mxu0 0
        %1901 = vmatprep.subr.bf16.mxu0 0
        %1902 = vmatpush1.bf16.msra.mxu0 0
        %1903 = vmatprep.subr.bf16.mxu0 0
        %1904 = vmatpush1.bf16.msra.mxu0 0
        %1905 = vmatprep.subr.bf16.mxu0 0
        %1906 = vmatpush1.bf16.msra.mxu0 0
        %1907 = vmatprep.subr.bf16.mxu0 0
        %1908 = vmatpush1.bf16.msra.mxu0 0
        %1909 = vmatprep.subr.bf16.mxu0 0
        %1910 = vmatpush1.bf16.msra.mxu0 0
        %1911 = vmatprep.subr.bf16.mxu0 0
        %1912 = vmatpush1.bf16.msra.mxu0 0
        %1913 = vmatprep.subr.bf16.mxu0 0
        %1914 = vmatpush1.bf16.msra.mxu0 0
        %1915 = vmatprep.subr.bf16.mxu0 0
        %1916 = vmatpush1.bf16.msra.mxu0 0
        %1917 = vmatprep.subr.bf16.mxu0 0
        %1918 = vmatpush1.bf16.msra.mxu0 0
        %1919 = vmatprep.subr.bf16.mxu0 0
        %1920 = vmatpush1.bf16.msra.mxu0 0
        %1921 = vmatprep.subr.bf16.mxu0 0
        %1922 = vmatpush1.bf16.msra.mxu0 0
        %1923 = vmatprep.subr.bf16.mxu0 0
        %1924 = vmatpush1.bf16.msra.mxu0 0
        %1925 = vmatprep.subr.bf16.mxu0 0
        %1926 = vmatpush1.bf16.msra.mxu0 0
        %1927 = vmatprep.subr.bf16.mxu0 0
        %1928 = vmatpush1.bf16.msra.mxu0 0
        %1929 = vmatprep.mubr.bf16.mxu0 0
        %1930 = vmatmul.mubr.bf16.gmra.mrb[0].mxu0 %v1892
        %v1931 = vpop.f32.mrb[0].mxu0
        %v1932 = vadd.f32 0.0, %v1931
        %v1933 = vpop.f32.mrb[0].mxu0
        %v1934 = vpop.f32.mrb[0].mxu0
        %v1935 = vpop.f32.mrb[0].mxu0
        %1936 = vdwg.mxu0
        %1937 = vrot.lane.b32.xlu0 %v816, 64
        %v1938 = vpop.permute.xlu0 %1937
        %v1940 = vsel %vm1647, %v1826, 0
        %v1943 = vsel %vm1845, %v1938, 0
        %1945 = vmatprep.subr.bf16.mxu0 0
        %1946 = vmatpush1.bf16.msra.mxu0 %v1943
        %1947 = vmatprep.subr.bf16.mxu0 0
        %1948 = vmatpush1.bf16.msra.mxu0 0
        %1949 = vmatprep.subr.bf16.mxu0 0
        %1950 = vmatpush1.bf16.msra.mxu0 0
        %1951 = vmatprep.subr.bf16.mxu0 0
        %1952 = vmatpush1.bf16.msra.mxu0 0
        %1953 = vmatprep.subr.bf16.mxu0 0
        %1954 = vmatpush1.bf16.msra.mxu0 0
        %1955 = vmatprep.subr.bf16.mxu0 0
        %1956 = vmatpush1.bf16.msra.mxu0 0
        %1957 = vmatprep.subr.bf16.mxu0 0
        %1958 = vmatpush1.bf16.msra.mxu0 0
        %1959 = vmatprep.subr.bf16.mxu0 0
        %1960 = vmatpush1.bf16.msra.mxu0 0
        %1961 = vmatprep.subr.bf16.mxu0 0
        %1962 = vmatpush1.bf16.msra.mxu0 0
        %1963 = vmatprep.subr.bf16.mxu0 0
        %1964 = vmatpush1.bf16.msra.mxu0 0
        %1965 = vmatprep.subr.bf16.mxu0 0
        %1966 = vmatpush1.bf16.msra.mxu0 0
        %1967 = vmatprep.subr.bf16.mxu0 0
        %1968 = vmatpush1.bf16.msra.mxu0 0
        %1969 = vmatprep.subr.bf16.mxu0 0
        %1970 = vmatpush1.bf16.msra.mxu0 0
        %1971 = vmatprep.subr.bf16.mxu0 0
        %1972 = vmatpush1.bf16.msra.mxu0 0
        %1973 = vmatprep.subr.bf16.mxu0 0
        %1974 = vmatpush1.bf16.msra.mxu0 0
        %1975 = vmatprep.subr.bf16.mxu0 0
        %1976 = vmatpush1.bf16.msra.mxu0 0
        %1977 = vmatprep.mubr.bf16.mxu0 0
        %1978 = vmatmul.mubr.bf16.gmra.mrb[0].mxu0 %v1940
        %v1979 = vpop.f32.mrb[0].mxu0
        %v1980 = vadd.f32 0.0, %v1979
        %v1981 = vpop.f32.mrb[0].mxu0
        %v1982 = vpop.f32.mrb[0].mxu0
        %v1983 = vpop.f32.mrb[0].mxu0
        %1984 = vdwg.mxu0
        %1985 = vrot.lane.b32.xlu0 %v817, 64
        %v1986 = vpop.permute.xlu0 %1985
        %v1988 = vsel %vm1647, %v1827, 0
        %v1991 = vsel %vm1845, %v1986, 0
        %1993 = vmatprep.subr.bf16.mxu0 0
        %1994 = vmatpush1.bf16.msra.mxu0 %v1991
        %1995 = vmatprep.subr.bf16.mxu0 0
        %1996 = vmatpush1.bf16.msra.mxu0 0
        %1997 = vmatprep.subr.bf16.mxu0 0
        %1998 = vmatpush1.bf16.msra.mxu0 0
        %1999 = vmatprep.subr.bf16.mxu0 0
        %2000 = vmatpush1.bf16.msra.mxu0 0
        %2001 = vmatprep.subr.bf16.mxu0 0
        %2002 = vmatpush1.bf16.msra.mxu0 0
        %2003 = vmatprep.subr.bf16.mxu0 0
        %2004 = vmatpush1.bf16.msra.mxu0 0
        %2005 = vmatprep.subr.bf16.mxu0 0
        %2006 = vmatpush1.bf16.msra.mxu0 0
        %2007 = vmatprep.subr.bf16.mxu0 0
        %2008 = vmatpush1.bf16.msra.mxu0 0
        %2009 = vmatprep.subr.bf16.mxu0 0
        %2010 = vmatpush1.bf16.msra.mxu0 0
        %2011 = vmatprep.subr.bf16.mxu0 0
        %2012 = vmatpush1.bf16.msra.mxu0 0
        %2013 = vmatprep.subr.bf16.mxu0 0
        %2014 = vmatpush1.bf16.msra.mxu0 0
        %2015 = vmatprep.subr.bf16.mxu0 0
        %2016 = vmatpush1.bf16.msra.mxu0 0
        %2017 = vmatprep.subr.bf16.mxu0 0
        %2018 = vmatpush1.bf16.msra.mxu0 0
        %2019 = vmatprep.subr.bf16.mxu0 0
        %2020 = vmatpush1.bf16.msra.mxu0 0
        %2021 = vmatprep.subr.bf16.mxu0 0
        %2022 = vmatpush1.bf16.msra.mxu0 0
        %2023 = vmatprep.subr.bf16.mxu0 0
        %2024 = vmatpush1.bf16.msra.mxu0 0
        %2025 = vmatprep.mubr.bf16.mxu0 0
        %2026 = vmatmul.mubr.bf16.gmra.mrb[0].mxu0 %v1988
        %v2027 = vpop.f32.mrb[0].mxu0
        %v2028 = vadd.f32 0.0, %v2027
        %v2029 = vpop.f32.mrb[0].mxu0
        %v2030 = vpop.f32.mrb[0].mxu0
        %v2031 = vpop.f32.mrb[0].mxu0
        %2032 = vdwg.mxu0
        %2033 = vrot.lane.b32.xlu0 %v818, 64
        %v2034 = vpop.permute.xlu0 %2033
        %v2036 = vsel %vm1647, %v1828, 0
        %v2039 = vsel %vm1845, %v2034, 0
        %2041 = vmatprep.subr.bf16.mxu0 0
        %2042 = vmatpush1.bf16.msra.mxu0 %v2039
        %2043 = vmatprep.subr.bf16.mxu0 0
        %2044 = vmatpush1.bf16.msra.mxu0 0
        %2045 = vmatprep.subr.bf16.mxu0 0
        %2046 = vmatpush1.bf16.msra.mxu0 0
        %2047 = vmatprep.subr.bf16.mxu0 0
        %2048 = vmatpush1.bf16.msra.mxu0 0
        %2049 = vmatprep.subr.bf16.mxu0 0
        %2050 = vmatpush1.bf16.msra.mxu0 0
        %2051 = vmatprep.subr.bf16.mxu0 0
        %2052 = vmatpush1.bf16.msra.mxu0 0
        %2053 = vmatprep.subr.bf16.mxu0 0
        %2054 = vmatpush1.bf16.msra.mxu0 0
        %2055 = vmatprep.subr.bf16.mxu0 0
        %2056 = vmatpush1.bf16.msra.mxu0 0
        %2057 = vmatprep.subr.bf16.mxu0 0
        %2058 = vmatpush1.bf16.msra.mxu0 0
        %2059 = vmatprep.subr.bf16.mxu0 0
        %2060 = vmatpush1.bf16.msra.mxu0 0
        %2061 = vmatprep.subr.bf16.mxu0 0
        %2062 = vmatpush1.bf16.msra.mxu0 0
        %2063 = vmatprep.subr.bf16.mxu0 0
        %2064 = vmatpush1.bf16.msra.mxu0 0
        %2065 = vmatprep.subr.bf16.mxu0 0
        %2066 = vmatpush1.bf16.msra.mxu0 0
        %2067 = vmatprep.subr.bf16.mxu0 0
        %2068 = vmatpush1.bf16.msra.mxu0 0
        %2069 = vmatprep.subr.bf16.mxu0 0
        %2070 = vmatpush1.bf16.msra.mxu0 0
        %2071 = vmatprep.subr.bf16.mxu0 0
        %2072 = vmatpush1.bf16.msra.mxu0 0
        %2073 = vmatprep.mubr.bf16.mxu0 0
        %2074 = vmatmul.mubr.bf16.gmra.mrb[0].mxu0 %v2036
        %v2075 = vpop.f32.mrb[0].mxu0
        %v2076 = vadd.f32 0.0, %v2075
        %v2077 = vpop.f32.mrb[0].mxu0
        %v2078 = vpop.f32.mrb[0].mxu0
        %v2079 = vpop.f32.mrb[0].mxu0
        %2080 = vdwg.mxu0
        %2081 = vrot.lane.b32.xlu0 %v819, 64
        %v2082 = vpop.permute.xlu0 %2081
        %v2084 = vsel %vm1647, %v1829, 0
        %v2087 = vsel %vm1845, %v2082, 0
        %2089 = vmatprep.subr.bf16.mxu0 0
        %2090 = vmatpush1.bf16.msra.mxu0 %v2087
        %2091 = vmatprep.subr.bf16.mxu0 0
        %2092 = vmatpush1.bf16.msra.mxu0 0
        %2093 = vmatprep.subr.bf16.mxu0 0
        %2094 = vmatpush1.bf16.msra.mxu0 0
        %2095 = vmatprep.subr.bf16.mxu0 0
        %2096 = vmatpush1.bf16.msra.mxu0 0
        %2097 = vmatprep.subr.bf16.mxu0 0
        %2098 = vmatpush1.bf16.msra.mxu0 0
        %2099 = vmatprep.subr.bf16.mxu0 0
        %2100 = vmatpush1.bf16.msra.mxu0 0
        %2101 = vmatprep.subr.bf16.mxu0 0
        %2102 = vmatpush1.bf16.msra.mxu0 0
        %2103 = vmatprep.subr.bf16.mxu0 0
        %2104 = vmatpush1.bf16.msra.mxu0 0
        %2105 = vmatprep.subr.bf16.mxu0 0
        %2106 = vmatpush1.bf16.msra.mxu0 0
        %2107 = vmatprep.subr.bf16.mxu0 0
        %2108 = vmatpush1.bf16.msra.mxu0 0
        %2109 = vmatprep.subr.bf16.mxu0 0
        %2110 = vmatpush1.bf16.msra.mxu0 0
        %2111 = vmatprep.subr.bf16.mxu0 0
        %2112 = vmatpush1.bf16.msra.mxu0 0
        %2113 = vmatprep.subr.bf16.mxu0 0
        %2114 = vmatpush1.bf16.msra.mxu0 0
        %2115 = vmatprep.subr.bf16.mxu0 0
        %2116 = vmatpush1.bf16.msra.mxu0 0
        %2117 = vmatprep.subr.bf16.mxu0 0
        %2118 = vmatpush1.bf16.msra.mxu0 0
        %2119 = vmatprep.subr.bf16.mxu0 0
        %2120 = vmatpush1.bf16.msra.mxu0 0
        %2121 = vmatprep.mubr.bf16.mxu0 0
        %2122 = vmatmul.mubr.bf16.gmra.mrb[0].mxu0 %v2084
        %v2123 = vpop.f32.mrb[0].mxu0
        %v2124 = vadd.f32 0.0, %v2123
        %v2125 = vpop.f32.mrb[0].mxu0
        %v2126 = vpop.f32.mrb[0].mxu0
        %v2127 = vpop.f32.mrb[0].mxu0
        %2128 = vdwg.mxu0
        %2129 = vrot.lane.b32.xlu0 %v820, 64
        %v2130 = vpop.permute.xlu0 %2129
        %v2132 = vsel %vm1647, %v1830, 0
        %v2135 = vsel %vm1845, %v2130, 0
        %2137 = vmatprep.subr.bf16.mxu0 0
        %2138 = vmatpush1.bf16.msra.mxu0 %v2135
        %2139 = vmatprep.subr.bf16.mxu0 0
        %2140 = vmatpush1.bf16.msra.mxu0 0
        %2141 = vmatprep.subr.bf16.mxu0 0
        %2142 = vmatpush1.bf16.msra.mxu0 0
        %2143 = vmatprep.subr.bf16.mxu0 0
        %2144 = vmatpush1.bf16.msra.mxu0 0
        %2145 = vmatprep.subr.bf16.mxu0 0
        %2146 = vmatpush1.bf16.msra.mxu0 0
        %2147 = vmatprep.subr.bf16.mxu0 0
        %2148 = vmatpush1.bf16.msra.mxu0 0
        %2149 = vmatprep.subr.bf16.mxu0 0
        %2150 = vmatpush1.bf16.msra.mxu0 0
        %2151 = vmatprep.subr.bf16.mxu0 0
        %2152 = vmatpush1.bf16.msra.mxu0 0
        %2153 = vmatprep.subr.bf16.mxu0 0
        %2154 = vmatpush1.bf16.msra.mxu0 0
        %2155 = vmatprep.subr.bf16.mxu0 0
        %2156 = vmatpush1.bf16.msra.mxu0 0
        %2157 = vmatprep.subr.bf16.mxu0 0
        %2158 = vmatpush1.bf16.msra.mxu0 0
        %2159 = vmatprep.subr.bf16.mxu0 0
        %2160 = vmatpush1.bf16.msra.mxu0 0
        %2161 = vmatprep.subr.bf16.mxu0 0
        %2162 = vmatpush1.bf16.msra.mxu0 0
        %2163 = vmatprep.subr.bf16.mxu0 0
        %2164 = vmatpush1.bf16.msra.mxu0 0
        %2165 = vmatprep.subr.bf16.mxu0 0
        %2166 = vmatpush1.bf16.msra.mxu0 0
        %2167 = vmatprep.subr.bf16.mxu0 0
        %2168 = vmatpush1.bf16.msra.mxu0 0
        %2169 = vmatprep.mubr.bf16.mxu0 0
        %2170 = vmatmul.mubr.bf16.gmra.mrb[0].mxu0 %v2132
        %v2171 = vpop.f32.mrb[0].mxu0
        %v2172 = vadd.f32 0.0, %v2171
        %v2173 = vpop.f32.mrb[0].mxu0
        %v2174 = vpop.f32.mrb[0].mxu0
        %v2175 = vpop.f32.mrb[0].mxu0
        %2176 = vdwg.mxu0
        %2177 = vrot.lane.b32.xlu0 %v821, 64
        %v2178 = vpop.permute.xlu0 %2177
        %v2180 = vsel %vm1647, %v1831, 0
        %v2183 = vsel %vm1845, %v2178, 0
        %2185 = vmatprep.subr.bf16.mxu0 0
        %2186 = vmatpush1.bf16.msra.mxu0 %v2183
        %2187 = vmatprep.subr.bf16.mxu0 0
        %2188 = vmatpush1.bf16.msra.mxu0 0
        %2189 = vmatprep.subr.bf16.mxu0 0
        %2190 = vmatpush1.bf16.msra.mxu0 0
        %2191 = vmatprep.subr.bf16.mxu0 0
        %2192 = vmatpush1.bf16.msra.mxu0 0
        %2193 = vmatprep.subr.bf16.mxu0 0
        %2194 = vmatpush1.bf16.msra.mxu0 0
        %2195 = vmatprep.subr.bf16.mxu0 0
        %2196 = vmatpush1.bf16.msra.mxu0 0
        %2197 = vmatprep.subr.bf16.mxu0 0
        %2198 = vmatpush1.bf16.msra.mxu0 0
        %2199 = vmatprep.subr.bf16.mxu0 0
        %2200 = vmatpush1.bf16.msra.mxu0 0
        %2201 = vmatprep.subr.bf16.mxu0 0
        %2202 = vmatpush1.bf16.msra.mxu0 0
        %2203 = vmatprep.subr.bf16.mxu0 0
        %2204 = vmatpush1.bf16.msra.mxu0 0
        %2205 = vmatprep.subr.bf16.mxu0 0
        %2206 = vmatpush1.bf16.msra.mxu0 0
        %2207 = vmatprep.subr.bf16.mxu0 0
        %2208 = vmatpush1.bf16.msra.mxu0 0
        %2209 = vmatprep.subr.bf16.mxu0 0
        %2210 = vmatpush1.bf16.msra.mxu0 0
        %2211 = vmatprep.subr.bf16.mxu0 0
        %2212 = vmatpush1.bf16.msra.mxu0 0
        %2213 = vmatprep.subr.bf16.mxu0 0
        %2214 = vmatpush1.bf16.msra.mxu0 0
        %2215 = vmatprep.subr.bf16.mxu0 0
        %2216 = vmatpush1.bf16.msra.mxu0 0
        %2217 = vmatprep.mubr.bf16.mxu0 0
        %2218 = vmatmul.mubr.bf16.gmra.mrb[0].mxu0 %v2180
        %v2219 = vpop.f32.mrb[0].mxu0
        %v2220 = vadd.f32 0.0, %v2219
        %v2221 = vpop.f32.mrb[0].mxu0
        %v2222 = vpop.f32.mrb[0].mxu0
        %v2223 = vpop.f32.mrb[0].mxu0
        %2224 = vdwg.mxu0
        %2225 = vrot.lane.b32.xlu0 %v822, 64
        %v2226 = vpop.permute.xlu0 %2225
        %v2228 = vsel %vm1647, %v1832, 0
        %v2231 = vsel %vm1845, %v2226, 0
        %2233 = vmatprep.subr.bf16.mxu0 0
        %2234 = vmatpush1.bf16.msra.mxu0 %v2231
        %2235 = vmatprep.subr.bf16.mxu0 0
        %2236 = vmatpush1.bf16.msra.mxu0 0
        %2237 = vmatprep.subr.bf16.mxu0 0
        %2238 = vmatpush1.bf16.msra.mxu0 0
        %2239 = vmatprep.subr.bf16.mxu0 0
        %2240 = vmatpush1.bf16.msra.mxu0 0
        %2241 = vmatprep.subr.bf16.mxu0 0
        %2242 = vmatpush1.bf16.msra.mxu0 0
        %2243 = vmatprep.subr.bf16.mxu0 0
        %2244 = vmatpush1.bf16.msra.mxu0 0
        %2245 = vmatprep.subr.bf16.mxu0 0
        %2246 = vmatpush1.bf16.msra.mxu0 0
        %2247 = vmatprep.subr.bf16.mxu0 0
        %2248 = vmatpush1.bf16.msra.mxu0 0
        %2249 = vmatprep.subr.bf16.mxu0 0
        %2250 = vmatpush1.bf16.msra.mxu0 0
        %2251 = vmatprep.subr.bf16.mxu0 0
        %2252 = vmatpush1.bf16.msra.mxu0 0
        %2253 = vmatprep.subr.bf16.mxu0 0
        %2254 = vmatpush1.bf16.msra.mxu0 0
        %2255 = vmatprep.subr.bf16.mxu0 0
        %2256 = vmatpush1.bf16.msra.mxu0 0
        %2257 = vmatprep.subr.bf16.mxu0 0
        %2258 = vmatpush1.bf16.msra.mxu0 0
        %2259 = vmatprep.subr.bf16.mxu0 0
        %2260 = vmatpush1.bf16.msra.mxu0 0
        %2261 = vmatprep.subr.bf16.mxu0 0
        %2262 = vmatpush1.bf16.msra.mxu0 0
        %2263 = vmatprep.subr.bf16.mxu0 0
        %2264 = vmatpush1.bf16.msra.mxu0 0
        %2265 = vmatprep.mubr.bf16.mxu0 0
        %2266 = vmatmul.mubr.bf16.gmra.mrb[0].mxu0 %v2228
        %v2267 = vpop.f32.mrb[0].mxu0
        %v2268 = vadd.f32 0.0, %v2267
        %v2269 = vpop.f32.mrb[0].mxu0
        %v2270 = vpop.f32.mrb[0].mxu0
        %v2271 = vpop.f32.mrb[0].mxu0
        %2272 = vdwg.mxu0
        %2273 = vrot.lane.b32.xlu0 %v823, 64
        %v2274 = vpop.permute.xlu0 %2273
        %v2276 = vsel %vm1647, %v1833, 0
        %v2279 = vsel %vm1845, %v2274, 0
        %2281 = vmatprep.subr.bf16.mxu0 0
        %2282 = vmatpush1.bf16.msra.mxu0 %v2279
        %2283 = vmatprep.subr.bf16.mxu0 0
        %2284 = vmatpush1.bf16.msra.mxu0 0
        %2285 = vmatprep.subr.bf16.mxu0 0
        %2286 = vmatpush1.bf16.msra.mxu0 0
        %2287 = vmatprep.subr.bf16.mxu0 0
        %2288 = vmatpush1.bf16.msra.mxu0 0
        %2289 = vmatprep.subr.bf16.mxu0 0
        %2290 = vmatpush1.bf16.msra.mxu0 0
        %2291 = vmatprep.subr.bf16.mxu0 0
        %2292 = vmatpush1.bf16.msra.mxu0 0
        %2293 = vmatprep.subr.bf16.mxu0 0
        %2294 = vmatpush1.bf16.msra.mxu0 0
        %2295 = vmatprep.subr.bf16.mxu0 0
        %2296 = vmatpush1.bf16.msra.mxu0 0
        %2297 = vmatprep.subr.bf16.mxu0 0
        %2298 = vmatpush1.bf16.msra.mxu0 0
        %2299 = vmatprep.subr.bf16.mxu0 0
        %2300 = vmatpush1.bf16.msra.mxu0 0
        %2301 = vmatprep.subr.bf16.mxu0 0
        %2302 = vmatpush1.bf16.msra.mxu0 0
        %2303 = vmatprep.subr.bf16.mxu0 0
        %2304 = vmatpush1.bf16.msra.mxu0 0
        %2305 = vmatprep.subr.bf16.mxu0 0
        %2306 = vmatpush1.bf16.msra.mxu0 0
        %2307 = vmatprep.subr.bf16.mxu0 0
        %2308 = vmatpush1.bf16.msra.mxu0 0
        %2309 = vmatprep.subr.bf16.mxu0 0
        %2310 = vmatpush1.bf16.msra.mxu0 0
        %2311 = vmatprep.subr.bf16.mxu0 0
        %2312 = vmatpush1.bf16.msra.mxu0 0
        %2313 = vmatprep.mubr.bf16.mxu0 0
        %2314 = vmatmul.mubr.bf16.gmra.mrb[0].mxu0 %v2276
        %v2315 = vpop.f32.mrb[0].mxu0
        %v2316 = vadd.f32 0.0, %v2315
        %v2317 = vpop.f32.mrb[0].mxu0
        %v2318 = vpop.f32.mrb[0].mxu0
        %v2319 = vpop.f32.mrb[0].mxu0
        %2320 = vdwg.mxu0
        %2321 = vrot.lane.b32.xlu0 %v824, 64
        %v2322 = vpop.permute.xlu0 %2321
        %v2324 = vsel %vm1647, %v1834, 0
        %v2327 = vsel %vm1845, %v2322, 0
        %2329 = vmatprep.subr.bf16.mxu0 0
        %2330 = vmatpush1.bf16.msra.mxu0 %v2327
        %2331 = vmatprep.subr.bf16.mxu0 0
        %2332 = vmatpush1.bf16.msra.mxu0 0
        %2333 = vmatprep.subr.bf16.mxu0 0
        %2334 = vmatpush1.bf16.msra.mxu0 0
        %2335 = vmatprep.subr.bf16.mxu0 0
        %2336 = vmatpush1.bf16.msra.mxu0 0
        %2337 = vmatprep.subr.bf16.mxu0 0
        %2338 = vmatpush1.bf16.msra.mxu0 0
        %2339 = vmatprep.subr.bf16.mxu0 0
        %2340 = vmatpush1.bf16.msra.mxu0 0
        %2341 = vmatprep.subr.bf16.mxu0 0
        %2342 = vmatpush1.bf16.msra.mxu0 0
        %2343 = vmatprep.subr.bf16.mxu0 0
        %2344 = vmatpush1.bf16.msra.mxu0 0
        %2345 = vmatprep.subr.bf16.mxu0 0
        %2346 = vmatpush1.bf16.msra.mxu0 0
        %2347 = vmatprep.subr.bf16.mxu0 0
        %2348 = vmatpush1.bf16.msra.mxu0 0
        %2349 = vmatprep.subr.bf16.mxu0 0
        %2350 = vmatpush1.bf16.msra.mxu0 0
        %2351 = vmatprep.subr.bf16.mxu0 0
        %2352 = vmatpush1.bf16.msra.mxu0 0
        %2353 = vmatprep.subr.bf16.mxu0 0
        %2354 = vmatpush1.bf16.msra.mxu0 0
        %2355 = vmatprep.subr.bf16.mxu0 0
        %2356 = vmatpush1.bf16.msra.mxu0 0
        %2357 = vmatprep.subr.bf16.mxu0 0
        %2358 = vmatpush1.bf16.msra.mxu0 0
        %2359 = vmatprep.subr.bf16.mxu0 0
        %2360 = vmatpush1.bf16.msra.mxu0 0
        %2361 = vmatprep.mubr.bf16.mxu0 0
        %2362 = vmatmul.mubr.bf16.gmra.mrb[0].mxu0 %v2324
        %v2363 = vpop.f32.mrb[0].mxu0
        %v2364 = vadd.f32 0.0, %v2363
        %v2365 = vpop.f32.mrb[0].mxu0
        %v2366 = vpop.f32.mrb[0].mxu0
        %v2367 = vpop.f32.mrb[0].mxu0
        %2368 = vdwg.mxu0
        %2369 = vrot.lane.b32.xlu0 %v825, 64
        %v2370 = vpop.permute.xlu0 %2369
        %v2372 = vsel %vm1647, %v1835, 0
        %v2375 = vsel %vm1845, %v2370, 0
        %2377 = vmatprep.subr.bf16.mxu0 0
        %2378 = vmatpush1.bf16.msra.mxu0 %v2375
        %2379 = vmatprep.subr.bf16.mxu0 0
        %2380 = vmatpush1.bf16.msra.mxu0 0
        %2381 = vmatprep.subr.bf16.mxu0 0
        %2382 = vmatpush1.bf16.msra.mxu0 0
        %2383 = vmatprep.subr.bf16.mxu0 0
        %2384 = vmatpush1.bf16.msra.mxu0 0
        %2385 = vmatprep.subr.bf16.mxu0 0
        %2386 = vmatpush1.bf16.msra.mxu0 0
        %2387 = vmatprep.subr.bf16.mxu0 0
        %2388 = vmatpush1.bf16.msra.mxu0 0
        %2389 = vmatprep.subr.bf16.mxu0 0
        %2390 = vmatpush1.bf16.msra.mxu0 0
        %2391 = vmatprep.subr.bf16.mxu0 0
        %2392 = vmatpush1.bf16.msra.mxu0 0
        %2393 = vmatprep.subr.bf16.mxu0 0
        %2394 = vmatpush1.bf16.msra.mxu0 0
        %2395 = vmatprep.subr.bf16.mxu0 0
        %2396 = vmatpush1.bf16.msra.mxu0 0
        %2397 = vmatprep.subr.bf16.mxu0 0
        %2398 = vmatpush1.bf16.msra.mxu0 0
        %2399 = vmatprep.subr.bf16.mxu0 0
        %2400 = vmatpush1.bf16.msra.mxu0 0
        %2401 = vmatprep.subr.bf16.mxu0 0
        %2402 = vmatpush1.bf16.msra.mxu0 0
        %2403 = vmatprep.subr.bf16.mxu0 0
        %2404 = vmatpush1.bf16.msra.mxu0 0
        %2405 = vmatprep.subr.bf16.mxu0 0
        %2406 = vmatpush1.bf16.msra.mxu0 0
        %2407 = vmatprep.subr.bf16.mxu0 0
        %2408 = vmatpush1.bf16.msra.mxu0 0
        %2409 = vmatprep.mubr.bf16.mxu0 0
        %2410 = vmatmul.mubr.bf16.gmra.mrb[0].mxu0 %v2372
        %v2411 = vpop.f32.mrb[0].mxu0
        %v2412 = vadd.f32 0.0, %v2411
        %v2413 = vpop.f32.mrb[0].mxu0
        %v2414 = vpop.f32.mrb[0].mxu0
        %v2415 = vpop.f32.mrb[0].mxu0
        %2416 = vdwg.mxu0
        %2417 = vrot.lane.b32.xlu0 %v826, 64
        %v2418 = vpop.permute.xlu0 %2417
        %v2420 = vsel %vm1647, %v1836, 0
        %v2423 = vsel %vm1845, %v2418, 0
        %2425 = vmatprep.subr.bf16.mxu0 0
        %2426 = vmatpush1.bf16.msra.mxu0 %v2423
        %2427 = vmatprep.subr.bf16.mxu0 0
        %2428 = vmatpush1.bf16.msra.mxu0 0
        %2429 = vmatprep.subr.bf16.mxu0 0
        %2430 = vmatpush1.bf16.msra.mxu0 0
        %2431 = vmatprep.subr.bf16.mxu0 0
        %2432 = vmatpush1.bf16.msra.mxu0 0
        %2433 = vmatprep.subr.bf16.mxu0 0
        %2434 = vmatpush1.bf16.msra.mxu0 0
        %2435 = vmatprep.subr.bf16.mxu0 0
        %2436 = vmatpush1.bf16.msra.mxu0 0
        %2437 = vmatprep.subr.bf16.mxu0 0
        %2438 = vmatpush1.bf16.msra.mxu0 0
        %2439 = vmatprep.subr.bf16.mxu0 0
        %2440 = vmatpush1.bf16.msra.mxu0 0
        %2441 = vmatprep.subr.bf16.mxu0 0
        %2442 = vmatpush1.bf16.msra.mxu0 0
        %2443 = vmatprep.subr.bf16.mxu0 0
        %2444 = vmatpush1.bf16.msra.mxu0 0
        %2445 = vmatprep.subr.bf16.mxu0 0
        %2446 = vmatpush1.bf16.msra.mxu0 0
        %2447 = vmatprep.subr.bf16.mxu0 0
        %2448 = vmatpush1.bf16.msra.mxu0 0
        %2449 = vmatprep.subr.bf16.mxu0 0
        %2450 = vmatpush1.bf16.msra.mxu0 0
        %2451 = vmatprep.subr.bf16.mxu0 0
        %2452 = vmatpush1.bf16.msra.mxu0 0
        %2453 = vmatprep.subr.bf16.mxu0 0
        %2454 = vmatpush1.bf16.msra.mxu0 0
        %2455 = vmatprep.subr.bf16.mxu0 0
        %2456 = vmatpush1.bf16.msra.mxu0 0
        %2457 = vmatprep.mubr.bf16.mxu0 0
        %2458 = vmatmul.mubr.bf16.gmra.mrb[0].mxu0 %v2420
        %v2459 = vpop.f32.mrb[0].mxu0
        %v2460 = vadd.f32 0.0, %v2459
        %v2461 = vpop.f32.mrb[0].mxu0
        %v2462 = vpop.f32.mrb[0].mxu0
        %v2463 = vpop.f32.mrb[0].mxu0
        %2464 = vdwg.mxu0
        %2465 = vrot.lane.b32.xlu0 %v827, 64
        %v2466 = vpop.permute.xlu0 %2465
        %v2468 = vsel %vm1647, %v1837, 0
        %v2471 = vsel %vm1845, %v2466, 0
        %2473 = vmatprep.subr.bf16.mxu0 0
        %2474 = vmatpush1.bf16.msra.mxu0 %v2471
        %2475 = vmatprep.subr.bf16.mxu0 0
        %2476 = vmatpush1.bf16.msra.mxu0 0
        %2477 = vmatprep.subr.bf16.mxu0 0
        %2478 = vmatpush1.bf16.msra.mxu0 0
        %2479 = vmatprep.subr.bf16.mxu0 0
        %2480 = vmatpush1.bf16.msra.mxu0 0
        %2481 = vmatprep.subr.bf16.mxu0 0
        %2482 = vmatpush1.bf16.msra.mxu0 0
        %2483 = vmatprep.subr.bf16.mxu0 0
        %2484 = vmatpush1.bf16.msra.mxu0 0
        %2485 = vmatprep.subr.bf16.mxu0 0
        %2486 = vmatpush1.bf16.msra.mxu0 0
        %2487 = vmatprep.subr.bf16.mxu0 0
        %2488 = vmatpush1.bf16.msra.mxu0 0
        %2489 = vmatprep.subr.bf16.mxu0 0
        %2490 = vmatpush1.bf16.msra.mxu0 0
        %2491 = vmatprep.subr.bf16.mxu0 0
        %2492 = vmatpush1.bf16.msra.mxu0 0
        %2493 = vmatprep.subr.bf16.mxu0 0
        %2494 = vmatpush1.bf16.msra.mxu0 0
        %2495 = vmatprep.subr.bf16.mxu0 0
        %2496 = vmatpush1.bf16.msra.mxu0 0
        %2497 = vmatprep.subr.bf16.mxu0 0
        %2498 = vmatpush1.bf16.msra.mxu0 0
        %2499 = vmatprep.subr.bf16.mxu0 0
        %2500 = vmatpush1.bf16.msra.mxu0 0
        %2501 = vmatprep.subr.bf16.mxu0 0
        %2502 = vmatpush1.bf16.msra.mxu0 0
        %2503 = vmatprep.subr.bf16.mxu0 0
        %2504 = vmatpush1.bf16.msra.mxu0 0
        %2505 = vmatprep.mubr.bf16.mxu0 0
        %2506 = vmatmul.mubr.bf16.gmra.mrb[0].mxu0 %v2468
        %v2507 = vpop.f32.mrb[0].mxu0
        %v2508 = vadd.f32 0.0, %v2507
        %v2509 = vpop.f32.mrb[0].mxu0
        %v2510 = vpop.f32.mrb[0].mxu0
        %v2511 = vpop.f32.mrb[0].mxu0
        %2512 = vdwg.mxu0
        %2513 = vrot.lane.b32.xlu0 %v828, 64
        %v2514 = vpop.permute.xlu0 %2513
        %v2516 = vsel %vm1647, %v1838, 0
        %v2519 = vsel %vm1845, %v2514, 0
        %2521 = vmatprep.subr.bf16.mxu0 0
        %2522 = vmatpush1.bf16.msra.mxu0 %v2519
        %2523 = vmatprep.subr.bf16.mxu0 0
        %2524 = vmatpush1.bf16.msra.mxu0 0
        %2525 = vmatprep.subr.bf16.mxu0 0
        %2526 = vmatpush1.bf16.msra.mxu0 0
        %2527 = vmatprep.subr.bf16.mxu0 0
        %2528 = vmatpush1.bf16.msra.mxu0 0
        %2529 = vmatprep.subr.bf16.mxu0 0
        %2530 = vmatpush1.bf16.msra.mxu0 0
        %2531 = vmatprep.subr.bf16.mxu0 0
        %2532 = vmatpush1.bf16.msra.mxu0 0
        %2533 = vmatprep.subr.bf16.mxu0 0
        %2534 = vmatpush1.bf16.msra.mxu0 0
        %2535 = vmatprep.subr.bf16.mxu0 0
        %2536 = vmatpush1.bf16.msra.mxu0 0
        %2537 = vmatprep.subr.bf16.mxu0 0
        %2538 = vmatpush1.bf16.msra.mxu0 0
        %2539 = vmatprep.subr.bf16.mxu0 0
        %2540 = vmatpush1.bf16.msra.mxu0 0
        %2541 = vmatprep.subr.bf16.mxu0 0
        %2542 = vmatpush1.bf16.msra.mxu0 0
        %2543 = vmatprep.subr.bf16.mxu0 0
        %2544 = vmatpush1.bf16.msra.mxu0 0
        %2545 = vmatprep.subr.bf16.mxu0 0
        %2546 = vmatpush1.bf16.msra.mxu0 0
        %2547 = vmatprep.subr.bf16.mxu0 0
        %2548 = vmatpush1.bf16.msra.mxu0 0
        %2549 = vmatprep.subr.bf16.mxu0 0
        %2550 = vmatpush1.bf16.msra.mxu0 0
        %2551 = vmatprep.subr.bf16.mxu0 0
        %2552 = vmatpush1.bf16.msra.mxu0 0
        %2553 = vmatprep.mubr.bf16.mxu0 0
        %2554 = vmatmul.mubr.bf16.gmra.mrb[0].mxu0 %v2516
        %v2555 = vpop.f32.mrb[0].mxu0
        %v2556 = vadd.f32 0.0, %v2555
        %v2557 = vpop.f32.mrb[0].mxu0
        %v2558 = vpop.f32.mrb[0].mxu0
        %v2559 = vpop.f32.mrb[0].mxu0
        %2560 = vdwg.mxu0
        %2561 = vrot.lane.b32.xlu0 %v829, 64
        %v2562 = vpop.permute.xlu0 %2561
        %v2564 = vsel %vm1647, %v1839, 0
        %v2567 = vsel %vm1845, %v2562, 0
        %2569 = vmatprep.subr.bf16.mxu0 0
        %2570 = vmatpush1.bf16.msra.mxu0 %v2567
        %2571 = vmatprep.subr.bf16.mxu0 0
        %2572 = vmatpush1.bf16.msra.mxu0 0
        %2573 = vmatprep.subr.bf16.mxu0 0
        %2574 = vmatpush1.bf16.msra.mxu0 0
        %2575 = vmatprep.subr.bf16.mxu0 0
        %2576 = vmatpush1.bf16.msra.mxu0 0
        %2577 = vmatprep.subr.bf16.mxu0 0
        %2578 = vmatpush1.bf16.msra.mxu0 0
        %2579 = vmatprep.subr.bf16.mxu0 0
        %2580 = vmatpush1.bf16.msra.mxu0 0
        %2581 = vmatprep.subr.bf16.mxu0 0
        %2582 = vmatpush1.bf16.msra.mxu0 0
        %2583 = vmatprep.subr.bf16.mxu0 0
        %2584 = vmatpush1.bf16.msra.mxu0 0
        %2585 = vmatprep.subr.bf16.mxu0 0
        %2586 = vmatpush1.bf16.msra.mxu0 0
        %2587 = vmatprep.subr.bf16.mxu0 0
        %2588 = vmatpush1.bf16.msra.mxu0 0
        %2589 = vmatprep.subr.bf16.mxu0 0
        %2590 = vmatpush1.bf16.msra.mxu0 0
        %2591 = vmatprep.subr.bf16.mxu0 0
        %2592 = vmatpush1.bf16.msra.mxu0 0
        %2593 = vmatprep.subr.bf16.mxu0 0
        %2594 = vmatpush1.bf16.msra.mxu0 0
        %2595 = vmatprep.subr.bf16.mxu0 0
        %2596 = vmatpush1.bf16.msra.mxu0 0
        %2597 = vmatprep.subr.bf16.mxu0 0
        %2598 = vmatpush1.bf16.msra.mxu0 0
        %2599 = vmatprep.subr.bf16.mxu0 0
        %2600 = vmatpush1.bf16.msra.mxu0 0
        %2601 = vmatprep.mubr.bf16.mxu0 0
        %2602 = vmatmul.mubr.bf16.gmra.mrb[0].mxu0 %v2564
        %v2603 = vpop.f32.mrb[0].mxu0
        %v2604 = vadd.f32 0.0, %v2603
        %v2605 = vpop.f32.mrb[0].mxu0
        %v2606 = vpop.f32.mrb[0].mxu0
        %v2607 = vpop.f32.mrb[0].mxu0
        %2608 = vdwg.mxu0
        %2609 = vrot.lane.b32.xlu0 %v814, 112
        %v2610 = vpop.permute.xlu0 %2609
        %2611 = vrot.lane.b32.xlu0 %v814, 80
        %v2612 = vpop.permute.xlu0 %2611
        %v2614 = vsel %vm833, %v2610, 0
        %v2617 = vsel %vm833, %v2612, 0
        %2619 = vmatprep.subr.bf16.mxu0 0
        %2620 = vmatpush1.bf16.xpose.msra.mxu0 %v2617
        %2621 = vmatprep.subr.bf16.mxu0 0
        %2622 = vmatpush1.bf16.xpose.msra.mxu0 0
        %2623 = vmatprep.subr.bf16.mxu0 0
        %2624 = vmatpush1.bf16.xpose.msra.mxu0 0
        %2625 = vmatprep.subr.bf16.mxu0 0
        %2626 = vmatpush1.bf16.xpose.msra.mxu0 0
        %2627 = vmatprep.subr.bf16.mxu0 0
        %2628 = vmatpush1.bf16.xpose.msra.mxu0 0
        %2629 = vmatprep.subr.bf16.mxu0 0
        %2630 = vmatpush1.bf16.xpose.msra.mxu0 0
        %2631 = vmatprep.subr.bf16.mxu0 0
        %2632 = vmatpush1.bf16.xpose.msra.mxu0 0
        %2633 = vmatprep.subr.bf16.mxu0 0
        %2634 = vmatpush1.bf16.xpose.msra.mxu0 0
        %2635 = vmatprep.subr.bf16.mxu0 0
        %2636 = vmatpush1.bf16.xpose.msra.mxu0 0
        %2637 = vmatprep.subr.bf16.mxu0 0
        %2638 = vmatpush1.bf16.xpose.msra.mxu0 0
        %2639 = vmatprep.subr.bf16.mxu0 0
        %2640 = vmatpush1.bf16.xpose.msra.mxu0 0
        %2641 = vmatprep.subr.bf16.mxu0 0
        %2642 = vmatpush1.bf16.xpose.msra.mxu0 0
        %2643 = vmatprep.subr.bf16.mxu0 0
        %2644 = vmatpush1.bf16.xpose.msra.mxu0 0
        %2645 = vmatprep.subr.bf16.mxu0 0
        %2646 = vmatpush1.bf16.xpose.msra.mxu0 0
        %2647 = vmatprep.subr.bf16.mxu0 0
        %2648 = vmatpush1.bf16.xpose.msra.mxu0 0
        %2649 = vmatprep.subr.bf16.mxu0 0
        %2650 = vmatpush1.bf16.xpose.msra.mxu0 0
        %2651 = vmatprep.mubr.bf16.mxu0 0
        %2652 = vmatmul.mubr.bf16.gmra.mrb[0].mxu0 %v2614
        %v2653 = vpop.f32.mrb[0].mxu0
        %v2654 = vadd.f32 0.0, %v2653
        %v2655 = vpop.f32.mrb[0].mxu0
        %v2656 = vpop.f32.mrb[0].mxu0
        %v2657 = vpop.f32.mrb[0].mxu0
        %2658 = vdwg.mxu0
        %2659 = vrot.lane.b32.xlu0 %v815, 112
        %v2660 = vpop.permute.xlu0 %2659
        %2661 = vrot.lane.b32.xlu0 %v815, 80
        %v2662 = vpop.permute.xlu0 %2661
        %v2664 = vsel %vm833, %v2660, 0
        %v2667 = vsel %vm833, %v2662, 0
        %2669 = vmatprep.subr.bf16.mxu0 0
        %2670 = vmatpush1.bf16.xpose.msra.mxu0 %v2667
        %2671 = vmatprep.subr.bf16.mxu0 0
        %2672 = vmatpush1.bf16.xpose.msra.mxu0 0
        %2673 = vmatprep.subr.bf16.mxu0 0
        %2674 = vmatpush1.bf16.xpose.msra.mxu0 0
        %2675 = vmatprep.subr.bf16.mxu0 0
        %2676 = vmatpush1.bf16.xpose.msra.mxu0 0
        %2677 = vmatprep.subr.bf16.mxu0 0
        %2678 = vmatpush1.bf16.xpose.msra.mxu0 0
        %2679 = vmatprep.subr.bf16.mxu0 0
        %2680 = vmatpush1.bf16.xpose.msra.mxu0 0
        %2681 = vmatprep.subr.bf16.mxu0 0
        %2682 = vmatpush1.bf16.xpose.msra.mxu0 0
        %2683 = vmatprep.subr.bf16.mxu0 0
        %2684 = vmatpush1.bf16.xpose.msra.mxu0 0
        %2685 = vmatprep.subr.bf16.mxu0 0
        %2686 = vmatpush1.bf16.xpose.msra.mxu0 0
        %2687 = vmatprep.subr.bf16.mxu0 0
        %2688 = vmatpush1.bf16.xpose.msra.mxu0 0
        %2689 = vmatprep.subr.bf16.mxu0 0
        %2690 = vmatpush1.bf16.xpose.msra.mxu0 0
        %2691 = vmatprep.subr.bf16.mxu0 0
        %2692 = vmatpush1.bf16.xpose.msra.mxu0 0
        %2693 = vmatprep.subr.bf16.mxu0 0
        %2694 = vmatpush1.bf16.xpose.msra.mxu0 0
        %2695 = vmatprep.subr.bf16.mxu0 0
        %2696 = vmatpush1.bf16.xpose.msra.mxu0 0
        %2697 = vmatprep.subr.bf16.mxu0 0
        %2698 = vmatpush1.bf16.xpose.msra.mxu0 0
        %2699 = vmatprep.subr.bf16.mxu0 0
        %2700 = vmatpush1.bf16.xpose.msra.mxu0 0
        %2701 = vmatprep.mubr.bf16.mxu0 0
        %2702 = vmatmul.mubr.bf16.gmra.mrb[0].mxu0 %v2664
        %v2703 = vpop.f32.mrb[0].mxu0
        %v2704 = vadd.f32 0.0, %v2703
        %v2705 = vpop.f32.mrb[0].mxu0
        %v2706 = vpop.f32.mrb[0].mxu0
        %v2707 = vpop.f32.mrb[0].mxu0
        %2708 = vdwg.mxu0
        %2709 = vrot.lane.b32.xlu0 %v816, 112
        %v2710 = vpop.permute.xlu0 %2709
        %2711 = vrot.lane.b32.xlu0 %v816, 80
        %v2712 = vpop.permute.xlu0 %2711
        %v2714 = vsel %vm833, %v2710, 0
        %v2717 = vsel %vm833, %v2712, 0
        %2719 = vmatprep.subr.bf16.mxu0 0
        %2720 = vmatpush1.bf16.xpose.msra.mxu0 %v2717
        %2721 = vmatprep.subr.bf16.mxu0 0
        %2722 = vmatpush1.bf16.xpose.msra.mxu0 0
        %2723 = vmatprep.subr.bf16.mxu0 0
        %2724 = vmatpush1.bf16.xpose.msra.mxu0 0
        %2725 = vmatprep.subr.bf16.mxu0 0
        %2726 = vmatpush1.bf16.xpose.msra.mxu0 0
        %2727 = vmatprep.subr.bf16.mxu0 0
        %2728 = vmatpush1.bf16.xpose.msra.mxu0 0
        %2729 = vmatprep.subr.bf16.mxu0 0
        %2730 = vmatpush1.bf16.xpose.msra.mxu0 0
        %2731 = vmatprep.subr.bf16.mxu0 0
        %2732 = vmatpush1.bf16.xpose.msra.mxu0 0
        %2733 = vmatprep.subr.bf16.mxu0 0
        %2734 = vmatpush1.bf16.xpose.msra.mxu0 0
        %2735 = vmatprep.subr.bf16.mxu0 0
        %2736 = vmatpush1.bf16.xpose.msra.mxu0 0
        %2737 = vmatprep.subr.bf16.mxu0 0
        %2738 = vmatpush1.bf16.xpose.msra.mxu0 0
        %2739 = vmatprep.subr.bf16.mxu0 0
        %2740 = vmatpush1.bf16.xpose.msra.mxu0 0
        %2741 = vmatprep.subr.bf16.mxu0 0
        %2742 = vmatpush1.bf16.xpose.msra.mxu0 0
        %2743 = vmatprep.subr.bf16.mxu0 0
        %2744 = vmatpush1.bf16.xpose.msra.mxu0 0
        %2745 = vmatprep.subr.bf16.mxu0 0
        %2746 = vmatpush1.bf16.xpose.msra.mxu0 0
        %2747 = vmatprep.subr.bf16.mxu0 0
        %2748 = vmatpush1.bf16.xpose.msra.mxu0 0
        %2749 = vmatprep.subr.bf16.mxu0 0
        %2750 = vmatpush1.bf16.xpose.msra.mxu0 0
        %2751 = vmatprep.mubr.bf16.mxu0 0
        %2752 = vmatmul.mubr.bf16.gmra.mrb[0].mxu0 %v2714
        %v2753 = vpop.f32.mrb[0].mxu0
        %v2754 = vadd.f32 0.0, %v2753
        %v2755 = vpop.f32.mrb[0].mxu0
        %v2756 = vpop.f32.mrb[0].mxu0
        %v2757 = vpop.f32.mrb[0].mxu0
        %2758 = vdwg.mxu0
        %2759 = vrot.lane.b32.xlu0 %v817, 112
        %v2760 = vpop.permute.xlu0 %2759
        %2761 = vrot.lane.b32.xlu0 %v817, 80
        %v2762 = vpop.permute.xlu0 %2761
        %v2764 = vsel %vm833, %v2760, 0
        %v2767 = vsel %vm833, %v2762, 0
        %2769 = vmatprep.subr.bf16.mxu0 0
        %2770 = vmatpush1.bf16.xpose.msra.mxu0 %v2767
        %2771 = vmatprep.subr.bf16.mxu0 0
        %2772 = vmatpush1.bf16.xpose.msra.mxu0 0
        %2773 = vmatprep.subr.bf16.mxu0 0
        %2774 = vmatpush1.bf16.xpose.msra.mxu0 0
        %2775 = vmatprep.subr.bf16.mxu0 0
        %2776 = vmatpush1.bf16.xpose.msra.mxu0 0
        %2777 = vmatprep.subr.bf16.mxu0 0
        %2778 = vmatpush1.bf16.xpose.msra.mxu0 0
        %2779 = vmatprep.subr.bf16.mxu0 0
        %2780 = vmatpush1.bf16.xpose.msra.mxu0 0
        %2781 = vmatprep.subr.bf16.mxu0 0
        %2782 = vmatpush1.bf16.xpose.msra.mxu0 0
        %2783 = vmatprep.subr.bf16.mxu0 0
        %2784 = vmatpush1.bf16.xpose.msra.mxu0 0
        %2785 = vmatprep.subr.bf16.mxu0 0
        %2786 = vmatpush1.bf16.xpose.msra.mxu0 0
        %2787 = vmatprep.subr.bf16.mxu0 0
        %2788 = vmatpush1.bf16.xpose.msra.mxu0 0
        %2789 = vmatprep.subr.bf16.mxu0 0
        %2790 = vmatpush1.bf16.xpose.msra.mxu0 0
        %2791 = vmatprep.subr.bf16.mxu0 0
        %2792 = vmatpush1.bf16.xpose.msra.mxu0 0
        %2793 = vmatprep.subr.bf16.mxu0 0
        %2794 = vmatpush1.bf16.xpose.msra.mxu0 0
        %2795 = vmatprep.subr.bf16.mxu0 0
        %2796 = vmatpush1.bf16.xpose.msra.mxu0 0
        %2797 = vmatprep.subr.bf16.mxu0 0
        %2798 = vmatpush1.bf16.xpose.msra.mxu0 0
        %2799 = vmatprep.subr.bf16.mxu0 0
        %2800 = vmatpush1.bf16.xpose.msra.mxu0 0
        %2801 = vmatprep.mubr.bf16.mxu0 0
        %2802 = vmatmul.mubr.bf16.gmra.mrb[0].mxu0 %v2764
        %v2803 = vpop.f32.mrb[0].mxu0
        %v2804 = vadd.f32 0.0, %v2803
        %v2805 = vpop.f32.mrb[0].mxu0
        %v2806 = vpop.f32.mrb[0].mxu0
        %v2807 = vpop.f32.mrb[0].mxu0
        %2808 = vdwg.mxu0
        %2809 = vrot.lane.b32.xlu0 %v818, 112
        %v2810 = vpop.permute.xlu0 %2809
        %2811 = vrot.lane.b32.xlu0 %v818, 80
        %v2812 = vpop.permute.xlu0 %2811
        %v2814 = vsel %vm833, %v2810, 0
        %v2817 = vsel %vm833, %v2812, 0
        %2819 = vmatprep.subr.bf16.mxu0 0
        %2820 = vmatpush1.bf16.xpose.msra.mxu0 %v2817
        %2821 = vmatprep.subr.bf16.mxu0 0
        %2822 = vmatpush1.bf16.xpose.msra.mxu0 0
        %2823 = vmatprep.subr.bf16.mxu0 0
        %2824 = vmatpush1.bf16.xpose.msra.mxu0 0
        %2825 = vmatprep.subr.bf16.mxu0 0
        %2826 = vmatpush1.bf16.xpose.msra.mxu0 0
        %2827 = vmatprep.subr.bf16.mxu0 0
        %2828 = vmatpush1.bf16.xpose.msra.mxu0 0
        %2829 = vmatprep.subr.bf16.mxu0 0
        %2830 = vmatpush1.bf16.xpose.msra.mxu0 0
        %2831 = vmatprep.subr.bf16.mxu0 0
        %2832 = vmatpush1.bf16.xpose.msra.mxu0 0
        %2833 = vmatprep.subr.bf16.mxu0 0
        %2834 = vmatpush1.bf16.xpose.msra.mxu0 0
        %2835 = vmatprep.subr.bf16.mxu0 0
        %2836 = vmatpush1.bf16.xpose.msra.mxu0 0
        %2837 = vmatprep.subr.bf16.mxu0 0
        %2838 = vmatpush1.bf16.xpose.msra.mxu0 0
        %2839 = vmatprep.subr.bf16.mxu0 0
        %2840 = vmatpush1.bf16.xpose.msra.mxu0 0
        %2841 = vmatprep.subr.bf16.mxu0 0
        %2842 = vmatpush1.bf16.xpose.msra.mxu0 0
        %2843 = vmatprep.subr.bf16.mxu0 0
        %2844 = vmatpush1.bf16.xpose.msra.mxu0 0
        %2845 = vmatprep.subr.bf16.mxu0 0
        %2846 = vmatpush1.bf16.xpose.msra.mxu0 0
        %2847 = vmatprep.subr.bf16.mxu0 0
        %2848 = vmatpush1.bf16.xpose.msra.mxu0 0
        %2849 = vmatprep.subr.bf16.mxu0 0
        %2850 = vmatpush1.bf16.xpose.msra.mxu0 0
        %2851 = vmatprep.mubr.bf16.mxu0 0
        %2852 = vmatmul.mubr.bf16.gmra.mrb[0].mxu0 %v2814
        %v2853 = vpop.f32.mrb[0].mxu0
        %v2854 = vadd.f32 0.0, %v2853
        %v2855 = vpop.f32.mrb[0].mxu0
        %v2856 = vpop.f32.mrb[0].mxu0
        %v2857 = vpop.f32.mrb[0].mxu0
        %2858 = vdwg.mxu0
        %2859 = vrot.lane.b32.xlu0 %v819, 112
        %v2860 = vpop.permute.xlu0 %2859
        %2861 = vrot.lane.b32.xlu0 %v819, 80
        %v2862 = vpop.permute.xlu0 %2861
        %v2864 = vsel %vm833, %v2860, 0
        %v2867 = vsel %vm833, %v2862, 0
        %2869 = vmatprep.subr.bf16.mxu0 0
        %2870 = vmatpush1.bf16.xpose.msra.mxu0 %v2867
        %2871 = vmatprep.subr.bf16.mxu0 0
        %2872 = vmatpush1.bf16.xpose.msra.mxu0 0
        %2873 = vmatprep.subr.bf16.mxu0 0
        %2874 = vmatpush1.bf16.xpose.msra.mxu0 0
        %2875 = vmatprep.subr.bf16.mxu0 0
        %2876 = vmatpush1.bf16.xpose.msra.mxu0 0
        %2877 = vmatprep.subr.bf16.mxu0 0
        %2878 = vmatpush1.bf16.xpose.msra.mxu0 0
        %2879 = vmatprep.subr.bf16.mxu0 0
        %2880 = vmatpush1.bf16.xpose.msra.mxu0 0
        %2881 = vmatprep.subr.bf16.mxu0 0
        %2882 = vmatpush1.bf16.xpose.msra.mxu0 0
        %2883 = vmatprep.subr.bf16.mxu0 0
        %2884 = vmatpush1.bf16.xpose.msra.mxu0 0
        %2885 = vmatprep.subr.bf16.mxu0 0
        %2886 = vmatpush1.bf16.xpose.msra.mxu0 0
        %2887 = vmatprep.subr.bf16.mxu0 0
        %2888 = vmatpush1.bf16.xpose.msra.mxu0 0
        %2889 = vmatprep.subr.bf16.mxu0 0
        %2890 = vmatpush1.bf16.xpose.msra.mxu0 0
        %2891 = vmatprep.subr.bf16.mxu0 0
        %2892 = vmatpush1.bf16.xpose.msra.mxu0 0
        %2893 = vmatprep.subr.bf16.mxu0 0
        %2894 = vmatpush1.bf16.xpose.msra.mxu0 0
        %2895 = vmatprep.subr.bf16.mxu0 0
        %2896 = vmatpush1.bf16.xpose.msra.mxu0 0
        %2897 = vmatprep.subr.bf16.mxu0 0
        %2898 = vmatpush1.bf16.xpose.msra.mxu0 0
        %2899 = vmatprep.subr.bf16.mxu0 0
        %2900 = vmatpush1.bf16.xpose.msra.mxu0 0
        %2901 = vmatprep.mubr.bf16.mxu0 0
        %2902 = vmatmul.mubr.bf16.gmra.mrb[0].mxu0 %v2864
        %v2903 = vpop.f32.mrb[0].mxu0
        %v2904 = vadd.f32 0.0, %v2903
        %v2905 = vpop.f32.mrb[0].mxu0
        %v2906 = vpop.f32.mrb[0].mxu0
        %v2907 = vpop.f32.mrb[0].mxu0
        %2908 = vdwg.mxu0
        %2909 = vrot.lane.b32.xlu0 %v820, 112
        %v2910 = vpop.permute.xlu0 %2909
        %2911 = vrot.lane.b32.xlu0 %v820, 80
        %v2912 = vpop.permute.xlu0 %2911
        %v2914 = vsel %vm833, %v2910, 0
        %v2917 = vsel %vm833, %v2912, 0
        %2919 = vmatprep.subr.bf16.mxu0 0
        %2920 = vmatpush1.bf16.xpose.msra.mxu0 %v2917
        %2921 = vmatprep.subr.bf16.mxu0 0
        %2922 = vmatpush1.bf16.xpose.msra.mxu0 0
        %2923 = vmatprep.subr.bf16.mxu0 0
        %2924 = vmatpush1.bf16.xpose.msra.mxu0 0
        %2925 = vmatprep.subr.bf16.mxu0 0
        %2926 = vmatpush1.bf16.xpose.msra.mxu0 0
        %2927 = vmatprep.subr.bf16.mxu0 0
        %2928 = vmatpush1.bf16.xpose.msra.mxu0 0
        %2929 = vmatprep.subr.bf16.mxu0 0
        %2930 = vmatpush1.bf16.xpose.msra.mxu0 0
        %2931 = vmatprep.subr.bf16.mxu0 0
        %2932 = vmatpush1.bf16.xpose.msra.mxu0 0
        %2933 = vmatprep.subr.bf16.mxu0 0
        %2934 = vmatpush1.bf16.xpose.msra.mxu0 0
        %2935 = vmatprep.subr.bf16.mxu0 0
        %2936 = vmatpush1.bf16.xpose.msra.mxu0 0
        %2937 = vmatprep.subr.bf16.mxu0 0
        %2938 = vmatpush1.bf16.xpose.msra.mxu0 0
        %2939 = vmatprep.subr.bf16.mxu0 0
        %2940 = vmatpush1.bf16.xpose.msra.mxu0 0
        %2941 = vmatprep.subr.bf16.mxu0 0
        %2942 = vmatpush1.bf16.xpose.msra.mxu0 0
        %2943 = vmatprep.subr.bf16.mxu0 0
        %2944 = vmatpush1.bf16.xpose.msra.mxu0 0
        %2945 = vmatprep.subr.bf16.mxu0 0
        %2946 = vmatpush1.bf16.xpose.msra.mxu0 0
        %2947 = vmatprep.subr.bf16.mxu0 0
        %2948 = vmatpush1.bf16.xpose.msra.mxu0 0
        %2949 = vmatprep.subr.bf16.mxu0 0
        %2950 = vmatpush1.bf16.xpose.msra.mxu0 0
        %2951 = vmatprep.mubr.bf16.mxu0 0
        %2952 = vmatmul.mubr.bf16.gmra.mrb[0].mxu0 %v2914
        %v2953 = vpop.f32.mrb[0].mxu0
        %v2954 = vadd.f32 0.0, %v2953
        %v2955 = vpop.f32.mrb[0].mxu0
        %v2956 = vpop.f32.mrb[0].mxu0
        %v2957 = vpop.f32.mrb[0].mxu0
        %2958 = vdwg.mxu0
        %2959 = vrot.lane.b32.xlu0 %v821, 112
        %v2960 = vpop.permute.xlu0 %2959
        %2961 = vrot.lane.b32.xlu0 %v821, 80
        %v2962 = vpop.permute.xlu0 %2961
        %v2964 = vsel %vm833, %v2960, 0
        %v2967 = vsel %vm833, %v2962, 0
        %2969 = vmatprep.subr.bf16.mxu0 0
        %2970 = vmatpush1.bf16.xpose.msra.mxu0 %v2967
        %2971 = vmatprep.subr.bf16.mxu0 0
        %2972 = vmatpush1.bf16.xpose.msra.mxu0 0
        %2973 = vmatprep.subr.bf16.mxu0 0
        %2974 = vmatpush1.bf16.xpose.msra.mxu0 0
        %2975 = vmatprep.subr.bf16.mxu0 0
        %2976 = vmatpush1.bf16.xpose.msra.mxu0 0
        %2977 = vmatprep.subr.bf16.mxu0 0
        %2978 = vmatpush1.bf16.xpose.msra.mxu0 0
        %2979 = vmatprep.subr.bf16.mxu0 0
        %2980 = vmatpush1.bf16.xpose.msra.mxu0 0
        %2981 = vmatprep.subr.bf16.mxu0 0
        %2982 = vmatpush1.bf16.xpose.msra.mxu0 0
        %2983 = vmatprep.subr.bf16.mxu0 0
        %2984 = vmatpush1.bf16.xpose.msra.mxu0 0
        %2985 = vmatprep.subr.bf16.mxu0 0
        %2986 = vmatpush1.bf16.xpose.msra.mxu0 0
        %2987 = vmatprep.subr.bf16.mxu0 0
        %2988 = vmatpush1.bf16.xpose.msra.mxu0 0
        %2989 = vmatprep.subr.bf16.mxu0 0
        %2990 = vmatpush1.bf16.xpose.msra.mxu0 0
        %2991 = vmatprep.subr.bf16.mxu0 0
        %2992 = vmatpush1.bf16.xpose.msra.mxu0 0
        %2993 = vmatprep.subr.bf16.mxu0 0
        %2994 = vmatpush1.bf16.xpose.msra.mxu0 0
        %2995 = vmatprep.subr.bf16.mxu0 0
        %2996 = vmatpush1.bf16.xpose.msra.mxu0 0
        %2997 = vmatprep.subr.bf16.mxu0 0
        %2998 = vmatpush1.bf16.xpose.msra.mxu0 0
        %2999 = vmatprep.subr.bf16.mxu0 0
        %3000 = vmatpush1.bf16.xpose.msra.mxu0 0
        %3001 = vmatprep.mubr.bf16.mxu0 0
        %3002 = vmatmul.mubr.bf16.gmra.mrb[0].mxu0 %v2964
        %v3003 = vpop.f32.mrb[0].mxu0
        %v3004 = vadd.f32 0.0, %v3003
        %v3005 = vpop.f32.mrb[0].mxu0
        %v3006 = vpop.f32.mrb[0].mxu0
        %v3007 = vpop.f32.mrb[0].mxu0
        %3008 = vdwg.mxu0
        %3009 = vrot.lane.b32.xlu0 %v822, 112
        %v3010 = vpop.permute.xlu0 %3009
        %3011 = vrot.lane.b32.xlu0 %v822, 80
        %v3012 = vpop.permute.xlu0 %3011
        %v3014 = vsel %vm833, %v3010, 0
        %v3017 = vsel %vm833, %v3012, 0
        %3019 = vmatprep.subr.bf16.mxu0 0
        %3020 = vmatpush1.bf16.xpose.msra.mxu0 %v3017
        %3021 = vmatprep.subr.bf16.mxu0 0
        %3022 = vmatpush1.bf16.xpose.msra.mxu0 0
        %3023 = vmatprep.subr.bf16.mxu0 0
        %3024 = vmatpush1.bf16.xpose.msra.mxu0 0
        %3025 = vmatprep.subr.bf16.mxu0 0
        %3026 = vmatpush1.bf16.xpose.msra.mxu0 0
        %3027 = vmatprep.subr.bf16.mxu0 0
        %3028 = vmatpush1.bf16.xpose.msra.mxu0 0
        %3029 = vmatprep.subr.bf16.mxu0 0
        %3030 = vmatpush1.bf16.xpose.msra.mxu0 0
        %3031 = vmatprep.subr.bf16.mxu0 0
        %3032 = vmatpush1.bf16.xpose.msra.mxu0 0
        %3033 = vmatprep.subr.bf16.mxu0 0
        %3034 = vmatpush1.bf16.xpose.msra.mxu0 0
        %3035 = vmatprep.subr.bf16.mxu0 0
        %3036 = vmatpush1.bf16.xpose.msra.mxu0 0
        %3037 = vmatprep.subr.bf16.mxu0 0
        %3038 = vmatpush1.bf16.xpose.msra.mxu0 0
        %3039 = vmatprep.subr.bf16.mxu0 0
        %3040 = vmatpush1.bf16.xpose.msra.mxu0 0
        %3041 = vmatprep.subr.bf16.mxu0 0
        %3042 = vmatpush1.bf16.xpose.msra.mxu0 0
        %3043 = vmatprep.subr.bf16.mxu0 0
        %3044 = vmatpush1.bf16.xpose.msra.mxu0 0
        %3045 = vmatprep.subr.bf16.mxu0 0
        %3046 = vmatpush1.bf16.xpose.msra.mxu0 0
        %3047 = vmatprep.subr.bf16.mxu0 0
        %3048 = vmatpush1.bf16.xpose.msra.mxu0 0
        %3049 = vmatprep.subr.bf16.mxu0 0
        %3050 = vmatpush1.bf16.xpose.msra.mxu0 0
        %3051 = vmatprep.mubr.bf16.mxu0 0
        %3052 = vmatmul.mubr.bf16.gmra.mrb[0].mxu0 %v3014
        %v3053 = vpop.f32.mrb[0].mxu0
        %v3054 = vadd.f32 0.0, %v3053
        %v3055 = vpop.f32.mrb[0].mxu0
        %v3056 = vpop.f32.mrb[0].mxu0
        %v3057 = vpop.f32.mrb[0].mxu0
        %3058 = vdwg.mxu0
        %3059 = vrot.lane.b32.xlu0 %v823, 112
        %v3060 = vpop.permute.xlu0 %3059
        %3061 = vrot.lane.b32.xlu0 %v823, 80
        %v3062 = vpop.permute.xlu0 %3061
        %v3064 = vsel %vm833, %v3060, 0
        %v3067 = vsel %vm833, %v3062, 0
        %3069 = vmatprep.subr.bf16.mxu0 0
        %3070 = vmatpush1.bf16.xpose.msra.mxu0 %v3067
        %3071 = vmatprep.subr.bf16.mxu0 0
        %3072 = vmatpush1.bf16.xpose.msra.mxu0 0
        %3073 = vmatprep.subr.bf16.mxu0 0
        %3074 = vmatpush1.bf16.xpose.msra.mxu0 0
        %3075 = vmatprep.subr.bf16.mxu0 0
        %3076 = vmatpush1.bf16.xpose.msra.mxu0 0
        %3077 = vmatprep.subr.bf16.mxu0 0
        %3078 = vmatpush1.bf16.xpose.msra.mxu0 0
        %3079 = vmatprep.subr.bf16.mxu0 0
        %3080 = vmatpush1.bf16.xpose.msra.mxu0 0
        %3081 = vmatprep.subr.bf16.mxu0 0
        %3082 = vmatpush1.bf16.xpose.msra.mxu0 0
        %3083 = vmatprep.subr.bf16.mxu0 0
        %3084 = vmatpush1.bf16.xpose.msra.mxu0 0
        %3085 = vmatprep.subr.bf16.mxu0 0
        %3086 = vmatpush1.bf16.xpose.msra.mxu0 0
        %3087 = vmatprep.subr.bf16.mxu0 0
        %3088 = vmatpush1.bf16.xpose.msra.mxu0 0
        %3089 = vmatprep.subr.bf16.mxu0 0
        %3090 = vmatpush1.bf16.xpose.msra.mxu0 0
        %3091 = vmatprep.subr.bf16.mxu0 0
        %3092 = vmatpush1.bf16.xpose.msra.mxu0 0
        %3093 = vmatprep.subr.bf16.mxu0 0
        %3094 = vmatpush1.bf16.xpose.msra.mxu0 0
        %3095 = vmatprep.subr.bf16.mxu0 0
        %3096 = vmatpush1.bf16.xpose.msra.mxu0 0
        %3097 = vmatprep.subr.bf16.mxu0 0
        %3098 = vmatpush1.bf16.xpose.msra.mxu0 0
        %3099 = vmatprep.subr.bf16.mxu0 0
        %3100 = vmatpush1.bf16.xpose.msra.mxu0 0
        %3101 = vmatprep.mubr.bf16.mxu0 0
        %3102 = vmatmul.mubr.bf16.gmra.mrb[0].mxu0 %v3064
        %v3103 = vpop.f32.mrb[0].mxu0
        %v3104 = vadd.f32 0.0, %v3103
        %v3105 = vpop.f32.mrb[0].mxu0
        %v3106 = vpop.f32.mrb[0].mxu0
        %v3107 = vpop.f32.mrb[0].mxu0
        %3108 = vdwg.mxu0
        %3109 = vrot.lane.b32.xlu0 %v824, 112
        %v3110 = vpop.permute.xlu0 %3109
        %3111 = vrot.lane.b32.xlu0 %v824, 80
        %v3112 = vpop.permute.xlu0 %3111
        %v3114 = vsel %vm833, %v3110, 0
        %v3117 = vsel %vm833, %v3112, 0
        %3119 = vmatprep.subr.bf16.mxu0 0
        %3120 = vmatpush1.bf16.xpose.msra.mxu0 %v3117
        %3121 = vmatprep.subr.bf16.mxu0 0
        %3122 = vmatpush1.bf16.xpose.msra.mxu0 0
        %3123 = vmatprep.subr.bf16.mxu0 0
        %3124 = vmatpush1.bf16.xpose.msra.mxu0 0
        %3125 = vmatprep.subr.bf16.mxu0 0
        %3126 = vmatpush1.bf16.xpose.msra.mxu0 0
        %3127 = vmatprep.subr.bf16.mxu0 0
        %3128 = vmatpush1.bf16.xpose.msra.mxu0 0
        %3129 = vmatprep.subr.bf16.mxu0 0
        %3130 = vmatpush1.bf16.xpose.msra.mxu0 0
        %3131 = vmatprep.subr.bf16.mxu0 0
        %3132 = vmatpush1.bf16.xpose.msra.mxu0 0
        %3133 = vmatprep.subr.bf16.mxu0 0
        %3134 = vmatpush1.bf16.xpose.msra.mxu0 0
        %3135 = vmatprep.subr.bf16.mxu0 0
        %3136 = vmatpush1.bf16.xpose.msra.mxu0 0
        %3137 = vmatprep.subr.bf16.mxu0 0
        %3138 = vmatpush1.bf16.xpose.msra.mxu0 0
        %3139 = vmatprep.subr.bf16.mxu0 0
        %3140 = vmatpush1.bf16.xpose.msra.mxu0 0
        %3141 = vmatprep.subr.bf16.mxu0 0
        %3142 = vmatpush1.bf16.xpose.msra.mxu0 0
        %3143 = vmatprep.subr.bf16.mxu0 0
        %3144 = vmatpush1.bf16.xpose.msra.mxu0 0
        %3145 = vmatprep.subr.bf16.mxu0 0
        %3146 = vmatpush1.bf16.xpose.msra.mxu0 0
        %3147 = vmatprep.subr.bf16.mxu0 0
        %3148 = vmatpush1.bf16.xpose.msra.mxu0 0
        %3149 = vmatprep.subr.bf16.mxu0 0
        %3150 = vmatpush1.bf16.xpose.msra.mxu0 0
        %3151 = vmatprep.mubr.bf16.mxu0 0
        %3152 = vmatmul.mubr.bf16.gmra.mrb[0].mxu0 %v3114
        %v3153 = vpop.f32.mrb[0].mxu0
        %v3154 = vadd.f32 0.0, %v3153
        %v3155 = vpop.f32.mrb[0].mxu0
        %v3156 = vpop.f32.mrb[0].mxu0
        %v3157 = vpop.f32.mrb[0].mxu0
        %3158 = vdwg.mxu0
        %3159 = vrot.lane.b32.xlu0 %v825, 112
        %v3160 = vpop.permute.xlu0 %3159
        %3161 = vrot.lane.b32.xlu0 %v825, 80
        %v3162 = vpop.permute.xlu0 %3161
        %v3164 = vsel %vm833, %v3160, 0
        %v3167 = vsel %vm833, %v3162, 0
        %3169 = vmatprep.subr.bf16.mxu0 0
        %3170 = vmatpush1.bf16.xpose.msra.mxu0 %v3167
        %3171 = vmatprep.subr.bf16.mxu0 0
        %3172 = vmatpush1.bf16.xpose.msra.mxu0 0
        %3173 = vmatprep.subr.bf16.mxu0 0
        %3174 = vmatpush1.bf16.xpose.msra.mxu0 0
        %3175 = vmatprep.subr.bf16.mxu0 0
        %3176 = vmatpush1.bf16.xpose.msra.mxu0 0
        %3177 = vmatprep.subr.bf16.mxu0 0
        %3178 = vmatpush1.bf16.xpose.msra.mxu0 0
        %3179 = vmatprep.subr.bf16.mxu0 0
        %3180 = vmatpush1.bf16.xpose.msra.mxu0 0
        %3181 = vmatprep.subr.bf16.mxu0 0
        %3182 = vmatpush1.bf16.xpose.msra.mxu0 0
        %3183 = vmatprep.subr.bf16.mxu0 0
        %3184 = vmatpush1.bf16.xpose.msra.mxu0 0
        %3185 = vmatprep.subr.bf16.mxu0 0
        %3186 = vmatpush1.bf16.xpose.msra.mxu0 0
        %3187 = vmatprep.subr.bf16.mxu0 0
        %3188 = vmatpush1.bf16.xpose.msra.mxu0 0
        %3189 = vmatprep.subr.bf16.mxu0 0
        %3190 = vmatpush1.bf16.xpose.msra.mxu0 0
        %3191 = vmatprep.subr.bf16.mxu0 0
        %3192 = vmatpush1.bf16.xpose.msra.mxu0 0
        %3193 = vmatprep.subr.bf16.mxu0 0
        %3194 = vmatpush1.bf16.xpose.msra.mxu0 0
        %3195 = vmatprep.subr.bf16.mxu0 0
        %3196 = vmatpush1.bf16.xpose.msra.mxu0 0
        %3197 = vmatprep.subr.bf16.mxu0 0
        %3198 = vmatpush1.bf16.xpose.msra.mxu0 0
        %3199 = vmatprep.subr.bf16.mxu0 0
        %3200 = vmatpush1.bf16.xpose.msra.mxu0 0
        %3201 = vmatprep.mubr.bf16.mxu0 0
        %3202 = vmatmul.mubr.bf16.gmra.mrb[0].mxu0 %v3164
        %v3203 = vpop.f32.mrb[0].mxu0
        %v3204 = vadd.f32 0.0, %v3203
        %v3205 = vpop.f32.mrb[0].mxu0
        %v3206 = vpop.f32.mrb[0].mxu0
        %v3207 = vpop.f32.mrb[0].mxu0
        %3208 = vdwg.mxu0
        %3209 = vrot.lane.b32.xlu0 %v826, 112
        %v3210 = vpop.permute.xlu0 %3209
        %3211 = vrot.lane.b32.xlu0 %v826, 80
        %v3212 = vpop.permute.xlu0 %3211
        %v3214 = vsel %vm833, %v3210, 0
        %v3217 = vsel %vm833, %v3212, 0
        %3219 = vmatprep.subr.bf16.mxu0 0
        %3220 = vmatpush1.bf16.xpose.msra.mxu0 %v3217
        %3221 = vmatprep.subr.bf16.mxu0 0
        %3222 = vmatpush1.bf16.xpose.msra.mxu0 0
        %3223 = vmatprep.subr.bf16.mxu0 0
        %3224 = vmatpush1.bf16.xpose.msra.mxu0 0
        %3225 = vmatprep.subr.bf16.mxu0 0
        %3226 = vmatpush1.bf16.xpose.msra.mxu0 0
        %3227 = vmatprep.subr.bf16.mxu0 0
        %3228 = vmatpush1.bf16.xpose.msra.mxu0 0
        %3229 = vmatprep.subr.bf16.mxu0 0
        %3230 = vmatpush1.bf16.xpose.msra.mxu0 0
        %3231 = vmatprep.subr.bf16.mxu0 0
        %3232 = vmatpush1.bf16.xpose.msra.mxu0 0
        %3233 = vmatprep.subr.bf16.mxu0 0
        %3234 = vmatpush1.bf16.xpose.msra.mxu0 0
        %3235 = vmatprep.subr.bf16.mxu0 0
        %3236 = vmatpush1.bf16.xpose.msra.mxu0 0
        %3237 = vmatprep.subr.bf16.mxu0 0
        %3238 = vmatpush1.bf16.xpose.msra.mxu0 0
        %3239 = vmatprep.subr.bf16.mxu0 0
        %3240 = vmatpush1.bf16.xpose.msra.mxu0 0
        %3241 = vmatprep.subr.bf16.mxu0 0
        %3242 = vmatpush1.bf16.xpose.msra.mxu0 0
        %3243 = vmatprep.subr.bf16.mxu0 0
        %3244 = vmatpush1.bf16.xpose.msra.mxu0 0
        %3245 = vmatprep.subr.bf16.mxu0 0
        %3246 = vmatpush1.bf16.xpose.msra.mxu0 0
        %3247 = vmatprep.subr.bf16.mxu0 0
        %3248 = vmatpush1.bf16.xpose.msra.mxu0 0
        %3249 = vmatprep.subr.bf16.mxu0 0
        %3250 = vmatpush1.bf16.xpose.msra.mxu0 0
        %3251 = vmatprep.mubr.bf16.mxu0 0
        %3252 = vmatmul.mubr.bf16.gmra.mrb[0].mxu0 %v3214
        %v3253 = vpop.f32.mrb[0].mxu0
        %v3254 = vadd.f32 0.0, %v3253
        %v3255 = vpop.f32.mrb[0].mxu0
        %v3256 = vpop.f32.mrb[0].mxu0
        %v3257 = vpop.f32.mrb[0].mxu0
        %3258 = vdwg.mxu0
        %3259 = vrot.lane.b32.xlu0 %v827, 112
        %v3260 = vpop.permute.xlu0 %3259
        %3261 = vrot.lane.b32.xlu0 %v827, 80
        %v3262 = vpop.permute.xlu0 %3261
        %v3264 = vsel %vm833, %v3260, 0
        %v3267 = vsel %vm833, %v3262, 0
        %3269 = vmatprep.subr.bf16.mxu0 0
        %3270 = vmatpush1.bf16.xpose.msra.mxu0 %v3267
        %3271 = vmatprep.subr.bf16.mxu0 0
        %3272 = vmatpush1.bf16.xpose.msra.mxu0 0
        %3273 = vmatprep.subr.bf16.mxu0 0
        %3274 = vmatpush1.bf16.xpose.msra.mxu0 0
        %3275 = vmatprep.subr.bf16.mxu0 0
        %3276 = vmatpush1.bf16.xpose.msra.mxu0 0
        %3277 = vmatprep.subr.bf16.mxu0 0
        %3278 = vmatpush1.bf16.xpose.msra.mxu0 0
        %3279 = vmatprep.subr.bf16.mxu0 0
        %3280 = vmatpush1.bf16.xpose.msra.mxu0 0
        %3281 = vmatprep.subr.bf16.mxu0 0
        %3282 = vmatpush1.bf16.xpose.msra.mxu0 0
        %3283 = vmatprep.subr.bf16.mxu0 0
        %3284 = vmatpush1.bf16.xpose.msra.mxu0 0
        %3285 = vmatprep.subr.bf16.mxu0 0
        %3286 = vmatpush1.bf16.xpose.msra.mxu0 0
        %3287 = vmatprep.subr.bf16.mxu0 0
        %3288 = vmatpush1.bf16.xpose.msra.mxu0 0
        %3289 = vmatprep.subr.bf16.mxu0 0
        %3290 = vmatpush1.bf16.xpose.msra.mxu0 0
        %3291 = vmatprep.subr.bf16.mxu0 0
        %3292 = vmatpush1.bf16.xpose.msra.mxu0 0
        %3293 = vmatprep.subr.bf16.mxu0 0
        %3294 = vmatpush1.bf16.xpose.msra.mxu0 0
        %3295 = vmatprep.subr.bf16.mxu0 0
        %3296 = vmatpush1.bf16.xpose.msra.mxu0 0
        %3297 = vmatprep.subr.bf16.mxu0 0
        %3298 = vmatpush1.bf16.xpose.msra.mxu0 0
        %3299 = vmatprep.subr.bf16.mxu0 0
        %3300 = vmatpush1.bf16.xpose.msra.mxu0 0
        %3301 = vmatprep.mubr.bf16.mxu0 0
        %3302 = vmatmul.mubr.bf16.gmra.mrb[0].mxu0 %v3264
        %v3303 = vpop.f32.mrb[0].mxu0
        %v3304 = vadd.f32 0.0, %v3303
        %v3305 = vpop.f32.mrb[0].mxu0
        %v3306 = vpop.f32.mrb[0].mxu0
        %v3307 = vpop.f32.mrb[0].mxu0
        %3308 = vdwg.mxu0
        %3309 = vrot.lane.b32.xlu0 %v828, 112
        %v3310 = vpop.permute.xlu0 %3309
        %3311 = vrot.lane.b32.xlu0 %v828, 80
        %v3312 = vpop.permute.xlu0 %3311
        %v3314 = vsel %vm833, %v3310, 0
        %v3317 = vsel %vm833, %v3312, 0
        %3319 = vmatprep.subr.bf16.mxu0 0
        %3320 = vmatpush1.bf16.xpose.msra.mxu0 %v3317
        %3321 = vmatprep.subr.bf16.mxu0 0
        %3322 = vmatpush1.bf16.xpose.msra.mxu0 0
        %3323 = vmatprep.subr.bf16.mxu0 0
        %3324 = vmatpush1.bf16.xpose.msra.mxu0 0
        %3325 = vmatprep.subr.bf16.mxu0 0
        %3326 = vmatpush1.bf16.xpose.msra.mxu0 0
        %3327 = vmatprep.subr.bf16.mxu0 0
        %3328 = vmatpush1.bf16.xpose.msra.mxu0 0
        %3329 = vmatprep.subr.bf16.mxu0 0
        %3330 = vmatpush1.bf16.xpose.msra.mxu0 0
        %3331 = vmatprep.subr.bf16.mxu0 0
        %3332 = vmatpush1.bf16.xpose.msra.mxu0 0
        %3333 = vmatprep.subr.bf16.mxu0 0
        %3334 = vmatpush1.bf16.xpose.msra.mxu0 0
        %3335 = vmatprep.subr.bf16.mxu0 0
        %3336 = vmatpush1.bf16.xpose.msra.mxu0 0
        %3337 = vmatprep.subr.bf16.mxu0 0
        %3338 = vmatpush1.bf16.xpose.msra.mxu0 0
        %3339 = vmatprep.subr.bf16.mxu0 0
        %3340 = vmatpush1.bf16.xpose.msra.mxu0 0
        %3341 = vmatprep.subr.bf16.mxu0 0
        %3342 = vmatpush1.bf16.xpose.msra.mxu0 0
        %3343 = vmatprep.subr.bf16.mxu0 0
        %3344 = vmatpush1.bf16.xpose.msra.mxu0 0
        %3345 = vmatprep.subr.bf16.mxu0 0
        %3346 = vmatpush1.bf16.xpose.msra.mxu0 0
        %3347 = vmatprep.subr.bf16.mxu0 0
        %3348 = vmatpush1.bf16.xpose.msra.mxu0 0
        %3349 = vmatprep.subr.bf16.mxu0 0
        %3350 = vmatpush1.bf16.xpose.msra.mxu0 0
        %3351 = vmatprep.mubr.bf16.mxu0 0
        %3352 = vmatmul.mubr.bf16.gmra.mrb[0].mxu0 %v3314
        %v3353 = vpop.f32.mrb[0].mxu0
        %v3354 = vadd.f32 0.0, %v3353
        %v3355 = vpop.f32.mrb[0].mxu0
        %v3356 = vpop.f32.mrb[0].mxu0
        %v3357 = vpop.f32.mrb[0].mxu0
        %3358 = vdwg.mxu0
        %3359 = vrot.lane.b32.xlu0 %v829, 112
        %v3360 = vpop.permute.xlu0 %3359
        %3361 = vrot.lane.b32.xlu0 %v829, 80
        %v3362 = vpop.permute.xlu0 %3361
        %v3364 = vsel %vm833, %v3360, 0
        %v3367 = vsel %vm833, %v3362, 0
        %3369 = vmatprep.subr.bf16.mxu0 0
        %3370 = vmatpush1.bf16.xpose.msra.mxu0 %v3367
        %3371 = vmatprep.subr.bf16.mxu0 0
        %3372 = vmatpush1.bf16.xpose.msra.mxu0 0
        %3373 = vmatprep.subr.bf16.mxu0 0
        %3374 = vmatpush1.bf16.xpose.msra.mxu0 0
        %3375 = vmatprep.subr.bf16.mxu0 0
        %3376 = vmatpush1.bf16.xpose.msra.mxu0 0
        %3377 = vmatprep.subr.bf16.mxu0 0
        %3378 = vmatpush1.bf16.xpose.msra.mxu0 0
        %3379 = vmatprep.subr.bf16.mxu0 0
        %3380 = vmatpush1.bf16.xpose.msra.mxu0 0
        %3381 = vmatprep.subr.bf16.mxu0 0
        %3382 = vmatpush1.bf16.xpose.msra.mxu0 0
        %3383 = vmatprep.subr.bf16.mxu0 0
        %3384 = vmatpush1.bf16.xpose.msra.mxu0 0
        %3385 = vmatprep.subr.bf16.mxu0 0
        %3386 = vmatpush1.bf16.xpose.msra.mxu0 0
        %3387 = vmatprep.subr.bf16.mxu0 0
        %3388 = vmatpush1.bf16.xpose.msra.mxu0 0
        %3389 = vmatprep.subr.bf16.mxu0 0
        %3390 = vmatpush1.bf16.xpose.msra.mxu0 0
        %3391 = vmatprep.subr.bf16.mxu0 0
        %3392 = vmatpush1.bf16.xpose.msra.mxu0 0
        %3393 = vmatprep.subr.bf16.mxu0 0
        %3394 = vmatpush1.bf16.xpose.msra.mxu0 0
        %3395 = vmatprep.subr.bf16.mxu0 0
        %3396 = vmatpush1.bf16.xpose.msra.mxu0 0
        %3397 = vmatprep.subr.bf16.mxu0 0
        %3398 = vmatpush1.bf16.xpose.msra.mxu0 0
        %3399 = vmatprep.subr.bf16.mxu0 0
        %3400 = vmatpush1.bf16.xpose.msra.mxu0 0
        %3401 = vmatprep.mubr.bf16.mxu0 0
        %3402 = vmatmul.mubr.bf16.gmra.mrb[0].mxu0 %v3364
        %v3403 = vpop.f32.mrb[0].mxu0
        %v3404 = vadd.f32 0.0, %v3403
        %v3405 = vpop.f32.mrb[0].mxu0
        %v3406 = vpop.f32.mrb[0].mxu0
        %v3407 = vpop.f32.mrb[0].mxu0
        %3408 = vdwg.mxu0
        %v3409 = vmul.f32 %v2654, 0.25
        %v3410 = vmul.f32 %v2704, 0.25
        %v3411 = vmul.f32 %v2754, 0.25
        %v3412 = vmul.f32 %v2804, 0.25
        %v3413 = vmul.f32 %v2854, 0.25
        %v3414 = vmul.f32 %v2904, 0.25
        %v3415 = vmul.f32 %v2954, 0.25
        %v3416 = vmul.f32 %v3004, 0.25
        %v3417 = vmul.f32 %v3054, 0.25
        %v3418 = vmul.f32 %v3104, 0.25
        %v3419 = vmul.f32 %v3154, 0.25
        %v3420 = vmul.f32 %v3204, 0.25
        %v3421 = vmul.f32 %v3254, 0.25
        %v3422 = vmul.f32 %v3304, 0.25
        %v3423 = vmul.f32 %v3354, 0.25
        %v3424 = vmul.f32 %v3404, 0.25
        %v3425 = vadd.f32 %v3409, %v662
        %v3426 = vadd.f32 %v3410, %v662
        %v3427 = vadd.f32 %v3411, %v662
        %v3428 = vadd.f32 %v3412, %v662
        %v3429 = vadd.f32 %v3413, %v662
        %v3430 = vadd.f32 %v3414, %v662
        %v3431 = vadd.f32 %v3415, %v662
        %v3432 = vadd.f32 %v3416, %v662
        %v3433 = vadd.f32 %v3417, %v662
        %v3434 = vadd.f32 %v3418, %v662
        %v3435 = vadd.f32 %v3419, %v662
        %v3436 = vadd.f32 %v3420, %v662
        %v3437 = vadd.f32 %v3421, %v662
        %v3438 = vadd.f32 %v3422, %v662
        %v3439 = vadd.f32 %v3423, %v662
        %v3440 = vadd.f32 %v3424, %v662
        %v3441 = vsel %vm1647, %v3425, -inf
        %3442 = vmax.xlane.f32.xlu0 %v3441
        %v3443 = vpop.xlane.xlu0 %3442
        %v3444 = vsel %vm1647, %v3426, -inf
        %3445 = vmax.xlane.f32.xlu0 %v3444
        %v3446 = vpop.xlane.xlu0 %3445
        %v3447 = vsel %vm1647, %v3427, -inf
        %3448 = vmax.xlane.f32.xlu0 %v3447
        %v3449 = vpop.xlane.xlu0 %3448
        %v3450 = vsel %vm1647, %v3428, -inf
        %3451 = vmax.xlane.f32.xlu0 %v3450
        %v3452 = vpop.xlane.xlu0 %3451
        %v3453 = vsel %vm1647, %v3429, -inf
        %3454 = vmax.xlane.f32.xlu0 %v3453
        %v3455 = vpop.xlane.xlu0 %3454
        %v3456 = vsel %vm1647, %v3430, -inf
        %3457 = vmax.xlane.f32.xlu0 %v3456
        %v3458 = vpop.xlane.xlu0 %3457
        %v3459 = vsel %vm1647, %v3431, -inf
        %3460 = vmax.xlane.f32.xlu0 %v3459
        %v3461 = vpop.xlane.xlu0 %3460
        %v3462 = vsel %vm1647, %v3432, -inf
        %3463 = vmax.xlane.f32.xlu0 %v3462
        %v3464 = vpop.xlane.xlu0 %3463
        %v3465 = vsel %vm1647, %v3433, -inf
        %3466 = vmax.xlane.f32.xlu0 %v3465
        %v3467 = vpop.xlane.xlu0 %3466
        %v3468 = vsel %vm1647, %v3434, -inf
        %3469 = vmax.xlane.f32.xlu0 %v3468
        %v3470 = vpop.xlane.xlu0 %3469
        %v3471 = vsel %vm1647, %v3435, -inf
        %3472 = vmax.xlane.f32.xlu0 %v3471
        %v3473 = vpop.xlane.xlu0 %3472
        %v3474 = vsel %vm1647, %v3436, -inf
        %3475 = vmax.xlane.f32.xlu0 %v3474
        %v3476 = vpop.xlane.xlu0 %3475
        %v3477 = vsel %vm1647, %v3437, -inf
        %3478 = vmax.xlane.f32.xlu0 %v3477
        %v3479 = vpop.xlane.xlu0 %3478
        %v3480 = vsel %vm1647, %v3438, -inf
        %3481 = vmax.xlane.f32.xlu0 %v3480
        %v3482 = vpop.xlane.xlu0 %3481
        %v3483 = vsel %vm1647, %v3439, -inf
        %3484 = vmax.xlane.f32.xlu0 %v3483
        %v3485 = vpop.xlane.xlu0 %3484
        %v3486 = vsel %vm1647, %v3440, -inf
        %3487 = vmax.xlane.f32.xlu0 %v3486
        %v3488 = vpop.xlane.xlu0 %3487
        %v3489 = vsub.f32 %v3425, %v3443
        %v3490 = vsub.f32 %v3426, %v3446
        %v3491 = vsub.f32 %v3427, %v3449
        %v3492 = vsub.f32 %v3428, %v3452
        %v3493 = vsub.f32 %v3429, %v3455
        %v3494 = vsub.f32 %v3430, %v3458
        %v3495 = vsub.f32 %v3431, %v3461
        %v3496 = vsub.f32 %v3432, %v3464
        %v3497 = vsub.f32 %v3433, %v3467
        %v3498 = vsub.f32 %v3434, %v3470
        %v3499 = vsub.f32 %v3435, %v3473
        %v3500 = vsub.f32 %v3436, %v3476
        %v3501 = vsub.f32 %v3437, %v3479
        %v3502 = vsub.f32 %v3438, %v3482
        %v3503 = vsub.f32 %v3439, %v3485
        %v3504 = vsub.f32 %v3440, %v3488
        %v3505 = vmul.f32 %v3489, 1.442695
        %v3506 = vpow.pop %v3505
        %v3507 = vmul.f32 %v3490, 1.442695
        %v3508 = vpow.pop %v3507
        %v3509 = vmul.f32 %v3491, 1.442695
        %v3510 = vpow.pop %v3509
        %v3511 = vmul.f32 %v3492, 1.442695
        %v3512 = vpow.pop %v3511
        %v3513 = vmul.f32 %v3493, 1.442695
        %v3514 = vpow.pop %v3513
        %v3515 = vmul.f32 %v3494, 1.442695
        %v3516 = vpow.pop %v3515
        %v3517 = vmul.f32 %v3495, 1.442695
        %v3518 = vpow.pop %v3517
        %v3519 = vmul.f32 %v3496, 1.442695
        %v3520 = vpow.pop %v3519
        %v3521 = vmul.f32 %v3497, 1.442695
        %v3522 = vpow.pop %v3521
        %v3523 = vmul.f32 %v3498, 1.442695
        %v3524 = vpow.pop %v3523
        %v3525 = vmul.f32 %v3499, 1.442695
        %v3526 = vpow.pop %v3525
        %v3527 = vmul.f32 %v3500, 1.442695
        %v3528 = vpow.pop %v3527
        %v3529 = vmul.f32 %v3501, 1.442695
        %v3530 = vpow.pop %v3529
        %v3531 = vmul.f32 %v3502, 1.442695
        %v3532 = vpow.pop %v3531
        %v3533 = vmul.f32 %v3503, 1.442695
        %v3534 = vpow.pop %v3533
        %v3535 = vmul.f32 %v3504, 1.442695
        %v3536 = vpow.pop %v3535
        %v3537 = vsel %vm1647, %v3506, 0.0
        %3538 = vadd.xlane.f32.xlu0 %v3537
        %v3539 = vpop.xlane.xlu0 %3538
        %v3540 = vsel %vm1647, %v3508, 0.0
        %3541 = vadd.xlane.f32.xlu0 %v3540
        %v3542 = vpop.xlane.xlu0 %3541
        %v3543 = vsel %vm1647, %v3510, 0.0
        %3544 = vadd.xlane.f32.xlu0 %v3543
        %v3545 = vpop.xlane.xlu0 %3544
        %v3546 = vsel %vm1647, %v3512, 0.0
        %3547 = vadd.xlane.f32.xlu0 %v3546
        %v3548 = vpop.xlane.xlu0 %3547
        %v3549 = vsel %vm1647, %v3514, 0.0
        %3550 = vadd.xlane.f32.xlu0 %v3549
        %v3551 = vpop.xlane.xlu0 %3550
        %v3552 = vsel %vm1647, %v3516, 0.0
        %3553 = vadd.xlane.f32.xlu0 %v3552
        %v3554 = vpop.xlane.xlu0 %3553
        %v3555 = vsel %vm1647, %v3518, 0.0
        %3556 = vadd.xlane.f32.xlu0 %v3555
        %v3557 = vpop.xlane.xlu0 %3556
        %v3558 = vsel %vm1647, %v3520, 0.0
        %3559 = vadd.xlane.f32.xlu0 %v3558
        %v3560 = vpop.xlane.xlu0 %3559
        %v3561 = vsel %vm1647, %v3522, 0.0
        %3562 = vadd.xlane.f32.xlu0 %v3561
        %v3563 = vpop.xlane.xlu0 %3562
        %v3564 = vsel %vm1647, %v3524, 0.0
        %3565 = vadd.xlane.f32.xlu0 %v3564
        %v3566 = vpop.xlane.xlu0 %3565
        %v3567 = vsel %vm1647, %v3526, 0.0
        %3568 = vadd.xlane.f32.xlu0 %v3567
        %v3569 = vpop.xlane.xlu0 %3568
        %v3570 = vsel %vm1647, %v3528, 0.0
        %3571 = vadd.xlane.f32.xlu0 %v3570
        %v3572 = vpop.xlane.xlu0 %3571
        %v3573 = vsel %vm1647, %v3530, 0.0
        %3574 = vadd.xlane.f32.xlu0 %v3573
        %v3575 = vpop.xlane.xlu0 %3574
        %v3576 = vsel %vm1647, %v3532, 0.0
        %3577 = vadd.xlane.f32.xlu0 %v3576
        %v3578 = vpop.xlane.xlu0 %3577
        %v3579 = vsel %vm1647, %v3534, 0.0
        %3580 = vadd.xlane.f32.xlu0 %v3579
        %v3581 = vpop.xlane.xlu0 %3580
        %v3582 = vsel %vm1647, %v3536, 0.0
        %3583 = vadd.xlane.f32.xlu0 %v3582
        %v3584 = vpop.xlane.xlu0 %3583
        %v3585 = vrcp.pop %v3539
        %v3586 = vrcp.pop %v3542
        %v3587 = vrcp.pop %v3545
        %v3588 = vrcp.pop %v3548
        %v3589 = vrcp.pop %v3551
        %v3590 = vrcp.pop %v3554
        %v3591 = vrcp.pop %v3557
        %v3592 = vrcp.pop %v3560
        %v3593 = vrcp.pop %v3563
        %v3594 = vrcp.pop %v3566
        %v3595 = vrcp.pop %v3569
        %v3596 = vrcp.pop %v3572
        %v3597 = vrcp.pop %v3575
        %v3598 = vrcp.pop %v3578
        %v3599 = vrcp.pop %v3581
        %v3600 = vrcp.pop %v3584
        %v3601 = vmul.f32 %v3506, %v3585
        %v3602 = vmul.f32 %v3508, %v3586
        %v3603 = vmul.f32 %v3510, %v3587
        %v3604 = vmul.f32 %v3512, %v3588
        %v3605 = vmul.f32 %v3514, %v3589
        %v3606 = vmul.f32 %v3516, %v3590
        %v3607 = vmul.f32 %v3518, %v3591
        %v3608 = vmul.f32 %v3520, %v3592
        %v3609 = vmul.f32 %v3522, %v3593
        %v3610 = vmul.f32 %v3524, %v3594
        %v3611 = vmul.f32 %v3526, %v3595
        %v3612 = vmul.f32 %v3528, %v3596
        %v3613 = vmul.f32 %v3530, %v3597
        %v3614 = vmul.f32 %v3532, %v3598
        %v3615 = vmul.f32 %v3534, %v3599
        %v3616 = vmul.f32 %v3536, %v3600
        %v3617 = vpack.c.bf16 %v3601, %v3601
        %v3618 = vpack.c.bf16 %v3602, %v3602
        %v3619 = vpack.c.bf16 %v3603, %v3603
        %v3620 = vpack.c.bf16 %v3604, %v3604
        %v3621 = vpack.c.bf16 %v3605, %v3605
        %v3622 = vpack.c.bf16 %v3606, %v3606
        %v3623 = vpack.c.bf16 %v3607, %v3607
        %v3624 = vpack.c.bf16 %v3608, %v3608
        %v3625 = vpack.c.bf16 %v3609, %v3609
        %v3626 = vpack.c.bf16 %v3610, %v3610
        %v3627 = vpack.c.bf16 %v3611, %v3611
        %v3628 = vpack.c.bf16 %v3612, %v3612
        %v3629 = vpack.c.bf16 %v3613, %v3613
        %v3630 = vpack.c.bf16 %v3614, %v3614
        %v3631 = vpack.c.bf16 %v3615, %v3615
        %v3632 = vpack.c.bf16 %v3616, %v3616
        %3633 = vrot.lane.b32.xlu0 %v814, 48
        %v3634 = vpop.permute.xlu0 %3633
        %v3636 = vsel %vm1647, %v3617, 0
        %v3639 = vsel %vm1845, %v3634, 0
        %3641 = vmatprep.subr.bf16.mxu0 0
        %3642 = vmatpush1.bf16.msra.mxu0 %v3639
        %3643 = vmatprep.subr.bf16.mxu0 0
        %3644 = vmatpush1.bf16.msra.mxu0 0
        %3645 = vmatprep.subr.bf16.mxu0 0
        %3646 = vmatpush1.bf16.msra.mxu0 0
        %3647 = vmatprep.subr.bf16.mxu0 0
        %3648 = vmatpush1.bf16.msra.mxu0 0
        %3649 = vmatprep.subr.bf16.mxu0 0
        %3650 = vmatpush1.bf16.msra.mxu0 0
        %3651 = vmatprep.subr.bf16.mxu0 0
        %3652 = vmatpush1.bf16.msra.mxu0 0
        %3653 = vmatprep.subr.bf16.mxu0 0
        %3654 = vmatpush1.bf16.msra.mxu0 0
        %3655 = vmatprep.subr.bf16.mxu0 0
        %3656 = vmatpush1.bf16.msra.mxu0 0
        %3657 = vmatprep.subr.bf16.mxu0 0
        %3658 = vmatpush1.bf16.msra.mxu0 0
        %3659 = vmatprep.subr.bf16.mxu0 0
        %3660 = vmatpush1.bf16.msra.mxu0 0
        %3661 = vmatprep.subr.bf16.mxu0 0
        %3662 = vmatpush1.bf16.msra.mxu0 0
        %3663 = vmatprep.subr.bf16.mxu0 0
        %3664 = vmatpush1.bf16.msra.mxu0 0
        %3665 = vmatprep.subr.bf16.mxu0 0
        %3666 = vmatpush1.bf16.msra.mxu0 0
        %3667 = vmatprep.subr.bf16.mxu0 0
        %3668 = vmatpush1.bf16.msra.mxu0 0
        %3669 = vmatprep.subr.bf16.mxu0 0
        %3670 = vmatpush1.bf16.msra.mxu0 0
        %3671 = vmatprep.subr.bf16.mxu0 0
        %3672 = vmatpush1.bf16.msra.mxu0 0
        %3673 = vmatprep.mubr.bf16.mxu0 0
        %3674 = vmatmul.mubr.bf16.gmra.mrb[0].mxu0 %v3636
        %v3675 = vpop.f32.mrb[0].mxu0
        %v3676 = vadd.f32 0.0, %v3675
        %v3677 = vpop.f32.mrb[0].mxu0
        %v3678 = vpop.f32.mrb[0].mxu0
        %v3679 = vpop.f32.mrb[0].mxu0
        %3680 = vdwg.mxu0
        %3681 = vrot.lane.b32.xlu0 %v815, 48
        %v3682 = vpop.permute.xlu0 %3681
        %v3684 = vsel %vm1647, %v3618, 0
        %v3687 = vsel %vm1845, %v3682, 0
        %3689 = vmatprep.subr.bf16.mxu0 0
        %3690 = vmatpush1.bf16.msra.mxu0 %v3687
        %3691 = vmatprep.subr.bf16.mxu0 0
        %3692 = vmatpush1.bf16.msra.mxu0 0
        %3693 = vmatprep.subr.bf16.mxu0 0
        %3694 = vmatpush1.bf16.msra.mxu0 0
        %3695 = vmatprep.subr.bf16.mxu0 0
        %3696 = vmatpush1.bf16.msra.mxu0 0
        %3697 = vmatprep.subr.bf16.mxu0 0
        %3698 = vmatpush1.bf16.msra.mxu0 0
        %3699 = vmatprep.subr.bf16.mxu0 0
        %3700 = vmatpush1.bf16.msra.mxu0 0
        %3701 = vmatprep.subr.bf16.mxu0 0
        %3702 = vmatpush1.bf16.msra.mxu0 0
        %3703 = vmatprep.subr.bf16.mxu0 0
        %3704 = vmatpush1.bf16.msra.mxu0 0
        %3705 = vmatprep.subr.bf16.mxu0 0
        %3706 = vmatpush1.bf16.msra.mxu0 0
        %3707 = vmatprep.subr.bf16.mxu0 0
        %3708 = vmatpush1.bf16.msra.mxu0 0
        %3709 = vmatprep.subr.bf16.mxu0 0
        %3710 = vmatpush1.bf16.msra.mxu0 0
        %3711 = vmatprep.subr.bf16.mxu0 0
        %3712 = vmatpush1.bf16.msra.mxu0 0
        %3713 = vmatprep.subr.bf16.mxu0 0
        %3714 = vmatpush1.bf16.msra.mxu0 0
        %3715 = vmatprep.subr.bf16.mxu0 0
        %3716 = vmatpush1.bf16.msra.mxu0 0
        %3717 = vmatprep.subr.bf16.mxu0 0
        %3718 = vmatpush1.bf16.msra.mxu0 0
        %3719 = vmatprep.subr.bf16.mxu0 0
        %3720 = vmatpush1.bf16.msra.mxu0 0
        %3721 = vmatprep.mubr.bf16.mxu0 0
        %3722 = vmatmul.mubr.bf16.gmra.mrb[0].mxu0 %v3684
        %v3723 = vpop.f32.mrb[0].mxu0
        %v3724 = vadd.f32 0.0, %v3723
        %v3725 = vpop.f32.mrb[0].mxu0
        %v3726 = vpop.f32.mrb[0].mxu0
        %v3727 = vpop.f32.mrb[0].mxu0
        %3728 = vdwg.mxu0
        %3729 = vrot.lane.b32.xlu0 %v816, 48
        %v3730 = vpop.permute.xlu0 %3729
        %v3732 = vsel %vm1647, %v3619, 0
        %v3735 = vsel %vm1845, %v3730, 0
        %3737 = vmatprep.subr.bf16.mxu0 0
        %3738 = vmatpush1.bf16.msra.mxu0 %v3735
        %3739 = vmatprep.subr.bf16.mxu0 0
        %3740 = vmatpush1.bf16.msra.mxu0 0
        %3741 = vmatprep.subr.bf16.mxu0 0
        %3742 = vmatpush1.bf16.msra.mxu0 0
        %3743 = vmatprep.subr.bf16.mxu0 0
        %3744 = vmatpush1.bf16.msra.mxu0 0
        %3745 = vmatprep.subr.bf16.mxu0 0
        %3746 = vmatpush1.bf16.msra.mxu0 0
        %3747 = vmatprep.subr.bf16.mxu0 0
        %3748 = vmatpush1.bf16.msra.mxu0 0
        %3749 = vmatprep.subr.bf16.mxu0 0
        %3750 = vmatpush1.bf16.msra.mxu0 0
        %3751 = vmatprep.subr.bf16.mxu0 0
        %3752 = vmatpush1.bf16.msra.mxu0 0
        %3753 = vmatprep.subr.bf16.mxu0 0
        %3754 = vmatpush1.bf16.msra.mxu0 0
        %3755 = vmatprep.subr.bf16.mxu0 0
        %3756 = vmatpush1.bf16.msra.mxu0 0
        %3757 = vmatprep.subr.bf16.mxu0 0
        %3758 = vmatpush1.bf16.msra.mxu0 0
        %3759 = vmatprep.subr.bf16.mxu0 0
        %3760 = vmatpush1.bf16.msra.mxu0 0
        %3761 = vmatprep.subr.bf16.mxu0 0
        %3762 = vmatpush1.bf16.msra.mxu0 0
        %3763 = vmatprep.subr.bf16.mxu0 0
        %3764 = vmatpush1.bf16.msra.mxu0 0
        %3765 = vmatprep.subr.bf16.mxu0 0
        %3766 = vmatpush1.bf16.msra.mxu0 0
        %3767 = vmatprep.subr.bf16.mxu0 0
        %3768 = vmatpush1.bf16.msra.mxu0 0
        %3769 = vmatprep.mubr.bf16.mxu0 0
        %3770 = vmatmul.mubr.bf16.gmra.mrb[0].mxu0 %v3732
        %v3771 = vpop.f32.mrb[0].mxu0
        %v3772 = vadd.f32 0.0, %v3771
        %v3773 = vpop.f32.mrb[0].mxu0
        %v3774 = vpop.f32.mrb[0].mxu0
        %v3775 = vpop.f32.mrb[0].mxu0
        %3776 = vdwg.mxu0
        %3777 = vrot.lane.b32.xlu0 %v817, 48
        %v3778 = vpop.permute.xlu0 %3777
        %v3780 = vsel %vm1647, %v3620, 0
        %v3783 = vsel %vm1845, %v3778, 0
        %3785 = vmatprep.subr.bf16.mxu0 0
        %3786 = vmatpush1.bf16.msra.mxu0 %v3783
        %3787 = vmatprep.subr.bf16.mxu0 0
        %3788 = vmatpush1.bf16.msra.mxu0 0
        %3789 = vmatprep.subr.bf16.mxu0 0
        %3790 = vmatpush1.bf16.msra.mxu0 0
        %3791 = vmatprep.subr.bf16.mxu0 0
        %3792 = vmatpush1.bf16.msra.mxu0 0
        %3793 = vmatprep.subr.bf16.mxu0 0
        %3794 = vmatpush1.bf16.msra.mxu0 0
        %3795 = vmatprep.subr.bf16.mxu0 0
        %3796 = vmatpush1.bf16.msra.mxu0 0
        %3797 = vmatprep.subr.bf16.mxu0 0
        %3798 = vmatpush1.bf16.msra.mxu0 0
        %3799 = vmatprep.subr.bf16.mxu0 0
        %3800 = vmatpush1.bf16.msra.mxu0 0
        %3801 = vmatprep.subr.bf16.mxu0 0
        %3802 = vmatpush1.bf16.msra.mxu0 0
        %3803 = vmatprep.subr.bf16.mxu0 0
        %3804 = vmatpush1.bf16.msra.mxu0 0
        %3805 = vmatprep.subr.bf16.mxu0 0
        %3806 = vmatpush1.bf16.msra.mxu0 0
        %3807 = vmatprep.subr.bf16.mxu0 0
        %3808 = vmatpush1.bf16.msra.mxu0 0
        %3809 = vmatprep.subr.bf16.mxu0 0
        %3810 = vmatpush1.bf16.msra.mxu0 0
        %3811 = vmatprep.subr.bf16.mxu0 0
        %3812 = vmatpush1.bf16.msra.mxu0 0
        %3813 = vmatprep.subr.bf16.mxu0 0
        %3814 = vmatpush1.bf16.msra.mxu0 0
        %3815 = vmatprep.subr.bf16.mxu0 0
        %3816 = vmatpush1.bf16.msra.mxu0 0
        %3817 = vmatprep.mubr.bf16.mxu0 0
        %3818 = vmatmul.mubr.bf16.gmra.mrb[0].mxu0 %v3780
        %v3819 = vpop.f32.mrb[0].mxu0
        %v3820 = vadd.f32 0.0, %v3819
        %v3821 = vpop.f32.mrb[0].mxu0
        %v3822 = vpop.f32.mrb[0].mxu0
        %v3823 = vpop.f32.mrb[0].mxu0
        %3824 = vdwg.mxu0
        %3825 = vrot.lane.b32.xlu0 %v818, 48
        %v3826 = vpop.permute.xlu0 %3825
        %v3828 = vsel %vm1647, %v3621, 0
        %v3831 = vsel %vm1845, %v3826, 0
        %3833 = vmatprep.subr.bf16.mxu0 0
        %3834 = vmatpush1.bf16.msra.mxu0 %v3831
        %3835 = vmatprep.subr.bf16.mxu0 0
        %3836 = vmatpush1.bf16.msra.mxu0 0
        %3837 = vmatprep.subr.bf16.mxu0 0
        %3838 = vmatpush1.bf16.msra.mxu0 0
        %3839 = vmatprep.subr.bf16.mxu0 0
        %3840 = vmatpush1.bf16.msra.mxu0 0
        %3841 = vmatprep.subr.bf16.mxu0 0
        %3842 = vmatpush1.bf16.msra.mxu0 0
        %3843 = vmatprep.subr.bf16.mxu0 0
        %3844 = vmatpush1.bf16.msra.mxu0 0
        %3845 = vmatprep.subr.bf16.mxu0 0
        %3846 = vmatpush1.bf16.msra.mxu0 0
        %3847 = vmatprep.subr.bf16.mxu0 0
        %3848 = vmatpush1.bf16.msra.mxu0 0
        %3849 = vmatprep.subr.bf16.mxu0 0
        %3850 = vmatpush1.bf16.msra.mxu0 0
        %3851 = vmatprep.subr.bf16.mxu0 0
        %3852 = vmatpush1.bf16.msra.mxu0 0
        %3853 = vmatprep.subr.bf16.mxu0 0
        %3854 = vmatpush1.bf16.msra.mxu0 0
        %3855 = vmatprep.subr.bf16.mxu0 0
        %3856 = vmatpush1.bf16.msra.mxu0 0
        %3857 = vmatprep.subr.bf16.mxu0 0
        %3858 = vmatpush1.bf16.msra.mxu0 0
        %3859 = vmatprep.subr.bf16.mxu0 0
        %3860 = vmatpush1.bf16.msra.mxu0 0
        %3861 = vmatprep.subr.bf16.mxu0 0
        %3862 = vmatpush1.bf16.msra.mxu0 0
        %3863 = vmatprep.subr.bf16.mxu0 0
        %3864 = vmatpush1.bf16.msra.mxu0 0
        %3865 = vmatprep.mubr.bf16.mxu0 0
        %3866 = vmatmul.mubr.bf16.gmra.mrb[0].mxu0 %v3828
        %v3867 = vpop.f32.mrb[0].mxu0
        %v3868 = vadd.f32 0.0, %v3867
        %v3869 = vpop.f32.mrb[0].mxu0
        %v3870 = vpop.f32.mrb[0].mxu0
        %v3871 = vpop.f32.mrb[0].mxu0
        %3872 = vdwg.mxu0
        %3873 = vrot.lane.b32.xlu0 %v819, 48
        %v3874 = vpop.permute.xlu0 %3873
        %v3876 = vsel %vm1647, %v3622, 0
        %v3879 = vsel %vm1845, %v3874, 0
        %3881 = vmatprep.subr.bf16.mxu0 0
        %3882 = vmatpush1.bf16.msra.mxu0 %v3879
        %3883 = vmatprep.subr.bf16.mxu0 0
        %3884 = vmatpush1.bf16.msra.mxu0 0
        %3885 = vmatprep.subr.bf16.mxu0 0
        %3886 = vmatpush1.bf16.msra.mxu0 0
        %3887 = vmatprep.subr.bf16.mxu0 0
        %3888 = vmatpush1.bf16.msra.mxu0 0
        %3889 = vmatprep.subr.bf16.mxu0 0
        %3890 = vmatpush1.bf16.msra.mxu0 0
        %3891 = vmatprep.subr.bf16.mxu0 0
        %3892 = vmatpush1.bf16.msra.mxu0 0
        %3893 = vmatprep.subr.bf16.mxu0 0
        %3894 = vmatpush1.bf16.msra.mxu0 0
        %3895 = vmatprep.subr.bf16.mxu0 0
        %3896 = vmatpush1.bf16.msra.mxu0 0
        %3897 = vmatprep.subr.bf16.mxu0 0
        %3898 = vmatpush1.bf16.msra.mxu0 0
        %3899 = vmatprep.subr.bf16.mxu0 0
        %3900 = vmatpush1.bf16.msra.mxu0 0
        %3901 = vmatprep.subr.bf16.mxu0 0
        %3902 = vmatpush1.bf16.msra.mxu0 0
        %3903 = vmatprep.subr.bf16.mxu0 0
        %3904 = vmatpush1.bf16.msra.mxu0 0
        %3905 = vmatprep.subr.bf16.mxu0 0
        %3906 = vmatpush1.bf16.msra.mxu0 0
        %3907 = vmatprep.subr.bf16.mxu0 0
        %3908 = vmatpush1.bf16.msra.mxu0 0
        %3909 = vmatprep.subr.bf16.mxu0 0
        %3910 = vmatpush1.bf16.msra.mxu0 0
        %3911 = vmatprep.subr.bf16.mxu0 0
        %3912 = vmatpush1.bf16.msra.mxu0 0
        %3913 = vmatprep.mubr.bf16.mxu0 0
        %3914 = vmatmul.mubr.bf16.gmra.mrb[0].mxu0 %v3876
        %v3915 = vpop.f32.mrb[0].mxu0
        %v3916 = vadd.f32 0.0, %v3915
        %v3917 = vpop.f32.mrb[0].mxu0
        %v3918 = vpop.f32.mrb[0].mxu0
        %v3919 = vpop.f32.mrb[0].mxu0
        %3920 = vdwg.mxu0
        %3921 = vrot.lane.b32.xlu0 %v820, 48
        %v3922 = vpop.permute.xlu0 %3921
        %v3924 = vsel %vm1647, %v3623, 0
        %v3927 = vsel %vm1845, %v3922, 0
        %3929 = vmatprep.subr.bf16.mxu0 0
        %3930 = vmatpush1.bf16.msra.mxu0 %v3927
        %3931 = vmatprep.subr.bf16.mxu0 0
        %3932 = vmatpush1.bf16.msra.mxu0 0
        %3933 = vmatprep.subr.bf16.mxu0 0
        %3934 = vmatpush1.bf16.msra.mxu0 0
        %3935 = vmatprep.subr.bf16.mxu0 0
        %3936 = vmatpush1.bf16.msra.mxu0 0
        %3937 = vmatprep.subr.bf16.mxu0 0
        %3938 = vmatpush1.bf16.msra.mxu0 0
        %3939 = vmatprep.subr.bf16.mxu0 0
        %3940 = vmatpush1.bf16.msra.mxu0 0
        %3941 = vmatprep.subr.bf16.mxu0 0
        %3942 = vmatpush1.bf16.msra.mxu0 0
        %3943 = vmatprep.subr.bf16.mxu0 0
        %3944 = vmatpush1.bf16.msra.mxu0 0
        %3945 = vmatprep.subr.bf16.mxu0 0
        %3946 = vmatpush1.bf16.msra.mxu0 0
        %3947 = vmatprep.subr.bf16.mxu0 0
        %3948 = vmatpush1.bf16.msra.mxu0 0
        %3949 = vmatprep.subr.bf16.mxu0 0
        %3950 = vmatpush1.bf16.msra.mxu0 0
        %3951 = vmatprep.subr.bf16.mxu0 0
        %3952 = vmatpush1.bf16.msra.mxu0 0
        %3953 = vmatprep.subr.bf16.mxu0 0
        %3954 = vmatpush1.bf16.msra.mxu0 0
        %3955 = vmatprep.subr.bf16.mxu0 0
        %3956 = vmatpush1.bf16.msra.mxu0 0
        %3957 = vmatprep.subr.bf16.mxu0 0
        %3958 = vmatpush1.bf16.msra.mxu0 0
        %3959 = vmatprep.subr.bf16.mxu0 0
        %3960 = vmatpush1.bf16.msra.mxu0 0
        %3961 = vmatprep.mubr.bf16.mxu0 0
        %3962 = vmatmul.mubr.bf16.gmra.mrb[0].mxu0 %v3924
        %v3963 = vpop.f32.mrb[0].mxu0
        %v3964 = vadd.f32 0.0, %v3963
        %v3965 = vpop.f32.mrb[0].mxu0
        %v3966 = vpop.f32.mrb[0].mxu0
        %v3967 = vpop.f32.mrb[0].mxu0
        %3968 = vdwg.mxu0
        %3969 = vrot.lane.b32.xlu0 %v821, 48
        %v3970 = vpop.permute.xlu0 %3969
        %v3972 = vsel %vm1647, %v3624, 0
        %v3975 = vsel %vm1845, %v3970, 0
        %3977 = vmatprep.subr.bf16.mxu0 0
        %3978 = vmatpush1.bf16.msra.mxu0 %v3975
        %3979 = vmatprep.subr.bf16.mxu0 0
        %3980 = vmatpush1.bf16.msra.mxu0 0
        %3981 = vmatprep.subr.bf16.mxu0 0
        %3982 = vmatpush1.bf16.msra.mxu0 0
        %3983 = vmatprep.subr.bf16.mxu0 0
        %3984 = vmatpush1.bf16.msra.mxu0 0
        %3985 = vmatprep.subr.bf16.mxu0 0
        %3986 = vmatpush1.bf16.msra.mxu0 0
        %3987 = vmatprep.subr.bf16.mxu0 0
        %3988 = vmatpush1.bf16.msra.mxu0 0
        %3989 = vmatprep.subr.bf16.mxu0 0
        %3990 = vmatpush1.bf16.msra.mxu0 0
        %3991 = vmatprep.subr.bf16.mxu0 0
        %3992 = vmatpush1.bf16.msra.mxu0 0
        %3993 = vmatprep.subr.bf16.mxu0 0
        %3994 = vmatpush1.bf16.msra.mxu0 0
        %3995 = vmatprep.subr.bf16.mxu0 0
        %3996 = vmatpush1.bf16.msra.mxu0 0
        %3997 = vmatprep.subr.bf16.mxu0 0
        %3998 = vmatpush1.bf16.msra.mxu0 0
        %3999 = vmatprep.subr.bf16.mxu0 0
        %4000 = vmatpush1.bf16.msra.mxu0 0
        %4001 = vmatprep.subr.bf16.mxu0 0
        %4002 = vmatpush1.bf16.msra.mxu0 0
        %4003 = vmatprep.subr.bf16.mxu0 0
        %4004 = vmatpush1.bf16.msra.mxu0 0
        %4005 = vmatprep.subr.bf16.mxu0 0
        %4006 = vmatpush1.bf16.msra.mxu0 0
        %4007 = vmatprep.subr.bf16.mxu0 0
        %4008 = vmatpush1.bf16.msra.mxu0 0
        %4009 = vmatprep.mubr.bf16.mxu0 0
        %4010 = vmatmul.mubr.bf16.gmra.mrb[0].mxu0 %v3972
        %v4011 = vpop.f32.mrb[0].mxu0
        %v4012 = vadd.f32 0.0, %v4011
        %v4013 = vpop.f32.mrb[0].mxu0
        %v4014 = vpop.f32.mrb[0].mxu0
        %v4015 = vpop.f32.mrb[0].mxu0
        %4016 = vdwg.mxu0
        %4017 = vrot.lane.b32.xlu0 %v822, 48
        %v4018 = vpop.permute.xlu0 %4017
        %v4020 = vsel %vm1647, %v3625, 0
        %v4023 = vsel %vm1845, %v4018, 0
        %4025 = vmatprep.subr.bf16.mxu0 0
        %4026 = vmatpush1.bf16.msra.mxu0 %v4023
        %4027 = vmatprep.subr.bf16.mxu0 0
        %4028 = vmatpush1.bf16.msra.mxu0 0
        %4029 = vmatprep.subr.bf16.mxu0 0
        %4030 = vmatpush1.bf16.msra.mxu0 0
        %4031 = vmatprep.subr.bf16.mxu0 0
        %4032 = vmatpush1.bf16.msra.mxu0 0
        %4033 = vmatprep.subr.bf16.mxu0 0
        %4034 = vmatpush1.bf16.msra.mxu0 0
        %4035 = vmatprep.subr.bf16.mxu0 0
        %4036 = vmatpush1.bf16.msra.mxu0 0
        %4037 = vmatprep.subr.bf16.mxu0 0
        %4038 = vmatpush1.bf16.msra.mxu0 0
        %4039 = vmatprep.subr.bf16.mxu0 0
        %4040 = vmatpush1.bf16.msra.mxu0 0
        %4041 = vmatprep.subr.bf16.mxu0 0
        %4042 = vmatpush1.bf16.msra.mxu0 0
        %4043 = vmatprep.subr.bf16.mxu0 0
        %4044 = vmatpush1.bf16.msra.mxu0 0
        %4045 = vmatprep.subr.bf16.mxu0 0
        %4046 = vmatpush1.bf16.msra.mxu0 0
        %4047 = vmatprep.subr.bf16.mxu0 0
        %4048 = vmatpush1.bf16.msra.mxu0 0
        %4049 = vmatprep.subr.bf16.mxu0 0
        %4050 = vmatpush1.bf16.msra.mxu0 0
        %4051 = vmatprep.subr.bf16.mxu0 0
        %4052 = vmatpush1.bf16.msra.mxu0 0
        %4053 = vmatprep.subr.bf16.mxu0 0
        %4054 = vmatpush1.bf16.msra.mxu0 0
        %4055 = vmatprep.subr.bf16.mxu0 0
        %4056 = vmatpush1.bf16.msra.mxu0 0
        %4057 = vmatprep.mubr.bf16.mxu0 0
        %4058 = vmatmul.mubr.bf16.gmra.mrb[0].mxu0 %v4020
        %v4059 = vpop.f32.mrb[0].mxu0
        %v4060 = vadd.f32 0.0, %v4059
        %v4061 = vpop.f32.mrb[0].mxu0
        %v4062 = vpop.f32.mrb[0].mxu0
        %v4063 = vpop.f32.mrb[0].mxu0
        %4064 = vdwg.mxu0
        %4065 = vrot.lane.b32.xlu0 %v823, 48
        %v4066 = vpop.permute.xlu0 %4065
        %v4068 = vsel %vm1647, %v3626, 0
        %v4071 = vsel %vm1845, %v4066, 0
        %4073 = vmatprep.subr.bf16.mxu0 0
        %4074 = vmatpush1.bf16.msra.mxu0 %v4071
        %4075 = vmatprep.subr.bf16.mxu0 0
        %4076 = vmatpush1.bf16.msra.mxu0 0
        %4077 = vmatprep.subr.bf16.mxu0 0
        %4078 = vmatpush1.bf16.msra.mxu0 0
        %4079 = vmatprep.subr.bf16.mxu0 0
        %4080 = vmatpush1.bf16.msra.mxu0 0
        %4081 = vmatprep.subr.bf16.mxu0 0
        %4082 = vmatpush1.bf16.msra.mxu0 0
        %4083 = vmatprep.subr.bf16.mxu0 0
        %4084 = vmatpush1.bf16.msra.mxu0 0
        %4085 = vmatprep.subr.bf16.mxu0 0
        %4086 = vmatpush1.bf16.msra.mxu0 0
        %4087 = vmatprep.subr.bf16.mxu0 0
        %4088 = vmatpush1.bf16.msra.mxu0 0
        %4089 = vmatprep.subr.bf16.mxu0 0
        %4090 = vmatpush1.bf16.msra.mxu0 0
        %4091 = vmatprep.subr.bf16.mxu0 0
        %4092 = vmatpush1.bf16.msra.mxu0 0
        %4093 = vmatprep.subr.bf16.mxu0 0
        %4094 = vmatpush1.bf16.msra.mxu0 0
        %4095 = vmatprep.subr.bf16.mxu0 0
        %4096 = vmatpush1.bf16.msra.mxu0 0
        %4097 = vmatprep.subr.bf16.mxu0 0
        %4098 = vmatpush1.bf16.msra.mxu0 0
        %4099 = vmatprep.subr.bf16.mxu0 0
        %4100 = vmatpush1.bf16.msra.mxu0 0
        %4101 = vmatprep.subr.bf16.mxu0 0
        %4102 = vmatpush1.bf16.msra.mxu0 0
        %4103 = vmatprep.subr.bf16.mxu0 0
        %4104 = vmatpush1.bf16.msra.mxu0 0
        %4105 = vmatprep.mubr.bf16.mxu0 0
        %4106 = vmatmul.mubr.bf16.gmra.mrb[0].mxu0 %v4068
        %v4107 = vpop.f32.mrb[0].mxu0
        %v4108 = vadd.f32 0.0, %v4107
        %v4109 = vpop.f32.mrb[0].mxu0
        %v4110 = vpop.f32.mrb[0].mxu0
        %v4111 = vpop.f32.mrb[0].mxu0
        %4112 = vdwg.mxu0
        %4113 = vrot.lane.b32.xlu0 %v824, 48
        %v4114 = vpop.permute.xlu0 %4113
        %v4116 = vsel %vm1647, %v3627, 0
        %v4119 = vsel %vm1845, %v4114, 0
        %4121 = vmatprep.subr.bf16.mxu0 0
        %4122 = vmatpush1.bf16.msra.mxu0 %v4119
        %4123 = vmatprep.subr.bf16.mxu0 0
        %4124 = vmatpush1.bf16.msra.mxu0 0
        %4125 = vmatprep.subr.bf16.mxu0 0
        %4126 = vmatpush1.bf16.msra.mxu0 0
        %4127 = vmatprep.subr.bf16.mxu0 0
        %4128 = vmatpush1.bf16.msra.mxu0 0
        %4129 = vmatprep.subr.bf16.mxu0 0
        %4130 = vmatpush1.bf16.msra.mxu0 0
        %4131 = vmatprep.subr.bf16.mxu0 0
        %4132 = vmatpush1.bf16.msra.mxu0 0
        %4133 = vmatprep.subr.bf16.mxu0 0
        %4134 = vmatpush1.bf16.msra.mxu0 0
        %4135 = vmatprep.subr.bf16.mxu0 0
        %4136 = vmatpush1.bf16.msra.mxu0 0
        %4137 = vmatprep.subr.bf16.mxu0 0
        %4138 = vmatpush1.bf16.msra.mxu0 0
        %4139 = vmatprep.subr.bf16.mxu0 0
        %4140 = vmatpush1.bf16.msra.mxu0 0
        %4141 = vmatprep.subr.bf16.mxu0 0
        %4142 = vmatpush1.bf16.msra.mxu0 0
        %4143 = vmatprep.subr.bf16.mxu0 0
        %4144 = vmatpush1.bf16.msra.mxu0 0
        %4145 = vmatprep.subr.bf16.mxu0 0
        %4146 = vmatpush1.bf16.msra.mxu0 0
        %4147 = vmatprep.subr.bf16.mxu0 0
        %4148 = vmatpush1.bf16.msra.mxu0 0
        %4149 = vmatprep.subr.bf16.mxu0 0
        %4150 = vmatpush1.bf16.msra.mxu0 0
        %4151 = vmatprep.subr.bf16.mxu0 0
        %4152 = vmatpush1.bf16.msra.mxu0 0
        %4153 = vmatprep.mubr.bf16.mxu0 0
        %4154 = vmatmul.mubr.bf16.gmra.mrb[0].mxu0 %v4116
        %v4155 = vpop.f32.mrb[0].mxu0
        %v4156 = vadd.f32 0.0, %v4155
        %v4157 = vpop.f32.mrb[0].mxu0
        %v4158 = vpop.f32.mrb[0].mxu0
        %v4159 = vpop.f32.mrb[0].mxu0
        %4160 = vdwg.mxu0
        %4161 = vrot.lane.b32.xlu0 %v825, 48
        %v4162 = vpop.permute.xlu0 %4161
        %v4164 = vsel %vm1647, %v3628, 0
        %v4167 = vsel %vm1845, %v4162, 0
        %4169 = vmatprep.subr.bf16.mxu0 0
        %4170 = vmatpush1.bf16.msra.mxu0 %v4167
        %4171 = vmatprep.subr.bf16.mxu0 0
        %4172 = vmatpush1.bf16.msra.mxu0 0
        %4173 = vmatprep.subr.bf16.mxu0 0
        %4174 = vmatpush1.bf16.msra.mxu0 0
        %4175 = vmatprep.subr.bf16.mxu0 0
        %4176 = vmatpush1.bf16.msra.mxu0 0
        %4177 = vmatprep.subr.bf16.mxu0 0
        %4178 = vmatpush1.bf16.msra.mxu0 0
        %4179 = vmatprep.subr.bf16.mxu0 0
        %4180 = vmatpush1.bf16.msra.mxu0 0
        %4181 = vmatprep.subr.bf16.mxu0 0
        %4182 = vmatpush1.bf16.msra.mxu0 0
        %4183 = vmatprep.subr.bf16.mxu0 0
        %4184 = vmatpush1.bf16.msra.mxu0 0
        %4185 = vmatprep.subr.bf16.mxu0 0
        %4186 = vmatpush1.bf16.msra.mxu0 0
        %4187 = vmatprep.subr.bf16.mxu0 0
        %4188 = vmatpush1.bf16.msra.mxu0 0
        %4189 = vmatprep.subr.bf16.mxu0 0
        %4190 = vmatpush1.bf16.msra.mxu0 0
        %4191 = vmatprep.subr.bf16.mxu0 0
        %4192 = vmatpush1.bf16.msra.mxu0 0
        %4193 = vmatprep.subr.bf16.mxu0 0
        %4194 = vmatpush1.bf16.msra.mxu0 0
        %4195 = vmatprep.subr.bf16.mxu0 0
        %4196 = vmatpush1.bf16.msra.mxu0 0
        %4197 = vmatprep.subr.bf16.mxu0 0
        %4198 = vmatpush1.bf16.msra.mxu0 0
        %4199 = vmatprep.subr.bf16.mxu0 0
        %4200 = vmatpush1.bf16.msra.mxu0 0
        %4201 = vmatprep.mubr.bf16.mxu0 0
        %4202 = vmatmul.mubr.bf16.gmra.mrb[0].mxu0 %v4164
        %v4203 = vpop.f32.mrb[0].mxu0
        %v4204 = vadd.f32 0.0, %v4203
        %v4205 = vpop.f32.mrb[0].mxu0
        %v4206 = vpop.f32.mrb[0].mxu0
        %v4207 = vpop.f32.mrb[0].mxu0
        %4208 = vdwg.mxu0
        %4209 = vrot.lane.b32.xlu0 %v826, 48
        %v4210 = vpop.permute.xlu0 %4209
        %v4212 = vsel %vm1647, %v3629, 0
        %v4215 = vsel %vm1845, %v4210, 0
        %4217 = vmatprep.subr.bf16.mxu0 0
        %4218 = vmatpush1.bf16.msra.mxu0 %v4215
        %4219 = vmatprep.subr.bf16.mxu0 0
        %4220 = vmatpush1.bf16.msra.mxu0 0
        %4221 = vmatprep.subr.bf16.mxu0 0
        %4222 = vmatpush1.bf16.msra.mxu0 0
        %4223 = vmatprep.subr.bf16.mxu0 0
        %4224 = vmatpush1.bf16.msra.mxu0 0
        %4225 = vmatprep.subr.bf16.mxu0 0
        %4226 = vmatpush1.bf16.msra.mxu0 0
        %4227 = vmatprep.subr.bf16.mxu0 0
        %4228 = vmatpush1.bf16.msra.mxu0 0
        %4229 = vmatprep.subr.bf16.mxu0 0
        %4230 = vmatpush1.bf16.msra.mxu0 0
        %4231 = vmatprep.subr.bf16.mxu0 0
        %4232 = vmatpush1.bf16.msra.mxu0 0
        %4233 = vmatprep.subr.bf16.mxu0 0
        %4234 = vmatpush1.bf16.msra.mxu0 0
        %4235 = vmatprep.subr.bf16.mxu0 0
        %4236 = vmatpush1.bf16.msra.mxu0 0
        %4237 = vmatprep.subr.bf16.mxu0 0
        %4238 = vmatpush1.bf16.msra.mxu0 0
        %4239 = vmatprep.subr.bf16.mxu0 0
        %4240 = vmatpush1.bf16.msra.mxu0 0
        %4241 = vmatprep.subr.bf16.mxu0 0
        %4242 = vmatpush1.bf16.msra.mxu0 0
        %4243 = vmatprep.subr.bf16.mxu0 0
        %4244 = vmatpush1.bf16.msra.mxu0 0
        %4245 = vmatprep.subr.bf16.mxu0 0
        %4246 = vmatpush1.bf16.msra.mxu0 0
        %4247 = vmatprep.subr.bf16.mxu0 0
        %4248 = vmatpush1.bf16.msra.mxu0 0
        %4249 = vmatprep.mubr.bf16.mxu0 0
        %4250 = vmatmul.mubr.bf16.gmra.mrb[0].mxu0 %v4212
        %v4251 = vpop.f32.mrb[0].mxu0
        %v4252 = vadd.f32 0.0, %v4251
        %v4253 = vpop.f32.mrb[0].mxu0
        %v4254 = vpop.f32.mrb[0].mxu0
        %v4255 = vpop.f32.mrb[0].mxu0
        %4256 = vdwg.mxu0
        %4257 = vrot.lane.b32.xlu0 %v827, 48
        %v4258 = vpop.permute.xlu0 %4257
        %v4260 = vsel %vm1647, %v3630, 0
        %v4263 = vsel %vm1845, %v4258, 0
        %4265 = vmatprep.subr.bf16.mxu0 0
        %4266 = vmatpush1.bf16.msra.mxu0 %v4263
        %4267 = vmatprep.subr.bf16.mxu0 0
        %4268 = vmatpush1.bf16.msra.mxu0 0
        %4269 = vmatprep.subr.bf16.mxu0 0
        %4270 = vmatpush1.bf16.msra.mxu0 0
        %4271 = vmatprep.subr.bf16.mxu0 0
        %4272 = vmatpush1.bf16.msra.mxu0 0
        %4273 = vmatprep.subr.bf16.mxu0 0
        %4274 = vmatpush1.bf16.msra.mxu0 0
        %4275 = vmatprep.subr.bf16.mxu0 0
        %4276 = vmatpush1.bf16.msra.mxu0 0
        %4277 = vmatprep.subr.bf16.mxu0 0
        %4278 = vmatpush1.bf16.msra.mxu0 0
        %4279 = vmatprep.subr.bf16.mxu0 0
        %4280 = vmatpush1.bf16.msra.mxu0 0
        %4281 = vmatprep.subr.bf16.mxu0 0
        %4282 = vmatpush1.bf16.msra.mxu0 0
        %4283 = vmatprep.subr.bf16.mxu0 0
        %4284 = vmatpush1.bf16.msra.mxu0 0
        %4285 = vmatprep.subr.bf16.mxu0 0
        %4286 = vmatpush1.bf16.msra.mxu0 0
        %4287 = vmatprep.subr.bf16.mxu0 0
        %4288 = vmatpush1.bf16.msra.mxu0 0
        %4289 = vmatprep.subr.bf16.mxu0 0
        %4290 = vmatpush1.bf16.msra.mxu0 0
        %4291 = vmatprep.subr.bf16.mxu0 0
        %4292 = vmatpush1.bf16.msra.mxu0 0
        %4293 = vmatprep.subr.bf16.mxu0 0
        %4294 = vmatpush1.bf16.msra.mxu0 0
        %4295 = vmatprep.subr.bf16.mxu0 0
        %4296 = vmatpush1.bf16.msra.mxu0 0
        %4297 = vmatprep.mubr.bf16.mxu0 0
        %4298 = vmatmul.mubr.bf16.gmra.mrb[0].mxu0 %v4260
        %v4299 = vpop.f32.mrb[0].mxu0
        %v4300 = vadd.f32 0.0, %v4299
        %v4301 = vpop.f32.mrb[0].mxu0
        %v4302 = vpop.f32.mrb[0].mxu0
        %v4303 = vpop.f32.mrb[0].mxu0
        %4304 = vdwg.mxu0
        %4305 = vrot.lane.b32.xlu0 %v828, 48
        %v4306 = vpop.permute.xlu0 %4305
        %v4308 = vsel %vm1647, %v3631, 0
        %v4311 = vsel %vm1845, %v4306, 0
        %4313 = vmatprep.subr.bf16.mxu0 0
        %4314 = vmatpush1.bf16.msra.mxu0 %v4311
        %4315 = vmatprep.subr.bf16.mxu0 0
        %4316 = vmatpush1.bf16.msra.mxu0 0
        %4317 = vmatprep.subr.bf16.mxu0 0
        %4318 = vmatpush1.bf16.msra.mxu0 0
        %4319 = vmatprep.subr.bf16.mxu0 0
        %4320 = vmatpush1.bf16.msra.mxu0 0
        %4321 = vmatprep.subr.bf16.mxu0 0
        %4322 = vmatpush1.bf16.msra.mxu0 0
        %4323 = vmatprep.subr.bf16.mxu0 0
        %4324 = vmatpush1.bf16.msra.mxu0 0
        %4325 = vmatprep.subr.bf16.mxu0 0
        %4326 = vmatpush1.bf16.msra.mxu0 0
        %4327 = vmatprep.subr.bf16.mxu0 0
        %4328 = vmatpush1.bf16.msra.mxu0 0
        %4329 = vmatprep.subr.bf16.mxu0 0
        %4330 = vmatpush1.bf16.msra.mxu0 0
        %4331 = vmatprep.subr.bf16.mxu0 0
        %4332 = vmatpush1.bf16.msra.mxu0 0
        %4333 = vmatprep.subr.bf16.mxu0 0
        %4334 = vmatpush1.bf16.msra.mxu0 0
        %4335 = vmatprep.subr.bf16.mxu0 0
        %4336 = vmatpush1.bf16.msra.mxu0 0
        %4337 = vmatprep.subr.bf16.mxu0 0
        %4338 = vmatpush1.bf16.msra.mxu0 0
        %4339 = vmatprep.subr.bf16.mxu0 0
        %4340 = vmatpush1.bf16.msra.mxu0 0
        %4341 = vmatprep.subr.bf16.mxu0 0
        %4342 = vmatpush1.bf16.msra.mxu0 0
        %4343 = vmatprep.subr.bf16.mxu0 0
        %4344 = vmatpush1.bf16.msra.mxu0 0
        %4345 = vmatprep.mubr.bf16.mxu0 0
        %4346 = vmatmul.mubr.bf16.gmra.mrb[0].mxu0 %v4308
        %v4347 = vpop.f32.mrb[0].mxu0
        %v4348 = vadd.f32 0.0, %v4347
        %v4349 = vpop.f32.mrb[0].mxu0
        %v4350 = vpop.f32.mrb[0].mxu0
        %v4351 = vpop.f32.mrb[0].mxu0
        %4352 = vdwg.mxu0
        %4353 = vrot.lane.b32.xlu0 %v829, 48
        %v4354 = vpop.permute.xlu0 %4353
        %v4356 = vsel %vm1647, %v3632, 0
        %v4359 = vsel %vm1845, %v4354, 0
        %4361 = vmatprep.subr.bf16.mxu0 0
        %4362 = vmatpush1.bf16.msra.mxu0 %v4359
        %4363 = vmatprep.subr.bf16.mxu0 0
        %4364 = vmatpush1.bf16.msra.mxu0 0
        %4365 = vmatprep.subr.bf16.mxu0 0
        %4366 = vmatpush1.bf16.msra.mxu0 0
        %4367 = vmatprep.subr.bf16.mxu0 0
        %4368 = vmatpush1.bf16.msra.mxu0 0
        %4369 = vmatprep.subr.bf16.mxu0 0
        %4370 = vmatpush1.bf16.msra.mxu0 0
        %4371 = vmatprep.subr.bf16.mxu0 0
        %4372 = vmatpush1.bf16.msra.mxu0 0
        %4373 = vmatprep.subr.bf16.mxu0 0
        %4374 = vmatpush1.bf16.msra.mxu0 0
        %4375 = vmatprep.subr.bf16.mxu0 0
        %4376 = vmatpush1.bf16.msra.mxu0 0
        %4377 = vmatprep.subr.bf16.mxu0 0
        %4378 = vmatpush1.bf16.msra.mxu0 0
        %4379 = vmatprep.subr.bf16.mxu0 0
        %4380 = vmatpush1.bf16.msra.mxu0 0
        %4381 = vmatprep.subr.bf16.mxu0 0
        %4382 = vmatpush1.bf16.msra.mxu0 0
        %4383 = vmatprep.subr.bf16.mxu0 0
        %4384 = vmatpush1.bf16.msra.mxu0 0
        %4385 = vmatprep.subr.bf16.mxu0 0
        %4386 = vmatpush1.bf16.msra.mxu0 0
        %4387 = vmatprep.subr.bf16.mxu0 0
        %4388 = vmatpush1.bf16.msra.mxu0 0
        %4389 = vmatprep.subr.bf16.mxu0 0
        %4390 = vmatpush1.bf16.msra.mxu0 0
        %4391 = vmatprep.subr.bf16.mxu0 0
        %4392 = vmatpush1.bf16.msra.mxu0 0
        %4393 = vmatprep.mubr.bf16.mxu0 0
        %4394 = vmatmul.mubr.bf16.gmra.mrb[0].mxu0 %v4356
        %v4395 = vpop.f32.mrb[0].mxu0
        %v4396 = vadd.f32 0.0, %v4395
        %v4397 = vpop.f32.mrb[0].mxu0
        %v4398 = vpop.f32.mrb[0].mxu0
        %v4399 = vpop.f32.mrb[0].mxu0
        %4400 = vdwg.mxu0
        %4417 = vrot.lane.b32.xlu0 %v3676, 16
        %v4418 = vpop.permute.xlu0 %4417
        %4419 = vrot.lane.b32.xlu0 %v3724, 16
        %v4420 = vpop.permute.xlu0 %4419
        %4421 = vrot.lane.b32.xlu0 %v3772, 16
        %v4422 = vpop.permute.xlu0 %4421
        %4423 = vrot.lane.b32.xlu0 %v3820, 16
        %v4424 = vpop.permute.xlu0 %4423
        %4425 = vrot.lane.b32.xlu0 %v3868, 16
        %v4426 = vpop.permute.xlu0 %4425
        %4427 = vrot.lane.b32.xlu0 %v3916, 16
        %v4428 = vpop.permute.xlu0 %4427
        %4429 = vrot.lane.b32.xlu0 %v3964, 16
        %v4430 = vpop.permute.xlu0 %4429
        %4431 = vrot.lane.b32.xlu0 %v4012, 16
        %v4432 = vpop.permute.xlu0 %4431
        %4433 = vrot.lane.b32.xlu0 %v4060, 16
        %v4434 = vpop.permute.xlu0 %4433
        %4435 = vrot.lane.b32.xlu0 %v4108, 16
        %v4436 = vpop.permute.xlu0 %4435
        %4437 = vrot.lane.b32.xlu0 %v4156, 16
        %v4438 = vpop.permute.xlu0 %4437
        %4439 = vrot.lane.b32.xlu0 %v4204, 16
        %v4440 = vpop.permute.xlu0 %4439
        %4441 = vrot.lane.b32.xlu0 %v4252, 16
        %v4442 = vpop.permute.xlu0 %4441
        %4443 = vrot.lane.b32.xlu0 %v4300, 16
        %v4444 = vpop.permute.xlu0 %4443
        %4445 = vrot.lane.b32.xlu0 %v4348, 16
        %v4446 = vpop.permute.xlu0 %4445
        %4447 = vrot.lane.b32.xlu0 %v4396, 16
        %v4448 = vpop.permute.xlu0 %4447
        %v4465 = vsel %vm833, %v1884, %v4418
        %v4466 = vsel %vm833, %v1932, %v4420
        %v4467 = vsel %vm833, %v1980, %v4422
        %v4468 = vsel %vm833, %v2028, %v4424
        %v4469 = vsel %vm833, %v2076, %v4426
        %v4470 = vsel %vm833, %v2124, %v4428
        %v4471 = vsel %vm833, %v2172, %v4430
        %v4472 = vsel %vm833, %v2220, %v4432
        %v4473 = vsel %vm833, %v2268, %v4434
        %v4474 = vsel %vm833, %v2316, %v4436
        %v4475 = vsel %vm833, %v2364, %v4438
        %v4476 = vsel %vm833, %v2412, %v4440
        %v4477 = vsel %vm833, %v2460, %v4442
        %v4478 = vsel %vm833, %v2508, %v4444
        %v4479 = vsel %vm833, %v2556, %v4446
        %v4480 = vsel %vm833, %v2604, %v4448
        %v4481 = vpack.c.bf16 %v4466, %v4465
        %v4482 = vpack.c.bf16 %v4468, %v4467
        %v4483 = vpack.c.bf16 %v4470, %v4469
        %v4484 = vpack.c.bf16 %v4472, %v4471
        %v4485 = vpack.c.bf16 %v4474, %v4473
        %v4486 = vpack.c.bf16 %v4476, %v4475
        %v4487 = vpack.c.bf16 %v4478, %v4477
        %v4488 = vpack.c.bf16 %v4480, %v4479
        %v4489 = vld [vmem:[%s4] sm:$0xf]
        %v4490 = vld [vmem:[%s4 + $0x4] sm:$0xf]
        %v4491 = vld [vmem:[%s4 + $0x8] sm:$0xf]
        %v4492 = vld [vmem:[%s4 + $0xc] sm:$0xf]
        %v4493 = vlaneseq
        %v4494 = vshrl.u32 %v4493, 7
        %v4495 = vsub.s32 1, %v4494
        %v4496 = vrot.slane %v663, %v4495
        %v4501 = vunpack.c.l.b16 %v4489
        %v4502 = vunpack.c.l.b16 %v4490
        %v4503 = vunpack.c.l.b16 %v4491
        %v4504 = vunpack.c.l.b16 %v4492
        %v4505 = vpack.c.b16 %v4502, %v4501
        %v4506 = vpack.c.b16 %v4504, %v4503
        %v4510 = vsel %vm692, %v4481, 0
        %v4513 = vsel %vm692, %v4482, 0
        %v4516 = vsel %vm692, %v4483, 0
        %v4519 = vsel %vm692, %v4484, 0
        %v4522 = vsel %vm692, %v4485, 0
        %v4525 = vsel %vm692, %v4486, 0
        %v4528 = vsel %vm692, %v4487, 0
        %v4531 = vsel %vm692, %v4488, 0
        %4533 = vmatprep.subr.bf16.mxu0 0
        %4534 = vmatpush1.bf16.msra.mxu0 %v4505
        %4535 = vmatprep.subr.bf16.mxu0 0
        %4536 = vmatpush1.bf16.msra.mxu0 %v4506
        %4537 = vmatprep.subr.bf16.mxu0 0
        %4538 = vmatpush1.bf16.msra.mxu0 0
        %4539 = vmatprep.subr.bf16.mxu0 0
        %4540 = vmatpush1.bf16.msra.mxu0 0
        %4541 = vmatprep.subr.bf16.mxu0 0
        %4542 = vmatpush1.bf16.msra.mxu0 0
        %4543 = vmatprep.subr.bf16.mxu0 0
        %4544 = vmatpush1.bf16.msra.mxu0 0
        %4545 = vmatprep.subr.bf16.mxu0 0
        %4546 = vmatpush1.bf16.msra.mxu0 0
        %4547 = vmatprep.subr.bf16.mxu0 0
        %4548 = vmatpush1.bf16.msra.mxu0 0
        %4549 = vmatprep.subr.bf16.mxu0 0
        %4550 = vmatpush1.bf16.msra.mxu0 0
        %4551 = vmatprep.subr.bf16.mxu0 0
        %4552 = vmatpush1.bf16.msra.mxu0 0
        %4553 = vmatprep.subr.bf16.mxu0 0
        %4554 = vmatpush1.bf16.msra.mxu0 0
        %4555 = vmatprep.subr.bf16.mxu0 0
        %4556 = vmatpush1.bf16.msra.mxu0 0
        %4557 = vmatprep.subr.bf16.mxu0 0
        %4558 = vmatpush1.bf16.msra.mxu0 0
        %4559 = vmatprep.subr.bf16.mxu0 0
        %4560 = vmatpush1.bf16.msra.mxu0 0
        %4561 = vmatprep.subr.bf16.mxu0 0
        %4562 = vmatpush1.bf16.msra.mxu0 0
        %4563 = vmatprep.subr.bf16.mxu0 0
        %4564 = vmatpush1.bf16.msra.mxu0 0
        %4565 = vmatprep.mubr.bf16.mxu0 0
        %4566 = vmatmul.mubr.bf16.gmra.mrb[0].mxu0 %v4510
        %v4567 = vpop.f32.mrb[0].mxu0
        %v4568 = vadd.f32 %v4496, %v4567
        %v4569 = vpop.f32.mrb[0].mxu0
        %v4570 = vpop.f32.mrb[0].mxu0
        %v4571 = vadd.f32 %v4496, %v4570
        %v4572 = vpop.f32.mrb[0].mxu0
        %4573 = vmatprep.mubr.bf16.mxu0 0
        %4574 = vmatmul.mubr.bf16.gmra.mrb[0].mxu0 %v4513
        %v4575 = vpop.f32.mrb[0].mxu0
        %v4576 = vadd.f32 %v4496, %v4575
        %v4577 = vpop.f32.mrb[0].mxu0
        %v4578 = vpop.f32.mrb[0].mxu0
        %v4579 = vadd.f32 %v4496, %v4578
        %v4580 = vpop.f32.mrb[0].mxu0
        %4581 = vmatprep.mubr.bf16.mxu0 0
        %4582 = vmatmul.mubr.bf16.gmra.mrb[0].mxu0 %v4516
        %v4583 = vpop.f32.mrb[0].mxu0
        %v4584 = vadd.f32 %v4496, %v4583
        %v4585 = vpop.f32.mrb[0].mxu0
        %v4586 = vpop.f32.mrb[0].mxu0
        %v4587 = vadd.f32 %v4496, %v4586
        %v4588 = vpop.f32.mrb[0].mxu0
        %4589 = vmatprep.mubr.bf16.mxu0 0
        %4590 = vmatmul.mubr.bf16.gmra.mrb[0].mxu0 %v4519
        %v4591 = vpop.f32.mrb[0].mxu0
        %v4592 = vadd.f32 %v4496, %v4591
        %v4593 = vpop.f32.mrb[0].mxu0
        %v4594 = vpop.f32.mrb[0].mxu0
        %v4595 = vadd.f32 %v4496, %v4594
        %v4596 = vpop.f32.mrb[0].mxu0
        %4597 = vmatprep.mubr.bf16.mxu0 0
        %4598 = vmatmul.mubr.bf16.gmra.mrb[0].mxu0 %v4522
        %v4599 = vpop.f32.mrb[0].mxu0
        %v4600 = vadd.f32 %v4496, %v4599
        %v4601 = vpop.f32.mrb[0].mxu0
        %v4602 = vpop.f32.mrb[0].mxu0
        %v4603 = vadd.f32 %v4496, %v4602
        %v4604 = vpop.f32.mrb[0].mxu0
        %4605 = vmatprep.mubr.bf16.mxu0 0
        %4606 = vmatmul.mubr.bf16.gmra.mrb[0].mxu0 %v4525
        %v4607 = vpop.f32.mrb[0].mxu0
        %v4608 = vadd.f32 %v4496, %v4607
        %v4609 = vpop.f32.mrb[0].mxu0
        %v4610 = vpop.f32.mrb[0].mxu0
        %v4611 = vadd.f32 %v4496, %v4610
        %v4612 = vpop.f32.mrb[0].mxu0
        %4613 = vmatprep.mubr.bf16.mxu0 0
        %4614 = vmatmul.mubr.bf16.gmra.mrb[0].mxu0 %v4528
        %v4615 = vpop.f32.mrb[0].mxu0
        %v4616 = vadd.f32 %v4496, %v4615
        %v4617 = vpop.f32.mrb[0].mxu0
        %v4618 = vpop.f32.mrb[0].mxu0
        %v4619 = vadd.f32 %v4496, %v4618
        %v4620 = vpop.f32.mrb[0].mxu0
        %4621 = vmatprep.mubr.bf16.mxu0 0
        %4622 = vmatmul.mubr.bf16.gmra.mrb[0].mxu0 %v4531
        %v4623 = vpop.f32.mrb[0].mxu0
        %v4624 = vadd.f32 %v4496, %v4623
        %v4625 = vpop.f32.mrb[0].mxu0
        %v4626 = vpop.f32.mrb[0].mxu0
        %v4627 = vadd.f32 %v4496, %v4626
        %v4628 = vpop.f32.mrb[0].mxu0
        %4629 = vdwg.mxu0
        %v4630 = vadd.f32 %v643, %v4568
        %v4631 = vadd.f32 %v644, %v4571
        %v4632 = vadd.f32 %v645, %v4576
        %v4633 = vadd.f32 %v646, %v4579
        %v4634 = vadd.f32 %v647, %v4584
        %v4635 = vadd.f32 %v648, %v4587
        %v4636 = vadd.f32 %v649, %v4592
        %v4637 = vadd.f32 %v650, %v4595
        %v4638 = vadd.f32 %v651, %v4600
        %v4639 = vadd.f32 %v652, %v4603
        %v4640 = vadd.f32 %v653, %v4608
        %v4641 = vadd.f32 %v654, %v4611
        %v4642 = vadd.f32 %v655, %v4616
        %v4643 = vadd.f32 %v656, %v4619
        %v4644 = vadd.f32 %v657, %v4624
        %v4645 = vadd.f32 %v658, %v4627
        %v4646 = vsel %vm692, %v4630, 0.0
        %4647 = vadd.xlane.f32.xlu0 %v4646
        %v4648 = vpop.xlane.xlu0 %4647
        %v4649 = vsel %vm692, %v4631, 0.0
        %4650 = vadd.xlane.f32.xlu0 %v4649
        %v4651 = vpop.xlane.xlu0 %4650
        %v4652 = vsel %vm692, %v4632, 0.0
        %4653 = vadd.xlane.f32.xlu0 %v4652
        %v4654 = vpop.xlane.xlu0 %4653
        %v4655 = vsel %vm692, %v4633, 0.0
        %4656 = vadd.xlane.f32.xlu0 %v4655
        %v4657 = vpop.xlane.xlu0 %4656
        %v4658 = vsel %vm692, %v4634, 0.0
        %4659 = vadd.xlane.f32.xlu0 %v4658
        %v4660 = vpop.xlane.xlu0 %4659
        %v4661 = vsel %vm692, %v4635, 0.0
        %4662 = vadd.xlane.f32.xlu0 %v4661
        %v4663 = vpop.xlane.xlu0 %4662
        %v4664 = vsel %vm692, %v4636, 0.0
        %4665 = vadd.xlane.f32.xlu0 %v4664
        %v4666 = vpop.xlane.xlu0 %4665
        %v4667 = vsel %vm692, %v4637, 0.0
        %4668 = vadd.xlane.f32.xlu0 %v4667
        %v4669 = vpop.xlane.xlu0 %4668
        %v4670 = vsel %vm692, %v4638, 0.0
        %4671 = vadd.xlane.f32.xlu0 %v4670
        %v4672 = vpop.xlane.xlu0 %4671
        %v4673 = vsel %vm692, %v4639, 0.0
        %4674 = vadd.xlane.f32.xlu0 %v4673
        %v4675 = vpop.xlane.xlu0 %4674
        %v4676 = vsel %vm692, %v4640, 0.0
        %4677 = vadd.xlane.f32.xlu0 %v4676
        %v4678 = vpop.xlane.xlu0 %4677
        %v4679 = vsel %vm692, %v4641, 0.0
        %4680 = vadd.xlane.f32.xlu0 %v4679
        %v4681 = vpop.xlane.xlu0 %4680
        %v4682 = vsel %vm692, %v4642, 0.0
        %4683 = vadd.xlane.f32.xlu0 %v4682
        %v4684 = vpop.xlane.xlu0 %4683
        %v4685 = vsel %vm692, %v4643, 0.0
        %4686 = vadd.xlane.f32.xlu0 %v4685
        %v4687 = vpop.xlane.xlu0 %4686
        %v4688 = vsel %vm692, %v4644, 0.0
        %4689 = vadd.xlane.f32.xlu0 %v4688
        %v4690 = vpop.xlane.xlu0 %4689
        %v4691 = vsel %vm692, %v4645, 0.0
        %4692 = vadd.xlane.f32.xlu0 %v4691
        %v4693 = vpop.xlane.xlu0 %4692
        %v4694 = vrcp.pop 32.0
        %v4695 = vmul.f32 %v4648, %v4694
        %v4696 = vmul.f32 %v4651, %v4694
        %v4697 = vmul.f32 %v4654, %v4694
        %v4698 = vmul.f32 %v4657, %v4694
        %v4699 = vmul.f32 %v4660, %v4694
        %v4700 = vmul.f32 %v4663, %v4694
        %v4701 = vmul.f32 %v4666, %v4694
        %v4702 = vmul.f32 %v4669, %v4694
        %v4703 = vmul.f32 %v4672, %v4694
        %v4704 = vmul.f32 %v4675, %v4694
        %v4705 = vmul.f32 %v4678, %v4694
        %v4706 = vmul.f32 %v4681, %v4694
        %v4707 = vmul.f32 %v4684, %v4694
        %v4708 = vmul.f32 %v4687, %v4694
        %v4709 = vmul.f32 %v4690, %v4694
        %v4710 = vmul.f32 %v4693, %v4694
        %v4711 = vsub.f32 %v4630, %v4695
        %v4712 = vsub.f32 %v4631, %v4696
        %v4713 = vsub.f32 %v4632, %v4697
        %v4714 = vsub.f32 %v4633, %v4698
        %v4715 = vsub.f32 %v4634, %v4699
        %v4716 = vsub.f32 %v4635, %v4700
        %v4717 = vsub.f32 %v4636, %v4701
        %v4718 = vsub.f32 %v4637, %v4702
        %v4719 = vsub.f32 %v4638, %v4703
        %v4720 = vsub.f32 %v4639, %v4704
        %v4721 = vsub.f32 %v4640, %v4705
        %v4722 = vsub.f32 %v4641, %v4706
        %v4723 = vsub.f32 %v4642, %v4707
        %v4724 = vsub.f32 %v4643, %v4708
        %v4725 = vsub.f32 %v4644, %v4709
        %v4726 = vsub.f32 %v4645, %v4710
        %v4727 = vmul.f32 %v4711, %v4711
        %v4728 = vmul.f32 %v4712, %v4712
        %v4729 = vmul.f32 %v4713, %v4713
        %v4730 = vmul.f32 %v4714, %v4714
        %v4731 = vmul.f32 %v4715, %v4715
        %v4732 = vmul.f32 %v4716, %v4716
        %v4733 = vmul.f32 %v4717, %v4717
        %v4734 = vmul.f32 %v4718, %v4718
        %v4735 = vmul.f32 %v4719, %v4719
        %v4736 = vmul.f32 %v4720, %v4720
        %v4737 = vmul.f32 %v4721, %v4721
        %v4738 = vmul.f32 %v4722, %v4722
        %v4739 = vmul.f32 %v4723, %v4723
        %v4740 = vmul.f32 %v4724, %v4724
        %v4741 = vmul.f32 %v4725, %v4725
        %v4742 = vmul.f32 %v4726, %v4726
        %v4743 = vsel %vm692, %v4727, 0.0
        %4744 = vadd.xlane.f32.xlu0 %v4743
        %v4745 = vpop.xlane.xlu0 %4744
        %v4746 = vsel %vm692, %v4728, 0.0
        %4747 = vadd.xlane.f32.xlu0 %v4746
        %v4748 = vpop.xlane.xlu0 %4747
        %v4749 = vsel %vm692, %v4729, 0.0
        %4750 = vadd.xlane.f32.xlu0 %v4749
        %v4751 = vpop.xlane.xlu0 %4750
        %v4752 = vsel %vm692, %v4730, 0.0
        %4753 = vadd.xlane.f32.xlu0 %v4752
        %v4754 = vpop.xlane.xlu0 %4753
        %v4755 = vsel %vm692, %v4731, 0.0
        %4756 = vadd.xlane.f32.xlu0 %v4755
        %v4757 = vpop.xlane.xlu0 %4756
        %v4758 = vsel %vm692, %v4732, 0.0
        %4759 = vadd.xlane.f32.xlu0 %v4758
        %v4760 = vpop.xlane.xlu0 %4759
        %v4761 = vsel %vm692, %v4733, 0.0
        %4762 = vadd.xlane.f32.xlu0 %v4761
        %v4763 = vpop.xlane.xlu0 %4762
        %v4764 = vsel %vm692, %v4734, 0.0
        %4765 = vadd.xlane.f32.xlu0 %v4764
        %v4766 = vpop.xlane.xlu0 %4765
        %v4767 = vsel %vm692, %v4735, 0.0
        %4768 = vadd.xlane.f32.xlu0 %v4767
        %v4769 = vpop.xlane.xlu0 %4768
        %v4770 = vsel %vm692, %v4736, 0.0
        %4771 = vadd.xlane.f32.xlu0 %v4770
        %v4772 = vpop.xlane.xlu0 %4771
        %v4773 = vsel %vm692, %v4737, 0.0
        %4774 = vadd.xlane.f32.xlu0 %v4773
        %v4775 = vpop.xlane.xlu0 %4774
        %v4776 = vsel %vm692, %v4738, 0.0
        %4777 = vadd.xlane.f32.xlu0 %v4776
        %v4778 = vpop.xlane.xlu0 %4777
        %v4779 = vsel %vm692, %v4739, 0.0
        %4780 = vadd.xlane.f32.xlu0 %v4779
        %v4781 = vpop.xlane.xlu0 %4780
        %v4782 = vsel %vm692, %v4740, 0.0
        %4783 = vadd.xlane.f32.xlu0 %v4782
        %v4784 = vpop.xlane.xlu0 %4783
        %v4785 = vsel %vm692, %v4741, 0.0
        %4786 = vadd.xlane.f32.xlu0 %v4785
        %v4787 = vpop.xlane.xlu0 %4786
        %v4788 = vsel %vm692, %v4742, 0.0
        %4789 = vadd.xlane.f32.xlu0 %v4788
        %v4790 = vpop.xlane.xlu0 %4789
        %v4791 = vmul.f32 %v4745, %v4694
        %v4792 = vmul.f32 %v4748, %v4694
        %v4793 = vmul.f32 %v4751, %v4694
        %v4794 = vmul.f32 %v4754, %v4694
        %v4795 = vmul.f32 %v4757, %v4694
        %v4796 = vmul.f32 %v4760, %v4694
        %v4797 = vmul.f32 %v4763, %v4694
        %v4798 = vmul.f32 %v4766, %v4694
        %v4799 = vmul.f32 %v4769, %v4694
        %v4800 = vmul.f32 %v4772, %v4694
        %v4801 = vmul.f32 %v4775, %v4694
        %v4802 = vmul.f32 %v4778, %v4694
        %v4803 = vmul.f32 %v4781, %v4694
        %v4804 = vmul.f32 %v4784, %v4694
        %v4805 = vmul.f32 %v4787, %v4694
        %v4806 = vmul.f32 %v4790, %v4694
        %v4807 = vadd.f32 %v4791, 1e-05
        %v4808 = vadd.f32 %v4792, 1e-05
        %v4809 = vadd.f32 %v4793, 1e-05
        %v4810 = vadd.f32 %v4794, 1e-05
        %v4811 = vadd.f32 %v4795, 1e-05
        %v4812 = vadd.f32 %v4796, 1e-05
        %v4813 = vadd.f32 %v4797, 1e-05
        %v4814 = vadd.f32 %v4798, 1e-05
        %v4815 = vadd.f32 %v4799, 1e-05
        %v4816 = vadd.f32 %v4800, 1e-05
        %v4817 = vadd.f32 %v4801, 1e-05
        %v4818 = vadd.f32 %v4802, 1e-05
        %v4819 = vadd.f32 %v4803, 1e-05
        %v4820 = vadd.f32 %v4804, 1e-05
        %v4821 = vadd.f32 %v4805, 1e-05
        %v4822 = vadd.f32 %v4806, 1e-05
        %v4823 = vrsqrt.pop %v4807
        %v4824 = vrsqrt.pop %v4808
        %v4825 = vrsqrt.pop %v4809
        %v4826 = vrsqrt.pop %v4810
        %v4827 = vrsqrt.pop %v4811
        %v4828 = vrsqrt.pop %v4812
        %v4829 = vrsqrt.pop %v4813
        %v4830 = vrsqrt.pop %v4814
        %v4831 = vrsqrt.pop %v4815
        %v4832 = vrsqrt.pop %v4816
        %v4833 = vrsqrt.pop %v4817
        %v4834 = vrsqrt.pop %v4818
        %v4835 = vrsqrt.pop %v4819
        %v4836 = vrsqrt.pop %v4820
        %v4837 = vrsqrt.pop %v4821
        %v4838 = vrsqrt.pop %v4822
        %v4839 = vmul.f32 %v4711, %v4823
        %v4840 = vmul.f32 %v4712, %v4824
        %v4841 = vmul.f32 %v4713, %v4825
        %v4842 = vmul.f32 %v4714, %v4826
        %v4843 = vmul.f32 %v4715, %v4827
        %v4844 = vmul.f32 %v4716, %v4828
        %v4845 = vmul.f32 %v4717, %v4829
        %v4846 = vmul.f32 %v4718, %v4830
        %v4847 = vmul.f32 %v4719, %v4831
        %v4848 = vmul.f32 %v4720, %v4832
        %v4849 = vmul.f32 %v4721, %v4833
        %v4850 = vmul.f32 %v4722, %v4834
        %v4851 = vmul.f32 %v4723, %v4835
        %v4852 = vmul.f32 %v4724, %v4836
        %v4853 = vmul.f32 %v4725, %v4837
        %v4854 = vmul.f32 %v4726, %v4838
        %v4855 = vlaneseq
        %v4856 = vshrl.u32 %v4855, 7
        %v4857 = vsub.s32 2, %v4856
        %v4858 = vrot.slane %v663, %v4857
        %v4859 = vmul.f32 %v4839, %v4858
        %v4860 = vmul.f32 %v4840, %v4858
        %v4861 = vmul.f32 %v4841, %v4858
        %v4862 = vmul.f32 %v4842, %v4858
        %v4863 = vmul.f32 %v4843, %v4858
        %v4864 = vmul.f32 %v4844, %v4858
        %v4865 = vmul.f32 %v4845, %v4858
        %v4866 = vmul.f32 %v4846, %v4858
        %v4867 = vmul.f32 %v4847, %v4858
        %v4868 = vmul.f32 %v4848, %v4858
        %v4869 = vmul.f32 %v4849, %v4858
        %v4870 = vmul.f32 %v4850, %v4858
        %v4871 = vmul.f32 %v4851, %v4858
        %v4872 = vmul.f32 %v4852, %v4858
        %v4873 = vmul.f32 %v4853, %v4858
        %v4874 = vmul.f32 %v4854, %v4858
        %v4875 = vlaneseq
        %v4876 = vshrl.u32 %v4875, 7
        %v4877 = vsub.s32 3, %v4876
        %v4878 = vrot.slane %v663, %v4877
        %v4879 = vadd.f32 %v4859, %v4878
        %v4880 = vadd.f32 %v4860, %v4878
        %v4881 = vadd.f32 %v4861, %v4878
        %v4882 = vadd.f32 %v4862, %v4878
        %v4883 = vadd.f32 %v4863, %v4878
        %v4884 = vadd.f32 %v4864, %v4878
        %v4885 = vadd.f32 %v4865, %v4878
        %v4886 = vadd.f32 %v4866, %v4878
        %v4887 = vadd.f32 %v4867, %v4878
        %v4888 = vadd.f32 %v4868, %v4878
        %v4889 = vadd.f32 %v4869, %v4878
        %v4890 = vadd.f32 %v4870, %v4878
        %v4891 = vadd.f32 %v4871, %v4878
        %v4892 = vadd.f32 %v4872, %v4878
        %v4893 = vadd.f32 %v4873, %v4878
        %v4894 = vadd.f32 %v4874, %v4878
        %v4895 = vpack.c.bf16 %v4880, %v4879
        %v4896 = vpack.c.bf16 %v4882, %v4881
        %v4897 = vpack.c.bf16 %v4884, %v4883
        %v4898 = vpack.c.bf16 %v4886, %v4885
        %v4899 = vpack.c.bf16 %v4888, %v4887
        %v4900 = vpack.c.bf16 %v4890, %v4889
        %v4901 = vpack.c.bf16 %v4892, %v4891
        %v4902 = vpack.c.bf16 %v4894, %v4893
        %v4903 = vld [vmem:[%s5] sm:$0xf]
        %v4904 = vld [vmem:[%s5 + $0x4] sm:$0xf]
        %v4905 = vld [vmem:[%s5 + $0x8] sm:$0xf]
        %v4906 = vld [vmem:[%s5 + $0xc] sm:$0xf]
        %v4907 = vlaneseq
        %v4908 = vshrl.u32 %v4907, 7
        %v4909 = vsub.s32 6, %v4908
        %v4910 = vrot.slane %v663, %v4909
        %v4915 = vunpack.c.l.b16 %v4903
        %v4916 = vunpack.c.l.b16 %v4904
        %v4917 = vunpack.c.l.b16 %v4905
        %v4918 = vunpack.c.l.b16 %v4906
        %v4919 = vpack.c.b16 %v4916, %v4915
        %v4920 = vpack.c.b16 %v4918, %v4917
        %v4924 = vsel %vm692, %v4895, 0
        %v4927 = vsel %vm692, %v4896, 0
        %v4930 = vsel %vm692, %v4897, 0
        %v4933 = vsel %vm692, %v4898, 0
        %v4936 = vsel %vm692, %v4899, 0
        %v4939 = vsel %vm692, %v4900, 0
        %v4942 = vsel %vm692, %v4901, 0
        %v4945 = vsel %vm692, %v4902, 0
        %4947 = vmatprep.subr.bf16.mxu0 0
        %4948 = vmatpush1.bf16.msra.mxu0 %v4919
        %4949 = vmatprep.subr.bf16.mxu0 0
        %4950 = vmatpush1.bf16.msra.mxu0 %v4920
        %4951 = vmatprep.subr.bf16.mxu0 0
        %4952 = vmatpush1.bf16.msra.mxu0 0
        %4953 = vmatprep.subr.bf16.mxu0 0
        %4954 = vmatpush1.bf16.msra.mxu0 0
        %4955 = vmatprep.subr.bf16.mxu0 0
        %4956 = vmatpush1.bf16.msra.mxu0 0
        %4957 = vmatprep.subr.bf16.mxu0 0
        %4958 = vmatpush1.bf16.msra.mxu0 0
        %4959 = vmatprep.subr.bf16.mxu0 0
        %4960 = vmatpush1.bf16.msra.mxu0 0
        %4961 = vmatprep.subr.bf16.mxu0 0
        %4962 = vmatpush1.bf16.msra.mxu0 0
        %4963 = vmatprep.subr.bf16.mxu0 0
        %4964 = vmatpush1.bf16.msra.mxu0 0
        %4965 = vmatprep.subr.bf16.mxu0 0
        %4966 = vmatpush1.bf16.msra.mxu0 0
        %4967 = vmatprep.subr.bf16.mxu0 0
        %4968 = vmatpush1.bf16.msra.mxu0 0
        %4969 = vmatprep.subr.bf16.mxu0 0
        %4970 = vmatpush1.bf16.msra.mxu0 0
        %4971 = vmatprep.subr.bf16.mxu0 0
        %4972 = vmatpush1.bf16.msra.mxu0 0
        %4973 = vmatprep.subr.bf16.mxu0 0
        %4974 = vmatpush1.bf16.msra.mxu0 0
        %4975 = vmatprep.subr.bf16.mxu0 0
        %4976 = vmatpush1.bf16.msra.mxu0 0
        %4977 = vmatprep.subr.bf16.mxu0 0
        %4978 = vmatpush1.bf16.msra.mxu0 0
        %4979 = vmatprep.mubr.bf16.mxu0 0
        %4980 = vmatmul.mubr.bf16.gmra.mrb[0].mxu0 %v4924
        %v4981 = vpop.f32.mrb[0].mxu0
        %v4982 = vadd.f32 %v4910, %v4981
        %v4983 = vpop.f32.mrb[0].mxu0
        %v4984 = vpop.f32.mrb[0].mxu0
        %v4985 = vadd.f32 %v4910, %v4984
        %v4986 = vpop.f32.mrb[0].mxu0
        %4987 = vmatprep.mubr.bf16.mxu0 0
        %4988 = vmatmul.mubr.bf16.gmra.mrb[0].mxu0 %v4927
        %v4989 = vpop.f32.mrb[0].mxu0
        %v4990 = vadd.f32 %v4910, %v4989
        %v4991 = vpop.f32.mrb[0].mxu0
        %v4992 = vpop.f32.mrb[0].mxu0
        %v4993 = vadd.f32 %v4910, %v4992
        %v4994 = vpop.f32.mrb[0].mxu0
        %4995 = vmatprep.mubr.bf16.mxu0 0
        %4996 = vmatmul.mubr.bf16.gmra.mrb[0].mxu0 %v4930
        %v4997 = vpop.f32.mrb[0].mxu0
        %v4998 = vadd.f32 %v4910, %v4997
        %v4999 = vpop.f32.mrb[0].mxu0
        %v5000 = vpop.f32.mrb[0].mxu0
        %v5001 = vadd.f32 %v4910, %v5000
        %v5002 = vpop.f32.mrb[0].mxu0
        %5003 = vmatprep.mubr.bf16.mxu0 0
        %5004 = vmatmul.mubr.bf16.gmra.mrb[0].mxu0 %v4933
        %v5005 = vpop.f32.mrb[0].mxu0
        %v5006 = vadd.f32 %v4910, %v5005
        %v5007 = vpop.f32.mrb[0].mxu0
        %v5008 = vpop.f32.mrb[0].mxu0
        %v5009 = vadd.f32 %v4910, %v5008
        %v5010 = vpop.f32.mrb[0].mxu0
        %5011 = vmatprep.mubr.bf16.mxu0 0
        %5012 = vmatmul.mubr.bf16.gmra.mrb[0].mxu0 %v4936
        %v5013 = vpop.f32.mrb[0].mxu0
        %v5014 = vadd.f32 %v4910, %v5013
        %v5015 = vpop.f32.mrb[0].mxu0
        %v5016 = vpop.f32.mrb[0].mxu0
        %v5017 = vadd.f32 %v4910, %v5016
        %v5018 = vpop.f32.mrb[0].mxu0
        %5019 = vmatprep.mubr.bf16.mxu0 0
        %5020 = vmatmul.mubr.bf16.gmra.mrb[0].mxu0 %v4939
        %v5021 = vpop.f32.mrb[0].mxu0
        %v5022 = vadd.f32 %v4910, %v5021
        %v5023 = vpop.f32.mrb[0].mxu0
        %v5024 = vpop.f32.mrb[0].mxu0
        %v5025 = vadd.f32 %v4910, %v5024
        %v5026 = vpop.f32.mrb[0].mxu0
        %5027 = vmatprep.mubr.bf16.mxu0 0
        %5028 = vmatmul.mubr.bf16.gmra.mrb[0].mxu0 %v4942
        %v5029 = vpop.f32.mrb[0].mxu0
        %v5030 = vadd.f32 %v4910, %v5029
        %v5031 = vpop.f32.mrb[0].mxu0
        %v5032 = vpop.f32.mrb[0].mxu0
        %v5033 = vadd.f32 %v4910, %v5032
        %v5034 = vpop.f32.mrb[0].mxu0
        %5035 = vmatprep.mubr.bf16.mxu0 0
        %5036 = vmatmul.mubr.bf16.gmra.mrb[0].mxu0 %v4945
        %v5037 = vpop.f32.mrb[0].mxu0
        %v5038 = vadd.f32 %v4910, %v5037
        %v5039 = vpop.f32.mrb[0].mxu0
        %v5040 = vpop.f32.mrb[0].mxu0
        %v5041 = vadd.f32 %v4910, %v5040
        %v5042 = vpop.f32.mrb[0].mxu0
        %5043 = vdwg.mxu0
        %v5044 = vmax.f32 %v4982, 0.0
        %v5045 = vmax.f32 %v4985, 0.0
        %v5046 = vmax.f32 %v4990, 0.0
        %v5047 = vmax.f32 %v4993, 0.0
        %v5048 = vmax.f32 %v4998, 0.0
        %v5049 = vmax.f32 %v5001, 0.0
        %v5050 = vmax.f32 %v5006, 0.0
        %v5051 = vmax.f32 %v5009, 0.0
        %v5052 = vmax.f32 %v5014, 0.0
        %v5053 = vmax.f32 %v5017, 0.0
        %v5054 = vmax.f32 %v5022, 0.0
        %v5055 = vmax.f32 %v5025, 0.0
        %v5056 = vmax.f32 %v5030, 0.0
        %v5057 = vmax.f32 %v5033, 0.0
        %v5058 = vmax.f32 %v5038, 0.0
        %v5059 = vmax.f32 %v5041, 0.0
        %v5060 = vpack.c.bf16 %v5045, %v5044
        %v5061 = vpack.c.bf16 %v5047, %v5046
        %v5062 = vpack.c.bf16 %v5049, %v5048
        %v5063 = vpack.c.bf16 %v5051, %v5050
        %v5064 = vpack.c.bf16 %v5053, %v5052
        %v5065 = vpack.c.bf16 %v5055, %v5054
        %v5066 = vpack.c.bf16 %v5057, %v5056
        %v5067 = vpack.c.bf16 %v5059, %v5058
        %v5068 = vld [vmem:[%s6] sm:$0xf]
        %v5069 = vld [vmem:[%s6 + $0x4] sm:$0xf]
        %v5070 = vld [vmem:[%s6 + $0x8] sm:$0xf]
        %v5071 = vld [vmem:[%s6 + $0xc] sm:$0xf]
        %v5072 = vld [vmem:[%s6 + $0x10] sm:$0xf]
        %v5073 = vld [vmem:[%s6 + $0x14] sm:$0xf]
        %v5074 = vld [vmem:[%s6 + $0x18] sm:$0xf]
        %v5075 = vld [vmem:[%s6 + $0x1c] sm:$0xf]
        %v5076 = vld [vmem:[%s6 + $0x20] sm:$0xf]
        %v5077 = vld [vmem:[%s6 + $0x24] sm:$0xf]
        %v5078 = vld [vmem:[%s6 + $0x28] sm:$0xf]
        %v5079 = vld [vmem:[%s6 + $0x2c] sm:$0xf]
        %v5080 = vld [vmem:[%s6 + $0x30] sm:$0xf]
        %v5081 = vld [vmem:[%s6 + $0x34] sm:$0xf]
        %v5082 = vld [vmem:[%s6 + $0x38] sm:$0xf]
        %v5083 = vld [vmem:[%s6 + $0x3c] sm:$0xf]
        %v5084 = vlaneseq
        %v5085 = vshrl.u32 %v5084, 7
        %v5086 = vsub.s32 7, %v5085
        %v5087 = vrot.slane %v663, %v5086
        %v5104 = vunpack.c.l.b16 %v5068
        %v5105 = vunpack.c.l.b16 %v5069
        %v5106 = vunpack.c.l.b16 %v5070
        %v5107 = vunpack.c.l.b16 %v5071
        %v5108 = vunpack.c.l.b16 %v5072
        %v5109 = vunpack.c.l.b16 %v5073
        %v5110 = vunpack.c.l.b16 %v5074
        %v5111 = vunpack.c.l.b16 %v5075
        %v5112 = vunpack.c.l.b16 %v5076
        %v5113 = vunpack.c.l.b16 %v5077
        %v5114 = vunpack.c.l.b16 %v5078
        %v5115 = vunpack.c.l.b16 %v5079
        %v5116 = vunpack.c.l.b16 %v5080
        %v5117 = vunpack.c.l.b16 %v5081
        %v5118 = vunpack.c.l.b16 %v5082
        %v5119 = vunpack.c.l.b16 %v5083
        %v5120 = vpack.c.b16 %v5105, %v5104
        %v5121 = vpack.c.b16 %v5107, %v5106
        %v5122 = vpack.c.b16 %v5109, %v5108
        %v5123 = vpack.c.b16 %v5111, %v5110
        %v5124 = vpack.c.b16 %v5113, %v5112
        %v5125 = vpack.c.b16 %v5115, %v5114
        %v5126 = vpack.c.b16 %v5117, %v5116
        %v5127 = vpack.c.b16 %v5119, %v5118
        %5136 = vmatprep.subr.bf16.mxu0 0
        %5137 = vmatpush1.bf16.msra.mxu0 %v5120
        %5138 = vmatprep.subr.bf16.mxu0 0
        %5139 = vmatpush1.bf16.msra.mxu0 %v5121
        %5140 = vmatprep.subr.bf16.mxu0 0
        %5141 = vmatpush1.bf16.msra.mxu0 %v5122
        %5142 = vmatprep.subr.bf16.mxu0 0
        %5143 = vmatpush1.bf16.msra.mxu0 %v5123
        %5144 = vmatprep.subr.bf16.mxu0 0
        %5145 = vmatpush1.bf16.msra.mxu0 %v5124
        %5146 = vmatprep.subr.bf16.mxu0 0
        %5147 = vmatpush1.bf16.msra.mxu0 %v5125
        %5148 = vmatprep.subr.bf16.mxu0 0
        %5149 = vmatpush1.bf16.msra.mxu0 %v5126
        %5150 = vmatprep.subr.bf16.mxu0 0
        %5151 = vmatpush1.bf16.msra.mxu0 %v5127
        %5152 = vmatprep.subr.bf16.mxu0 0
        %5153 = vmatpush1.bf16.msra.mxu0 0
        %5154 = vmatprep.subr.bf16.mxu0 0
        %5155 = vmatpush1.bf16.msra.mxu0 0
        %5156 = vmatprep.subr.bf16.mxu0 0
        %5157 = vmatpush1.bf16.msra.mxu0 0
        %5158 = vmatprep.subr.bf16.mxu0 0
        %5159 = vmatpush1.bf16.msra.mxu0 0
        %5160 = vmatprep.subr.bf16.mxu0 0
        %5161 = vmatpush1.bf16.msra.mxu0 0
        %5162 = vmatprep.subr.bf16.mxu0 0
        %5163 = vmatpush1.bf16.msra.mxu0 0
        %5164 = vmatprep.subr.bf16.mxu0 0
        %5165 = vmatpush1.bf16.msra.mxu0 0
        %5166 = vmatprep.subr.bf16.mxu0 0
        %5167 = vmatpush1.bf16.msra.mxu0 0
        %5168 = vmatprep.mubr.bf16.mxu0 0
        %5169 = vmatmul.mubr.bf16.gmra.mrb[0].mxu0 %v5060
        %v5170 = vpop.f32.mrb[0].mxu0
        %v5171 = vadd.f32 %v5087, %v5170
        %v5172 = vpop.f32.mrb[0].mxu0
        %v5173 = vpop.f32.mrb[0].mxu0
        %v5174 = vadd.f32 %v5087, %v5173
        %v5175 = vpop.f32.mrb[0].mxu0
        %5176 = vmatprep.mubr.bf16.mxu0 0
        %5177 = vmatmul.mubr.bf16.gmra.mrb[0].mxu0 %v5061
        %v5178 = vpop.f32.mrb[0].mxu0
        %v5179 = vadd.f32 %v5087, %v5178
        %v5180 = vpop.f32.mrb[0].mxu0
        %v5181 = vpop.f32.mrb[0].mxu0
        %v5182 = vadd.f32 %v5087, %v5181
        %v5183 = vpop.f32.mrb[0].mxu0
        %5184 = vmatprep.mubr.bf16.mxu0 0
        %5185 = vmatmul.mubr.bf16.gmra.mrb[0].mxu0 %v5062
        %v5186 = vpop.f32.mrb[0].mxu0
        %v5187 = vadd.f32 %v5087, %v5186
        %v5188 = vpop.f32.mrb[0].mxu0
        %v5189 = vpop.f32.mrb[0].mxu0
        %v5190 = vadd.f32 %v5087, %v5189
        %v5191 = vpop.f32.mrb[0].mxu0
        %5192 = vmatprep.mubr.bf16.mxu0 0
        %5193 = vmatmul.mubr.bf16.gmra.mrb[0].mxu0 %v5063
        %v5194 = vpop.f32.mrb[0].mxu0
        %v5195 = vadd.f32 %v5087, %v5194
        %v5196 = vpop.f32.mrb[0].mxu0
        %v5197 = vpop.f32.mrb[0].mxu0
        %v5198 = vadd.f32 %v5087, %v5197
        %v5199 = vpop.f32.mrb[0].mxu0
        %5200 = vmatprep.mubr.bf16.mxu0 0
        %5201 = vmatmul.mubr.bf16.gmra.mrb[0].mxu0 %v5064
        %v5202 = vpop.f32.mrb[0].mxu0
        %v5203 = vadd.f32 %v5087, %v5202
        %v5204 = vpop.f32.mrb[0].mxu0
        %v5205 = vpop.f32.mrb[0].mxu0
        %v5206 = vadd.f32 %v5087, %v5205
        %v5207 = vpop.f32.mrb[0].mxu0
        %5208 = vmatprep.mubr.bf16.mxu0 0
        %5209 = vmatmul.mubr.bf16.gmra.mrb[0].mxu0 %v5065
        %v5210 = vpop.f32.mrb[0].mxu0
        %v5211 = vadd.f32 %v5087, %v5210
        %v5212 = vpop.f32.mrb[0].mxu0
        %v5213 = vpop.f32.mrb[0].mxu0
        %v5214 = vadd.f32 %v5087, %v5213
        %v5215 = vpop.f32.mrb[0].mxu0
        %5216 = vmatprep.mubr.bf16.mxu0 0
        %5217 = vmatmul.mubr.bf16.gmra.mrb[0].mxu0 %v5066
        %v5218 = vpop.f32.mrb[0].mxu0
        %v5219 = vadd.f32 %v5087, %v5218
        %v5220 = vpop.f32.mrb[0].mxu0
        %v5221 = vpop.f32.mrb[0].mxu0
        %v5222 = vadd.f32 %v5087, %v5221
        %v5223 = vpop.f32.mrb[0].mxu0
        %5224 = vmatprep.mubr.bf16.mxu0 0
        %5225 = vmatmul.mubr.bf16.gmra.mrb[0].mxu0 %v5067
        %v5226 = vpop.f32.mrb[0].mxu0
        %v5227 = vadd.f32 %v5087, %v5226
        %v5228 = vpop.f32.mrb[0].mxu0
        %v5229 = vpop.f32.mrb[0].mxu0
        %v5230 = vadd.f32 %v5087, %v5229
        %v5231 = vpop.f32.mrb[0].mxu0
        %5232 = vdwg.mxu0
        %v5233 = vadd.f32 %v4879, %v5171
        %v5234 = vadd.f32 %v4880, %v5174
        %v5235 = vadd.f32 %v4881, %v5179
        %v5236 = vadd.f32 %v4882, %v5182
        %v5237 = vadd.f32 %v4883, %v5187
        %v5238 = vadd.f32 %v4884, %v5190
        %v5239 = vadd.f32 %v4885, %v5195
        %v5240 = vadd.f32 %v4886, %v5198
        %v5241 = vadd.f32 %v4887, %v5203
        %v5242 = vadd.f32 %v4888, %v5206
        %v5243 = vadd.f32 %v4889, %v5211
        %v5244 = vadd.f32 %v4890, %v5214
        %v5245 = vadd.f32 %v4891, %v5219
        %v5246 = vadd.f32 %v4892, %v5222
        %v5247 = vadd.f32 %v4893, %v5227
        %v5248 = vadd.f32 %v4894, %v5230
        %v5249 = vsel %vm692, %v5233, 0.0
        %5250 = vadd.xlane.f32.xlu0 %v5249
        %v5251 = vpop.xlane.xlu0 %5250
        %v5252 = vsel %vm692, %v5234, 0.0
        %5253 = vadd.xlane.f32.xlu0 %v5252
        %v5254 = vpop.xlane.xlu0 %5253
        %v5255 = vsel %vm692, %v5235, 0.0
        %5256 = vadd.xlane.f32.xlu0 %v5255
        %v5257 = vpop.xlane.xlu0 %5256
        %v5258 = vsel %vm692, %v5236, 0.0
        %5259 = vadd.xlane.f32.xlu0 %v5258
        %v5260 = vpop.xlane.xlu0 %5259
        %v5261 = vsel %vm692, %v5237, 0.0
        %5262 = vadd.xlane.f32.xlu0 %v5261
        %v5263 = vpop.xlane.xlu0 %5262
        %v5264 = vsel %vm692, %v5238, 0.0
        %5265 = vadd.xlane.f32.xlu0 %v5264
        %v5266 = vpop.xlane.xlu0 %5265
        %v5267 = vsel %vm692, %v5239, 0.0
        %5268 = vadd.xlane.f32.xlu0 %v5267
        %v5269 = vpop.xlane.xlu0 %5268
        %v5270 = vsel %vm692, %v5240, 0.0
        %5271 = vadd.xlane.f32.xlu0 %v5270
        %v5272 = vpop.xlane.xlu0 %5271
        %v5273 = vsel %vm692, %v5241, 0.0
        %5274 = vadd.xlane.f32.xlu0 %v5273
        %v5275 = vpop.xlane.xlu0 %5274
        %v5276 = vsel %vm692, %v5242, 0.0
        %5277 = vadd.xlane.f32.xlu0 %v5276
        %v5278 = vpop.xlane.xlu0 %5277
        %v5279 = vsel %vm692, %v5243, 0.0
        %5280 = vadd.xlane.f32.xlu0 %v5279
        %v5281 = vpop.xlane.xlu0 %5280
        %v5282 = vsel %vm692, %v5244, 0.0
        %5283 = vadd.xlane.f32.xlu0 %v5282
        %v5284 = vpop.xlane.xlu0 %5283
        %v5285 = vsel %vm692, %v5245, 0.0
        %5286 = vadd.xlane.f32.xlu0 %v5285
        %v5287 = vpop.xlane.xlu0 %5286
        %v5288 = vsel %vm692, %v5246, 0.0
        %5289 = vadd.xlane.f32.xlu0 %v5288
        %v5290 = vpop.xlane.xlu0 %5289
        %v5291 = vsel %vm692, %v5247, 0.0
        %5292 = vadd.xlane.f32.xlu0 %v5291
        %v5293 = vpop.xlane.xlu0 %5292
        %v5294 = vsel %vm692, %v5248, 0.0
        %5295 = vadd.xlane.f32.xlu0 %v5294
        %v5296 = vpop.xlane.xlu0 %5295
        %v5297 = vmul.f32 %v5251, %v4694
        %v5298 = vmul.f32 %v5254, %v4694
        %v5299 = vmul.f32 %v5257, %v4694
        %v5300 = vmul.f32 %v5260, %v4694
        %v5301 = vmul.f32 %v5263, %v4694
        %v5302 = vmul.f32 %v5266, %v4694
        %v5303 = vmul.f32 %v5269, %v4694
        %v5304 = vmul.f32 %v5272, %v4694
        %v5305 = vmul.f32 %v5275, %v4694
        %v5306 = vmul.f32 %v5278, %v4694
        %v5307 = vmul.f32 %v5281, %v4694
        %v5308 = vmul.f32 %v5284, %v4694
        %v5309 = vmul.f32 %v5287, %v4694
        %v5310 = vmul.f32 %v5290, %v4694
        %v5311 = vmul.f32 %v5293, %v4694
        %v5312 = vmul.f32 %v5296, %v4694
        %v5313 = vsub.f32 %v5233, %v5297
        %v5314 = vsub.f32 %v5234, %v5298
        %v5315 = vsub.f32 %v5235, %v5299
        %v5316 = vsub.f32 %v5236, %v5300
        %v5317 = vsub.f32 %v5237, %v5301
        %v5318 = vsub.f32 %v5238, %v5302
        %v5319 = vsub.f32 %v5239, %v5303
        %v5320 = vsub.f32 %v5240, %v5304
        %v5321 = vsub.f32 %v5241, %v5305
        %v5322 = vsub.f32 %v5242, %v5306
        %v5323 = vsub.f32 %v5243, %v5307
        %v5324 = vsub.f32 %v5244, %v5308
        %v5325 = vsub.f32 %v5245, %v5309
        %v5326 = vsub.f32 %v5246, %v5310
        %v5327 = vsub.f32 %v5247, %v5311
        %v5328 = vsub.f32 %v5248, %v5312
        %v5329 = vmul.f32 %v5313, %v5313
        %v5330 = vmul.f32 %v5314, %v5314
        %v5331 = vmul.f32 %v5315, %v5315
        %v5332 = vmul.f32 %v5316, %v5316
        %v5333 = vmul.f32 %v5317, %v5317
        %v5334 = vmul.f32 %v5318, %v5318
        %v5335 = vmul.f32 %v5319, %v5319
        %v5336 = vmul.f32 %v5320, %v5320
        %v5337 = vmul.f32 %v5321, %v5321
        %v5338 = vmul.f32 %v5322, %v5322
        %v5339 = vmul.f32 %v5323, %v5323
        %v5340 = vmul.f32 %v5324, %v5324
        %v5341 = vmul.f32 %v5325, %v5325
        %v5342 = vmul.f32 %v5326, %v5326
        %v5343 = vmul.f32 %v5327, %v5327
        %v5344 = vmul.f32 %v5328, %v5328
        %v5345 = vsel %vm692, %v5329, 0.0
        %5346 = vadd.xlane.f32.xlu0 %v5345
        %v5347 = vpop.xlane.xlu0 %5346
        %v5348 = vsel %vm692, %v5330, 0.0
        %5349 = vadd.xlane.f32.xlu0 %v5348
        %v5350 = vpop.xlane.xlu0 %5349
        %v5351 = vsel %vm692, %v5331, 0.0
        %5352 = vadd.xlane.f32.xlu0 %v5351
        %v5353 = vpop.xlane.xlu0 %5352
        %v5354 = vsel %vm692, %v5332, 0.0
        %5355 = vadd.xlane.f32.xlu0 %v5354
        %v5356 = vpop.xlane.xlu0 %5355
        %v5357 = vsel %vm692, %v5333, 0.0
        %5358 = vadd.xlane.f32.xlu0 %v5357
        %v5359 = vpop.xlane.xlu0 %5358
        %v5360 = vsel %vm692, %v5334, 0.0
        %5361 = vadd.xlane.f32.xlu0 %v5360
        %v5362 = vpop.xlane.xlu0 %5361
        %v5363 = vsel %vm692, %v5335, 0.0
        %5364 = vadd.xlane.f32.xlu0 %v5363
        %v5365 = vpop.xlane.xlu0 %5364
        %v5366 = vsel %vm692, %v5336, 0.0
        %5367 = vadd.xlane.f32.xlu0 %v5366
        %v5368 = vpop.xlane.xlu0 %5367
        %v5369 = vsel %vm692, %v5337, 0.0
        %5370 = vadd.xlane.f32.xlu0 %v5369
        %v5371 = vpop.xlane.xlu0 %5370
        %v5372 = vsel %vm692, %v5338, 0.0
        %5373 = vadd.xlane.f32.xlu0 %v5372
        %v5374 = vpop.xlane.xlu0 %5373
        %v5375 = vsel %vm692, %v5339, 0.0
        %5376 = vadd.xlane.f32.xlu0 %v5375
        %v5377 = vpop.xlane.xlu0 %5376
        %v5378 = vsel %vm692, %v5340, 0.0
        %5379 = vadd.xlane.f32.xlu0 %v5378
        %v5380 = vpop.xlane.xlu0 %5379
        %v5381 = vsel %vm692, %v5341, 0.0
        %5382 = vadd.xlane.f32.xlu0 %v5381
        %v5383 = vpop.xlane.xlu0 %5382
        %v5384 = vsel %vm692, %v5342, 0.0
        %5385 = vadd.xlane.f32.xlu0 %v5384
        %v5386 = vpop.xlane.xlu0 %5385
        %v5387 = vsel %vm692, %v5343, 0.0
        %5388 = vadd.xlane.f32.xlu0 %v5387
        %v5389 = vpop.xlane.xlu0 %5388
        %v5390 = vsel %vm692, %v5344, 0.0
        %5391 = vadd.xlane.f32.xlu0 %v5390
        %v5392 = vpop.xlane.xlu0 %5391
        %v5393 = vmul.f32 %v5347, %v4694
        %v5394 = vmul.f32 %v5350, %v4694
        %v5395 = vmul.f32 %v5353, %v4694
        %v5396 = vmul.f32 %v5356, %v4694
        %v5397 = vmul.f32 %v5359, %v4694
        %v5398 = vmul.f32 %v5362, %v4694
        %v5399 = vmul.f32 %v5365, %v4694
        %v5400 = vmul.f32 %v5368, %v4694
        %v5401 = vmul.f32 %v5371, %v4694
        %v5402 = vmul.f32 %v5374, %v4694
        %v5403 = vmul.f32 %v5377, %v4694
        %v5404 = vmul.f32 %v5380, %v4694
        %v5405 = vmul.f32 %v5383, %v4694
        %v5406 = vmul.f32 %v5386, %v4694
        %v5407 = vmul.f32 %v5389, %v4694
        %v5408 = vmul.f32 %v5392, %v4694
        %v5409 = vadd.f32 %v5393, 1e-05
        %v5410 = vadd.f32 %v5394, 1e-05
        %v5411 = vadd.f32 %v5395, 1e-05
        %v5412 = vadd.f32 %v5396, 1e-05
        %v5413 = vadd.f32 %v5397, 1e-05
        %v5414 = vadd.f32 %v5398, 1e-05
        %v5415 = vadd.f32 %v5399, 1e-05
        %v5416 = vadd.f32 %v5400, 1e-05
        %v5417 = vadd.f32 %v5401, 1e-05
        %v5418 = vadd.f32 %v5402, 1e-05
        %v5419 = vadd.f32 %v5403, 1e-05
        %v5420 = vadd.f32 %v5404, 1e-05
        %v5421 = vadd.f32 %v5405, 1e-05
        %v5422 = vadd.f32 %v5406, 1e-05
        %v5423 = vadd.f32 %v5407, 1e-05
        %v5424 = vadd.f32 %v5408, 1e-05
        %v5425 = vrsqrt.pop %v5409
        %v5426 = vrsqrt.pop %v5410
        %v5427 = vrsqrt.pop %v5411
        %v5428 = vrsqrt.pop %v5412
        %v5429 = vrsqrt.pop %v5413
        %v5430 = vrsqrt.pop %v5414
        %v5431 = vrsqrt.pop %v5415
        %v5432 = vrsqrt.pop %v5416
        %v5433 = vrsqrt.pop %v5417
        %v5434 = vrsqrt.pop %v5418
        %v5435 = vrsqrt.pop %v5419
        %v5436 = vrsqrt.pop %v5420
        %v5437 = vrsqrt.pop %v5421
        %v5438 = vrsqrt.pop %v5422
        %v5439 = vrsqrt.pop %v5423
        %v5440 = vrsqrt.pop %v5424
        %v5441 = vmul.f32 %v5313, %v5425
        %v5442 = vmul.f32 %v5314, %v5426
        %v5443 = vmul.f32 %v5315, %v5427
        %v5444 = vmul.f32 %v5316, %v5428
        %v5445 = vmul.f32 %v5317, %v5429
        %v5446 = vmul.f32 %v5318, %v5430
        %v5447 = vmul.f32 %v5319, %v5431
        %v5448 = vmul.f32 %v5320, %v5432
        %v5449 = vmul.f32 %v5321, %v5433
        %v5450 = vmul.f32 %v5322, %v5434
        %v5451 = vmul.f32 %v5323, %v5435
        %v5452 = vmul.f32 %v5324, %v5436
        %v5453 = vmul.f32 %v5325, %v5437
        %v5454 = vmul.f32 %v5326, %v5438
        %v5455 = vmul.f32 %v5327, %v5439
        %v5456 = vmul.f32 %v5328, %v5440
        %v5457 = vlaneseq
        %v5458 = vshrl.u32 %v5457, 7
        %v5459 = vsub.s32 4, %v5458
        %v5460 = vrot.slane %v663, %v5459
        %v5461 = vmul.f32 %v5441, %v5460
        %v5462 = vmul.f32 %v5442, %v5460
        %v5463 = vmul.f32 %v5443, %v5460
        %v5464 = vmul.f32 %v5444, %v5460
        %v5465 = vmul.f32 %v5445, %v5460
        %v5466 = vmul.f32 %v5446, %v5460
        %v5467 = vmul.f32 %v5447, %v5460
        %v5468 = vmul.f32 %v5448, %v5460
        %v5469 = vmul.f32 %v5449, %v5460
        %v5470 = vmul.f32 %v5450, %v5460
        %v5471 = vmul.f32 %v5451, %v5460
        %v5472 = vmul.f32 %v5452, %v5460
        %v5473 = vmul.f32 %v5453, %v5460
        %v5474 = vmul.f32 %v5454, %v5460
        %v5475 = vmul.f32 %v5455, %v5460
        %v5476 = vmul.f32 %v5456, %v5460
        %v5477 = vlaneseq
        %v5478 = vshrl.u32 %v5477, 7
        %v5479 = vsub.s32 5, %v5478
        %v5480 = vrot.slane %v663, %v5479
        %v5481 = vadd.f32 %v5461, %v5480
        %v5482 = vadd.f32 %v5462, %v5480
        %v5483 = vadd.f32 %v5463, %v5480
        %v5484 = vadd.f32 %v5464, %v5480
        %v5485 = vadd.f32 %v5465, %v5480
        %v5486 = vadd.f32 %v5466, %v5480
        %v5487 = vadd.f32 %v5467, %v5480
        %v5488 = vadd.f32 %v5468, %v5480
        %v5489 = vadd.f32 %v5469, %v5480
        %v5490 = vadd.f32 %v5470, %v5480
        %v5491 = vadd.f32 %v5471, %v5480
        %v5492 = vadd.f32 %v5472, %v5480
        %v5493 = vadd.f32 %v5473, %v5480
        %v5494 = vadd.f32 %v5474, %v5480
        %v5495 = vadd.f32 %v5475, %v5480
        %v5496 = vadd.f32 %v5476, %v5480
        %s5497 = scalar_lea.vmem %s7, 8
        %v5498 = vld [vmem:[%s5497] sm:$0xff]
        %v5499 = vpack.c.bf16 %v5482, %v5481
        %v5500 = vpack.c.bf16 %v5484, %v5483
        %v5501 = vpack.c.bf16 %v5486, %v5485
        %v5502 = vpack.c.bf16 %v5488, %v5487
        %v5503 = vpack.c.bf16 %v5490, %v5489
        %v5504 = vpack.c.bf16 %v5492, %v5491
        %v5505 = vpack.c.bf16 %v5494, %v5493
        %v5506 = vpack.c.bf16 %v5496, %v5495
        %s5507 = scalar_lea.vmem %s3, 16
        %v5508 = vld [vmem:[%s5507] sm:$0xf]
        %v5509 = vld [vmem:[%s5507 + $0x4] sm:$0xf]
        %v5510 = vld [vmem:[%s5507 + $0x8] sm:$0xf]
        %v5511 = vld [vmem:[%s5507 + $0xc] sm:$0xf]
        %v5512 = vlaneseq
        %v5513 = vshrl.u32 %v5512, 7
        %v5514 = vsub.s32 0, %v5513
        %v5515 = vrot.slane %v5498, %v5514
        %v5520 = vunpack.c.l.b16 %v5508
        %v5521 = vunpack.c.l.b16 %v5509
        %v5522 = vunpack.c.l.b16 %v5510
        %v5523 = vunpack.c.l.b16 %v5511
        %v5524 = vpack.c.b16 %v5521, %v5520
        %v5525 = vpack.c.b16 %v5523, %v5522
        %v5529 = vsel %vm692, %v5499, 0
        %v5532 = vsel %vm692, %v5500, 0
        %v5535 = vsel %vm692, %v5501, 0
        %v5538 = vsel %vm692, %v5502, 0
        %v5541 = vsel %vm692, %v5503, 0
        %v5544 = vsel %vm692, %v5504, 0
        %v5547 = vsel %vm692, %v5505, 0
        %v5550 = vsel %vm692, %v5506, 0
        %5552 = vmatprep.subr.bf16.mxu0 0
        %5553 = vmatpush1.bf16.msra.mxu0 %v5524
        %5554 = vmatprep.subr.bf16.mxu0 0
        %5555 = vmatpush1.bf16.msra.mxu0 %v5525
        %5556 = vmatprep.subr.bf16.mxu0 0
        %5557 = vmatpush1.bf16.msra.mxu0 0
        %5558 = vmatprep.subr.bf16.mxu0 0
        %5559 = vmatpush1.bf16.msra.mxu0 0
        %5560 = vmatprep.subr.bf16.mxu0 0
        %5561 = vmatpush1.bf16.msra.mxu0 0
        %5562 = vmatprep.subr.bf16.mxu0 0
        %5563 = vmatpush1.bf16.msra.mxu0 0
        %5564 = vmatprep.subr.bf16.mxu0 0
        %5565 = vmatpush1.bf16.msra.mxu0 0
        %5566 = vmatprep.subr.bf16.mxu0 0
        %5567 = vmatpush1.bf16.msra.mxu0 0
        %5568 = vmatprep.subr.bf16.mxu0 0
        %5569 = vmatpush1.bf16.msra.mxu0 0
        %5570 = vmatprep.subr.bf16.mxu0 0
        %5571 = vmatpush1.bf16.msra.mxu0 0
        %5572 = vmatprep.subr.bf16.mxu0 0
        %5573 = vmatpush1.bf16.msra.mxu0 0
        %5574 = vmatprep.subr.bf16.mxu0 0
        %5575 = vmatpush1.bf16.msra.mxu0 0
        %5576 = vmatprep.subr.bf16.mxu0 0
        %5577 = vmatpush1.bf16.msra.mxu0 0
        %5578 = vmatprep.subr.bf16.mxu0 0
        %5579 = vmatpush1.bf16.msra.mxu0 0
        %5580 = vmatprep.subr.bf16.mxu0 0
        %5581 = vmatpush1.bf16.msra.mxu0 0
        %5582 = vmatprep.subr.bf16.mxu0 0
        %5583 = vmatpush1.bf16.msra.mxu0 0
        %5584 = vmatprep.mubr.bf16.mxu0 0
        %5585 = vmatmul.mubr.bf16.gmra.mrb[0].mxu0 %v5529
        %v5586 = vpop.f32.mrb[0].mxu0
        %v5587 = vadd.f32 %v5515, %v5586
        %v5588 = vpop.f32.mrb[0].mxu0
        %v5589 = vpop.f32.mrb[0].mxu0
        %v5590 = vadd.f32 %v5515, %v5589
        %v5591 = vpop.f32.mrb[0].mxu0
        %5592 = vmatprep.mubr.bf16.mxu0 0
        %5593 = vmatmul.mubr.bf16.gmra.mrb[0].mxu0 %v5532
        %v5594 = vpop.f32.mrb[0].mxu0
        %v5595 = vadd.f32 %v5515, %v5594
        %v5596 = vpop.f32.mrb[0].mxu0
        %v5597 = vpop.f32.mrb[0].mxu0
        %v5598 = vadd.f32 %v5515, %v5597
        %v5599 = vpop.f32.mrb[0].mxu0
        %5600 = vmatprep.mubr.bf16.mxu0 0
        %5601 = vmatmul.mubr.bf16.gmra.mrb[0].mxu0 %v5535
        %v5602 = vpop.f32.mrb[0].mxu0
        %v5603 = vadd.f32 %v5515, %v5602
        %v5604 = vpop.f32.mrb[0].mxu0
        %v5605 = vpop.f32.mrb[0].mxu0
        %v5606 = vadd.f32 %v5515, %v5605
        %v5607 = vpop.f32.mrb[0].mxu0
        %5608 = vmatprep.mubr.bf16.mxu0 0
        %5609 = vmatmul.mubr.bf16.gmra.mrb[0].mxu0 %v5538
        %v5610 = vpop.f32.mrb[0].mxu0
        %v5611 = vadd.f32 %v5515, %v5610
        %v5612 = vpop.f32.mrb[0].mxu0
        %v5613 = vpop.f32.mrb[0].mxu0
        %v5614 = vadd.f32 %v5515, %v5613
        %v5615 = vpop.f32.mrb[0].mxu0
        %5616 = vmatprep.mubr.bf16.mxu0 0
        %5617 = vmatmul.mubr.bf16.gmra.mrb[0].mxu0 %v5541
        %v5618 = vpop.f32.mrb[0].mxu0
        %v5619 = vadd.f32 %v5515, %v5618
        %v5620 = vpop.f32.mrb[0].mxu0
        %v5621 = vpop.f32.mrb[0].mxu0
        %v5622 = vadd.f32 %v5515, %v5621
        %v5623 = vpop.f32.mrb[0].mxu0
        %5624 = vmatprep.mubr.bf16.mxu0 0
        %5625 = vmatmul.mubr.bf16.gmra.mrb[0].mxu0 %v5544
        %v5626 = vpop.f32.mrb[0].mxu0
        %v5627 = vadd.f32 %v5515, %v5626
        %v5628 = vpop.f32.mrb[0].mxu0
        %v5629 = vpop.f32.mrb[0].mxu0
        %v5630 = vadd.f32 %v5515, %v5629
        %v5631 = vpop.f32.mrb[0].mxu0
        %5632 = vmatprep.mubr.bf16.mxu0 0
        %5633 = vmatmul.mubr.bf16.gmra.mrb[0].mxu0 %v5547
        %v5634 = vpop.f32.mrb[0].mxu0
        %v5635 = vadd.f32 %v5515, %v5634
        %v5636 = vpop.f32.mrb[0].mxu0
        %v5637 = vpop.f32.mrb[0].mxu0
        %v5638 = vadd.f32 %v5515, %v5637
        %v5639 = vpop.f32.mrb[0].mxu0
        %5640 = vmatprep.mubr.bf16.mxu0 0
        %5641 = vmatmul.mubr.bf16.gmra.mrb[0].mxu0 %v5550
        %v5642 = vpop.f32.mrb[0].mxu0
        %v5643 = vadd.f32 %v5515, %v5642
        %v5644 = vpop.f32.mrb[0].mxu0
        %v5645 = vpop.f32.mrb[0].mxu0
        %v5646 = vadd.f32 %v5515, %v5645
        %v5647 = vpop.f32.mrb[0].mxu0
        %5648 = vdwg.mxu0
        %v5649 = vpack.c.bf16 %v5587, %v5587
        %v5650 = vpack.c.bf16 %v5590, %v5590
        %v5651 = vpack.c.bf16 %v5595, %v5595
        %v5652 = vpack.c.bf16 %v5598, %v5598
        %v5653 = vpack.c.bf16 %v5603, %v5603
        %v5654 = vpack.c.bf16 %v5606, %v5606
        %v5655 = vpack.c.bf16 %v5611, %v5611
        %v5656 = vpack.c.bf16 %v5614, %v5614
        %v5657 = vpack.c.bf16 %v5619, %v5619
        %v5658 = vpack.c.bf16 %v5622, %v5622
        %v5659 = vpack.c.bf16 %v5627, %v5627
        %v5660 = vpack.c.bf16 %v5630, %v5630
        %v5661 = vpack.c.bf16 %v5635, %v5635
        %v5662 = vpack.c.bf16 %v5638, %v5638
        %v5663 = vpack.c.bf16 %v5643, %v5643
        %v5664 = vpack.c.bf16 %v5646, %v5646
        %5666 = vrot.lane.b32.xlu0 %v5649, 96
        %v5667 = vpop.permute.xlu0 %5666
        %v5669 = vsel %vm833, %v5649, 0
        %v5672 = vsel %vm833, %v5667, 0
        %5674 = vmatprep.subr.bf16.mxu0 0
        %5675 = vmatpush1.bf16.xpose.msra.mxu0 %v5672
        %5676 = vmatprep.subr.bf16.mxu0 0
        %5677 = vmatpush1.bf16.xpose.msra.mxu0 0
        %5678 = vmatprep.subr.bf16.mxu0 0
        %5679 = vmatpush1.bf16.xpose.msra.mxu0 0
        %5680 = vmatprep.subr.bf16.mxu0 0
        %5681 = vmatpush1.bf16.xpose.msra.mxu0 0
        %5682 = vmatprep.subr.bf16.mxu0 0
        %5683 = vmatpush1.bf16.xpose.msra.mxu0 0
        %5684 = vmatprep.subr.bf16.mxu0 0
        %5685 = vmatpush1.bf16.xpose.msra.mxu0 0
        %5686 = vmatprep.subr.bf16.mxu0 0
        %5687 = vmatpush1.bf16.xpose.msra.mxu0 0
        %5688 = vmatprep.subr.bf16.mxu0 0
        %5689 = vmatpush1.bf16.xpose.msra.mxu0 0
        %5690 = vmatprep.subr.bf16.mxu0 0
        %5691 = vmatpush1.bf16.xpose.msra.mxu0 0
        %5692 = vmatprep.subr.bf16.mxu0 0
        %5693 = vmatpush1.bf16.xpose.msra.mxu0 0
        %5694 = vmatprep.subr.bf16.mxu0 0
        %5695 = vmatpush1.bf16.xpose.msra.mxu0 0
        %5696 = vmatprep.subr.bf16.mxu0 0
        %5697 = vmatpush1.bf16.xpose.msra.mxu0 0
        %5698 = vmatprep.subr.bf16.mxu0 0
        %5699 = vmatpush1.bf16.xpose.msra.mxu0 0
        %5700 = vmatprep.subr.bf16.mxu0 0
        %5701 = vmatpush1.bf16.xpose.msra.mxu0 0
        %5702 = vmatprep.subr.bf16.mxu0 0
        %5703 = vmatpush1.bf16.xpose.msra.mxu0 0
        %5704 = vmatprep.subr.bf16.mxu0 0
        %5705 = vmatpush1.bf16.xpose.msra.mxu0 0
        %5706 = vmatprep.mubr.bf16.mxu0 0
        %5707 = vmatmul.mubr.bf16.gmra.mrb[0].mxu0 %v5669
        %v5708 = vpop.f32.mrb[0].mxu0
        %v5709 = vadd.f32 0.0, %v5708
        %v5710 = vpop.f32.mrb[0].mxu0
        %v5711 = vpop.f32.mrb[0].mxu0
        %v5712 = vpop.f32.mrb[0].mxu0
        %5713 = vdwg.mxu0
        %5715 = vrot.lane.b32.xlu0 %v5650, 96
        %v5716 = vpop.permute.xlu0 %5715
        %v5718 = vsel %vm833, %v5650, 0
        %v5721 = vsel %vm833, %v5716, 0
        %5723 = vmatprep.subr.bf16.mxu0 0
        %5724 = vmatpush1.bf16.xpose.msra.mxu0 %v5721
        %5725 = vmatprep.subr.bf16.mxu0 0
        %5726 = vmatpush1.bf16.xpose.msra.mxu0 0
        %5727 = vmatprep.subr.bf16.mxu0 0
        %5728 = vmatpush1.bf16.xpose.msra.mxu0 0
        %5729 = vmatprep.subr.bf16.mxu0 0
        %5730 = vmatpush1.bf16.xpose.msra.mxu0 0
        %5731 = vmatprep.subr.bf16.mxu0 0
        %5732 = vmatpush1.bf16.xpose.msra.mxu0 0
        %5733 = vmatprep.subr.bf16.mxu0 0
        %5734 = vmatpush1.bf16.xpose.msra.mxu0 0
        %5735 = vmatprep.subr.bf16.mxu0 0
        %5736 = vmatpush1.bf16.xpose.msra.mxu0 0
        %5737 = vmatprep.subr.bf16.mxu0 0
        %5738 = vmatpush1.bf16.xpose.msra.mxu0 0
        %5739 = vmatprep.subr.bf16.mxu0 0
        %5740 = vmatpush1.bf16.xpose.msra.mxu0 0
        %5741 = vmatprep.subr.bf16.mxu0 0
        %5742 = vmatpush1.bf16.xpose.msra.mxu0 0
        %5743 = vmatprep.subr.bf16.mxu0 0
        %5744 = vmatpush1.bf16.xpose.msra.mxu0 0
        %5745 = vmatprep.subr.bf16.mxu0 0
        %5746 = vmatpush1.bf16.xpose.msra.mxu0 0
        %5747 = vmatprep.subr.bf16.mxu0 0
        %5748 = vmatpush1.bf16.xpose.msra.mxu0 0
        %5749 = vmatprep.subr.bf16.mxu0 0
        %5750 = vmatpush1.bf16.xpose.msra.mxu0 0
        %5751 = vmatprep.subr.bf16.mxu0 0
        %5752 = vmatpush1.bf16.xpose.msra.mxu0 0
        %5753 = vmatprep.subr.bf16.mxu0 0
        %5754 = vmatpush1.bf16.xpose.msra.mxu0 0
        %5755 = vmatprep.mubr.bf16.mxu0 0
        %5756 = vmatmul.mubr.bf16.gmra.mrb[0].mxu0 %v5718
        %v5757 = vpop.f32.mrb[0].mxu0
        %v5758 = vadd.f32 0.0, %v5757
        %v5759 = vpop.f32.mrb[0].mxu0
        %v5760 = vpop.f32.mrb[0].mxu0
        %v5761 = vpop.f32.mrb[0].mxu0
        %5762 = vdwg.mxu0
        %5764 = vrot.lane.b32.xlu0 %v5651, 96
        %v5765 = vpop.permute.xlu0 %5764
        %v5767 = vsel %vm833, %v5651, 0
        %v5770 = vsel %vm833, %v5765, 0
        %5772 = vmatprep.subr.bf16.mxu0 0
        %5773 = vmatpush1.bf16.xpose.msra.mxu0 %v5770
        %5774 = vmatprep.subr.bf16.mxu0 0
        %5775 = vmatpush1.bf16.xpose.msra.mxu0 0
        %5776 = vmatprep.subr.bf16.mxu0 0
        %5777 = vmatpush1.bf16.xpose.msra.mxu0 0
        %5778 = vmatprep.subr.bf16.mxu0 0
        %5779 = vmatpush1.bf16.xpose.msra.mxu0 0
        %5780 = vmatprep.subr.bf16.mxu0 0
        %5781 = vmatpush1.bf16.xpose.msra.mxu0 0
        %5782 = vmatprep.subr.bf16.mxu0 0
        %5783 = vmatpush1.bf16.xpose.msra.mxu0 0
        %5784 = vmatprep.subr.bf16.mxu0 0
        %5785 = vmatpush1.bf16.xpose.msra.mxu0 0
        %5786 = vmatprep.subr.bf16.mxu0 0
        %5787 = vmatpush1.bf16.xpose.msra.mxu0 0
        %5788 = vmatprep.subr.bf16.mxu0 0
        %5789 = vmatpush1.bf16.xpose.msra.mxu0 0
        %5790 = vmatprep.subr.bf16.mxu0 0
        %5791 = vmatpush1.bf16.xpose.msra.mxu0 0
        %5792 = vmatprep.subr.bf16.mxu0 0
        %5793 = vmatpush1.bf16.xpose.msra.mxu0 0
        %5794 = vmatprep.subr.bf16.mxu0 0
        %5795 = vmatpush1.bf16.xpose.msra.mxu0 0
        %5796 = vmatprep.subr.bf16.mxu0 0
        %5797 = vmatpush1.bf16.xpose.msra.mxu0 0
        %5798 = vmatprep.subr.bf16.mxu0 0
        %5799 = vmatpush1.bf16.xpose.msra.mxu0 0
        %5800 = vmatprep.subr.bf16.mxu0 0
        %5801 = vmatpush1.bf16.xpose.msra.mxu0 0
        %5802 = vmatprep.subr.bf16.mxu0 0
        %5803 = vmatpush1.bf16.xpose.msra.mxu0 0
        %5804 = vmatprep.mubr.bf16.mxu0 0
        %5805 = vmatmul.mubr.bf16.gmra.mrb[0].mxu0 %v5767
        %v5806 = vpop.f32.mrb[0].mxu0
        %v5807 = vadd.f32 0.0, %v5806
        %v5808 = vpop.f32.mrb[0].mxu0
        %v5809 = vpop.f32.mrb[0].mxu0
        %v5810 = vpop.f32.mrb[0].mxu0
        %5811 = vdwg.mxu0
        %5813 = vrot.lane.b32.xlu0 %v5652, 96
        %v5814 = vpop.permute.xlu0 %5813
        %v5816 = vsel %vm833, %v5652, 0
        %v5819 = vsel %vm833, %v5814, 0
        %5821 = vmatprep.subr.bf16.mxu0 0
        %5822 = vmatpush1.bf16.xpose.msra.mxu0 %v5819
        %5823 = vmatprep.subr.bf16.mxu0 0
        %5824 = vmatpush1.bf16.xpose.msra.mxu0 0
        %5825 = vmatprep.subr.bf16.mxu0 0
        %5826 = vmatpush1.bf16.xpose.msra.mxu0 0
        %5827 = vmatprep.subr.bf16.mxu0 0
        %5828 = vmatpush1.bf16.xpose.msra.mxu0 0
        %5829 = vmatprep.subr.bf16.mxu0 0
        %5830 = vmatpush1.bf16.xpose.msra.mxu0 0
        %5831 = vmatprep.subr.bf16.mxu0 0
        %5832 = vmatpush1.bf16.xpose.msra.mxu0 0
        %5833 = vmatprep.subr.bf16.mxu0 0
        %5834 = vmatpush1.bf16.xpose.msra.mxu0 0
        %5835 = vmatprep.subr.bf16.mxu0 0
        %5836 = vmatpush1.bf16.xpose.msra.mxu0 0
        %5837 = vmatprep.subr.bf16.mxu0 0
        %5838 = vmatpush1.bf16.xpose.msra.mxu0 0
        %5839 = vmatprep.subr.bf16.mxu0 0
        %5840 = vmatpush1.bf16.xpose.msra.mxu0 0
        %5841 = vmatprep.subr.bf16.mxu0 0
        %5842 = vmatpush1.bf16.xpose.msra.mxu0 0
        %5843 = vmatprep.subr.bf16.mxu0 0
        %5844 = vmatpush1.bf16.xpose.msra.mxu0 0
        %5845 = vmatprep.subr.bf16.mxu0 0
        %5846 = vmatpush1.bf16.xpose.msra.mxu0 0
        %5847 = vmatprep.subr.bf16.mxu0 0
        %5848 = vmatpush1.bf16.xpose.msra.mxu0 0
        %5849 = vmatprep.subr.bf16.mxu0 0
        %5850 = vmatpush1.bf16.xpose.msra.mxu0 0
        %5851 = vmatprep.subr.bf16.mxu0 0
        %5852 = vmatpush1.bf16.xpose.msra.mxu0 0
        %5853 = vmatprep.mubr.bf16.mxu0 0
        %5854 = vmatmul.mubr.bf16.gmra.mrb[0].mxu0 %v5816
        %v5855 = vpop.f32.mrb[0].mxu0
        %v5856 = vadd.f32 0.0, %v5855
        %v5857 = vpop.f32.mrb[0].mxu0
        %v5858 = vpop.f32.mrb[0].mxu0
        %v5859 = vpop.f32.mrb[0].mxu0
        %5860 = vdwg.mxu0
        %5862 = vrot.lane.b32.xlu0 %v5653, 96
        %v5863 = vpop.permute.xlu0 %5862
        %v5865 = vsel %vm833, %v5653, 0
        %v5868 = vsel %vm833, %v5863, 0
        %5870 = vmatprep.subr.bf16.mxu0 0
        %5871 = vmatpush1.bf16.xpose.msra.mxu0 %v5868
        %5872 = vmatprep.subr.bf16.mxu0 0
        %5873 = vmatpush1.bf16.xpose.msra.mxu0 0
        %5874 = vmatprep.subr.bf16.mxu0 0
        %5875 = vmatpush1.bf16.xpose.msra.mxu0 0
        %5876 = vmatprep.subr.bf16.mxu0 0
        %5877 = vmatpush1.bf16.xpose.msra.mxu0 0
        %5878 = vmatprep.subr.bf16.mxu0 0
        %5879 = vmatpush1.bf16.xpose.msra.mxu0 0
        %5880 = vmatprep.subr.bf16.mxu0 0
        %5881 = vmatpush1.bf16.xpose.msra.mxu0 0
        %5882 = vmatprep.subr.bf16.mxu0 0
        %5883 = vmatpush1.bf16.xpose.msra.mxu0 0
        %5884 = vmatprep.subr.bf16.mxu0 0
        %5885 = vmatpush1.bf16.xpose.msra.mxu0 0
        %5886 = vmatprep.subr.bf16.mxu0 0
        %5887 = vmatpush1.bf16.xpose.msra.mxu0 0
        %5888 = vmatprep.subr.bf16.mxu0 0
        %5889 = vmatpush1.bf16.xpose.msra.mxu0 0
        %5890 = vmatprep.subr.bf16.mxu0 0
        %5891 = vmatpush1.bf16.xpose.msra.mxu0 0
        %5892 = vmatprep.subr.bf16.mxu0 0
        %5893 = vmatpush1.bf16.xpose.msra.mxu0 0
        %5894 = vmatprep.subr.bf16.mxu0 0
        %5895 = vmatpush1.bf16.xpose.msra.mxu0 0
        %5896 = vmatprep.subr.bf16.mxu0 0
        %5897 = vmatpush1.bf16.xpose.msra.mxu0 0
        %5898 = vmatprep.subr.bf16.mxu0 0
        %5899 = vmatpush1.bf16.xpose.msra.mxu0 0
        %5900 = vmatprep.subr.bf16.mxu0 0
        %5901 = vmatpush1.bf16.xpose.msra.mxu0 0
        %5902 = vmatprep.mubr.bf16.mxu0 0
        %5903 = vmatmul.mubr.bf16.gmra.mrb[0].mxu0 %v5865
        %v5904 = vpop.f32.mrb[0].mxu0
        %v5905 = vadd.f32 0.0, %v5904
        %v5906 = vpop.f32.mrb[0].mxu0
        %v5907 = vpop.f32.mrb[0].mxu0
        %v5908 = vpop.f32.mrb[0].mxu0
        %5909 = vdwg.mxu0
        %5911 = vrot.lane.b32.xlu0 %v5654, 96
        %v5912 = vpop.permute.xlu0 %5911
        %v5914 = vsel %vm833, %v5654, 0
        %v5917 = vsel %vm833, %v5912, 0
        %5919 = vmatprep.subr.bf16.mxu0 0
        %5920 = vmatpush1.bf16.xpose.msra.mxu0 %v5917
        %5921 = vmatprep.subr.bf16.mxu0 0
        %5922 = vmatpush1.bf16.xpose.msra.mxu0 0
        %5923 = vmatprep.subr.bf16.mxu0 0
        %5924 = vmatpush1.bf16.xpose.msra.mxu0 0
        %5925 = vmatprep.subr.bf16.mxu0 0
        %5926 = vmatpush1.bf16.xpose.msra.mxu0 0
        %5927 = vmatprep.subr.bf16.mxu0 0
        %5928 = vmatpush1.bf16.xpose.msra.mxu0 0
        %5929 = vmatprep.subr.bf16.mxu0 0
        %5930 = vmatpush1.bf16.xpose.msra.mxu0 0
        %5931 = vmatprep.subr.bf16.mxu0 0
        %5932 = vmatpush1.bf16.xpose.msra.mxu0 0
        %5933 = vmatprep.subr.bf16.mxu0 0
        %5934 = vmatpush1.bf16.xpose.msra.mxu0 0
        %5935 = vmatprep.subr.bf16.mxu0 0
        %5936 = vmatpush1.bf16.xpose.msra.mxu0 0
        %5937 = vmatprep.subr.bf16.mxu0 0
        %5938 = vmatpush1.bf16.xpose.msra.mxu0 0
        %5939 = vmatprep.subr.bf16.mxu0 0
        %5940 = vmatpush1.bf16.xpose.msra.mxu0 0
        %5941 = vmatprep.subr.bf16.mxu0 0
        %5942 = vmatpush1.bf16.xpose.msra.mxu0 0
        %5943 = vmatprep.subr.bf16.mxu0 0
        %5944 = vmatpush1.bf16.xpose.msra.mxu0 0
        %5945 = vmatprep.subr.bf16.mxu0 0
        %5946 = vmatpush1.bf16.xpose.msra.mxu0 0
        %5947 = vmatprep.subr.bf16.mxu0 0
        %5948 = vmatpush1.bf16.xpose.msra.mxu0 0
        %5949 = vmatprep.subr.bf16.mxu0 0
        %5950 = vmatpush1.bf16.xpose.msra.mxu0 0
        %5951 = vmatprep.mubr.bf16.mxu0 0
        %5952 = vmatmul.mubr.bf16.gmra.mrb[0].mxu0 %v5914
        %v5953 = vpop.f32.mrb[0].mxu0
        %v5954 = vadd.f32 0.0, %v5953
        %v5955 = vpop.f32.mrb[0].mxu0
        %v5956 = vpop.f32.mrb[0].mxu0
        %v5957 = vpop.f32.mrb[0].mxu0
        %5958 = vdwg.mxu0
        %5960 = vrot.lane.b32.xlu0 %v5655, 96
        %v5961 = vpop.permute.xlu0 %5960
        %v5963 = vsel %vm833, %v5655, 0
        %v5966 = vsel %vm833, %v5961, 0
        %5968 = vmatprep.subr.bf16.mxu0 0
        %5969 = vmatpush1.bf16.xpose.msra.mxu0 %v5966
        %5970 = vmatprep.subr.bf16.mxu0 0
        %5971 = vmatpush1.bf16.xpose.msra.mxu0 0
        %5972 = vmatprep.subr.bf16.mxu0 0
        %5973 = vmatpush1.bf16.xpose.msra.mxu0 0
        %5974 = vmatprep.subr.bf16.mxu0 0
        %5975 = vmatpush1.bf16.xpose.msra.mxu0 0
        %5976 = vmatprep.subr.bf16.mxu0 0
        %5977 = vmatpush1.bf16.xpose.msra.mxu0 0
        %5978 = vmatprep.subr.bf16.mxu0 0
        %5979 = vmatpush1.bf16.xpose.msra.mxu0 0
        %5980 = vmatprep.subr.bf16.mxu0 0
        %5981 = vmatpush1.bf16.xpose.msra.mxu0 0
        %5982 = vmatprep.subr.bf16.mxu0 0
        %5983 = vmatpush1.bf16.xpose.msra.mxu0 0
        %5984 = vmatprep.subr.bf16.mxu0 0
        %5985 = vmatpush1.bf16.xpose.msra.mxu0 0
        %5986 = vmatprep.subr.bf16.mxu0 0
        %5987 = vmatpush1.bf16.xpose.msra.mxu0 0
        %5988 = vmatprep.subr.bf16.mxu0 0
        %5989 = vmatpush1.bf16.xpose.msra.mxu0 0
        %5990 = vmatprep.subr.bf16.mxu0 0
        %5991 = vmatpush1.bf16.xpose.msra.mxu0 0
        %5992 = vmatprep.subr.bf16.mxu0 0
        %5993 = vmatpush1.bf16.xpose.msra.mxu0 0
        %5994 = vmatprep.subr.bf16.mxu0 0
        %5995 = vmatpush1.bf16.xpose.msra.mxu0 0
        %5996 = vmatprep.subr.bf16.mxu0 0
        %5997 = vmatpush1.bf16.xpose.msra.mxu0 0
        %5998 = vmatprep.subr.bf16.mxu0 0
        %5999 = vmatpush1.bf16.xpose.msra.mxu0 0
        %6000 = vmatprep.mubr.bf16.mxu0 0
        %6001 = vmatmul.mubr.bf16.gmra.mrb[0].mxu0 %v5963
        %v6002 = vpop.f32.mrb[0].mxu0
        %v6003 = vadd.f32 0.0, %v6002
        %v6004 = vpop.f32.mrb[0].mxu0
        %v6005 = vpop.f32.mrb[0].mxu0
        %v6006 = vpop.f32.mrb[0].mxu0
        %6007 = vdwg.mxu0
        %6009 = vrot.lane.b32.xlu0 %v5656, 96
        %v6010 = vpop.permute.xlu0 %6009
        %v6012 = vsel %vm833, %v5656, 0
        %v6015 = vsel %vm833, %v6010, 0
        %6017 = vmatprep.subr.bf16.mxu0 0
        %6018 = vmatpush1.bf16.xpose.msra.mxu0 %v6015
        %6019 = vmatprep.subr.bf16.mxu0 0
        %6020 = vmatpush1.bf16.xpose.msra.mxu0 0
        %6021 = vmatprep.subr.bf16.mxu0 0
        %6022 = vmatpush1.bf16.xpose.msra.mxu0 0
        %6023 = vmatprep.subr.bf16.mxu0 0
        %6024 = vmatpush1.bf16.xpose.msra.mxu0 0
        %6025 = vmatprep.subr.bf16.mxu0 0
        %6026 = vmatpush1.bf16.xpose.msra.mxu0 0
        %6027 = vmatprep.subr.bf16.mxu0 0
        %6028 = vmatpush1.bf16.xpose.msra.mxu0 0
        %6029 = vmatprep.subr.bf16.mxu0 0
        %6030 = vmatpush1.bf16.xpose.msra.mxu0 0
        %6031 = vmatprep.subr.bf16.mxu0 0
        %6032 = vmatpush1.bf16.xpose.msra.mxu0 0
        %6033 = vmatprep.subr.bf16.mxu0 0
        %6034 = vmatpush1.bf16.xpose.msra.mxu0 0
        %6035 = vmatprep.subr.bf16.mxu0 0
        %6036 = vmatpush1.bf16.xpose.msra.mxu0 0
        %6037 = vmatprep.subr.bf16.mxu0 0
        %6038 = vmatpush1.bf16.xpose.msra.mxu0 0
        %6039 = vmatprep.subr.bf16.mxu0 0
        %6040 = vmatpush1.bf16.xpose.msra.mxu0 0
        %6041 = vmatprep.subr.bf16.mxu0 0
        %6042 = vmatpush1.bf16.xpose.msra.mxu0 0
        %6043 = vmatprep.subr.bf16.mxu0 0
        %6044 = vmatpush1.bf16.xpose.msra.mxu0 0
        %6045 = vmatprep.subr.bf16.mxu0 0
        %6046 = vmatpush1.bf16.xpose.msra.mxu0 0
        %6047 = vmatprep.subr.bf16.mxu0 0
        %6048 = vmatpush1.bf16.xpose.msra.mxu0 0
        %6049 = vmatprep.mubr.bf16.mxu0 0
        %6050 = vmatmul.mubr.bf16.gmra.mrb[0].mxu0 %v6012
        %v6051 = vpop.f32.mrb[0].mxu0
        %v6052 = vadd.f32 0.0, %v6051
        %v6053 = vpop.f32.mrb[0].mxu0
        %v6054 = vpop.f32.mrb[0].mxu0
        %v6055 = vpop.f32.mrb[0].mxu0
        %6056 = vdwg.mxu0
        %6058 = vrot.lane.b32.xlu0 %v5657, 96
        %v6059 = vpop.permute.xlu0 %6058
        %v6061 = vsel %vm833, %v5657, 0
        %v6064 = vsel %vm833, %v6059, 0
        %6066 = vmatprep.subr.bf16.mxu0 0
        %6067 = vmatpush1.bf16.xpose.msra.mxu0 %v6064
        %6068 = vmatprep.subr.bf16.mxu0 0
        %6069 = vmatpush1.bf16.xpose.msra.mxu0 0
        %6070 = vmatprep.subr.bf16.mxu0 0
        %6071 = vmatpush1.bf16.xpose.msra.mxu0 0
        %6072 = vmatprep.subr.bf16.mxu0 0
        %6073 = vmatpush1.bf16.xpose.msra.mxu0 0
        %6074 = vmatprep.subr.bf16.mxu0 0
        %6075 = vmatpush1.bf16.xpose.msra.mxu0 0
        %6076 = vmatprep.subr.bf16.mxu0 0
        %6077 = vmatpush1.bf16.xpose.msra.mxu0 0
        %6078 = vmatprep.subr.bf16.mxu0 0
        %6079 = vmatpush1.bf16.xpose.msra.mxu0 0
        %6080 = vmatprep.subr.bf16.mxu0 0
        %6081 = vmatpush1.bf16.xpose.msra.mxu0 0
        %6082 = vmatprep.subr.bf16.mxu0 0
        %6083 = vmatpush1.bf16.xpose.msra.mxu0 0
        %6084 = vmatprep.subr.bf16.mxu0 0
        %6085 = vmatpush1.bf16.xpose.msra.mxu0 0
        %6086 = vmatprep.subr.bf16.mxu0 0
        %6087 = vmatpush1.bf16.xpose.msra.mxu0 0
        %6088 = vmatprep.subr.bf16.mxu0 0
        %6089 = vmatpush1.bf16.xpose.msra.mxu0 0
        %6090 = vmatprep.subr.bf16.mxu0 0
        %6091 = vmatpush1.bf16.xpose.msra.mxu0 0
        %6092 = vmatprep.subr.bf16.mxu0 0
        %6093 = vmatpush1.bf16.xpose.msra.mxu0 0
        %6094 = vmatprep.subr.bf16.mxu0 0
        %6095 = vmatpush1.bf16.xpose.msra.mxu0 0
        %6096 = vmatprep.subr.bf16.mxu0 0
        %6097 = vmatpush1.bf16.xpose.msra.mxu0 0
        %6098 = vmatprep.mubr.bf16.mxu0 0
        %6099 = vmatmul.mubr.bf16.gmra.mrb[0].mxu0 %v6061
        %v6100 = vpop.f32.mrb[0].mxu0
        %v6101 = vadd.f32 0.0, %v6100
        %v6102 = vpop.f32.mrb[0].mxu0
        %v6103 = vpop.f32.mrb[0].mxu0
        %v6104 = vpop.f32.mrb[0].mxu0
        %6105 = vdwg.mxu0
        %6107 = vrot.lane.b32.xlu0 %v5658, 96
        %v6108 = vpop.permute.xlu0 %6107
        %v6110 = vsel %vm833, %v5658, 0
        %v6113 = vsel %vm833, %v6108, 0
        %6115 = vmatprep.subr.bf16.mxu0 0
        %6116 = vmatpush1.bf16.xpose.msra.mxu0 %v6113
        %6117 = vmatprep.subr.bf16.mxu0 0
        %6118 = vmatpush1.bf16.xpose.msra.mxu0 0
        %6119 = vmatprep.subr.bf16.mxu0 0
        %6120 = vmatpush1.bf16.xpose.msra.mxu0 0
        %6121 = vmatprep.subr.bf16.mxu0 0
        %6122 = vmatpush1.bf16.xpose.msra.mxu0 0
        %6123 = vmatprep.subr.bf16.mxu0 0
        %6124 = vmatpush1.bf16.xpose.msra.mxu0 0
        %6125 = vmatprep.subr.bf16.mxu0 0
        %6126 = vmatpush1.bf16.xpose.msra.mxu0 0
        %6127 = vmatprep.subr.bf16.mxu0 0
        %6128 = vmatpush1.bf16.xpose.msra.mxu0 0
        %6129 = vmatprep.subr.bf16.mxu0 0
        %6130 = vmatpush1.bf16.xpose.msra.mxu0 0
        %6131 = vmatprep.subr.bf16.mxu0 0
        %6132 = vmatpush1.bf16.xpose.msra.mxu0 0
        %6133 = vmatprep.subr.bf16.mxu0 0
        %6134 = vmatpush1.bf16.xpose.msra.mxu0 0
        %6135 = vmatprep.subr.bf16.mxu0 0
        %6136 = vmatpush1.bf16.xpose.msra.mxu0 0
        %6137 = vmatprep.subr.bf16.mxu0 0
        %6138 = vmatpush1.bf16.xpose.msra.mxu0 0
        %6139 = vmatprep.subr.bf16.mxu0 0
        %6140 = vmatpush1.bf16.xpose.msra.mxu0 0
        %6141 = vmatprep.subr.bf16.mxu0 0
        %6142 = vmatpush1.bf16.xpose.msra.mxu0 0
        %6143 = vmatprep.subr.bf16.mxu0 0
        %6144 = vmatpush1.bf16.xpose.msra.mxu0 0
        %6145 = vmatprep.subr.bf16.mxu0 0
        %6146 = vmatpush1.bf16.xpose.msra.mxu0 0
        %6147 = vmatprep.mubr.bf16.mxu0 0
        %6148 = vmatmul.mubr.bf16.gmra.mrb[0].mxu0 %v6110
        %v6149 = vpop.f32.mrb[0].mxu0
        %v6150 = vadd.f32 0.0, %v6149
        %v6151 = vpop.f32.mrb[0].mxu0
        %v6152 = vpop.f32.mrb[0].mxu0
        %v6153 = vpop.f32.mrb[0].mxu0
        %6154 = vdwg.mxu0
        %6156 = vrot.lane.b32.xlu0 %v5659, 96
        %v6157 = vpop.permute.xlu0 %6156
        %v6159 = vsel %vm833, %v5659, 0
        %v6162 = vsel %vm833, %v6157, 0
        %6164 = vmatprep.subr.bf16.mxu0 0
        %6165 = vmatpush1.bf16.xpose.msra.mxu0 %v6162
        %6166 = vmatprep.subr.bf16.mxu0 0
        %6167 = vmatpush1.bf16.xpose.msra.mxu0 0
        %6168 = vmatprep.subr.bf16.mxu0 0
        %6169 = vmatpush1.bf16.xpose.msra.mxu0 0
        %6170 = vmatprep.subr.bf16.mxu0 0
        %6171 = vmatpush1.bf16.xpose.msra.mxu0 0
        %6172 = vmatprep.subr.bf16.mxu0 0
        %6173 = vmatpush1.bf16.xpose.msra.mxu0 0
        %6174 = vmatprep.subr.bf16.mxu0 0
        %6175 = vmatpush1.bf16.xpose.msra.mxu0 0
        %6176 = vmatprep.subr.bf16.mxu0 0
        %6177 = vmatpush1.bf16.xpose.msra.mxu0 0
        %6178 = vmatprep.subr.bf16.mxu0 0
        %6179 = vmatpush1.bf16.xpose.msra.mxu0 0
        %6180 = vmatprep.subr.bf16.mxu0 0
        %6181 = vmatpush1.bf16.xpose.msra.mxu0 0
        %6182 = vmatprep.subr.bf16.mxu0 0
        %6183 = vmatpush1.bf16.xpose.msra.mxu0 0
        %6184 = vmatprep.subr.bf16.mxu0 0
        %6185 = vmatpush1.bf16.xpose.msra.mxu0 0
        %6186 = vmatprep.subr.bf16.mxu0 0
        %6187 = vmatpush1.bf16.xpose.msra.mxu0 0
        %6188 = vmatprep.subr.bf16.mxu0 0
        %6189 = vmatpush1.bf16.xpose.msra.mxu0 0
        %6190 = vmatprep.subr.bf16.mxu0 0
        %6191 = vmatpush1.bf16.xpose.msra.mxu0 0
        %6192 = vmatprep.subr.bf16.mxu0 0
        %6193 = vmatpush1.bf16.xpose.msra.mxu0 0
        %6194 = vmatprep.subr.bf16.mxu0 0
        %6195 = vmatpush1.bf16.xpose.msra.mxu0 0
        %6196 = vmatprep.mubr.bf16.mxu0 0
        %6197 = vmatmul.mubr.bf16.gmra.mrb[0].mxu0 %v6159
        %v6198 = vpop.f32.mrb[0].mxu0
        %v6199 = vadd.f32 0.0, %v6198
        %v6200 = vpop.f32.mrb[0].mxu0
        %v6201 = vpop.f32.mrb[0].mxu0
        %v6202 = vpop.f32.mrb[0].mxu0
        %6203 = vdwg.mxu0
        %6205 = vrot.lane.b32.xlu0 %v5660, 96
        %v6206 = vpop.permute.xlu0 %6205
        %v6208 = vsel %vm833, %v5660, 0
        %v6211 = vsel %vm833, %v6206, 0
        %6213 = vmatprep.subr.bf16.mxu0 0
        %6214 = vmatpush1.bf16.xpose.msra.mxu0 %v6211
        %6215 = vmatprep.subr.bf16.mxu0 0
        %6216 = vmatpush1.bf16.xpose.msra.mxu0 0
        %6217 = vmatprep.subr.bf16.mxu0 0
        %6218 = vmatpush1.bf16.xpose.msra.mxu0 0
        %6219 = vmatprep.subr.bf16.mxu0 0
        %6220 = vmatpush1.bf16.xpose.msra.mxu0 0
        %6221 = vmatprep.subr.bf16.mxu0 0
        %6222 = vmatpush1.bf16.xpose.msra.mxu0 0
        %6223 = vmatprep.subr.bf16.mxu0 0
        %6224 = vmatpush1.bf16.xpose.msra.mxu0 0
        %6225 = vmatprep.subr.bf16.mxu0 0
        %6226 = vmatpush1.bf16.xpose.msra.mxu0 0
        %6227 = vmatprep.subr.bf16.mxu0 0
        %6228 = vmatpush1.bf16.xpose.msra.mxu0 0
        %6229 = vmatprep.subr.bf16.mxu0 0
        %6230 = vmatpush1.bf16.xpose.msra.mxu0 0
        %6231 = vmatprep.subr.bf16.mxu0 0
        %6232 = vmatpush1.bf16.xpose.msra.mxu0 0
        %6233 = vmatprep.subr.bf16.mxu0 0
        %6234 = vmatpush1.bf16.xpose.msra.mxu0 0
        %6235 = vmatprep.subr.bf16.mxu0 0
        %6236 = vmatpush1.bf16.xpose.msra.mxu0 0
        %6237 = vmatprep.subr.bf16.mxu0 0
        %6238 = vmatpush1.bf16.xpose.msra.mxu0 0
        %6239 = vmatprep.subr.bf16.mxu0 0
        %6240 = vmatpush1.bf16.xpose.msra.mxu0 0
        %6241 = vmatprep.subr.bf16.mxu0 0
        %6242 = vmatpush1.bf16.xpose.msra.mxu0 0
        %6243 = vmatprep.subr.bf16.mxu0 0
        %6244 = vmatpush1.bf16.xpose.msra.mxu0 0
        %6245 = vmatprep.mubr.bf16.mxu0 0
        %6246 = vmatmul.mubr.bf16.gmra.mrb[0].mxu0 %v6208
        %v6247 = vpop.f32.mrb[0].mxu0
        %v6248 = vadd.f32 0.0, %v6247
        %v6249 = vpop.f32.mrb[0].mxu0
        %v6250 = vpop.f32.mrb[0].mxu0
        %v6251 = vpop.f32.mrb[0].mxu0
        %6252 = vdwg.mxu0
        %6254 = vrot.lane.b32.xlu0 %v5661, 96
        %v6255 = vpop.permute.xlu0 %6254
        %v6257 = vsel %vm833, %v5661, 0
        %v6260 = vsel %vm833, %v6255, 0
        %6262 = vmatprep.subr.bf16.mxu0 0
        %6263 = vmatpush1.bf16.xpose.msra.mxu0 %v6260
        %6264 = vmatprep.subr.bf16.mxu0 0
        %6265 = vmatpush1.bf16.xpose.msra.mxu0 0
        %6266 = vmatprep.subr.bf16.mxu0 0
        %6267 = vmatpush1.bf16.xpose.msra.mxu0 0
        %6268 = vmatprep.subr.bf16.mxu0 0
        %6269 = vmatpush1.bf16.xpose.msra.mxu0 0
        %6270 = vmatprep.subr.bf16.mxu0 0
        %6271 = vmatpush1.bf16.xpose.msra.mxu0 0
        %6272 = vmatprep.subr.bf16.mxu0 0
        %6273 = vmatpush1.bf16.xpose.msra.mxu0 0
        %6274 = vmatprep.subr.bf16.mxu0 0
        %6275 = vmatpush1.bf16.xpose.msra.mxu0 0
        %6276 = vmatprep.subr.bf16.mxu0 0
        %6277 = vmatpush1.bf16.xpose.msra.mxu0 0
        %6278 = vmatprep.subr.bf16.mxu0 0
        %6279 = vmatpush1.bf16.xpose.msra.mxu0 0
        %6280 = vmatprep.subr.bf16.mxu0 0
        %6281 = vmatpush1.bf16.xpose.msra.mxu0 0
        %6282 = vmatprep.subr.bf16.mxu0 0
        %6283 = vmatpush1.bf16.xpose.msra.mxu0 0
        %6284 = vmatprep.subr.bf16.mxu0 0
        %6285 = vmatpush1.bf16.xpose.msra.mxu0 0
        %6286 = vmatprep.subr.bf16.mxu0 0
        %6287 = vmatpush1.bf16.xpose.msra.mxu0 0
        %6288 = vmatprep.subr.bf16.mxu0 0
        %6289 = vmatpush1.bf16.xpose.msra.mxu0 0
        %6290 = vmatprep.subr.bf16.mxu0 0
        %6291 = vmatpush1.bf16.xpose.msra.mxu0 0
        %6292 = vmatprep.subr.bf16.mxu0 0
        %6293 = vmatpush1.bf16.xpose.msra.mxu0 0
        %6294 = vmatprep.mubr.bf16.mxu0 0
        %6295 = vmatmul.mubr.bf16.gmra.mrb[0].mxu0 %v6257
        %v6296 = vpop.f32.mrb[0].mxu0
        %v6297 = vadd.f32 0.0, %v6296
        %v6298 = vpop.f32.mrb[0].mxu0
        %v6299 = vpop.f32.mrb[0].mxu0
        %v6300 = vpop.f32.mrb[0].mxu0
        %6301 = vdwg.mxu0
        %6303 = vrot.lane.b32.xlu0 %v5662, 96
        %v6304 = vpop.permute.xlu0 %6303
        %v6306 = vsel %vm833, %v5662, 0
        %v6309 = vsel %vm833, %v6304, 0
        %6311 = vmatprep.subr.bf16.mxu0 0
        %6312 = vmatpush1.bf16.xpose.msra.mxu0 %v6309
        %6313 = vmatprep.subr.bf16.mxu0 0
        %6314 = vmatpush1.bf16.xpose.msra.mxu0 0
        %6315 = vmatprep.subr.bf16.mxu0 0
        %6316 = vmatpush1.bf16.xpose.msra.mxu0 0
        %6317 = vmatprep.subr.bf16.mxu0 0
        %6318 = vmatpush1.bf16.xpose.msra.mxu0 0
        %6319 = vmatprep.subr.bf16.mxu0 0
        %6320 = vmatpush1.bf16.xpose.msra.mxu0 0
        %6321 = vmatprep.subr.bf16.mxu0 0
        %6322 = vmatpush1.bf16.xpose.msra.mxu0 0
        %6323 = vmatprep.subr.bf16.mxu0 0
        %6324 = vmatpush1.bf16.xpose.msra.mxu0 0
        %6325 = vmatprep.subr.bf16.mxu0 0
        %6326 = vmatpush1.bf16.xpose.msra.mxu0 0
        %6327 = vmatprep.subr.bf16.mxu0 0
        %6328 = vmatpush1.bf16.xpose.msra.mxu0 0
        %6329 = vmatprep.subr.bf16.mxu0 0
        %6330 = vmatpush1.bf16.xpose.msra.mxu0 0
        %6331 = vmatprep.subr.bf16.mxu0 0
        %6332 = vmatpush1.bf16.xpose.msra.mxu0 0
        %6333 = vmatprep.subr.bf16.mxu0 0
        %6334 = vmatpush1.bf16.xpose.msra.mxu0 0
        %6335 = vmatprep.subr.bf16.mxu0 0
        %6336 = vmatpush1.bf16.xpose.msra.mxu0 0
        %6337 = vmatprep.subr.bf16.mxu0 0
        %6338 = vmatpush1.bf16.xpose.msra.mxu0 0
        %6339 = vmatprep.subr.bf16.mxu0 0
        %6340 = vmatpush1.bf16.xpose.msra.mxu0 0
        %6341 = vmatprep.subr.bf16.mxu0 0
        %6342 = vmatpush1.bf16.xpose.msra.mxu0 0
        %6343 = vmatprep.mubr.bf16.mxu0 0
        %6344 = vmatmul.mubr.bf16.gmra.mrb[0].mxu0 %v6306
        %v6345 = vpop.f32.mrb[0].mxu0
        %v6346 = vadd.f32 0.0, %v6345
        %v6347 = vpop.f32.mrb[0].mxu0
        %v6348 = vpop.f32.mrb[0].mxu0
        %v6349 = vpop.f32.mrb[0].mxu0
        %6350 = vdwg.mxu0
        %6352 = vrot.lane.b32.xlu0 %v5663, 96
        %v6353 = vpop.permute.xlu0 %6352
        %v6355 = vsel %vm833, %v5663, 0
        %v6358 = vsel %vm833, %v6353, 0
        %6360 = vmatprep.subr.bf16.mxu0 0
        %6361 = vmatpush1.bf16.xpose.msra.mxu0 %v6358
        %6362 = vmatprep.subr.bf16.mxu0 0
        %6363 = vmatpush1.bf16.xpose.msra.mxu0 0
        %6364 = vmatprep.subr.bf16.mxu0 0
        %6365 = vmatpush1.bf16.xpose.msra.mxu0 0
        %6366 = vmatprep.subr.bf16.mxu0 0
        %6367 = vmatpush1.bf16.xpose.msra.mxu0 0
        %6368 = vmatprep.subr.bf16.mxu0 0
        %6369 = vmatpush1.bf16.xpose.msra.mxu0 0
        %6370 = vmatprep.subr.bf16.mxu0 0
        %6371 = vmatpush1.bf16.xpose.msra.mxu0 0
        %6372 = vmatprep.subr.bf16.mxu0 0
        %6373 = vmatpush1.bf16.xpose.msra.mxu0 0
        %6374 = vmatprep.subr.bf16.mxu0 0
        %6375 = vmatpush1.bf16.xpose.msra.mxu0 0
        %6376 = vmatprep.subr.bf16.mxu0 0
        %6377 = vmatpush1.bf16.xpose.msra.mxu0 0
        %6378 = vmatprep.subr.bf16.mxu0 0
        %6379 = vmatpush1.bf16.xpose.msra.mxu0 0
        %6380 = vmatprep.subr.bf16.mxu0 0
        %6381 = vmatpush1.bf16.xpose.msra.mxu0 0
        %6382 = vmatprep.subr.bf16.mxu0 0
        %6383 = vmatpush1.bf16.xpose.msra.mxu0 0
        %6384 = vmatprep.subr.bf16.mxu0 0
        %6385 = vmatpush1.bf16.xpose.msra.mxu0 0
        %6386 = vmatprep.subr.bf16.mxu0 0
        %6387 = vmatpush1.bf16.xpose.msra.mxu0 0
        %6388 = vmatprep.subr.bf16.mxu0 0
        %6389 = vmatpush1.bf16.xpose.msra.mxu0 0
        %6390 = vmatprep.subr.bf16.mxu0 0
        %6391 = vmatpush1.bf16.xpose.msra.mxu0 0
        %6392 = vmatprep.mubr.bf16.mxu0 0
        %6393 = vmatmul.mubr.bf16.gmra.mrb[0].mxu0 %v6355
        %v6394 = vpop.f32.mrb[0].mxu0
        %v6395 = vadd.f32 0.0, %v6394
        %v6396 = vpop.f32.mrb[0].mxu0
        %v6397 = vpop.f32.mrb[0].mxu0
        %v6398 = vpop.f32.mrb[0].mxu0
        %6399 = vdwg.mxu0
        %6401 = vrot.lane.b32.xlu0 %v5664, 96
        %v6402 = vpop.permute.xlu0 %6401
        %v6404 = vsel %vm833, %v5664, 0
        %v6407 = vsel %vm833, %v6402, 0
        %6409 = vmatprep.subr.bf16.mxu0 0
        %6410 = vmatpush1.bf16.xpose.msra.mxu0 %v6407
        %6411 = vmatprep.subr.bf16.mxu0 0
        %6412 = vmatpush1.bf16.xpose.msra.mxu0 0
        %6413 = vmatprep.subr.bf16.mxu0 0
        %6414 = vmatpush1.bf16.xpose.msra.mxu0 0
        %6415 = vmatprep.subr.bf16.mxu0 0
        %6416 = vmatpush1.bf16.xpose.msra.mxu0 0
        %6417 = vmatprep.subr.bf16.mxu0 0
        %6418 = vmatpush1.bf16.xpose.msra.mxu0 0
        %6419 = vmatprep.subr.bf16.mxu0 0
        %6420 = vmatpush1.bf16.xpose.msra.mxu0 0
        %6421 = vmatprep.subr.bf16.mxu0 0
        %6422 = vmatpush1.bf16.xpose.msra.mxu0 0
        %6423 = vmatprep.subr.bf16.mxu0 0
        %6424 = vmatpush1.bf16.xpose.msra.mxu0 0
        %6425 = vmatprep.subr.bf16.mxu0 0
        %6426 = vmatpush1.bf16.xpose.msra.mxu0 0
        %6427 = vmatprep.subr.bf16.mxu0 0
        %6428 = vmatpush1.bf16.xpose.msra.mxu0 0
        %6429 = vmatprep.subr.bf16.mxu0 0
        %6430 = vmatpush1.bf16.xpose.msra.mxu0 0
        %6431 = vmatprep.subr.bf16.mxu0 0
        %6432 = vmatpush1.bf16.xpose.msra.mxu0 0
        %6433 = vmatprep.subr.bf16.mxu0 0
        %6434 = vmatpush1.bf16.xpose.msra.mxu0 0
        %6435 = vmatprep.subr.bf16.mxu0 0
        %6436 = vmatpush1.bf16.xpose.msra.mxu0 0
        %6437 = vmatprep.subr.bf16.mxu0 0
        %6438 = vmatpush1.bf16.xpose.msra.mxu0 0
        %6439 = vmatprep.subr.bf16.mxu0 0
        %6440 = vmatpush1.bf16.xpose.msra.mxu0 0
        %6441 = vmatprep.mubr.bf16.mxu0 0
        %6442 = vmatmul.mubr.bf16.gmra.mrb[0].mxu0 %v6404
        %v6443 = vpop.f32.mrb[0].mxu0
        %v6444 = vadd.f32 0.0, %v6443
        %v6445 = vpop.f32.mrb[0].mxu0
        %v6446 = vpop.f32.mrb[0].mxu0
        %v6447 = vpop.f32.mrb[0].mxu0
        %6448 = vdwg.mxu0
        %v6449 = vmul.f32 %v5709, 0.25
        %v6450 = vmul.f32 %v5758, 0.25
        %v6451 = vmul.f32 %v5807, 0.25
        %v6452 = vmul.f32 %v5856, 0.25
        %v6453 = vmul.f32 %v5905, 0.25
        %v6454 = vmul.f32 %v5954, 0.25
        %v6455 = vmul.f32 %v6003, 0.25
        %v6456 = vmul.f32 %v6052, 0.25
        %v6457 = vmul.f32 %v6101, 0.25
        %v6458 = vmul.f32 %v6150, 0.25
        %v6459 = vmul.f32 %v6199, 0.25
        %v6460 = vmul.f32 %v6248, 0.25
        %v6461 = vmul.f32 %v6297, 0.25
        %v6462 = vmul.f32 %v6346, 0.25
        %v6463 = vmul.f32 %v6395, 0.25
        %v6464 = vmul.f32 %v6444, 0.25
        %v6465 = vadd.f32 %v6449, %v662
        %v6466 = vadd.f32 %v6450, %v662
        %v6467 = vadd.f32 %v6451, %v662
        %v6468 = vadd.f32 %v6452, %v662
        %v6469 = vadd.f32 %v6453, %v662
        %v6470 = vadd.f32 %v6454, %v662
        %v6471 = vadd.f32 %v6455, %v662
        %v6472 = vadd.f32 %v6456, %v662
        %v6473 = vadd.f32 %v6457, %v662
        %v6474 = vadd.f32 %v6458, %v662
        %v6475 = vadd.f32 %v6459, %v662
        %v6476 = vadd.f32 %v6460, %v662
        %v6477 = vadd.f32 %v6461, %v662
        %v6478 = vadd.f32 %v6462, %v662
        %v6479 = vadd.f32 %v6463, %v662
        %v6480 = vadd.f32 %v6464, %v662
        %v6481 = vsel %vm1647, %v6465, -inf
        %6482 = vmax.xlane.f32.xlu0 %v6481
        %v6483 = vpop.xlane.xlu0 %6482
        %v6484 = vsel %vm1647, %v6466, -inf
        %6485 = vmax.xlane.f32.xlu0 %v6484
        %v6486 = vpop.xlane.xlu0 %6485
        %v6487 = vsel %vm1647, %v6467, -inf
        %6488 = vmax.xlane.f32.xlu0 %v6487
        %v6489 = vpop.xlane.xlu0 %6488
        %v6490 = vsel %vm1647, %v6468, -inf
        %6491 = vmax.xlane.f32.xlu0 %v6490
        %v6492 = vpop.xlane.xlu0 %6491
        %v6493 = vsel %vm1647, %v6469, -inf
        %6494 = vmax.xlane.f32.xlu0 %v6493
        %v6495 = vpop.xlane.xlu0 %6494
        %v6496 = vsel %vm1647, %v6470, -inf
        %6497 = vmax.xlane.f32.xlu0 %v6496
        %v6498 = vpop.xlane.xlu0 %6497
        %v6499 = vsel %vm1647, %v6471, -inf
        %6500 = vmax.xlane.f32.xlu0 %v6499
        %v6501 = vpop.xlane.xlu0 %6500
        %v6502 = vsel %vm1647, %v6472, -inf
        %6503 = vmax.xlane.f32.xlu0 %v6502
        %v6504 = vpop.xlane.xlu0 %6503
        %v6505 = vsel %vm1647, %v6473, -inf
        %6506 = vmax.xlane.f32.xlu0 %v6505
        %v6507 = vpop.xlane.xlu0 %6506
        %v6508 = vsel %vm1647, %v6474, -inf
        %6509 = vmax.xlane.f32.xlu0 %v6508
        %v6510 = vpop.xlane.xlu0 %6509
        %v6511 = vsel %vm1647, %v6475, -inf
        %6512 = vmax.xlane.f32.xlu0 %v6511
        %v6513 = vpop.xlane.xlu0 %6512
        %v6514 = vsel %vm1647, %v6476, -inf
        %6515 = vmax.xlane.f32.xlu0 %v6514
        %v6516 = vpop.xlane.xlu0 %6515
        %v6517 = vsel %vm1647, %v6477, -inf
        %6518 = vmax.xlane.f32.xlu0 %v6517
        %v6519 = vpop.xlane.xlu0 %6518
        %v6520 = vsel %vm1647, %v6478, -inf
        %6521 = vmax.xlane.f32.xlu0 %v6520
        %v6522 = vpop.xlane.xlu0 %6521
        %v6523 = vsel %vm1647, %v6479, -inf
        %6524 = vmax.xlane.f32.xlu0 %v6523
        %v6525 = vpop.xlane.xlu0 %6524
        %v6526 = vsel %vm1647, %v6480, -inf
        %6527 = vmax.xlane.f32.xlu0 %v6526
        %v6528 = vpop.xlane.xlu0 %6527
        %v6529 = vsub.f32 %v6465, %v6483
        %v6530 = vsub.f32 %v6466, %v6486
        %v6531 = vsub.f32 %v6467, %v6489
        %v6532 = vsub.f32 %v6468, %v6492
        %v6533 = vsub.f32 %v6469, %v6495
        %v6534 = vsub.f32 %v6470, %v6498
        %v6535 = vsub.f32 %v6471, %v6501
        %v6536 = vsub.f32 %v6472, %v6504
        %v6537 = vsub.f32 %v6473, %v6507
        %v6538 = vsub.f32 %v6474, %v6510
        %v6539 = vsub.f32 %v6475, %v6513
        %v6540 = vsub.f32 %v6476, %v6516
        %v6541 = vsub.f32 %v6477, %v6519
        %v6542 = vsub.f32 %v6478, %v6522
        %v6543 = vsub.f32 %v6479, %v6525
        %v6544 = vsub.f32 %v6480, %v6528
        %v6545 = vmul.f32 %v6529, 1.442695
        %v6546 = vpow.pop %v6545
        %v6547 = vmul.f32 %v6530, 1.442695
        %v6548 = vpow.pop %v6547
        %v6549 = vmul.f32 %v6531, 1.442695
        %v6550 = vpow.pop %v6549
        %v6551 = vmul.f32 %v6532, 1.442695
        %v6552 = vpow.pop %v6551
        %v6553 = vmul.f32 %v6533, 1.442695
        %v6554 = vpow.pop %v6553
        %v6555 = vmul.f32 %v6534, 1.442695
        %v6556 = vpow.pop %v6555
        %v6557 = vmul.f32 %v6535, 1.442695
        %v6558 = vpow.pop %v6557
        %v6559 = vmul.f32 %v6536, 1.442695
        %v6560 = vpow.pop %v6559
        %v6561 = vmul.f32 %v6537, 1.442695
        %v6562 = vpow.pop %v6561
        %v6563 = vmul.f32 %v6538, 1.442695
        %v6564 = vpow.pop %v6563
        %v6565 = vmul.f32 %v6539, 1.442695
        %v6566 = vpow.pop %v6565
        %v6567 = vmul.f32 %v6540, 1.442695
        %v6568 = vpow.pop %v6567
        %v6569 = vmul.f32 %v6541, 1.442695
        %v6570 = vpow.pop %v6569
        %v6571 = vmul.f32 %v6542, 1.442695
        %v6572 = vpow.pop %v6571
        %v6573 = vmul.f32 %v6543, 1.442695
        %v6574 = vpow.pop %v6573
        %v6575 = vmul.f32 %v6544, 1.442695
        %v6576 = vpow.pop %v6575
        %v6577 = vsel %vm1647, %v6546, 0.0
        %6578 = vadd.xlane.f32.xlu0 %v6577
        %v6579 = vpop.xlane.xlu0 %6578
        %v6580 = vsel %vm1647, %v6548, 0.0
        %6581 = vadd.xlane.f32.xlu0 %v6580
        %v6582 = vpop.xlane.xlu0 %6581
        %v6583 = vsel %vm1647, %v6550, 0.0
        %6584 = vadd.xlane.f32.xlu0 %v6583
        %v6585 = vpop.xlane.xlu0 %6584
        %v6586 = vsel %vm1647, %v6552, 0.0
        %6587 = vadd.xlane.f32.xlu0 %v6586
        %v6588 = vpop.xlane.xlu0 %6587
        %v6589 = vsel %vm1647, %v6554, 0.0
        %6590 = vadd.xlane.f32.xlu0 %v6589
        %v6591 = vpop.xlane.xlu0 %6590
        %v6592 = vsel %vm1647, %v6556, 0.0
        %6593 = vadd.xlane.f32.xlu0 %v6592
        %v6594 = vpop.xlane.xlu0 %6593
        %v6595 = vsel %vm1647, %v6558, 0.0
        %6596 = vadd.xlane.f32.xlu0 %v6595
        %v6597 = vpop.xlane.xlu0 %6596
        %v6598 = vsel %vm1647, %v6560, 0.0
        %6599 = vadd.xlane.f32.xlu0 %v6598
        %v6600 = vpop.xlane.xlu0 %6599
        %v6601 = vsel %vm1647, %v6562, 0.0
        %6602 = vadd.xlane.f32.xlu0 %v6601
        %v6603 = vpop.xlane.xlu0 %6602
        %v6604 = vsel %vm1647, %v6564, 0.0
        %6605 = vadd.xlane.f32.xlu0 %v6604
        %v6606 = vpop.xlane.xlu0 %6605
        %v6607 = vsel %vm1647, %v6566, 0.0
        %6608 = vadd.xlane.f32.xlu0 %v6607
        %v6609 = vpop.xlane.xlu0 %6608
        %v6610 = vsel %vm1647, %v6568, 0.0
        %6611 = vadd.xlane.f32.xlu0 %v6610
        %v6612 = vpop.xlane.xlu0 %6611
        %v6613 = vsel %vm1647, %v6570, 0.0
        %6614 = vadd.xlane.f32.xlu0 %v6613
        %v6615 = vpop.xlane.xlu0 %6614
        %v6616 = vsel %vm1647, %v6572, 0.0
        %6617 = vadd.xlane.f32.xlu0 %v6616
        %v6618 = vpop.xlane.xlu0 %6617
        %v6619 = vsel %vm1647, %v6574, 0.0
        %6620 = vadd.xlane.f32.xlu0 %v6619
        %v6621 = vpop.xlane.xlu0 %6620
        %v6622 = vsel %vm1647, %v6576, 0.0
        %6623 = vadd.xlane.f32.xlu0 %v6622
        %v6624 = vpop.xlane.xlu0 %6623
        %v6625 = vrcp.pop %v6579
        %v6626 = vrcp.pop %v6582
        %v6627 = vrcp.pop %v6585
        %v6628 = vrcp.pop %v6588
        %v6629 = vrcp.pop %v6591
        %v6630 = vrcp.pop %v6594
        %v6631 = vrcp.pop %v6597
        %v6632 = vrcp.pop %v6600
        %v6633 = vrcp.pop %v6603
        %v6634 = vrcp.pop %v6606
        %v6635 = vrcp.pop %v6609
        %v6636 = vrcp.pop %v6612
        %v6637 = vrcp.pop %v6615
        %v6638 = vrcp.pop %v6618
        %v6639 = vrcp.pop %v6621
        %v6640 = vrcp.pop %v6624
        %v6641 = vmul.f32 %v6546, %v6625
        %v6642 = vmul.f32 %v6548, %v6626
        %v6643 = vmul.f32 %v6550, %v6627
        %v6644 = vmul.f32 %v6552, %v6628
        %v6645 = vmul.f32 %v6554, %v6629
        %v6646 = vmul.f32 %v6556, %v6630
        %v6647 = vmul.f32 %v6558, %v6631
        %v6648 = vmul.f32 %v6560, %v6632
        %v6649 = vmul.f32 %v6562, %v6633
        %v6650 = vmul.f32 %v6564, %v6634
        %v6651 = vmul.f32 %v6566, %v6635
        %v6652 = vmul.f32 %v6568, %v6636
        %v6653 = vmul.f32 %v6570, %v6637
        %v6654 = vmul.f32 %v6572, %v6638
        %v6655 = vmul.f32 %v6574, %v6639
        %v6656 = vmul.f32 %v6576, %v6640
        %v6657 = vpack.c.bf16 %v6641, %v6641
        %v6658 = vpack.c.bf16 %v6642, %v6642
        %v6659 = vpack.c.bf16 %v6643, %v6643
        %v6660 = vpack.c.bf16 %v6644, %v6644
        %v6661 = vpack.c.bf16 %v6645, %v6645
        %v6662 = vpack.c.bf16 %v6646, %v6646
        %v6663 = vpack.c.bf16 %v6647, %v6647
        %v6664 = vpack.c.bf16 %v6648, %v6648
        %v6665 = vpack.c.bf16 %v6649, %v6649
        %v6666 = vpack.c.bf16 %v6650, %v6650
        %v6667 = vpack.c.bf16 %v6651, %v6651
        %v6668 = vpack.c.bf16 %v6652, %v6652
        %v6669 = vpack.c.bf16 %v6653, %v6653
        %v6670 = vpack.c.bf16 %v6654, %v6654
        %v6671 = vpack.c.bf16 %v6655, %v6655
        %v6672 = vpack.c.bf16 %v6656, %v6656
        %6673 = vrot.lane.b32.xlu0 %v5649, 64
        %v6674 = vpop.permute.xlu0 %6673
        %v6676 = vsel %vm1647, %v6657, 0
        %v6679 = vsel %vm1845, %v6674, 0
        %6681 = vmatprep.subr.bf16.mxu0 0
        %6682 = vmatpush1.bf16.msra.mxu0 %v6679
        %6683 = vmatprep.subr.bf16.mxu0 0
        %6684 = vmatpush1.bf16.msra.mxu0 0
        %6685 = vmatprep.subr.bf16.mxu0 0
        %6686 = vmatpush1.bf16.msra.mxu0 0
        %6687 = vmatprep.subr.bf16.mxu0 0
        %6688 = vmatpush1.bf16.msra.mxu0 0
        %6689 = vmatprep.subr.bf16.mxu0 0
        %6690 = vmatpush1.bf16.msra.mxu0 0
        %6691 = vmatprep.subr.bf16.mxu0 0
        %6692 = vmatpush1.bf16.msra.mxu0 0
        %6693 = vmatprep.subr.bf16.mxu0 0
        %6694 = vmatpush1.bf16.msra.mxu0 0
        %6695 = vmatprep.subr.bf16.mxu0 0
        %6696 = vmatpush1.bf16.msra.mxu0 0
        %6697 = vmatprep.subr.bf16.mxu0 0
        %6698 = vmatpush1.bf16.msra.mxu0 0
        %6699 = vmatprep.subr.bf16.mxu0 0
        %6700 = vmatpush1.bf16.msra.mxu0 0
        %6701 = vmatprep.subr.bf16.mxu0 0
        %6702 = vmatpush1.bf16.msra.mxu0 0
        %6703 = vmatprep.subr.bf16.mxu0 0
        %6704 = vmatpush1.bf16.msra.mxu0 0
        %6705 = vmatprep.subr.bf16.mxu0 0
        %6706 = vmatpush1.bf16.msra.mxu0 0
        %6707 = vmatprep.subr.bf16.mxu0 0
        %6708 = vmatpush1.bf16.msra.mxu0 0
        %6709 = vmatprep.subr.bf16.mxu0 0
        %6710 = vmatpush1.bf16.msra.mxu0 0
        %6711 = vmatprep.subr.bf16.mxu0 0
        %6712 = vmatpush1.bf16.msra.mxu0 0
        %6713 = vmatprep.mubr.bf16.mxu0 0
        %6714 = vmatmul.mubr.bf16.gmra.mrb[0].mxu0 %v6676
        %v6715 = vpop.f32.mrb[0].mxu0
        %v6716 = vadd.f32 0.0, %v6715
        %v6717 = vpop.f32.mrb[0].mxu0
        %v6718 = vpop.f32.mrb[0].mxu0
        %v6719 = vpop.f32.mrb[0].mxu0
        %6720 = vdwg.mxu0
        %6721 = vrot.lane.b32.xlu0 %v5650, 64
        %v6722 = vpop.permute.xlu0 %6721
        %v6724 = vsel %vm1647, %v6658, 0
        %v6727 = vsel %vm1845, %v6722, 0
        %6729 = vmatprep.subr.bf16.mxu0 0
        %6730 = vmatpush1.bf16.msra.mxu0 %v6727
        %6731 = vmatprep.subr.bf16.mxu0 0
        %6732 = vmatpush1.bf16.msra.mxu0 0
        %6733 = vmatprep.subr.bf16.mxu0 0
        %6734 = vmatpush1.bf16.msra.mxu0 0
        %6735 = vmatprep.subr.bf16.mxu0 0
        %6736 = vmatpush1.bf16.msra.mxu0 0
        %6737 = vmatprep.subr.bf16.mxu0 0
        %6738 = vmatpush1.bf16.msra.mxu0 0
        %6739 = vmatprep.subr.bf16.mxu0 0
        %6740 = vmatpush1.bf16.msra.mxu0 0
        %6741 = vmatprep.subr.bf16.mxu0 0
        %6742 = vmatpush1.bf16.msra.mxu0 0
        %6743 = vmatprep.subr.bf16.mxu0 0
        %6744 = vmatpush1.bf16.msra.mxu0 0
        %6745 = vmatprep.subr.bf16.mxu0 0
        %6746 = vmatpush1.bf16.msra.mxu0 0
        %6747 = vmatprep.subr.bf16.mxu0 0
        %6748 = vmatpush1.bf16.msra.mxu0 0
        %6749 = vmatprep.subr.bf16.mxu0 0
        %6750 = vmatpush1.bf16.msra.mxu0 0
        %6751 = vmatprep.subr.bf16.mxu0 0
        %6752 = vmatpush1.bf16.msra.mxu0 0
        %6753 = vmatprep.subr.bf16.mxu0 0
        %6754 = vmatpush1.bf16.msra.mxu0 0
        %6755 = vmatprep.subr.bf16.mxu0 0
        %6756 = vmatpush1.bf16.msra.mxu0 0
        %6757 = vmatprep.subr.bf16.mxu0 0
        %6758 = vmatpush1.bf16.msra.mxu0 0
        %6759 = vmatprep.subr.bf16.mxu0 0
        %6760 = vmatpush1.bf16.msra.mxu0 0
        %6761 = vmatprep.mubr.bf16.mxu0 0
        %6762 = vmatmul.mubr.bf16.gmra.mrb[0].mxu0 %v6724
        %v6763 = vpop.f32.mrb[0].mxu0
        %v6764 = vadd.f32 0.0, %v6763
        %v6765 = vpop.f32.mrb[0].mxu0
        %v6766 = vpop.f32.mrb[0].mxu0
        %v6767 = vpop.f32.mrb[0].mxu0
        %6768 = vdwg.mxu0
        %6769 = vrot.lane.b32.xlu0 %v5651, 64
        %v6770 = vpop.permute.xlu0 %6769
        %v6772 = vsel %vm1647, %v6659, 0
        %v6775 = vsel %vm1845, %v6770, 0
        %6777 = vmatprep.subr.bf16.mxu0 0
        %6778 = vmatpush1.bf16.msra.mxu0 %v6775
        %6779 = vmatprep.subr.bf16.mxu0 0
        %6780 = vmatpush1.bf16.msra.mxu0 0
        %6781 = vmatprep.subr.bf16.mxu0 0
        %6782 = vmatpush1.bf16.msra.mxu0 0
        %6783 = vmatprep.subr.bf16.mxu0 0
        %6784 = vmatpush1.bf16.msra.mxu0 0
        %6785 = vmatprep.subr.bf16.mxu0 0
        %6786 = vmatpush1.bf16.msra.mxu0 0
        %6787 = vmatprep.subr.bf16.mxu0 0
        %6788 = vmatpush1.bf16.msra.mxu0 0
        %6789 = vmatprep.subr.bf16.mxu0 0
        %6790 = vmatpush1.bf16.msra.mxu0 0
        %6791 = vmatprep.subr.bf16.mxu0 0
        %6792 = vmatpush1.bf16.msra.mxu0 0
        %6793 = vmatprep.subr.bf16.mxu0 0
        %6794 = vmatpush1.bf16.msra.mxu0 0
        %6795 = vmatprep.subr.bf16.mxu0 0
        %6796 = vmatpush1.bf16.msra.mxu0 0
        %6797 = vmatprep.subr.bf16.mxu0 0
        %6798 = vmatpush1.bf16.msra.mxu0 0
        %6799 = vmatprep.subr.bf16.mxu0 0
        %6800 = vmatpush1.bf16.msra.mxu0 0
        %6801 = vmatprep.subr.bf16.mxu0 0
        %6802 = vmatpush1.bf16.msra.mxu0 0
        %6803 = vmatprep.subr.bf16.mxu0 0
        %6804 = vmatpush1.bf16.msra.mxu0 0
        %6805 = vmatprep.subr.bf16.mxu0 0
        %6806 = vmatpush1.bf16.msra.mxu0 0
        %6807 = vmatprep.subr.bf16.mxu0 0
        %6808 = vmatpush1.bf16.msra.mxu0 0
        %6809 = vmatprep.mubr.bf16.mxu0 0
        %6810 = vmatmul.mubr.bf16.gmra.mrb[0].mxu0 %v6772
        %v6811 = vpop.f32.mrb[0].mxu0
        %v6812 = vadd.f32 0.0, %v6811
        %v6813 = vpop.f32.mrb[0].mxu0
        %v6814 = vpop.f32.mrb[0].mxu0
        %v6815 = vpop.f32.mrb[0].mxu0
        %6816 = vdwg.mxu0
        %6817 = vrot.lane.b32.xlu0 %v5652, 64
        %v6818 = vpop.permute.xlu0 %6817
        %v6820 = vsel %vm1647, %v6660, 0
        %v6823 = vsel %vm1845, %v6818, 0
        %6825 = vmatprep.subr.bf16.mxu0 0
        %6826 = vmatpush1.bf16.msra.mxu0 %v6823
        %6827 = vmatprep.subr.bf16.mxu0 0
        %6828 = vmatpush1.bf16.msra.mxu0 0
        %6829 = vmatprep.subr.bf16.mxu0 0
        %6830 = vmatpush1.bf16.msra.mxu0 0
        %6831 = vmatprep.subr.bf16.mxu0 0
        %6832 = vmatpush1.bf16.msra.mxu0 0
        %6833 = vmatprep.subr.bf16.mxu0 0
        %6834 = vmatpush1.bf16.msra.mxu0 0
        %6835 = vmatprep.subr.bf16.mxu0 0
        %6836 = vmatpush1.bf16.msra.mxu0 0
        %6837 = vmatprep.subr.bf16.mxu0 0
        %6838 = vmatpush1.bf16.msra.mxu0 0
        %6839 = vmatprep.subr.bf16.mxu0 0
        %6840 = vmatpush1.bf16.msra.mxu0 0
        %6841 = vmatprep.subr.bf16.mxu0 0
        %6842 = vmatpush1.bf16.msra.mxu0 0
        %6843 = vmatprep.subr.bf16.mxu0 0
        %6844 = vmatpush1.bf16.msra.mxu0 0
        %6845 = vmatprep.subr.bf16.mxu0 0
        %6846 = vmatpush1.bf16.msra.mxu0 0
        %6847 = vmatprep.subr.bf16.mxu0 0
        %6848 = vmatpush1.bf16.msra.mxu0 0
        %6849 = vmatprep.subr.bf16.mxu0 0
        %6850 = vmatpush1.bf16.msra.mxu0 0
        %6851 = vmatprep.subr.bf16.mxu0 0
        %6852 = vmatpush1.bf16.msra.mxu0 0
        %6853 = vmatprep.subr.bf16.mxu0 0
        %6854 = vmatpush1.bf16.msra.mxu0 0
        %6855 = vmatprep.subr.bf16.mxu0 0
        %6856 = vmatpush1.bf16.msra.mxu0 0
        %6857 = vmatprep.mubr.bf16.mxu0 0
        %6858 = vmatmul.mubr.bf16.gmra.mrb[0].mxu0 %v6820
        %v6859 = vpop.f32.mrb[0].mxu0
        %v6860 = vadd.f32 0.0, %v6859
        %v6861 = vpop.f32.mrb[0].mxu0
        %v6862 = vpop.f32.mrb[0].mxu0
        %v6863 = vpop.f32.mrb[0].mxu0
        %6864 = vdwg.mxu0
        %6865 = vrot.lane.b32.xlu0 %v5653, 64
        %v6866 = vpop.permute.xlu0 %6865
        %v6868 = vsel %vm1647, %v6661, 0
        %v6871 = vsel %vm1845, %v6866, 0
        %6873 = vmatprep.subr.bf16.mxu0 0
        %6874 = vmatpush1.bf16.msra.mxu0 %v6871
        %6875 = vmatprep.subr.bf16.mxu0 0
        %6876 = vmatpush1.bf16.msra.mxu0 0
        %6877 = vmatprep.subr.bf16.mxu0 0
        %6878 = vmatpush1.bf16.msra.mxu0 0
        %6879 = vmatprep.subr.bf16.mxu0 0
        %6880 = vmatpush1.bf16.msra.mxu0 0
        %6881 = vmatprep.subr.bf16.mxu0 0
        %6882 = vmatpush1.bf16.msra.mxu0 0
        %6883 = vmatprep.subr.bf16.mxu0 0
        %6884 = vmatpush1.bf16.msra.mxu0 0
        %6885 = vmatprep.subr.bf16.mxu0 0
        %6886 = vmatpush1.bf16.msra.mxu0 0
        %6887 = vmatprep.subr.bf16.mxu0 0
        %6888 = vmatpush1.bf16.msra.mxu0 0
        %6889 = vmatprep.subr.bf16.mxu0 0
        %6890 = vmatpush1.bf16.msra.mxu0 0
        %6891 = vmatprep.subr.bf16.mxu0 0
        %6892 = vmatpush1.bf16.msra.mxu0 0
        %6893 = vmatprep.subr.bf16.mxu0 0
        %6894 = vmatpush1.bf16.msra.mxu0 0
        %6895 = vmatprep.subr.bf16.mxu0 0
        %6896 = vmatpush1.bf16.msra.mxu0 0
        %6897 = vmatprep.subr.bf16.mxu0 0
        %6898 = vmatpush1.bf16.msra.mxu0 0
        %6899 = vmatprep.subr.bf16.mxu0 0
        %6900 = vmatpush1.bf16.msra.mxu0 0
        %6901 = vmatprep.subr.bf16.mxu0 0
        %6902 = vmatpush1.bf16.msra.mxu0 0
        %6903 = vmatprep.subr.bf16.mxu0 0
        %6904 = vmatpush1.bf16.msra.mxu0 0
        %6905 = vmatprep.mubr.bf16.mxu0 0
        %6906 = vmatmul.mubr.bf16.gmra.mrb[0].mxu0 %v6868
        %v6907 = vpop.f32.mrb[0].mxu0
        %v6908 = vadd.f32 0.0, %v6907
        %v6909 = vpop.f32.mrb[0].mxu0
        %v6910 = vpop.f32.mrb[0].mxu0
        %v6911 = vpop.f32.mrb[0].mxu0
        %6912 = vdwg.mxu0
        %6913 = vrot.lane.b32.xlu0 %v5654, 64
        %v6914 = vpop.permute.xlu0 %6913
        %v6916 = vsel %vm1647, %v6662, 0
        %v6919 = vsel %vm1845, %v6914, 0
        %6921 = vmatprep.subr.bf16.mxu0 0
        %6922 = vmatpush1.bf16.msra.mxu0 %v6919
        %6923 = vmatprep.subr.bf16.mxu0 0
        %6924 = vmatpush1.bf16.msra.mxu0 0
        %6925 = vmatprep.subr.bf16.mxu0 0
        %6926 = vmatpush1.bf16.msra.mxu0 0
        %6927 = vmatprep.subr.bf16.mxu0 0
        %6928 = vmatpush1.bf16.msra.mxu0 0
        %6929 = vmatprep.subr.bf16.mxu0 0
        %6930 = vmatpush1.bf16.msra.mxu0 0
        %6931 = vmatprep.subr.bf16.mxu0 0
        %6932 = vmatpush1.bf16.msra.mxu0 0
        %6933 = vmatprep.subr.bf16.mxu0 0
        %6934 = vmatpush1.bf16.msra.mxu0 0
        %6935 = vmatprep.subr.bf16.mxu0 0
        %6936 = vmatpush1.bf16.msra.mxu0 0
        %6937 = vmatprep.subr.bf16.mxu0 0
        %6938 = vmatpush1.bf16.msra.mxu0 0
        %6939 = vmatprep.subr.bf16.mxu0 0
        %6940 = vmatpush1.bf16.msra.mxu0 0
        %6941 = vmatprep.subr.bf16.mxu0 0
        %6942 = vmatpush1.bf16.msra.mxu0 0
        %6943 = vmatprep.subr.bf16.mxu0 0
        %6944 = vmatpush1.bf16.msra.mxu0 0
        %6945 = vmatprep.subr.bf16.mxu0 0
        %6946 = vmatpush1.bf16.msra.mxu0 0
        %6947 = vmatprep.subr.bf16.mxu0 0
        %6948 = vmatpush1.bf16.msra.mxu0 0
        %6949 = vmatprep.subr.bf16.mxu0 0
        %6950 = vmatpush1.bf16.msra.mxu0 0
        %6951 = vmatprep.subr.bf16.mxu0 0
        %6952 = vmatpush1.bf16.msra.mxu0 0
        %6953 = vmatprep.mubr.bf16.mxu0 0
        %6954 = vmatmul.mubr.bf16.gmra.mrb[0].mxu0 %v6916
        %v6955 = vpop.f32.mrb[0].mxu0
        %v6956 = vadd.f32 0.0, %v6955
        %v6957 = vpop.f32.mrb[0].mxu0
        %v6958 = vpop.f32.mrb[0].mxu0
        %v6959 = vpop.f32.mrb[0].mxu0
        %6960 = vdwg.mxu0
        %6961 = vrot.lane.b32.xlu0 %v5655, 64
        %v6962 = vpop.permute.xlu0 %6961
        %v6964 = vsel %vm1647, %v6663, 0
        %v6967 = vsel %vm1845, %v6962, 0
        %6969 = vmatprep.subr.bf16.mxu0 0
        %6970 = vmatpush1.bf16.msra.mxu0 %v6967
        %6971 = vmatprep.subr.bf16.mxu0 0
        %6972 = vmatpush1.bf16.msra.mxu0 0
        %6973 = vmatprep.subr.bf16.mxu0 0
        %6974 = vmatpush1.bf16.msra.mxu0 0
        %6975 = vmatprep.subr.bf16.mxu0 0
        %6976 = vmatpush1.bf16.msra.mxu0 0
        %6977 = vmatprep.subr.bf16.mxu0 0
        %6978 = vmatpush1.bf16.msra.mxu0 0
        %6979 = vmatprep.subr.bf16.mxu0 0
        %6980 = vmatpush1.bf16.msra.mxu0 0
        %6981 = vmatprep.subr.bf16.mxu0 0
        %6982 = vmatpush1.bf16.msra.mxu0 0
        %6983 = vmatprep.subr.bf16.mxu0 0
        %6984 = vmatpush1.bf16.msra.mxu0 0
        %6985 = vmatprep.subr.bf16.mxu0 0
        %6986 = vmatpush1.bf16.msra.mxu0 0
        %6987 = vmatprep.subr.bf16.mxu0 0
        %6988 = vmatpush1.bf16.msra.mxu0 0
        %6989 = vmatprep.subr.bf16.mxu0 0
        %6990 = vmatpush1.bf16.msra.mxu0 0
        %6991 = vmatprep.subr.bf16.mxu0 0
        %6992 = vmatpush1.bf16.msra.mxu0 0
        %6993 = vmatprep.subr.bf16.mxu0 0
        %6994 = vmatpush1.bf16.msra.mxu0 0
        %6995 = vmatprep.subr.bf16.mxu0 0
        %6996 = vmatpush1.bf16.msra.mxu0 0
        %6997 = vmatprep.subr.bf16.mxu0 0
        %6998 = vmatpush1.bf16.msra.mxu0 0
        %6999 = vmatprep.subr.bf16.mxu0 0
        %7000 = vmatpush1.bf16.msra.mxu0 0
        %7001 = vmatprep.mubr.bf16.mxu0 0
        %7002 = vmatmul.mubr.bf16.gmra.mrb[0].mxu0 %v6964
        %v7003 = vpop.f32.mrb[0].mxu0
        %v7004 = vadd.f32 0.0, %v7003
        %v7005 = vpop.f32.mrb[0].mxu0
        %v7006 = vpop.f32.mrb[0].mxu0
        %v7007 = vpop.f32.mrb[0].mxu0
        %7008 = vdwg.mxu0
        %7009 = vrot.lane.b32.xlu0 %v5656, 64
        %v7010 = vpop.permute.xlu0 %7009
        %v7012 = vsel %vm1647, %v6664, 0
        %v7015 = vsel %vm1845, %v7010, 0
        %7017 = vmatprep.subr.bf16.mxu0 0
        %7018 = vmatpush1.bf16.msra.mxu0 %v7015
        %7019 = vmatprep.subr.bf16.mxu0 0
        %7020 = vmatpush1.bf16.msra.mxu0 0
        %7021 = vmatprep.subr.bf16.mxu0 0
        %7022 = vmatpush1.bf16.msra.mxu0 0
        %7023 = vmatprep.subr.bf16.mxu0 0
        %7024 = vmatpush1.bf16.msra.mxu0 0
        %7025 = vmatprep.subr.bf16.mxu0 0
        %7026 = vmatpush1.bf16.msra.mxu0 0
        %7027 = vmatprep.subr.bf16.mxu0 0
        %7028 = vmatpush1.bf16.msra.mxu0 0
        %7029 = vmatprep.subr.bf16.mxu0 0
        %7030 = vmatpush1.bf16.msra.mxu0 0
        %7031 = vmatprep.subr.bf16.mxu0 0
        %7032 = vmatpush1.bf16.msra.mxu0 0
        %7033 = vmatprep.subr.bf16.mxu0 0
        %7034 = vmatpush1.bf16.msra.mxu0 0
        %7035 = vmatprep.subr.bf16.mxu0 0
        %7036 = vmatpush1.bf16.msra.mxu0 0
        %7037 = vmatprep.subr.bf16.mxu0 0
        %7038 = vmatpush1.bf16.msra.mxu0 0
        %7039 = vmatprep.subr.bf16.mxu0 0
        %7040 = vmatpush1.bf16.msra.mxu0 0
        %7041 = vmatprep.subr.bf16.mxu0 0
        %7042 = vmatpush1.bf16.msra.mxu0 0
        %7043 = vmatprep.subr.bf16.mxu0 0
        %7044 = vmatpush1.bf16.msra.mxu0 0
        %7045 = vmatprep.subr.bf16.mxu0 0
        %7046 = vmatpush1.bf16.msra.mxu0 0
        %7047 = vmatprep.subr.bf16.mxu0 0
        %7048 = vmatpush1.bf16.msra.mxu0 0
        %7049 = vmatprep.mubr.bf16.mxu0 0
        %7050 = vmatmul.mubr.bf16.gmra.mrb[0].mxu0 %v7012
        %v7051 = vpop.f32.mrb[0].mxu0
        %v7052 = vadd.f32 0.0, %v7051
        %v7053 = vpop.f32.mrb[0].mxu0
        %v7054 = vpop.f32.mrb[0].mxu0
        %v7055 = vpop.f32.mrb[0].mxu0
        %7056 = vdwg.mxu0
        %7057 = vrot.lane.b32.xlu0 %v5657, 64
        %v7058 = vpop.permute.xlu0 %7057
        %v7060 = vsel %vm1647, %v6665, 0
        %v7063 = vsel %vm1845, %v7058, 0
        %7065 = vmatprep.subr.bf16.mxu0 0
        %7066 = vmatpush1.bf16.msra.mxu0 %v7063
        %7067 = vmatprep.subr.bf16.mxu0 0
        %7068 = vmatpush1.bf16.msra.mxu0 0
        %7069 = vmatprep.subr.bf16.mxu0 0
        %7070 = vmatpush1.bf16.msra.mxu0 0
        %7071 = vmatprep.subr.bf16.mxu0 0
        %7072 = vmatpush1.bf16.msra.mxu0 0
        %7073 = vmatprep.subr.bf16.mxu0 0
        %7074 = vmatpush1.bf16.msra.mxu0 0
        %7075 = vmatprep.subr.bf16.mxu0 0
        %7076 = vmatpush1.bf16.msra.mxu0 0
        %7077 = vmatprep.subr.bf16.mxu0 0
        %7078 = vmatpush1.bf16.msra.mxu0 0
        %7079 = vmatprep.subr.bf16.mxu0 0
        %7080 = vmatpush1.bf16.msra.mxu0 0
        %7081 = vmatprep.subr.bf16.mxu0 0
        %7082 = vmatpush1.bf16.msra.mxu0 0
        %7083 = vmatprep.subr.bf16.mxu0 0
        %7084 = vmatpush1.bf16.msra.mxu0 0
        %7085 = vmatprep.subr.bf16.mxu0 0
        %7086 = vmatpush1.bf16.msra.mxu0 0
        %7087 = vmatprep.subr.bf16.mxu0 0
        %7088 = vmatpush1.bf16.msra.mxu0 0
        %7089 = vmatprep.subr.bf16.mxu0 0
        %7090 = vmatpush1.bf16.msra.mxu0 0
        %7091 = vmatprep.subr.bf16.mxu0 0
        %7092 = vmatpush1.bf16.msra.mxu0 0
        %7093 = vmatprep.subr.bf16.mxu0 0
        %7094 = vmatpush1.bf16.msra.mxu0 0
        %7095 = vmatprep.subr.bf16.mxu0 0
        %7096 = vmatpush1.bf16.msra.mxu0 0
        %7097 = vmatprep.mubr.bf16.mxu0 0
        %7098 = vmatmul.mubr.bf16.gmra.mrb[0].mxu0 %v7060
        %v7099 = vpop.f32.mrb[0].mxu0
        %v7100 = vadd.f32 0.0, %v7099
        %v7101 = vpop.f32.mrb[0].mxu0
        %v7102 = vpop.f32.mrb[0].mxu0
        %v7103 = vpop.f32.mrb[0].mxu0
        %7104 = vdwg.mxu0
        %7105 = vrot.lane.b32.xlu0 %v5658, 64
        %v7106 = vpop.permute.xlu0 %7105
        %v7108 = vsel %vm1647, %v6666, 0
        %v7111 = vsel %vm1845, %v7106, 0
        %7113 = vmatprep.subr.bf16.mxu0 0
        %7114 = vmatpush1.bf16.msra.mxu0 %v7111
        %7115 = vmatprep.subr.bf16.mxu0 0
        %7116 = vmatpush1.bf16.msra.mxu0 0
        %7117 = vmatprep.subr.bf16.mxu0 0
        %7118 = vmatpush1.bf16.msra.mxu0 0
        %7119 = vmatprep.subr.bf16.mxu0 0
        %7120 = vmatpush1.bf16.msra.mxu0 0
        %7121 = vmatprep.subr.bf16.mxu0 0
        %7122 = vmatpush1.bf16.msra.mxu0 0
        %7123 = vmatprep.subr.bf16.mxu0 0
        %7124 = vmatpush1.bf16.msra.mxu0 0
        %7125 = vmatprep.subr.bf16.mxu0 0
        %7126 = vmatpush1.bf16.msra.mxu0 0
        %7127 = vmatprep.subr.bf16.mxu0 0
        %7128 = vmatpush1.bf16.msra.mxu0 0
        %7129 = vmatprep.subr.bf16.mxu0 0
        %7130 = vmatpush1.bf16.msra.mxu0 0
        %7131 = vmatprep.subr.bf16.mxu0 0
        %7132 = vmatpush1.bf16.msra.mxu0 0
        %7133 = vmatprep.subr.bf16.mxu0 0
        %7134 = vmatpush1.bf16.msra.mxu0 0
        %7135 = vmatprep.subr.bf16.mxu0 0
        %7136 = vmatpush1.bf16.msra.mxu0 0
        %7137 = vmatprep.subr.bf16.mxu0 0
        %7138 = vmatpush1.bf16.msra.mxu0 0
        %7139 = vmatprep.subr.bf16.mxu0 0
        %7140 = vmatpush1.bf16.msra.mxu0 0
        %7141 = vmatprep.subr.bf16.mxu0 0
        %7142 = vmatpush1.bf16.msra.mxu0 0
        %7143 = vmatprep.subr.bf16.mxu0 0
        %7144 = vmatpush1.bf16.msra.mxu0 0
        %7145 = vmatprep.mubr.bf16.mxu0 0
        %7146 = vmatmul.mubr.bf16.gmra.mrb[0].mxu0 %v7108
        %v7147 = vpop.f32.mrb[0].mxu0
        %v7148 = vadd.f32 0.0, %v7147
        %v7149 = vpop.f32.mrb[0].mxu0
        %v7150 = vpop.f32.mrb[0].mxu0
        %v7151 = vpop.f32.mrb[0].mxu0
        %7152 = vdwg.mxu0
        %7153 = vrot.lane.b32.xlu0 %v5659, 64
        %v7154 = vpop.permute.xlu0 %7153
        %v7156 = vsel %vm1647, %v6667, 0
        %v7159 = vsel %vm1845, %v7154, 0
        %7161 = vmatprep.subr.bf16.mxu0 0
        %7162 = vmatpush1.bf16.msra.mxu0 %v7159
        %7163 = vmatprep.subr.bf16.mxu0 0
        %7164 = vmatpush1.bf16.msra.mxu0 0
        %7165 = vmatprep.subr.bf16.mxu0 0
        %7166 = vmatpush1.bf16.msra.mxu0 0
        %7167 = vmatprep.subr.bf16.mxu0 0
        %7168 = vmatpush1.bf16.msra.mxu0 0
        %7169 = vmatprep.subr.bf16.mxu0 0
        %7170 = vmatpush1.bf16.msra.mxu0 0
        %7171 = vmatprep.subr.bf16.mxu0 0
        %7172 = vmatpush1.bf16.msra.mxu0 0
        %7173 = vmatprep.subr.bf16.mxu0 0
        %7174 = vmatpush1.bf16.msra.mxu0 0
        %7175 = vmatprep.subr.bf16.mxu0 0
        %7176 = vmatpush1.bf16.msra.mxu0 0
        %7177 = vmatprep.subr.bf16.mxu0 0
        %7178 = vmatpush1.bf16.msra.mxu0 0
        %7179 = vmatprep.subr.bf16.mxu0 0
        %7180 = vmatpush1.bf16.msra.mxu0 0
        %7181 = vmatprep.subr.bf16.mxu0 0
        %7182 = vmatpush1.bf16.msra.mxu0 0
        %7183 = vmatprep.subr.bf16.mxu0 0
        %7184 = vmatpush1.bf16.msra.mxu0 0
        %7185 = vmatprep.subr.bf16.mxu0 0
        %7186 = vmatpush1.bf16.msra.mxu0 0
        %7187 = vmatprep.subr.bf16.mxu0 0
        %7188 = vmatpush1.bf16.msra.mxu0 0
        %7189 = vmatprep.subr.bf16.mxu0 0
        %7190 = vmatpush1.bf16.msra.mxu0 0
        %7191 = vmatprep.subr.bf16.mxu0 0
        %7192 = vmatpush1.bf16.msra.mxu0 0
        %7193 = vmatprep.mubr.bf16.mxu0 0
        %7194 = vmatmul.mubr.bf16.gmra.mrb[0].mxu0 %v7156
        %v7195 = vpop.f32.mrb[0].mxu0
        %v7196 = vadd.f32 0.0, %v7195
        %v7197 = vpop.f32.mrb[0].mxu0
        %v7198 = vpop.f32.mrb[0].mxu0
        %v7199 = vpop.f32.mrb[0].mxu0
        %7200 = vdwg.mxu0
        %7201 = vrot.lane.b32.xlu0 %v5660, 64
        %v7202 = vpop.permute.xlu0 %7201
        %v7204 = vsel %vm1647, %v6668, 0
        %v7207 = vsel %vm1845, %v7202, 0
        %7209 = vmatprep.subr.bf16.mxu0 0
        %7210 = vmatpush1.bf16.msra.mxu0 %v7207
        %7211 = vmatprep.subr.bf16.mxu0 0
        %7212 = vmatpush1.bf16.msra.mxu0 0
        %7213 = vmatprep.subr.bf16.mxu0 0
        %7214 = vmatpush1.bf16.msra.mxu0 0
        %7215 = vmatprep.subr.bf16.mxu0 0
        %7216 = vmatpush1.bf16.msra.mxu0 0
        %7217 = vmatprep.subr.bf16.mxu0 0
        %7218 = vmatpush1.bf16.msra.mxu0 0
        %7219 = vmatprep.subr.bf16.mxu0 0
        %7220 = vmatpush1.bf16.msra.mxu0 0
        %7221 = vmatprep.subr.bf16.mxu0 0
        %7222 = vmatpush1.bf16.msra.mxu0 0
        %7223 = vmatprep.subr.bf16.mxu0 0
        %7224 = vmatpush1.bf16.msra.mxu0 0
        %7225 = vmatprep.subr.bf16.mxu0 0
        %7226 = vmatpush1.bf16.msra.mxu0 0
        %7227 = vmatprep.subr.bf16.mxu0 0
        %7228 = vmatpush1.bf16.msra.mxu0 0
        %7229 = vmatprep.subr.bf16.mxu0 0
        %7230 = vmatpush1.bf16.msra.mxu0 0
        %7231 = vmatprep.subr.bf16.mxu0 0
        %7232 = vmatpush1.bf16.msra.mxu0 0
        %7233 = vmatprep.subr.bf16.mxu0 0
        %7234 = vmatpush1.bf16.msra.mxu0 0
        %7235 = vmatprep.subr.bf16.mxu0 0
        %7236 = vmatpush1.bf16.msra.mxu0 0
        %7237 = vmatprep.subr.bf16.mxu0 0
        %7238 = vmatpush1.bf16.msra.mxu0 0
        %7239 = vmatprep.subr.bf16.mxu0 0
        %7240 = vmatpush1.bf16.msra.mxu0 0
        %7241 = vmatprep.mubr.bf16.mxu0 0
        %7242 = vmatmul.mubr.bf16.gmra.mrb[0].mxu0 %v7204
        %v7243 = vpop.f32.mrb[0].mxu0
        %v7244 = vadd.f32 0.0, %v7243
        %v7245 = vpop.f32.mrb[0].mxu0
        %v7246 = vpop.f32.mrb[0].mxu0
        %v7247 = vpop.f32.mrb[0].mxu0
        %7248 = vdwg.mxu0
        %7249 = vrot.lane.b32.xlu0 %v5661, 64
        %v7250 = vpop.permute.xlu0 %7249
        %v7252 = vsel %vm1647, %v6669, 0
        %v7255 = vsel %vm1845, %v7250, 0
        %7257 = vmatprep.subr.bf16.mxu0 0
        %7258 = vmatpush1.bf16.msra.mxu0 %v7255
        %7259 = vmatprep.subr.bf16.mxu0 0
        %7260 = vmatpush1.bf16.msra.mxu0 0
        %7261 = vmatprep.subr.bf16.mxu0 0
        %7262 = vmatpush1.bf16.msra.mxu0 0
        %7263 = vmatprep.subr.bf16.mxu0 0
        %7264 = vmatpush1.bf16.msra.mxu0 0
        %7265 = vmatprep.subr.bf16.mxu0 0
        %7266 = vmatpush1.bf16.msra.mxu0 0
        %7267 = vmatprep.subr.bf16.mxu0 0
        %7268 = vmatpush1.bf16.msra.mxu0 0
        %7269 = vmatprep.subr.bf16.mxu0 0
        %7270 = vmatpush1.bf16.msra.mxu0 0
        %7271 = vmatprep.subr.bf16.mxu0 0
        %7272 = vmatpush1.bf16.msra.mxu0 0
        %7273 = vmatprep.subr.bf16.mxu0 0
        %7274 = vmatpush1.bf16.msra.mxu0 0
        %7275 = vmatprep.subr.bf16.mxu0 0
        %7276 = vmatpush1.bf16.msra.mxu0 0
        %7277 = vmatprep.subr.bf16.mxu0 0
        %7278 = vmatpush1.bf16.msra.mxu0 0
        %7279 = vmatprep.subr.bf16.mxu0 0
        %7280 = vmatpush1.bf16.msra.mxu0 0
        %7281 = vmatprep.subr.bf16.mxu0 0
        %7282 = vmatpush1.bf16.msra.mxu0 0
        %7283 = vmatprep.subr.bf16.mxu0 0
        %7284 = vmatpush1.bf16.msra.mxu0 0
        %7285 = vmatprep.subr.bf16.mxu0 0
        %7286 = vmatpush1.bf16.msra.mxu0 0
        %7287 = vmatprep.subr.bf16.mxu0 0
        %7288 = vmatpush1.bf16.msra.mxu0 0
        %7289 = vmatprep.mubr.bf16.mxu0 0
        %7290 = vmatmul.mubr.bf16.gmra.mrb[0].mxu0 %v7252
        %v7291 = vpop.f32.mrb[0].mxu0
        %v7292 = vadd.f32 0.0, %v7291
        %v7293 = vpop.f32.mrb[0].mxu0
        %v7294 = vpop.f32.mrb[0].mxu0
        %v7295 = vpop.f32.mrb[0].mxu0
        %7296 = vdwg.mxu0
        %7297 = vrot.lane.b32.xlu0 %v5662, 64
        %v7298 = vpop.permute.xlu0 %7297
        %v7300 = vsel %vm1647, %v6670, 0
        %v7303 = vsel %vm1845, %v7298, 0
        %7305 = vmatprep.subr.bf16.mxu0 0
        %7306 = vmatpush1.bf16.msra.mxu0 %v7303
        %7307 = vmatprep.subr.bf16.mxu0 0
        %7308 = vmatpush1.bf16.msra.mxu0 0
        %7309 = vmatprep.subr.bf16.mxu0 0
        %7310 = vmatpush1.bf16.msra.mxu0 0
        %7311 = vmatprep.subr.bf16.mxu0 0
        %7312 = vmatpush1.bf16.msra.mxu0 0
        %7313 = vmatprep.subr.bf16.mxu0 0
        %7314 = vmatpush1.bf16.msra.mxu0 0
        %7315 = vmatprep.subr.bf16.mxu0 0
        %7316 = vmatpush1.bf16.msra.mxu0 0
        %7317 = vmatprep.subr.bf16.mxu0 0
        %7318 = vmatpush1.bf16.msra.mxu0 0
        %7319 = vmatprep.subr.bf16.mxu0 0
        %7320 = vmatpush1.bf16.msra.mxu0 0
        %7321 = vmatprep.subr.bf16.mxu0 0
        %7322 = vmatpush1.bf16.msra.mxu0 0
        %7323 = vmatprep.subr.bf16.mxu0 0
        %7324 = vmatpush1.bf16.msra.mxu0 0
        %7325 = vmatprep.subr.bf16.mxu0 0
        %7326 = vmatpush1.bf16.msra.mxu0 0
        %7327 = vmatprep.subr.bf16.mxu0 0
        %7328 = vmatpush1.bf16.msra.mxu0 0
        %7329 = vmatprep.subr.bf16.mxu0 0
        %7330 = vmatpush1.bf16.msra.mxu0 0
        %7331 = vmatprep.subr.bf16.mxu0 0
        %7332 = vmatpush1.bf16.msra.mxu0 0
        %7333 = vmatprep.subr.bf16.mxu0 0
        %7334 = vmatpush1.bf16.msra.mxu0 0
        %7335 = vmatprep.subr.bf16.mxu0 0
        %7336 = vmatpush1.bf16.msra.mxu0 0
        %7337 = vmatprep.mubr.bf16.mxu0 0
        %7338 = vmatmul.mubr.bf16.gmra.mrb[0].mxu0 %v7300
        %v7339 = vpop.f32.mrb[0].mxu0
        %v7340 = vadd.f32 0.0, %v7339
        %v7341 = vpop.f32.mrb[0].mxu0
        %v7342 = vpop.f32.mrb[0].mxu0
        %v7343 = vpop.f32.mrb[0].mxu0
        %7344 = vdwg.mxu0
        %7345 = vrot.lane.b32.xlu0 %v5663, 64
        %v7346 = vpop.permute.xlu0 %7345
        %v7348 = vsel %vm1647, %v6671, 0
        %v7351 = vsel %vm1845, %v7346, 0
        %7353 = vmatprep.subr.bf16.mxu0 0
        %7354 = vmatpush1.bf16.msra.mxu0 %v7351
        %7355 = vmatprep.subr.bf16.mxu0 0
        %7356 = vmatpush1.bf16.msra.mxu0 0
        %7357 = vmatprep.subr.bf16.mxu0 0
        %7358 = vmatpush1.bf16.msra.mxu0 0
        %7359 = vmatprep.subr.bf16.mxu0 0
        %7360 = vmatpush1.bf16.msra.mxu0 0
        %7361 = vmatprep.subr.bf16.mxu0 0
        %7362 = vmatpush1.bf16.msra.mxu0 0
        %7363 = vmatprep.subr.bf16.mxu0 0
        %7364 = vmatpush1.bf16.msra.mxu0 0
        %7365 = vmatprep.subr.bf16.mxu0 0
        %7366 = vmatpush1.bf16.msra.mxu0 0
        %7367 = vmatprep.subr.bf16.mxu0 0
        %7368 = vmatpush1.bf16.msra.mxu0 0
        %7369 = vmatprep.subr.bf16.mxu0 0
        %7370 = vmatpush1.bf16.msra.mxu0 0
        %7371 = vmatprep.subr.bf16.mxu0 0
        %7372 = vmatpush1.bf16.msra.mxu0 0
        %7373 = vmatprep.subr.bf16.mxu0 0
        %7374 = vmatpush1.bf16.msra.mxu0 0
        %7375 = vmatprep.subr.bf16.mxu0 0
        %7376 = vmatpush1.bf16.msra.mxu0 0
        %7377 = vmatprep.subr.bf16.mxu0 0
        %7378 = vmatpush1.bf16.msra.mxu0 0
        %7379 = vmatprep.subr.bf16.mxu0 0
        %7380 = vmatpush1.bf16.msra.mxu0 0
        %7381 = vmatprep.subr.bf16.mxu0 0
        %7382 = vmatpush1.bf16.msra.mxu0 0
        %7383 = vmatprep.subr.bf16.mxu0 0
        %7384 = vmatpush1.bf16.msra.mxu0 0
        %7385 = vmatprep.mubr.bf16.mxu0 0
        %7386 = vmatmul.mubr.bf16.gmra.mrb[0].mxu0 %v7348
        %v7387 = vpop.f32.mrb[0].mxu0
        %v7388 = vadd.f32 0.0, %v7387
        %v7389 = vpop.f32.mrb[0].mxu0
        %v7390 = vpop.f32.mrb[0].mxu0
        %v7391 = vpop.f32.mrb[0].mxu0
        %7392 = vdwg.mxu0
        %7393 = vrot.lane.b32.xlu0 %v5664, 64
        %v7394 = vpop.permute.xlu0 %7393
        %v7396 = vsel %vm1647, %v6672, 0
        %v7399 = vsel %vm1845, %v7394, 0
        %7401 = vmatprep.subr.bf16.mxu0 0
        %7402 = vmatpush1.bf16.msra.mxu0 %v7399
        %7403 = vmatprep.subr.bf16.mxu0 0
        %7404 = vmatpush1.bf16.msra.mxu0 0
        %7405 = vmatprep.subr.bf16.mxu0 0
        %7406 = vmatpush1.bf16.msra.mxu0 0
        %7407 = vmatprep.subr.bf16.mxu0 0
        %7408 = vmatpush1.bf16.msra.mxu0 0
        %7409 = vmatprep.subr.bf16.mxu0 0
        %7410 = vmatpush1.bf16.msra.mxu0 0
        %7411 = vmatprep.subr.bf16.mxu0 0
        %7412 = vmatpush1.bf16.msra.mxu0 0
        %7413 = vmatprep.subr.bf16.mxu0 0
        %7414 = vmatpush1.bf16.msra.mxu0 0
        %7415 = vmatprep.subr.bf16.mxu0 0
        %7416 = vmatpush1.bf16.msra.mxu0 0
        %7417 = vmatprep.subr.bf16.mxu0 0
        %7418 = vmatpush1.bf16.msra.mxu0 0
        %7419 = vmatprep.subr.bf16.mxu0 0
        %7420 = vmatpush1.bf16.msra.mxu0 0
        %7421 = vmatprep.subr.bf16.mxu0 0
        %7422 = vmatpush1.bf16.msra.mxu0 0
        %7423 = vmatprep.subr.bf16.mxu0 0
        %7424 = vmatpush1.bf16.msra.mxu0 0
        %7425 = vmatprep.subr.bf16.mxu0 0
        %7426 = vmatpush1.bf16.msra.mxu0 0
        %7427 = vmatprep.subr.bf16.mxu0 0
        %7428 = vmatpush1.bf16.msra.mxu0 0
        %7429 = vmatprep.subr.bf16.mxu0 0
        %7430 = vmatpush1.bf16.msra.mxu0 0
        %7431 = vmatprep.subr.bf16.mxu0 0
        %7432 = vmatpush1.bf16.msra.mxu0 0
        %7433 = vmatprep.mubr.bf16.mxu0 0
        %7434 = vmatmul.mubr.bf16.gmra.mrb[0].mxu0 %v7396
        %v7435 = vpop.f32.mrb[0].mxu0
        %v7436 = vadd.f32 0.0, %v7435
        %v7437 = vpop.f32.mrb[0].mxu0
        %v7438 = vpop.f32.mrb[0].mxu0
        %v7439 = vpop.f32.mrb[0].mxu0
        %7440 = vdwg.mxu0
        %7441 = vrot.lane.b32.xlu0 %v5649, 112
        %v7442 = vpop.permute.xlu0 %7441
        %7443 = vrot.lane.b32.xlu0 %v5649, 80
        %v7444 = vpop.permute.xlu0 %7443
        %v7446 = vsel %vm833, %v7442, 0
        %v7449 = vsel %vm833, %v7444, 0
        %7451 = vmatprep.subr.bf16.mxu0 0
        %7452 = vmatpush1.bf16.xpose.msra.mxu0 %v7449
        %7453 = vmatprep.subr.bf16.mxu0 0
        %7454 = vmatpush1.bf16.xpose.msra.mxu0 0
        %7455 = vmatprep.subr.bf16.mxu0 0
        %7456 = vmatpush1.bf16.xpose.msra.mxu0 0
        %7457 = vmatprep.subr.bf16.mxu0 0
        %7458 = vmatpush1.bf16.xpose.msra.mxu0 0
        %7459 = vmatprep.subr.bf16.mxu0 0
        %7460 = vmatpush1.bf16.xpose.msra.mxu0 0
        %7461 = vmatprep.subr.bf16.mxu0 0
        %7462 = vmatpush1.bf16.xpose.msra.mxu0 0
        %7463 = vmatprep.subr.bf16.mxu0 0
        %7464 = vmatpush1.bf16.xpose.msra.mxu0 0
        %7465 = vmatprep.subr.bf16.mxu0 0
        %7466 = vmatpush1.bf16.xpose.msra.mxu0 0
        %7467 = vmatprep.subr.bf16.mxu0 0
        %7468 = vmatpush1.bf16.xpose.msra.mxu0 0
        %7469 = vmatprep.subr.bf16.mxu0 0
        %7470 = vmatpush1.bf16.xpose.msra.mxu0 0
        %7471 = vmatprep.subr.bf16.mxu0 0
        %7472 = vmatpush1.bf16.xpose.msra.mxu0 0
        %7473 = vmatprep.subr.bf16.mxu0 0
        %7474 = vmatpush1.bf16.xpose.msra.mxu0 0
        %7475 = vmatprep.subr.bf16.mxu0 0
        %7476 = vmatpush1.bf16.xpose.msra.mxu0 0
        %7477 = vmatprep.subr.bf16.mxu0 0
        %7478 = vmatpush1.bf16.xpose.msra.mxu0 0
        %7479 = vmatprep.subr.bf16.mxu0 0
        %7480 = vmatpush1.bf16.xpose.msra.mxu0 0
        %7481 = vmatprep.subr.bf16.mxu0 0
        %7482 = vmatpush1.bf16.xpose.msra.mxu0 0
        %7483 = vmatprep.mubr.bf16.mxu0 0
        %7484 = vmatmul.mubr.bf16.gmra.mrb[0].mxu0 %v7446
        %v7485 = vpop.f32.mrb[0].mxu0
        %v7486 = vadd.f32 0.0, %v7485
        %v7487 = vpop.f32.mrb[0].mxu0
        %v7488 = vpop.f32.mrb[0].mxu0
        %v7489 = vpop.f32.mrb[0].mxu0
        %7490 = vdwg.mxu0
        %7491 = vrot.lane.b32.xlu0 %v5650, 112
        %v7492 = vpop.permute.xlu0 %7491
        %7493 = vrot.lane.b32.xlu0 %v5650, 80
        %v7494 = vpop.permute.xlu0 %7493
        %v7496 = vsel %vm833, %v7492, 0
        %v7499 = vsel %vm833, %v7494, 0
        %7501 = vmatprep.subr.bf16.mxu0 0
        %7502 = vmatpush1.bf16.xpose.msra.mxu0 %v7499
        %7503 = vmatprep.subr.bf16.mxu0 0
        %7504 = vmatpush1.bf16.xpose.msra.mxu0 0
        %7505 = vmatprep.subr.bf16.mxu0 0
        %7506 = vmatpush1.bf16.xpose.msra.mxu0 0
        %7507 = vmatprep.subr.bf16.mxu0 0
        %7508 = vmatpush1.bf16.xpose.msra.mxu0 0
        %7509 = vmatprep.subr.bf16.mxu0 0
        %7510 = vmatpush1.bf16.xpose.msra.mxu0 0
        %7511 = vmatprep.subr.bf16.mxu0 0
        %7512 = vmatpush1.bf16.xpose.msra.mxu0 0
        %7513 = vmatprep.subr.bf16.mxu0 0
        %7514 = vmatpush1.bf16.xpose.msra.mxu0 0
        %7515 = vmatprep.subr.bf16.mxu0 0
        %7516 = vmatpush1.bf16.xpose.msra.mxu0 0
        %7517 = vmatprep.subr.bf16.mxu0 0
        %7518 = vmatpush1.bf16.xpose.msra.mxu0 0
        %7519 = vmatprep.subr.bf16.mxu0 0
        %7520 = vmatpush1.bf16.xpose.msra.mxu0 0
        %7521 = vmatprep.subr.bf16.mxu0 0
        %7522 = vmatpush1.bf16.xpose.msra.mxu0 0
        %7523 = vmatprep.subr.bf16.mxu0 0
        %7524 = vmatpush1.bf16.xpose.msra.mxu0 0
        %7525 = vmatprep.subr.bf16.mxu0 0
        %7526 = vmatpush1.bf16.xpose.msra.mxu0 0
        %7527 = vmatprep.subr.bf16.mxu0 0
        %7528 = vmatpush1.bf16.xpose.msra.mxu0 0
        %7529 = vmatprep.subr.bf16.mxu0 0
        %7530 = vmatpush1.bf16.xpose.msra.mxu0 0
        %7531 = vmatprep.subr.bf16.mxu0 0
        %7532 = vmatpush1.bf16.xpose.msra.mxu0 0
        %7533 = vmatprep.mubr.bf16.mxu0 0
        %7534 = vmatmul.mubr.bf16.gmra.mrb[0].mxu0 %v7496
        %v7535 = vpop.f32.mrb[0].mxu0
        %v7536 = vadd.f32 0.0, %v7535
        %v7537 = vpop.f32.mrb[0].mxu0
        %v7538 = vpop.f32.mrb[0].mxu0
        %v7539 = vpop.f32.mrb[0].mxu0
        %7540 = vdwg.mxu0
        %7541 = vrot.lane.b32.xlu0 %v5651, 112
        %v7542 = vpop.permute.xlu0 %7541
        %7543 = vrot.lane.b32.xlu0 %v5651, 80
        %v7544 = vpop.permute.xlu0 %7543
        %v7546 = vsel %vm833, %v7542, 0
        %v7549 = vsel %vm833, %v7544, 0
        %7551 = vmatprep.subr.bf16.mxu0 0
        %7552 = vmatpush1.bf16.xpose.msra.mxu0 %v7549
        %7553 = vmatprep.subr.bf16.mxu0 0
        %7554 = vmatpush1.bf16.xpose.msra.mxu0 0
        %7555 = vmatprep.subr.bf16.mxu0 0
        %7556 = vmatpush1.bf16.xpose.msra.mxu0 0
        %7557 = vmatprep.subr.bf16.mxu0 0
        %7558 = vmatpush1.bf16.xpose.msra.mxu0 0
        %7559 = vmatprep.subr.bf16.mxu0 0
        %7560 = vmatpush1.bf16.xpose.msra.mxu0 0
        %7561 = vmatprep.subr.bf16.mxu0 0
        %7562 = vmatpush1.bf16.xpose.msra.mxu0 0
        %7563 = vmatprep.subr.bf16.mxu0 0
        %7564 = vmatpush1.bf16.xpose.msra.mxu0 0
        %7565 = vmatprep.subr.bf16.mxu0 0
        %7566 = vmatpush1.bf16.xpose.msra.mxu0 0
        %7567 = vmatprep.subr.bf16.mxu0 0
        %7568 = vmatpush1.bf16.xpose.msra.mxu0 0
        %7569 = vmatprep.subr.bf16.mxu0 0
        %7570 = vmatpush1.bf16.xpose.msra.mxu0 0
        %7571 = vmatprep.subr.bf16.mxu0 0
        %7572 = vmatpush1.bf16.xpose.msra.mxu0 0
        %7573 = vmatprep.subr.bf16.mxu0 0
        %7574 = vmatpush1.bf16.xpose.msra.mxu0 0
        %7575 = vmatprep.subr.bf16.mxu0 0
        %7576 = vmatpush1.bf16.xpose.msra.mxu0 0
        %7577 = vmatprep.subr.bf16.mxu0 0
        %7578 = vmatpush1.bf16.xpose.msra.mxu0 0
        %7579 = vmatprep.subr.bf16.mxu0 0
        %7580 = vmatpush1.bf16.xpose.msra.mxu0 0
        %7581 = vmatprep.subr.bf16.mxu0 0
        %7582 = vmatpush1.bf16.xpose.msra.mxu0 0
        %7583 = vmatprep.mubr.bf16.mxu0 0
        %7584 = vmatmul.mubr.bf16.gmra.mrb[0].mxu0 %v7546
        %v7585 = vpop.f32.mrb[0].mxu0
        %v7586 = vadd.f32 0.0, %v7585
        %v7587 = vpop.f32.mrb[0].mxu0
        %v7588 = vpop.f32.mrb[0].mxu0
        %v7589 = vpop.f32.mrb[0].mxu0
        %7590 = vdwg.mxu0
        %7591 = vrot.lane.b32.xlu0 %v5652, 112
        %v7592 = vpop.permute.xlu0 %7591
        %7593 = vrot.lane.b32.xlu0 %v5652, 80
        %v7594 = vpop.permute.xlu0 %7593
        %v7596 = vsel %vm833, %v7592, 0
        %v7599 = vsel %vm833, %v7594, 0
        %7601 = vmatprep.subr.bf16.mxu0 0
        %7602 = vmatpush1.bf16.xpose.msra.mxu0 %v7599
        %7603 = vmatprep.subr.bf16.mxu0 0
        %7604 = vmatpush1.bf16.xpose.msra.mxu0 0
        %7605 = vmatprep.subr.bf16.mxu0 0
        %7606 = vmatpush1.bf16.xpose.msra.mxu0 0
        %7607 = vmatprep.subr.bf16.mxu0 0
        %7608 = vmatpush1.bf16.xpose.msra.mxu0 0
        %7609 = vmatprep.subr.bf16.mxu0 0
        %7610 = vmatpush1.bf16.xpose.msra.mxu0 0
        %7611 = vmatprep.subr.bf16.mxu0 0
        %7612 = vmatpush1.bf16.xpose.msra.mxu0 0
        %7613 = vmatprep.subr.bf16.mxu0 0
        %7614 = vmatpush1.bf16.xpose.msra.mxu0 0
        %7615 = vmatprep.subr.bf16.mxu0 0
        %7616 = vmatpush1.bf16.xpose.msra.mxu0 0
        %7617 = vmatprep.subr.bf16.mxu0 0
        %7618 = vmatpush1.bf16.xpose.msra.mxu0 0
        %7619 = vmatprep.subr.bf16.mxu0 0
        %7620 = vmatpush1.bf16.xpose.msra.mxu0 0
        %7621 = vmatprep.subr.bf16.mxu0 0
        %7622 = vmatpush1.bf16.xpose.msra.mxu0 0
        %7623 = vmatprep.subr.bf16.mxu0 0
        %7624 = vmatpush1.bf16.xpose.msra.mxu0 0
        %7625 = vmatprep.subr.bf16.mxu0 0
        %7626 = vmatpush1.bf16.xpose.msra.mxu0 0
        %7627 = vmatprep.subr.bf16.mxu0 0
        %7628 = vmatpush1.bf16.xpose.msra.mxu0 0
        %7629 = vmatprep.subr.bf16.mxu0 0
        %7630 = vmatpush1.bf16.xpose.msra.mxu0 0
        %7631 = vmatprep.subr.bf16.mxu0 0
        %7632 = vmatpush1.bf16.xpose.msra.mxu0 0
        %7633 = vmatprep.mubr.bf16.mxu0 0
        %7634 = vmatmul.mubr.bf16.gmra.mrb[0].mxu0 %v7596
        %v7635 = vpop.f32.mrb[0].mxu0
        %v7636 = vadd.f32 0.0, %v7635
        %v7637 = vpop.f32.mrb[0].mxu0
        %v7638 = vpop.f32.mrb[0].mxu0
        %v7639 = vpop.f32.mrb[0].mxu0
        %7640 = vdwg.mxu0
        %7641 = vrot.lane.b32.xlu0 %v5653, 112
        %v7642 = vpop.permute.xlu0 %7641
        %7643 = vrot.lane.b32.xlu0 %v5653, 80
        %v7644 = vpop.permute.xlu0 %7643
        %v7646 = vsel %vm833, %v7642, 0
        %v7649 = vsel %vm833, %v7644, 0
        %7651 = vmatprep.subr.bf16.mxu0 0
        %7652 = vmatpush1.bf16.xpose.msra.mxu0 %v7649
        %7653 = vmatprep.subr.bf16.mxu0 0
        %7654 = vmatpush1.bf16.xpose.msra.mxu0 0
        %7655 = vmatprep.subr.bf16.mxu0 0
        %7656 = vmatpush1.bf16.xpose.msra.mxu0 0
        %7657 = vmatprep.subr.bf16.mxu0 0
        %7658 = vmatpush1.bf16.xpose.msra.mxu0 0
        %7659 = vmatprep.subr.bf16.mxu0 0
        %7660 = vmatpush1.bf16.xpose.msra.mxu0 0
        %7661 = vmatprep.subr.bf16.mxu0 0
        %7662 = vmatpush1.bf16.xpose.msra.mxu0 0
        %7663 = vmatprep.subr.bf16.mxu0 0
        %7664 = vmatpush1.bf16.xpose.msra.mxu0 0
        %7665 = vmatprep.subr.bf16.mxu0 0
        %7666 = vmatpush1.bf16.xpose.msra.mxu0 0
        %7667 = vmatprep.subr.bf16.mxu0 0
        %7668 = vmatpush1.bf16.xpose.msra.mxu0 0
        %7669 = vmatprep.subr.bf16.mxu0 0
        %7670 = vmatpush1.bf16.xpose.msra.mxu0 0
        %7671 = vmatprep.subr.bf16.mxu0 0
        %7672 = vmatpush1.bf16.xpose.msra.mxu0 0
        %7673 = vmatprep.subr.bf16.mxu0 0
        %7674 = vmatpush1.bf16.xpose.msra.mxu0 0
        %7675 = vmatprep.subr.bf16.mxu0 0
        %7676 = vmatpush1.bf16.xpose.msra.mxu0 0
        %7677 = vmatprep.subr.bf16.mxu0 0
        %7678 = vmatpush1.bf16.xpose.msra.mxu0 0
        %7679 = vmatprep.subr.bf16.mxu0 0
        %7680 = vmatpush1.bf16.xpose.msra.mxu0 0
        %7681 = vmatprep.subr.bf16.mxu0 0
        %7682 = vmatpush1.bf16.xpose.msra.mxu0 0
        %7683 = vmatprep.mubr.bf16.mxu0 0
        %7684 = vmatmul.mubr.bf16.gmra.mrb[0].mxu0 %v7646
        %v7685 = vpop.f32.mrb[0].mxu0
        %v7686 = vadd.f32 0.0, %v7685
        %v7687 = vpop.f32.mrb[0].mxu0
        %v7688 = vpop.f32.mrb[0].mxu0
        %v7689 = vpop.f32.mrb[0].mxu0
        %7690 = vdwg.mxu0
        %7691 = vrot.lane.b32.xlu0 %v5654, 112
        %v7692 = vpop.permute.xlu0 %7691
        %7693 = vrot.lane.b32.xlu0 %v5654, 80
        %v7694 = vpop.permute.xlu0 %7693
        %v7696 = vsel %vm833, %v7692, 0
        %v7699 = vsel %vm833, %v7694, 0
        %7701 = vmatprep.subr.bf16.mxu0 0
        %7702 = vmatpush1.bf16.xpose.msra.mxu0 %v7699
        %7703 = vmatprep.subr.bf16.mxu0 0
        %7704 = vmatpush1.bf16.xpose.msra.mxu0 0
        %7705 = vmatprep.subr.bf16.mxu0 0
        %7706 = vmatpush1.bf16.xpose.msra.mxu0 0
        %7707 = vmatprep.subr.bf16.mxu0 0
        %7708 = vmatpush1.bf16.xpose.msra.mxu0 0
        %7709 = vmatprep.subr.bf16.mxu0 0
        %7710 = vmatpush1.bf16.xpose.msra.mxu0 0
        %7711 = vmatprep.subr.bf16.mxu0 0
        %7712 = vmatpush1.bf16.xpose.msra.mxu0 0
        %7713 = vmatprep.subr.bf16.mxu0 0
        %7714 = vmatpush1.bf16.xpose.msra.mxu0 0
        %7715 = vmatprep.subr.bf16.mxu0 0
        %7716 = vmatpush1.bf16.xpose.msra.mxu0 0
        %7717 = vmatprep.subr.bf16.mxu0 0
        %7718 = vmatpush1.bf16.xpose.msra.mxu0 0
        %7719 = vmatprep.subr.bf16.mxu0 0
        %7720 = vmatpush1.bf16.xpose.msra.mxu0 0
        %7721 = vmatprep.subr.bf16.mxu0 0
        %7722 = vmatpush1.bf16.xpose.msra.mxu0 0
        %7723 = vmatprep.subr.bf16.mxu0 0
        %7724 = vmatpush1.bf16.xpose.msra.mxu0 0
        %7725 = vmatprep.subr.bf16.mxu0 0
        %7726 = vmatpush1.bf16.xpose.msra.mxu0 0
        %7727 = vmatprep.subr.bf16.mxu0 0
        %7728 = vmatpush1.bf16.xpose.msra.mxu0 0
        %7729 = vmatprep.subr.bf16.mxu0 0
        %7730 = vmatpush1.bf16.xpose.msra.mxu0 0
        %7731 = vmatprep.subr.bf16.mxu0 0
        %7732 = vmatpush1.bf16.xpose.msra.mxu0 0
        %7733 = vmatprep.mubr.bf16.mxu0 0
        %7734 = vmatmul.mubr.bf16.gmra.mrb[0].mxu0 %v7696
        %v7735 = vpop.f32.mrb[0].mxu0
        %v7736 = vadd.f32 0.0, %v7735
        %v7737 = vpop.f32.mrb[0].mxu0
        %v7738 = vpop.f32.mrb[0].mxu0
        %v7739 = vpop.f32.mrb[0].mxu0
        %7740 = vdwg.mxu0
        %7741 = vrot.lane.b32.xlu0 %v5655, 112
        %v7742 = vpop.permute.xlu0 %7741
        %7743 = vrot.lane.b32.xlu0 %v5655, 80
        %v7744 = vpop.permute.xlu0 %7743
        %v7746 = vsel %vm833, %v7742, 0
        %v7749 = vsel %vm833, %v7744, 0
        %7751 = vmatprep.subr.bf16.mxu0 0
        %7752 = vmatpush1.bf16.xpose.msra.mxu0 %v7749
        %7753 = vmatprep.subr.bf16.mxu0 0
        %7754 = vmatpush1.bf16.xpose.msra.mxu0 0
        %7755 = vmatprep.subr.bf16.mxu0 0
        %7756 = vmatpush1.bf16.xpose.msra.mxu0 0
        %7757 = vmatprep.subr.bf16.mxu0 0
        %7758 = vmatpush1.bf16.xpose.msra.mxu0 0
        %7759 = vmatprep.subr.bf16.mxu0 0
        %7760 = vmatpush1.bf16.xpose.msra.mxu0 0
        %7761 = vmatprep.subr.bf16.mxu0 0
        %7762 = vmatpush1.bf16.xpose.msra.mxu0 0
        %7763 = vmatprep.subr.bf16.mxu0 0
        %7764 = vmatpush1.bf16.xpose.msra.mxu0 0
        %7765 = vmatprep.subr.bf16.mxu0 0
        %7766 = vmatpush1.bf16.xpose.msra.mxu0 0
        %7767 = vmatprep.subr.bf16.mxu0 0
        %7768 = vmatpush1.bf16.xpose.msra.mxu0 0
        %7769 = vmatprep.subr.bf16.mxu0 0
        %7770 = vmatpush1.bf16.xpose.msra.mxu0 0
        %7771 = vmatprep.subr.bf16.mxu0 0
        %7772 = vmatpush1.bf16.xpose.msra.mxu0 0
        %7773 = vmatprep.subr.bf16.mxu0 0
        %7774 = vmatpush1.bf16.xpose.msra.mxu0 0
        %7775 = vmatprep.subr.bf16.mxu0 0
        %7776 = vmatpush1.bf16.xpose.msra.mxu0 0
        %7777 = vmatprep.subr.bf16.mxu0 0
        %7778 = vmatpush1.bf16.xpose.msra.mxu0 0
        %7779 = vmatprep.subr.bf16.mxu0 0
        %7780 = vmatpush1.bf16.xpose.msra.mxu0 0
        %7781 = vmatprep.subr.bf16.mxu0 0
        %7782 = vmatpush1.bf16.xpose.msra.mxu0 0
        %7783 = vmatprep.mubr.bf16.mxu0 0
        %7784 = vmatmul.mubr.bf16.gmra.mrb[0].mxu0 %v7746
        %v7785 = vpop.f32.mrb[0].mxu0
        %v7786 = vadd.f32 0.0, %v7785
        %v7787 = vpop.f32.mrb[0].mxu0
        %v7788 = vpop.f32.mrb[0].mxu0
        %v7789 = vpop.f32.mrb[0].mxu0
        %7790 = vdwg.mxu0
        %7791 = vrot.lane.b32.xlu0 %v5656, 112
        %v7792 = vpop.permute.xlu0 %7791
        %7793 = vrot.lane.b32.xlu0 %v5656, 80
        %v7794 = vpop.permute.xlu0 %7793
        %v7796 = vsel %vm833, %v7792, 0
        %v7799 = vsel %vm833, %v7794, 0
        %7801 = vmatprep.subr.bf16.mxu0 0
        %7802 = vmatpush1.bf16.xpose.msra.mxu0 %v7799
        %7803 = vmatprep.subr.bf16.mxu0 0
        %7804 = vmatpush1.bf16.xpose.msra.mxu0 0
        %7805 = vmatprep.subr.bf16.mxu0 0
        %7806 = vmatpush1.bf16.xpose.msra.mxu0 0
        %7807 = vmatprep.subr.bf16.mxu0 0
        %7808 = vmatpush1.bf16.xpose.msra.mxu0 0
        %7809 = vmatprep.subr.bf16.mxu0 0
        %7810 = vmatpush1.bf16.xpose.msra.mxu0 0
        %7811 = vmatprep.subr.bf16.mxu0 0
        %7812 = vmatpush1.bf16.xpose.msra.mxu0 0
        %7813 = vmatprep.subr.bf16.mxu0 0
        %7814 = vmatpush1.bf16.xpose.msra.mxu0 0
        %7815 = vmatprep.subr.bf16.mxu0 0
        %7816 = vmatpush1.bf16.xpose.msra.mxu0 0
        %7817 = vmatprep.subr.bf16.mxu0 0
        %7818 = vmatpush1.bf16.xpose.msra.mxu0 0
        %7819 = vmatprep.subr.bf16.mxu0 0
        %7820 = vmatpush1.bf16.xpose.msra.mxu0 0
        %7821 = vmatprep.subr.bf16.mxu0 0
        %7822 = vmatpush1.bf16.xpose.msra.mxu0 0
        %7823 = vmatprep.subr.bf16.mxu0 0
        %7824 = vmatpush1.bf16.xpose.msra.mxu0 0
        %7825 = vmatprep.subr.bf16.mxu0 0
        %7826 = vmatpush1.bf16.xpose.msra.mxu0 0
        %7827 = vmatprep.subr.bf16.mxu0 0
        %7828 = vmatpush1.bf16.xpose.msra.mxu0 0
        %7829 = vmatprep.subr.bf16.mxu0 0
        %7830 = vmatpush1.bf16.xpose.msra.mxu0 0
        %7831 = vmatprep.subr.bf16.mxu0 0
        %7832 = vmatpush1.bf16.xpose.msra.mxu0 0
        %7833 = vmatprep.mubr.bf16.mxu0 0
        %7834 = vmatmul.mubr.bf16.gmra.mrb[0].mxu0 %v7796
        %v7835 = vpop.f32.mrb[0].mxu0
        %v7836 = vadd.f32 0.0, %v7835
        %v7837 = vpop.f32.mrb[0].mxu0
        %v7838 = vpop.f32.mrb[0].mxu0
        %v7839 = vpop.f32.mrb[0].mxu0
        %7840 = vdwg.mxu0
        %7841 = vrot.lane.b32.xlu0 %v5657, 112
        %v7842 = vpop.permute.xlu0 %7841
        %7843 = vrot.lane.b32.xlu0 %v5657, 80
        %v7844 = vpop.permute.xlu0 %7843
        %v7846 = vsel %vm833, %v7842, 0
        %v7849 = vsel %vm833, %v7844, 0
        %7851 = vmatprep.subr.bf16.mxu0 0
        %7852 = vmatpush1.bf16.xpose.msra.mxu0 %v7849
        %7853 = vmatprep.subr.bf16.mxu0 0
        %7854 = vmatpush1.bf16.xpose.msra.mxu0 0
        %7855 = vmatprep.subr.bf16.mxu0 0
        %7856 = vmatpush1.bf16.xpose.msra.mxu0 0
        %7857 = vmatprep.subr.bf16.mxu0 0
        %7858 = vmatpush1.bf16.xpose.msra.mxu0 0
        %7859 = vmatprep.subr.bf16.mxu0 0
        %7860 = vmatpush1.bf16.xpose.msra.mxu0 0
        %7861 = vmatprep.subr.bf16.mxu0 0
        %7862 = vmatpush1.bf16.xpose.msra.mxu0 0
        %7863 = vmatprep.subr.bf16.mxu0 0
        %7864 = vmatpush1.bf16.xpose.msra.mxu0 0
        %7865 = vmatprep.subr.bf16.mxu0 0
        %7866 = vmatpush1.bf16.xpose.msra.mxu0 0
        %7867 = vmatprep.subr.bf16.mxu0 0
        %7868 = vmatpush1.bf16.xpose.msra.mxu0 0
        %7869 = vmatprep.subr.bf16.mxu0 0
        %7870 = vmatpush1.bf16.xpose.msra.mxu0 0
        %7871 = vmatprep.subr.bf16.mxu0 0
        %7872 = vmatpush1.bf16.xpose.msra.mxu0 0
        %7873 = vmatprep.subr.bf16.mxu0 0
        %7874 = vmatpush1.bf16.xpose.msra.mxu0 0
        %7875 = vmatprep.subr.bf16.mxu0 0
        %7876 = vmatpush1.bf16.xpose.msra.mxu0 0
        %7877 = vmatprep.subr.bf16.mxu0 0
        %7878 = vmatpush1.bf16.xpose.msra.mxu0 0
        %7879 = vmatprep.subr.bf16.mxu0 0
        %7880 = vmatpush1.bf16.xpose.msra.mxu0 0
        %7881 = vmatprep.subr.bf16.mxu0 0
        %7882 = vmatpush1.bf16.xpose.msra.mxu0 0
        %7883 = vmatprep.mubr.bf16.mxu0 0
        %7884 = vmatmul.mubr.bf16.gmra.mrb[0].mxu0 %v7846
        %v7885 = vpop.f32.mrb[0].mxu0
        %v7886 = vadd.f32 0.0, %v7885
        %v7887 = vpop.f32.mrb[0].mxu0
        %v7888 = vpop.f32.mrb[0].mxu0
        %v7889 = vpop.f32.mrb[0].mxu0
        %7890 = vdwg.mxu0
        %7891 = vrot.lane.b32.xlu0 %v5658, 112
        %v7892 = vpop.permute.xlu0 %7891
        %7893 = vrot.lane.b32.xlu0 %v5658, 80
        %v7894 = vpop.permute.xlu0 %7893
        %v7896 = vsel %vm833, %v7892, 0
        %v7899 = vsel %vm833, %v7894, 0
        %7901 = vmatprep.subr.bf16.mxu0 0
        %7902 = vmatpush1.bf16.xpose.msra.mxu0 %v7899
        %7903 = vmatprep.subr.bf16.mxu0 0
        %7904 = vmatpush1.bf16.xpose.msra.mxu0 0
        %7905 = vmatprep.subr.bf16.mxu0 0
        %7906 = vmatpush1.bf16.xpose.msra.mxu0 0
        %7907 = vmatprep.subr.bf16.mxu0 0
        %7908 = vmatpush1.bf16.xpose.msra.mxu0 0
        %7909 = vmatprep.subr.bf16.mxu0 0
        %7910 = vmatpush1.bf16.xpose.msra.mxu0 0
        %7911 = vmatprep.subr.bf16.mxu0 0
        %7912 = vmatpush1.bf16.xpose.msra.mxu0 0
        %7913 = vmatprep.subr.bf16.mxu0 0
        %7914 = vmatpush1.bf16.xpose.msra.mxu0 0
        %7915 = vmatprep.subr.bf16.mxu0 0
        %7916 = vmatpush1.bf16.xpose.msra.mxu0 0
        %7917 = vmatprep.subr.bf16.mxu0 0
        %7918 = vmatpush1.bf16.xpose.msra.mxu0 0
        %7919 = vmatprep.subr.bf16.mxu0 0
        %7920 = vmatpush1.bf16.xpose.msra.mxu0 0
        %7921 = vmatprep.subr.bf16.mxu0 0
        %7922 = vmatpush1.bf16.xpose.msra.mxu0 0
        %7923 = vmatprep.subr.bf16.mxu0 0
        %7924 = vmatpush1.bf16.xpose.msra.mxu0 0
        %7925 = vmatprep.subr.bf16.mxu0 0
        %7926 = vmatpush1.bf16.xpose.msra.mxu0 0
        %7927 = vmatprep.subr.bf16.mxu0 0
        %7928 = vmatpush1.bf16.xpose.msra.mxu0 0
        %7929 = vmatprep.subr.bf16.mxu0 0
        %7930 = vmatpush1.bf16.xpose.msra.mxu0 0
        %7931 = vmatprep.subr.bf16.mxu0 0
        %7932 = vmatpush1.bf16.xpose.msra.mxu0 0
        %7933 = vmatprep.mubr.bf16.mxu0 0
        %7934 = vmatmul.mubr.bf16.gmra.mrb[0].mxu0 %v7896
        %v7935 = vpop.f32.mrb[0].mxu0
        %v7936 = vadd.f32 0.0, %v7935
        %v7937 = vpop.f32.mrb[0].mxu0
        %v7938 = vpop.f32.mrb[0].mxu0
        %v7939 = vpop.f32.mrb[0].mxu0
        %7940 = vdwg.mxu0
        %7941 = vrot.lane.b32.xlu0 %v5659, 112
        %v7942 = vpop.permute.xlu0 %7941
        %7943 = vrot.lane.b32.xlu0 %v5659, 80
        %v7944 = vpop.permute.xlu0 %7943
        %v7946 = vsel %vm833, %v7942, 0
        %v7949 = vsel %vm833, %v7944, 0
        %7951 = vmatprep.subr.bf16.mxu0 0
        %7952 = vmatpush1.bf16.xpose.msra.mxu0 %v7949
        %7953 = vmatprep.subr.bf16.mxu0 0
        %7954 = vmatpush1.bf16.xpose.msra.mxu0 0
        %7955 = vmatprep.subr.bf16.mxu0 0
        %7956 = vmatpush1.bf16.xpose.msra.mxu0 0
        %7957 = vmatprep.subr.bf16.mxu0 0
        %7958 = vmatpush1.bf16.xpose.msra.mxu0 0
        %7959 = vmatprep.subr.bf16.mxu0 0
        %7960 = vmatpush1.bf16.xpose.msra.mxu0 0
        %7961 = vmatprep.subr.bf16.mxu0 0
        %7962 = vmatpush1.bf16.xpose.msra.mxu0 0
        %7963 = vmatprep.subr.bf16.mxu0 0
        %7964 = vmatpush1.bf16.xpose.msra.mxu0 0
        %7965 = vmatprep.subr.bf16.mxu0 0
        %7966 = vmatpush1.bf16.xpose.msra.mxu0 0
        %7967 = vmatprep.subr.bf16.mxu0 0
        %7968 = vmatpush1.bf16.xpose.msra.mxu0 0
        %7969 = vmatprep.subr.bf16.mxu0 0
        %7970 = vmatpush1.bf16.xpose.msra.mxu0 0
        %7971 = vmatprep.subr.bf16.mxu0 0
        %7972 = vmatpush1.bf16.xpose.msra.mxu0 0
        %7973 = vmatprep.subr.bf16.mxu0 0
        %7974 = vmatpush1.bf16.xpose.msra.mxu0 0
        %7975 = vmatprep.subr.bf16.mxu0 0
        %7976 = vmatpush1.bf16.xpose.msra.mxu0 0
        %7977 = vmatprep.subr.bf16.mxu0 0
        %7978 = vmatpush1.bf16.xpose.msra.mxu0 0
        %7979 = vmatprep.subr.bf16.mxu0 0
        %7980 = vmatpush1.bf16.xpose.msra.mxu0 0
        %7981 = vmatprep.subr.bf16.mxu0 0
        %7982 = vmatpush1.bf16.xpose.msra.mxu0 0
        %7983 = vmatprep.mubr.bf16.mxu0 0
        %7984 = vmatmul.mubr.bf16.gmra.mrb[0].mxu0 %v7946
        %v7985 = vpop.f32.mrb[0].mxu0
        %v7986 = vadd.f32 0.0, %v7985
        %v7987 = vpop.f32.mrb[0].mxu0
        %v7988 = vpop.f32.mrb[0].mxu0
        %v7989 = vpop.f32.mrb[0].mxu0
        %7990 = vdwg.mxu0
        %7991 = vrot.lane.b32.xlu0 %v5660, 112
        %v7992 = vpop.permute.xlu0 %7991
        %7993 = vrot.lane.b32.xlu0 %v5660, 80
        %v7994 = vpop.permute.xlu0 %7993
        %v7996 = vsel %vm833, %v7992, 0
        %v7999 = vsel %vm833, %v7994, 0
        %8001 = vmatprep.subr.bf16.mxu0 0
        %8002 = vmatpush1.bf16.xpose.msra.mxu0 %v7999
        %8003 = vmatprep.subr.bf16.mxu0 0
        %8004 = vmatpush1.bf16.xpose.msra.mxu0 0
        %8005 = vmatprep.subr.bf16.mxu0 0
        %8006 = vmatpush1.bf16.xpose.msra.mxu0 0
        %8007 = vmatprep.subr.bf16.mxu0 0
        %8008 = vmatpush1.bf16.xpose.msra.mxu0 0
        %8009 = vmatprep.subr.bf16.mxu0 0
        %8010 = vmatpush1.bf16.xpose.msra.mxu0 0
        %8011 = vmatprep.subr.bf16.mxu0 0
        %8012 = vmatpush1.bf16.xpose.msra.mxu0 0
        %8013 = vmatprep.subr.bf16.mxu0 0
        %8014 = vmatpush1.bf16.xpose.msra.mxu0 0
        %8015 = vmatprep.subr.bf16.mxu0 0
        %8016 = vmatpush1.bf16.xpose.msra.mxu0 0
        %8017 = vmatprep.subr.bf16.mxu0 0
        %8018 = vmatpush1.bf16.xpose.msra.mxu0 0
        %8019 = vmatprep.subr.bf16.mxu0 0
        %8020 = vmatpush1.bf16.xpose.msra.mxu0 0
        %8021 = vmatprep.subr.bf16.mxu0 0
        %8022 = vmatpush1.bf16.xpose.msra.mxu0 0
        %8023 = vmatprep.subr.bf16.mxu0 0
        %8024 = vmatpush1.bf16.xpose.msra.mxu0 0
        %8025 = vmatprep.subr.bf16.mxu0 0
        %8026 = vmatpush1.bf16.xpose.msra.mxu0 0
        %8027 = vmatprep.subr.bf16.mxu0 0
        %8028 = vmatpush1.bf16.xpose.msra.mxu0 0
        %8029 = vmatprep.subr.bf16.mxu0 0
        %8030 = vmatpush1.bf16.xpose.msra.mxu0 0
        %8031 = vmatprep.subr.bf16.mxu0 0
        %8032 = vmatpush1.bf16.xpose.msra.mxu0 0
        %8033 = vmatprep.mubr.bf16.mxu0 0
        %8034 = vmatmul.mubr.bf16.gmra.mrb[0].mxu0 %v7996
        %v8035 = vpop.f32.mrb[0].mxu0
        %v8036 = vadd.f32 0.0, %v8035
        %v8037 = vpop.f32.mrb[0].mxu0
        %v8038 = vpop.f32.mrb[0].mxu0
        %v8039 = vpop.f32.mrb[0].mxu0
        %8040 = vdwg.mxu0
        %8041 = vrot.lane.b32.xlu0 %v5661, 112
        %v8042 = vpop.permute.xlu0 %8041
        %8043 = vrot.lane.b32.xlu0 %v5661, 80
        %v8044 = vpop.permute.xlu0 %8043
        %v8046 = vsel %vm833, %v8042, 0
        %v8049 = vsel %vm833, %v8044, 0
        %8051 = vmatprep.subr.bf16.mxu0 0
        %8052 = vmatpush1.bf16.xpose.msra.mxu0 %v8049
        %8053 = vmatprep.subr.bf16.mxu0 0
        %8054 = vmatpush1.bf16.xpose.msra.mxu0 0
        %8055 = vmatprep.subr.bf16.mxu0 0
        %8056 = vmatpush1.bf16.xpose.msra.mxu0 0
        %8057 = vmatprep.subr.bf16.mxu0 0
        %8058 = vmatpush1.bf16.xpose.msra.mxu0 0
        %8059 = vmatprep.subr.bf16.mxu0 0
        %8060 = vmatpush1.bf16.xpose.msra.mxu0 0
        %8061 = vmatprep.subr.bf16.mxu0 0
        %8062 = vmatpush1.bf16.xpose.msra.mxu0 0
        %8063 = vmatprep.subr.bf16.mxu0 0
        %8064 = vmatpush1.bf16.xpose.msra.mxu0 0
        %8065 = vmatprep.subr.bf16.mxu0 0
        %8066 = vmatpush1.bf16.xpose.msra.mxu0 0
        %8067 = vmatprep.subr.bf16.mxu0 0
        %8068 = vmatpush1.bf16.xpose.msra.mxu0 0
        %8069 = vmatprep.subr.bf16.mxu0 0
        %8070 = vmatpush1.bf16.xpose.msra.mxu0 0
        %8071 = vmatprep.subr.bf16.mxu0 0
        %8072 = vmatpush1.bf16.xpose.msra.mxu0 0
        %8073 = vmatprep.subr.bf16.mxu0 0
        %8074 = vmatpush1.bf16.xpose.msra.mxu0 0
        %8075 = vmatprep.subr.bf16.mxu0 0
        %8076 = vmatpush1.bf16.xpose.msra.mxu0 0
        %8077 = vmatprep.subr.bf16.mxu0 0
        %8078 = vmatpush1.bf16.xpose.msra.mxu0 0
        %8079 = vmatprep.subr.bf16.mxu0 0
        %8080 = vmatpush1.bf16.xpose.msra.mxu0 0
        %8081 = vmatprep.subr.bf16.mxu0 0
        %8082 = vmatpush1.bf16.xpose.msra.mxu0 0
        %8083 = vmatprep.mubr.bf16.mxu0 0
        %8084 = vmatmul.mubr.bf16.gmra.mrb[0].mxu0 %v8046
        %v8085 = vpop.f32.mrb[0].mxu0
        %v8086 = vadd.f32 0.0, %v8085
        %v8087 = vpop.f32.mrb[0].mxu0
        %v8088 = vpop.f32.mrb[0].mxu0
        %v8089 = vpop.f32.mrb[0].mxu0
        %8090 = vdwg.mxu0
        %8091 = vrot.lane.b32.xlu0 %v5662, 112
        %v8092 = vpop.permute.xlu0 %8091
        %8093 = vrot.lane.b32.xlu0 %v5662, 80
        %v8094 = vpop.permute.xlu0 %8093
        %v8096 = vsel %vm833, %v8092, 0
        %v8099 = vsel %vm833, %v8094, 0
        %8101 = vmatprep.subr.bf16.mxu0 0
        %8102 = vmatpush1.bf16.xpose.msra.mxu0 %v8099
        %8103 = vmatprep.subr.bf16.mxu0 0
        %8104 = vmatpush1.bf16.xpose.msra.mxu0 0
        %8105 = vmatprep.subr.bf16.mxu0 0
        %8106 = vmatpush1.bf16.xpose.msra.mxu0 0
        %8107 = vmatprep.subr.bf16.mxu0 0
        %8108 = vmatpush1.bf16.xpose.msra.mxu0 0
        %8109 = vmatprep.subr.bf16.mxu0 0
        %8110 = vmatpush1.bf16.xpose.msra.mxu0 0
        %8111 = vmatprep.subr.bf16.mxu0 0
        %8112 = vmatpush1.bf16.xpose.msra.mxu0 0
        %8113 = vmatprep.subr.bf16.mxu0 0
        %8114 = vmatpush1.bf16.xpose.msra.mxu0 0
        %8115 = vmatprep.subr.bf16.mxu0 0
        %8116 = vmatpush1.bf16.xpose.msra.mxu0 0
        %8117 = vmatprep.subr.bf16.mxu0 0
        %8118 = vmatpush1.bf16.xpose.msra.mxu0 0
        %8119 = vmatprep.subr.bf16.mxu0 0
        %8120 = vmatpush1.bf16.xpose.msra.mxu0 0
        %8121 = vmatprep.subr.bf16.mxu0 0
        %8122 = vmatpush1.bf16.xpose.msra.mxu0 0
        %8123 = vmatprep.subr.bf16.mxu0 0
        %8124 = vmatpush1.bf16.xpose.msra.mxu0 0
        %8125 = vmatprep.subr.bf16.mxu0 0
        %8126 = vmatpush1.bf16.xpose.msra.mxu0 0
        %8127 = vmatprep.subr.bf16.mxu0 0
        %8128 = vmatpush1.bf16.xpose.msra.mxu0 0
        %8129 = vmatprep.subr.bf16.mxu0 0
        %8130 = vmatpush1.bf16.xpose.msra.mxu0 0
        %8131 = vmatprep.subr.bf16.mxu0 0
        %8132 = vmatpush1.bf16.xpose.msra.mxu0 0
        %8133 = vmatprep.mubr.bf16.mxu0 0
        %8134 = vmatmul.mubr.bf16.gmra.mrb[0].mxu0 %v8096
        %v8135 = vpop.f32.mrb[0].mxu0
        %v8136 = vadd.f32 0.0, %v8135
        %v8137 = vpop.f32.mrb[0].mxu0
        %v8138 = vpop.f32.mrb[0].mxu0
        %v8139 = vpop.f32.mrb[0].mxu0
        %8140 = vdwg.mxu0
        %8141 = vrot.lane.b32.xlu0 %v5663, 112
        %v8142 = vpop.permute.xlu0 %8141
        %8143 = vrot.lane.b32.xlu0 %v5663, 80
        %v8144 = vpop.permute.xlu0 %8143
        %v8146 = vsel %vm833, %v8142, 0
        %v8149 = vsel %vm833, %v8144, 0
        %8151 = vmatprep.subr.bf16.mxu0 0
        %8152 = vmatpush1.bf16.xpose.msra.mxu0 %v8149
        %8153 = vmatprep.subr.bf16.mxu0 0
        %8154 = vmatpush1.bf16.xpose.msra.mxu0 0
        %8155 = vmatprep.subr.bf16.mxu0 0
        %8156 = vmatpush1.bf16.xpose.msra.mxu0 0
        %8157 = vmatprep.subr.bf16.mxu0 0
        %8158 = vmatpush1.bf16.xpose.msra.mxu0 0
        %8159 = vmatprep.subr.bf16.mxu0 0
        %8160 = vmatpush1.bf16.xpose.msra.mxu0 0
        %8161 = vmatprep.subr.bf16.mxu0 0
        %8162 = vmatpush1.bf16.xpose.msra.mxu0 0
        %8163 = vmatprep.subr.bf16.mxu0 0
        %8164 = vmatpush1.bf16.xpose.msra.mxu0 0
        %8165 = vmatprep.subr.bf16.mxu0 0
        %8166 = vmatpush1.bf16.xpose.msra.mxu0 0
        %8167 = vmatprep.subr.bf16.mxu0 0
        %8168 = vmatpush1.bf16.xpose.msra.mxu0 0
        %8169 = vmatprep.subr.bf16.mxu0 0
        %8170 = vmatpush1.bf16.xpose.msra.mxu0 0
        %8171 = vmatprep.subr.bf16.mxu0 0
        %8172 = vmatpush1.bf16.xpose.msra.mxu0 0
        %8173 = vmatprep.subr.bf16.mxu0 0
        %8174 = vmatpush1.bf16.xpose.msra.mxu0 0
        %8175 = vmatprep.subr.bf16.mxu0 0
        %8176 = vmatpush1.bf16.xpose.msra.mxu0 0
        %8177 = vmatprep.subr.bf16.mxu0 0
        %8178 = vmatpush1.bf16.xpose.msra.mxu0 0
        %8179 = vmatprep.subr.bf16.mxu0 0
        %8180 = vmatpush1.bf16.xpose.msra.mxu0 0
        %8181 = vmatprep.subr.bf16.mxu0 0
        %8182 = vmatpush1.bf16.xpose.msra.mxu0 0
        %8183 = vmatprep.mubr.bf16.mxu0 0
        %8184 = vmatmul.mubr.bf16.gmra.mrb[0].mxu0 %v8146
        %v8185 = vpop.f32.mrb[0].mxu0
        %v8186 = vadd.f32 0.0, %v8185
        %v8187 = vpop.f32.mrb[0].mxu0
        %v8188 = vpop.f32.mrb[0].mxu0
        %v8189 = vpop.f32.mrb[0].mxu0
        %8190 = vdwg.mxu0
        %8191 = vrot.lane.b32.xlu0 %v5664, 112
        %v8192 = vpop.permute.xlu0 %8191
        %8193 = vrot.lane.b32.xlu0 %v5664, 80
        %v8194 = vpop.permute.xlu0 %8193
        %v8196 = vsel %vm833, %v8192, 0
        %v8199 = vsel %vm833, %v8194, 0
        %8201 = vmatprep.subr.bf16.mxu0 0
        %8202 = vmatpush1.bf16.xpose.msra.mxu0 %v8199
        %8203 = vmatprep.subr.bf16.mxu0 0
        %8204 = vmatpush1.bf16.xpose.msra.mxu0 0
        %8205 = vmatprep.subr.bf16.mxu0 0
        %8206 = vmatpush1.bf16.xpose.msra.mxu0 0
        %8207 = vmatprep.subr.bf16.mxu0 0
        %8208 = vmatpush1.bf16.xpose.msra.mxu0 0
        %8209 = vmatprep.subr.bf16.mxu0 0
        %8210 = vmatpush1.bf16.xpose.msra.mxu0 0
        %8211 = vmatprep.subr.bf16.mxu0 0
        %8212 = vmatpush1.bf16.xpose.msra.mxu0 0
        %8213 = vmatprep.subr.bf16.mxu0 0
        %8214 = vmatpush1.bf16.xpose.msra.mxu0 0
        %8215 = vmatprep.subr.bf16.mxu0 0
        %8216 = vmatpush1.bf16.xpose.msra.mxu0 0
        %8217 = vmatprep.subr.bf16.mxu0 0
        %8218 = vmatpush1.bf16.xpose.msra.mxu0 0
        %8219 = vmatprep.subr.bf16.mxu0 0
        %8220 = vmatpush1.bf16.xpose.msra.mxu0 0
        %8221 = vmatprep.subr.bf16.mxu0 0
        %8222 = vmatpush1.bf16.xpose.msra.mxu0 0
        %8223 = vmatprep.subr.bf16.mxu0 0
        %8224 = vmatpush1.bf16.xpose.msra.mxu0 0
        %8225 = vmatprep.subr.bf16.mxu0 0
        %8226 = vmatpush1.bf16.xpose.msra.mxu0 0
        %8227 = vmatprep.subr.bf16.mxu0 0
        %8228 = vmatpush1.bf16.xpose.msra.mxu0 0
        %8229 = vmatprep.subr.bf16.mxu0 0
        %8230 = vmatpush1.bf16.xpose.msra.mxu0 0
        %8231 = vmatprep.subr.bf16.mxu0 0
        %8232 = vmatpush1.bf16.xpose.msra.mxu0 0
        %8233 = vmatprep.mubr.bf16.mxu0 0
        %8234 = vmatmul.mubr.bf16.gmra.mrb[0].mxu0 %v8196
        %v8235 = vpop.f32.mrb[0].mxu0
        %v8236 = vadd.f32 0.0, %v8235
        %v8237 = vpop.f32.mrb[0].mxu0
        %v8238 = vpop.f32.mrb[0].mxu0
        %v8239 = vpop.f32.mrb[0].mxu0
        %8240 = vdwg.mxu0
        %v8241 = vmul.f32 %v7486, 0.25
        %v8242 = vmul.f32 %v7536, 0.25
        %v8243 = vmul.f32 %v7586, 0.25
        %v8244 = vmul.f32 %v7636, 0.25
        %v8245 = vmul.f32 %v7686, 0.25
        %v8246 = vmul.f32 %v7736, 0.25
        %v8247 = vmul.f32 %v7786, 0.25
        %v8248 = vmul.f32 %v7836, 0.25
        %v8249 = vmul.f32 %v7886, 0.25
        %v8250 = vmul.f32 %v7936, 0.25
        %v8251 = vmul.f32 %v7986, 0.25
        %v8252 = vmul.f32 %v8036, 0.25
        %v8253 = vmul.f32 %v8086, 0.25
        %v8254 = vmul.f32 %v8136, 0.25
        %v8255 = vmul.f32 %v8186, 0.25
        %v8256 = vmul.f32 %v8236, 0.25
        %v8257 = vadd.f32 %v8241, %v662
        %v8258 = vadd.f32 %v8242, %v662
        %v8259 = vadd.f32 %v8243, %v662
        %v8260 = vadd.f32 %v8244, %v662
        %v8261 = vadd.f32 %v8245, %v662
        %v8262 = vadd.f32 %v8246, %v662
        %v8263 = vadd.f32 %v8247, %v662
        %v8264 = vadd.f32 %v8248, %v662
        %v8265 = vadd.f32 %v8249, %v662
        %v8266 = vadd.f32 %v8250, %v662
        %v8267 = vadd.f32 %v8251, %v662
        %v8268 = vadd.f32 %v8252, %v662
        %v8269 = vadd.f32 %v8253, %v662
        %v8270 = vadd.f32 %v8254, %v662
        %v8271 = vadd.f32 %v8255, %v662
        %v8272 = vadd.f32 %v8256, %v662
        %v8273 = vsel %vm1647, %v8257, -inf
        %8274 = vmax.xlane.f32.xlu0 %v8273
        %v8275 = vpop.xlane.xlu0 %8274
        %v8276 = vsel %vm1647, %v8258, -inf
        %8277 = vmax.xlane.f32.xlu0 %v8276
        %v8278 = vpop.xlane.xlu0 %8277
        %v8279 = vsel %vm1647, %v8259, -inf
        %8280 = vmax.xlane.f32.xlu0 %v8279
        %v8281 = vpop.xlane.xlu0 %8280
        %v8282 = vsel %vm1647, %v8260, -inf
        %8283 = vmax.xlane.f32.xlu0 %v8282
        %v8284 = vpop.xlane.xlu0 %8283
        %v8285 = vsel %vm1647, %v8261, -inf
        %8286 = vmax.xlane.f32.xlu0 %v8285
        %v8287 = vpop.xlane.xlu0 %8286
        %v8288 = vsel %vm1647, %v8262, -inf
        %8289 = vmax.xlane.f32.xlu0 %v8288
        %v8290 = vpop.xlane.xlu0 %8289
        %v8291 = vsel %vm1647, %v8263, -inf
        %8292 = vmax.xlane.f32.xlu0 %v8291
        %v8293 = vpop.xlane.xlu0 %8292
        %v8294 = vsel %vm1647, %v8264, -inf
        %8295 = vmax.xlane.f32.xlu0 %v8294
        %v8296 = vpop.xlane.xlu0 %8295
        %v8297 = vsel %vm1647, %v8265, -inf
        %8298 = vmax.xlane.f32.xlu0 %v8297
        %v8299 = vpop.xlane.xlu0 %8298
        %v8300 = vsel %vm1647, %v8266, -inf
        %8301 = vmax.xlane.f32.xlu0 %v8300
        %v8302 = vpop.xlane.xlu0 %8301
        %v8303 = vsel %vm1647, %v8267, -inf
        %8304 = vmax.xlane.f32.xlu0 %v8303
        %v8305 = vpop.xlane.xlu0 %8304
        %v8306 = vsel %vm1647, %v8268, -inf
        %8307 = vmax.xlane.f32.xlu0 %v8306
        %v8308 = vpop.xlane.xlu0 %8307
        %v8309 = vsel %vm1647, %v8269, -inf
        %8310 = vmax.xlane.f32.xlu0 %v8309
        %v8311 = vpop.xlane.xlu0 %8310
        %v8312 = vsel %vm1647, %v8270, -inf
        %8313 = vmax.xlane.f32.xlu0 %v8312
        %v8314 = vpop.xlane.xlu0 %8313
        %v8315 = vsel %vm1647, %v8271, -inf
        %8316 = vmax.xlane.f32.xlu0 %v8315
        %v8317 = vpop.xlane.xlu0 %8316
        %v8318 = vsel %vm1647, %v8272, -inf
        %8319 = vmax.xlane.f32.xlu0 %v8318
        %v8320 = vpop.xlane.xlu0 %8319
        %v8321 = vsub.f32 %v8257, %v8275
        %v8322 = vsub.f32 %v8258, %v8278
        %v8323 = vsub.f32 %v8259, %v8281
        %v8324 = vsub.f32 %v8260, %v8284
        %v8325 = vsub.f32 %v8261, %v8287
        %v8326 = vsub.f32 %v8262, %v8290
        %v8327 = vsub.f32 %v8263, %v8293
        %v8328 = vsub.f32 %v8264, %v8296
        %v8329 = vsub.f32 %v8265, %v8299
        %v8330 = vsub.f32 %v8266, %v8302
        %v8331 = vsub.f32 %v8267, %v8305
        %v8332 = vsub.f32 %v8268, %v8308
        %v8333 = vsub.f32 %v8269, %v8311
        %v8334 = vsub.f32 %v8270, %v8314
        %v8335 = vsub.f32 %v8271, %v8317
        %v8336 = vsub.f32 %v8272, %v8320
        %v8337 = vmul.f32 %v8321, 1.442695
        %v8338 = vpow.pop %v8337
        %v8339 = vmul.f32 %v8322, 1.442695
        %v8340 = vpow.pop %v8339
        %v8341 = vmul.f32 %v8323, 1.442695
        %v8342 = vpow.pop %v8341
        %v8343 = vmul.f32 %v8324, 1.442695
        %v8344 = vpow.pop %v8343
        %v8345 = vmul.f32 %v8325, 1.442695
        %v8346 = vpow.pop %v8345
        %v8347 = vmul.f32 %v8326, 1.442695
        %v8348 = vpow.pop %v8347
        %v8349 = vmul.f32 %v8327, 1.442695
        %v8350 = vpow.pop %v8349
        %v8351 = vmul.f32 %v8328, 1.442695
        %v8352 = vpow.pop %v8351
        %v8353 = vmul.f32 %v8329, 1.442695
        %v8354 = vpow.pop %v8353
        %v8355 = vmul.f32 %v8330, 1.442695
        %v8356 = vpow.pop %v8355
        %v8357 = vmul.f32 %v8331, 1.442695
        %v8358 = vpow.pop %v8357
        %v8359 = vmul.f32 %v8332, 1.442695
        %v8360 = vpow.pop %v8359
        %v8361 = vmul.f32 %v8333, 1.442695
        %v8362 = vpow.pop %v8361
        %v8363 = vmul.f32 %v8334, 1.442695
        %v8364 = vpow.pop %v8363
        %v8365 = vmul.f32 %v8335, 1.442695
        %v8366 = vpow.pop %v8365
        %v8367 = vmul.f32 %v8336, 1.442695
        %v8368 = vpow.pop %v8367
        %v8369 = vsel %vm1647, %v8338, 0.0
        %8370 = vadd.xlane.f32.xlu0 %v8369
        %v8371 = vpop.xlane.xlu0 %8370
        %v8372 = vsel %vm1647, %v8340, 0.0
        %8373 = vadd.xlane.f32.xlu0 %v8372
        %v8374 = vpop.xlane.xlu0 %8373
        %v8375 = vsel %vm1647, %v8342, 0.0
        %8376 = vadd.xlane.f32.xlu0 %v8375
        %v8377 = vpop.xlane.xlu0 %8376
        %v8378 = vsel %vm1647, %v8344, 0.0
        %8379 = vadd.xlane.f32.xlu0 %v8378
        %v8380 = vpop.xlane.xlu0 %8379
        %v8381 = vsel %vm1647, %v8346, 0.0
        %8382 = vadd.xlane.f32.xlu0 %v8381
        %v8383 = vpop.xlane.xlu0 %8382
        %v8384 = vsel %vm1647, %v8348, 0.0
        %8385 = vadd.xlane.f32.xlu0 %v8384
        %v8386 = vpop.xlane.xlu0 %8385
        %v8387 = vsel %vm1647, %v8350, 0.0
        %8388 = vadd.xlane.f32.xlu0 %v8387
        %v8389 = vpop.xlane.xlu0 %8388
        %v8390 = vsel %vm1647, %v8352, 0.0
        %8391 = vadd.xlane.f32.xlu0 %v8390
        %v8392 = vpop.xlane.xlu0 %8391
        %v8393 = vsel %vm1647, %v8354, 0.0
        %8394 = vadd.xlane.f32.xlu0 %v8393
        %v8395 = vpop.xlane.xlu0 %8394
        %v8396 = vsel %vm1647, %v8356, 0.0
        %8397 = vadd.xlane.f32.xlu0 %v8396
        %v8398 = vpop.xlane.xlu0 %8397
        %v8399 = vsel %vm1647, %v8358, 0.0
        %8400 = vadd.xlane.f32.xlu0 %v8399
        %v8401 = vpop.xlane.xlu0 %8400
        %v8402 = vsel %vm1647, %v8360, 0.0
        %8403 = vadd.xlane.f32.xlu0 %v8402
        %v8404 = vpop.xlane.xlu0 %8403
        %v8405 = vsel %vm1647, %v8362, 0.0
        %8406 = vadd.xlane.f32.xlu0 %v8405
        %v8407 = vpop.xlane.xlu0 %8406
        %v8408 = vsel %vm1647, %v8364, 0.0
        %8409 = vadd.xlane.f32.xlu0 %v8408
        %v8410 = vpop.xlane.xlu0 %8409
        %v8411 = vsel %vm1647, %v8366, 0.0
        %8412 = vadd.xlane.f32.xlu0 %v8411
        %v8413 = vpop.xlane.xlu0 %8412
        %v8414 = vsel %vm1647, %v8368, 0.0
        %8415 = vadd.xlane.f32.xlu0 %v8414
        %v8416 = vpop.xlane.xlu0 %8415
        %v8417 = vrcp.pop %v8371
        %v8418 = vrcp.pop %v8374
        %v8419 = vrcp.pop %v8377
        %v8420 = vrcp.pop %v8380
        %v8421 = vrcp.pop %v8383
        %v8422 = vrcp.pop %v8386
        %v8423 = vrcp.pop %v8389
        %v8424 = vrcp.pop %v8392
        %v8425 = vrcp.pop %v8395
        %v8426 = vrcp.pop %v8398
        %v8427 = vrcp.pop %v8401
        %v8428 = vrcp.pop %v8404
        %v8429 = vrcp.pop %v8407
        %v8430 = vrcp.pop %v8410
        %v8431 = vrcp.pop %v8413
        %v8432 = vrcp.pop %v8416
        %v8433 = vmul.f32 %v8338, %v8417
        %v8434 = vmul.f32 %v8340, %v8418
        %v8435 = vmul.f32 %v8342, %v8419
        %v8436 = vmul.f32 %v8344, %v8420
        %v8437 = vmul.f32 %v8346, %v8421
        %v8438 = vmul.f32 %v8348, %v8422
        %v8439 = vmul.f32 %v8350, %v8423
        %v8440 = vmul.f32 %v8352, %v8424
        %v8441 = vmul.f32 %v8354, %v8425
        %v8442 = vmul.f32 %v8356, %v8426
        %v8443 = vmul.f32 %v8358, %v8427
        %v8444 = vmul.f32 %v8360, %v8428
        %v8445 = vmul.f32 %v8362, %v8429
        %v8446 = vmul.f32 %v8364, %v8430
        %v8447 = vmul.f32 %v8366, %v8431
        %v8448 = vmul.f32 %v8368, %v8432
        %v8449 = vpack.c.bf16 %v8433, %v8433
        %v8450 = vpack.c.bf16 %v8434, %v8434
        %v8451 = vpack.c.bf16 %v8435, %v8435
        %v8452 = vpack.c.bf16 %v8436, %v8436
        %v8453 = vpack.c.bf16 %v8437, %v8437
        %v8454 = vpack.c.bf16 %v8438, %v8438
        %v8455 = vpack.c.bf16 %v8439, %v8439
        %v8456 = vpack.c.bf16 %v8440, %v8440
        %v8457 = vpack.c.bf16 %v8441, %v8441
        %v8458 = vpack.c.bf16 %v8442, %v8442
        %v8459 = vpack.c.bf16 %v8443, %v8443
        %v8460 = vpack.c.bf16 %v8444, %v8444
        %v8461 = vpack.c.bf16 %v8445, %v8445
        %v8462 = vpack.c.bf16 %v8446, %v8446
        %v8463 = vpack.c.bf16 %v8447, %v8447
        %v8464 = vpack.c.bf16 %v8448, %v8448
        %8465 = vrot.lane.b32.xlu0 %v5649, 48
        %v8466 = vpop.permute.xlu0 %8465
        %v8468 = vsel %vm1647, %v8449, 0
        %v8471 = vsel %vm1845, %v8466, 0
        %8473 = vmatprep.subr.bf16.mxu0 0
        %8474 = vmatpush1.bf16.msra.mxu0 %v8471
        %8475 = vmatprep.subr.bf16.mxu0 0
        %8476 = vmatpush1.bf16.msra.mxu0 0
        %8477 = vmatprep.subr.bf16.mxu0 0
        %8478 = vmatpush1.bf16.msra.mxu0 0
        %8479 = vmatprep.subr.bf16.mxu0 0
        %8480 = vmatpush1.bf16.msra.mxu0 0
        %8481 = vmatprep.subr.bf16.mxu0 0
        %8482 = vmatpush1.bf16.msra.mxu0 0
        %8483 = vmatprep.subr.bf16.mxu0 0
        %8484 = vmatpush1.bf16.msra.mxu0 0
        %8485 = vmatprep.subr.bf16.mxu0 0
        %8486 = vmatpush1.bf16.msra.mxu0 0
        %8487 = vmatprep.subr.bf16.mxu0 0
        %8488 = vmatpush1.bf16.msra.mxu0 0
        %8489 = vmatprep.subr.bf16.mxu0 0
        %8490 = vmatpush1.bf16.msra.mxu0 0
        %8491 = vmatprep.subr.bf16.mxu0 0
        %8492 = vmatpush1.bf16.msra.mxu0 0
        %8493 = vmatprep.subr.bf16.mxu0 0
        %8494 = vmatpush1.bf16.msra.mxu0 0
        %8495 = vmatprep.subr.bf16.mxu0 0
        %8496 = vmatpush1.bf16.msra.mxu0 0
        %8497 = vmatprep.subr.bf16.mxu0 0
        %8498 = vmatpush1.bf16.msra.mxu0 0
        %8499 = vmatprep.subr.bf16.mxu0 0
        %8500 = vmatpush1.bf16.msra.mxu0 0
        %8501 = vmatprep.subr.bf16.mxu0 0
        %8502 = vmatpush1.bf16.msra.mxu0 0
        %8503 = vmatprep.subr.bf16.mxu0 0
        %8504 = vmatpush1.bf16.msra.mxu0 0
        %8505 = vmatprep.mubr.bf16.mxu0 0
        %8506 = vmatmul.mubr.bf16.gmra.mrb[0].mxu0 %v8468
        %v8507 = vpop.f32.mrb[0].mxu0
        %v8508 = vadd.f32 0.0, %v8507
        %v8509 = vpop.f32.mrb[0].mxu0
        %v8510 = vpop.f32.mrb[0].mxu0
        %v8511 = vpop.f32.mrb[0].mxu0
        %8512 = vdwg.mxu0
        %8513 = vrot.lane.b32.xlu0 %v5650, 48
        %v8514 = vpop.permute.xlu0 %8513
        %v8516 = vsel %vm1647, %v8450, 0
        %v8519 = vsel %vm1845, %v8514, 0
        %8521 = vmatprep.subr.bf16.mxu0 0
        %8522 = vmatpush1.bf16.msra.mxu0 %v8519
        %8523 = vmatprep.subr.bf16.mxu0 0
        %8524 = vmatpush1.bf16.msra.mxu0 0
        %8525 = vmatprep.subr.bf16.mxu0 0
        %8526 = vmatpush1.bf16.msra.mxu0 0
        %8527 = vmatprep.subr.bf16.mxu0 0
        %8528 = vmatpush1.bf16.msra.mxu0 0
        %8529 = vmatprep.subr.bf16.mxu0 0
        %8530 = vmatpush1.bf16.msra.mxu0 0
        %8531 = vmatprep.subr.bf16.mxu0 0
        %8532 = vmatpush1.bf16.msra.mxu0 0
        %8533 = vmatprep.subr.bf16.mxu0 0
        %8534 = vmatpush1.bf16.msra.mxu0 0
        %8535 = vmatprep.subr.bf16.mxu0 0
        %8536 = vmatpush1.bf16.msra.mxu0 0
        %8537 = vmatprep.subr.bf16.mxu0 0
        %8538 = vmatpush1.bf16.msra.mxu0 0
        %8539 = vmatprep.subr.bf16.mxu0 0
        %8540 = vmatpush1.bf16.msra.mxu0 0
        %8541 = vmatprep.subr.bf16.mxu0 0
        %8542 = vmatpush1.bf16.msra.mxu0 0
        %8543 = vmatprep.subr.bf16.mxu0 0
        %8544 = vmatpush1.bf16.msra.mxu0 0
        %8545 = vmatprep.subr.bf16.mxu0 0
        %8546 = vmatpush1.bf16.msra.mxu0 0
        %8547 = vmatprep.subr.bf16.mxu0 0
        %8548 = vmatpush1.bf16.msra.mxu0 0
        %8549 = vmatprep.subr.bf16.mxu0 0
        %8550 = vmatpush1.bf16.msra.mxu0 0
        %8551 = vmatprep.subr.bf16.mxu0 0
        %8552 = vmatpush1.bf16.msra.mxu0 0
        %8553 = vmatprep.mubr.bf16.mxu0 0
        %8554 = vmatmul.mubr.bf16.gmra.mrb[0].mxu0 %v8516
        %v8555 = vpop.f32.mrb[0].mxu0
        %v8556 = vadd.f32 0.0, %v8555
        %v8557 = vpop.f32.mrb[0].mxu0
        %v8558 = vpop.f32.mrb[0].mxu0
        %v8559 = vpop.f32.mrb[0].mxu0
        %8560 = vdwg.mxu0
        %8561 = vrot.lane.b32.xlu0 %v5651, 48
        %v8562 = vpop.permute.xlu0 %8561
        %v8564 = vsel %vm1647, %v8451, 0
        %v8567 = vsel %vm1845, %v8562, 0
        %8569 = vmatprep.subr.bf16.mxu0 0
        %8570 = vmatpush1.bf16.msra.mxu0 %v8567
        %8571 = vmatprep.subr.bf16.mxu0 0
        %8572 = vmatpush1.bf16.msra.mxu0 0
        %8573 = vmatprep.subr.bf16.mxu0 0
        %8574 = vmatpush1.bf16.msra.mxu0 0
        %8575 = vmatprep.subr.bf16.mxu0 0
        %8576 = vmatpush1.bf16.msra.mxu0 0
        %8577 = vmatprep.subr.bf16.mxu0 0
        %8578 = vmatpush1.bf16.msra.mxu0 0
        %8579 = vmatprep.subr.bf16.mxu0 0
        %8580 = vmatpush1.bf16.msra.mxu0 0
        %8581 = vmatprep.subr.bf16.mxu0 0
        %8582 = vmatpush1.bf16.msra.mxu0 0
        %8583 = vmatprep.subr.bf16.mxu0 0
        %8584 = vmatpush1.bf16.msra.mxu0 0
        %8585 = vmatprep.subr.bf16.mxu0 0
        %8586 = vmatpush1.bf16.msra.mxu0 0
        %8587 = vmatprep.subr.bf16.mxu0 0
        %8588 = vmatpush1.bf16.msra.mxu0 0
        %8589 = vmatprep.subr.bf16.mxu0 0
        %8590 = vmatpush1.bf16.msra.mxu0 0
        %8591 = vmatprep.subr.bf16.mxu0 0
        %8592 = vmatpush1.bf16.msra.mxu0 0
        %8593 = vmatprep.subr.bf16.mxu0 0
        %8594 = vmatpush1.bf16.msra.mxu0 0
        %8595 = vmatprep.subr.bf16.mxu0 0
        %8596 = vmatpush1.bf16.msra.mxu0 0
        %8597 = vmatprep.subr.bf16.mxu0 0
        %8598 = vmatpush1.bf16.msra.mxu0 0
        %8599 = vmatprep.subr.bf16.mxu0 0
        %8600 = vmatpush1.bf16.msra.mxu0 0
        %8601 = vmatprep.mubr.bf16.mxu0 0
        %8602 = vmatmul.mubr.bf16.gmra.mrb[0].mxu0 %v8564
        %v8603 = vpop.f32.mrb[0].mxu0
        %v8604 = vadd.f32 0.0, %v8603
        %v8605 = vpop.f32.mrb[0].mxu0
        %v8606 = vpop.f32.mrb[0].mxu0
        %v8607 = vpop.f32.mrb[0].mxu0
        %8608 = vdwg.mxu0
        %8609 = vrot.lane.b32.xlu0 %v5652, 48
        %v8610 = vpop.permute.xlu0 %8609
        %v8612 = vsel %vm1647, %v8452, 0
        %v8615 = vsel %vm1845, %v8610, 0
        %8617 = vmatprep.subr.bf16.mxu0 0
        %8618 = vmatpush1.bf16.msra.mxu0 %v8615
        %8619 = vmatprep.subr.bf16.mxu0 0
        %8620 = vmatpush1.bf16.msra.mxu0 0
        %8621 = vmatprep.subr.bf16.mxu0 0
        %8622 = vmatpush1.bf16.msra.mxu0 0
        %8623 = vmatprep.subr.bf16.mxu0 0
        %8624 = vmatpush1.bf16.msra.mxu0 0
        %8625 = vmatprep.subr.bf16.mxu0 0
        %8626 = vmatpush1.bf16.msra.mxu0 0
        %8627 = vmatprep.subr.bf16.mxu0 0
        %8628 = vmatpush1.bf16.msra.mxu0 0
        %8629 = vmatprep.subr.bf16.mxu0 0
        %8630 = vmatpush1.bf16.msra.mxu0 0
        %8631 = vmatprep.subr.bf16.mxu0 0
        %8632 = vmatpush1.bf16.msra.mxu0 0
        %8633 = vmatprep.subr.bf16.mxu0 0
        %8634 = vmatpush1.bf16.msra.mxu0 0
        %8635 = vmatprep.subr.bf16.mxu0 0
        %8636 = vmatpush1.bf16.msra.mxu0 0
        %8637 = vmatprep.subr.bf16.mxu0 0
        %8638 = vmatpush1.bf16.msra.mxu0 0
        %8639 = vmatprep.subr.bf16.mxu0 0
        %8640 = vmatpush1.bf16.msra.mxu0 0
        %8641 = vmatprep.subr.bf16.mxu0 0
        %8642 = vmatpush1.bf16.msra.mxu0 0
        %8643 = vmatprep.subr.bf16.mxu0 0
        %8644 = vmatpush1.bf16.msra.mxu0 0
        %8645 = vmatprep.subr.bf16.mxu0 0
        %8646 = vmatpush1.bf16.msra.mxu0 0
        %8647 = vmatprep.subr.bf16.mxu0 0
        %8648 = vmatpush1.bf16.msra.mxu0 0
        %8649 = vmatprep.mubr.bf16.mxu0 0
        %8650 = vmatmul.mubr.bf16.gmra.mrb[0].mxu0 %v8612
        %v8651 = vpop.f32.mrb[0].mxu0
        %v8652 = vadd.f32 0.0, %v8651
        %v8653 = vpop.f32.mrb[0].mxu0
        %v8654 = vpop.f32.mrb[0].mxu0
        %v8655 = vpop.f32.mrb[0].mxu0
        %8656 = vdwg.mxu0
        %8657 = vrot.lane.b32.xlu0 %v5653, 48
        %v8658 = vpop.permute.xlu0 %8657
        %v8660 = vsel %vm1647, %v8453, 0
        %v8663 = vsel %vm1845, %v8658, 0
        %8665 = vmatprep.subr.bf16.mxu0 0
        %8666 = vmatpush1.bf16.msra.mxu0 %v8663
        %8667 = vmatprep.subr.bf16.mxu0 0
        %8668 = vmatpush1.bf16.msra.mxu0 0
        %8669 = vmatprep.subr.bf16.mxu0 0
        %8670 = vmatpush1.bf16.msra.mxu0 0
        %8671 = vmatprep.subr.bf16.mxu0 0
        %8672 = vmatpush1.bf16.msra.mxu0 0
        %8673 = vmatprep.subr.bf16.mxu0 0
        %8674 = vmatpush1.bf16.msra.mxu0 0
        %8675 = vmatprep.subr.bf16.mxu0 0
        %8676 = vmatpush1.bf16.msra.mxu0 0
        %8677 = vmatprep.subr.bf16.mxu0 0
        %8678 = vmatpush1.bf16.msra.mxu0 0
        %8679 = vmatprep.subr.bf16.mxu0 0
        %8680 = vmatpush1.bf16.msra.mxu0 0
        %8681 = vmatprep.subr.bf16.mxu0 0
        %8682 = vmatpush1.bf16.msra.mxu0 0
        %8683 = vmatprep.subr.bf16.mxu0 0
        %8684 = vmatpush1.bf16.msra.mxu0 0
        %8685 = vmatprep.subr.bf16.mxu0 0
        %8686 = vmatpush1.bf16.msra.mxu0 0
        %8687 = vmatprep.subr.bf16.mxu0 0
        %8688 = vmatpush1.bf16.msra.mxu0 0
        %8689 = vmatprep.subr.bf16.mxu0 0
        %8690 = vmatpush1.bf16.msra.mxu0 0
        %8691 = vmatprep.subr.bf16.mxu0 0
        %8692 = vmatpush1.bf16.msra.mxu0 0
        %8693 = vmatprep.subr.bf16.mxu0 0
        %8694 = vmatpush1.bf16.msra.mxu0 0
        %8695 = vmatprep.subr.bf16.mxu0 0
        %8696 = vmatpush1.bf16.msra.mxu0 0
        %8697 = vmatprep.mubr.bf16.mxu0 0
        %8698 = vmatmul.mubr.bf16.gmra.mrb[0].mxu0 %v8660
        %v8699 = vpop.f32.mrb[0].mxu0
        %v8700 = vadd.f32 0.0, %v8699
        %v8701 = vpop.f32.mrb[0].mxu0
        %v8702 = vpop.f32.mrb[0].mxu0
        %v8703 = vpop.f32.mrb[0].mxu0
        %8704 = vdwg.mxu0
        %8705 = vrot.lane.b32.xlu0 %v5654, 48
        %v8706 = vpop.permute.xlu0 %8705
        %v8708 = vsel %vm1647, %v8454, 0
        %v8711 = vsel %vm1845, %v8706, 0
        %8713 = vmatprep.subr.bf16.mxu0 0
        %8714 = vmatpush1.bf16.msra.mxu0 %v8711
        %8715 = vmatprep.subr.bf16.mxu0 0
        %8716 = vmatpush1.bf16.msra.mxu0 0
        %8717 = vmatprep.subr.bf16.mxu0 0
        %8718 = vmatpush1.bf16.msra.mxu0 0
        %8719 = vmatprep.subr.bf16.mxu0 0
        %8720 = vmatpush1.bf16.msra.mxu0 0
        %8721 = vmatprep.subr.bf16.mxu0 0
        %8722 = vmatpush1.bf16.msra.mxu0 0
        %8723 = vmatprep.subr.bf16.mxu0 0
        %8724 = vmatpush1.bf16.msra.mxu0 0
        %8725 = vmatprep.subr.bf16.mxu0 0
        %8726 = vmatpush1.bf16.msra.mxu0 0
        %8727 = vmatprep.subr.bf16.mxu0 0
        %8728 = vmatpush1.bf16.msra.mxu0 0
        %8729 = vmatprep.subr.bf16.mxu0 0
        %8730 = vmatpush1.bf16.msra.mxu0 0
        %8731 = vmatprep.subr.bf16.mxu0 0
        %8732 = vmatpush1.bf16.msra.mxu0 0
        %8733 = vmatprep.subr.bf16.mxu0 0
        %8734 = vmatpush1.bf16.msra.mxu0 0
        %8735 = vmatprep.subr.bf16.mxu0 0
        %8736 = vmatpush1.bf16.msra.mxu0 0
        %8737 = vmatprep.subr.bf16.mxu0 0
        %8738 = vmatpush1.bf16.msra.mxu0 0
        %8739 = vmatprep.subr.bf16.mxu0 0
        %8740 = vmatpush1.bf16.msra.mxu0 0
        %8741 = vmatprep.subr.bf16.mxu0 0
        %8742 = vmatpush1.bf16.msra.mxu0 0
        %8743 = vmatprep.subr.bf16.mxu0 0
        %8744 = vmatpush1.bf16.msra.mxu0 0
        %8745 = vmatprep.mubr.bf16.mxu0 0
        %8746 = vmatmul.mubr.bf16.gmra.mrb[0].mxu0 %v8708
        %v8747 = vpop.f32.mrb[0].mxu0
        %v8748 = vadd.f32 0.0, %v8747
        %v8749 = vpop.f32.mrb[0].mxu0
        %v8750 = vpop.f32.mrb[0].mxu0
        %v8751 = vpop.f32.mrb[0].mxu0
        %8752 = vdwg.mxu0
        %8753 = vrot.lane.b32.xlu0 %v5655, 48
        %v8754 = vpop.permute.xlu0 %8753
        %v8756 = vsel %vm1647, %v8455, 0
        %v8759 = vsel %vm1845, %v8754, 0
        %8761 = vmatprep.subr.bf16.mxu0 0
        %8762 = vmatpush1.bf16.msra.mxu0 %v8759
        %8763 = vmatprep.subr.bf16.mxu0 0
        %8764 = vmatpush1.bf16.msra.mxu0 0
        %8765 = vmatprep.subr.bf16.mxu0 0
        %8766 = vmatpush1.bf16.msra.mxu0 0
        %8767 = vmatprep.subr.bf16.mxu0 0
        %8768 = vmatpush1.bf16.msra.mxu0 0
        %8769 = vmatprep.subr.bf16.mxu0 0
        %8770 = vmatpush1.bf16.msra.mxu0 0
        %8771 = vmatprep.subr.bf16.mxu0 0
        %8772 = vmatpush1.bf16.msra.mxu0 0
        %8773 = vmatprep.subr.bf16.mxu0 0
        %8774 = vmatpush1.bf16.msra.mxu0 0
        %8775 = vmatprep.subr.bf16.mxu0 0
        %8776 = vmatpush1.bf16.msra.mxu0 0
        %8777 = vmatprep.subr.bf16.mxu0 0
        %8778 = vmatpush1.bf16.msra.mxu0 0
        %8779 = vmatprep.subr.bf16.mxu0 0
        %8780 = vmatpush1.bf16.msra.mxu0 0
        %8781 = vmatprep.subr.bf16.mxu0 0
        %8782 = vmatpush1.bf16.msra.mxu0 0
        %8783 = vmatprep.subr.bf16.mxu0 0
        %8784 = vmatpush1.bf16.msra.mxu0 0
        %8785 = vmatprep.subr.bf16.mxu0 0
        %8786 = vmatpush1.bf16.msra.mxu0 0
        %8787 = vmatprep.subr.bf16.mxu0 0
        %8788 = vmatpush1.bf16.msra.mxu0 0
        %8789 = vmatprep.subr.bf16.mxu0 0
        %8790 = vmatpush1.bf16.msra.mxu0 0
        %8791 = vmatprep.subr.bf16.mxu0 0
        %8792 = vmatpush1.bf16.msra.mxu0 0
        %8793 = vmatprep.mubr.bf16.mxu0 0
        %8794 = vmatmul.mubr.bf16.gmra.mrb[0].mxu0 %v8756
        %v8795 = vpop.f32.mrb[0].mxu0
        %v8796 = vadd.f32 0.0, %v8795
        %v8797 = vpop.f32.mrb[0].mxu0
        %v8798 = vpop.f32.mrb[0].mxu0
        %v8799 = vpop.f32.mrb[0].mxu0
        %8800 = vdwg.mxu0
        %8801 = vrot.lane.b32.xlu0 %v5656, 48
        %v8802 = vpop.permute.xlu0 %8801
        %v8804 = vsel %vm1647, %v8456, 0
        %v8807 = vsel %vm1845, %v8802, 0
        %8809 = vmatprep.subr.bf16.mxu0 0
        %8810 = vmatpush1.bf16.msra.mxu0 %v8807
        %8811 = vmatprep.subr.bf16.mxu0 0
        %8812 = vmatpush1.bf16.msra.mxu0 0
        %8813 = vmatprep.subr.bf16.mxu0 0
        %8814 = vmatpush1.bf16.msra.mxu0 0
        %8815 = vmatprep.subr.bf16.mxu0 0
        %8816 = vmatpush1.bf16.msra.mxu0 0
        %8817 = vmatprep.subr.bf16.mxu0 0
        %8818 = vmatpush1.bf16.msra.mxu0 0
        %8819 = vmatprep.subr.bf16.mxu0 0
        %8820 = vmatpush1.bf16.msra.mxu0 0
        %8821 = vmatprep.subr.bf16.mxu0 0
        %8822 = vmatpush1.bf16.msra.mxu0 0
        %8823 = vmatprep.subr.bf16.mxu0 0
        %8824 = vmatpush1.bf16.msra.mxu0 0
        %8825 = vmatprep.subr.bf16.mxu0 0
        %8826 = vmatpush1.bf16.msra.mxu0 0
        %8827 = vmatprep.subr.bf16.mxu0 0
        %8828 = vmatpush1.bf16.msra.mxu0 0
        %8829 = vmatprep.subr.bf16.mxu0 0
        %8830 = vmatpush1.bf16.msra.mxu0 0
        %8831 = vmatprep.subr.bf16.mxu0 0
        %8832 = vmatpush1.bf16.msra.mxu0 0
        %8833 = vmatprep.subr.bf16.mxu0 0
        %8834 = vmatpush1.bf16.msra.mxu0 0
        %8835 = vmatprep.subr.bf16.mxu0 0
        %8836 = vmatpush1.bf16.msra.mxu0 0
        %8837 = vmatprep.subr.bf16.mxu0 0
        %8838 = vmatpush1.bf16.msra.mxu0 0
        %8839 = vmatprep.subr.bf16.mxu0 0
        %8840 = vmatpush1.bf16.msra.mxu0 0
        %8841 = vmatprep.mubr.bf16.mxu0 0
        %8842 = vmatmul.mubr.bf16.gmra.mrb[0].mxu0 %v8804
        %v8843 = vpop.f32.mrb[0].mxu0
        %v8844 = vadd.f32 0.0, %v8843
        %v8845 = vpop.f32.mrb[0].mxu0
        %v8846 = vpop.f32.mrb[0].mxu0
        %v8847 = vpop.f32.mrb[0].mxu0
        %8848 = vdwg.mxu0
        %8849 = vrot.lane.b32.xlu0 %v5657, 48
        %v8850 = vpop.permute.xlu0 %8849
        %v8852 = vsel %vm1647, %v8457, 0
        %v8855 = vsel %vm1845, %v8850, 0
        %8857 = vmatprep.subr.bf16.mxu0 0
        %8858 = vmatpush1.bf16.msra.mxu0 %v8855
        %8859 = vmatprep.subr.bf16.mxu0 0
        %8860 = vmatpush1.bf16.msra.mxu0 0
        %8861 = vmatprep.subr.bf16.mxu0 0
        %8862 = vmatpush1.bf16.msra.mxu0 0
        %8863 = vmatprep.subr.bf16.mxu0 0
        %8864 = vmatpush1.bf16.msra.mxu0 0
        %8865 = vmatprep.subr.bf16.mxu0 0
        %8866 = vmatpush1.bf16.msra.mxu0 0
        %8867 = vmatprep.subr.bf16.mxu0 0
        %8868 = vmatpush1.bf16.msra.mxu0 0
        %8869 = vmatprep.subr.bf16.mxu0 0
        %8870 = vmatpush1.bf16.msra.mxu0 0
        %8871 = vmatprep.subr.bf16.mxu0 0
        %8872 = vmatpush1.bf16.msra.mxu0 0
        %8873 = vmatprep.subr.bf16.mxu0 0
        %8874 = vmatpush1.bf16.msra.mxu0 0
        %8875 = vmatprep.subr.bf16.mxu0 0
        %8876 = vmatpush1.bf16.msra.mxu0 0
        %8877 = vmatprep.subr.bf16.mxu0 0
        %8878 = vmatpush1.bf16.msra.mxu0 0
        %8879 = vmatprep.subr.bf16.mxu0 0
        %8880 = vmatpush1.bf16.msra.mxu0 0
        %8881 = vmatprep.subr.bf16.mxu0 0
        %8882 = vmatpush1.bf16.msra.mxu0 0
        %8883 = vmatprep.subr.bf16.mxu0 0
        %8884 = vmatpush1.bf16.msra.mxu0 0
        %8885 = vmatprep.subr.bf16.mxu0 0
        %8886 = vmatpush1.bf16.msra.mxu0 0
        %8887 = vmatprep.subr.bf16.mxu0 0
        %8888 = vmatpush1.bf16.msra.mxu0 0
        %8889 = vmatprep.mubr.bf16.mxu0 0
        %8890 = vmatmul.mubr.bf16.gmra.mrb[0].mxu0 %v8852
        %v8891 = vpop.f32.mrb[0].mxu0
        %v8892 = vadd.f32 0.0, %v8891
        %v8893 = vpop.f32.mrb[0].mxu0
        %v8894 = vpop.f32.mrb[0].mxu0
        %v8895 = vpop.f32.mrb[0].mxu0
        %8896 = vdwg.mxu0
        %8897 = vrot.lane.b32.xlu0 %v5658, 48
        %v8898 = vpop.permute.xlu0 %8897
        %v8900 = vsel %vm1647, %v8458, 0
        %v8903 = vsel %vm1845, %v8898, 0
        %8905 = vmatprep.subr.bf16.mxu0 0
        %8906 = vmatpush1.bf16.msra.mxu0 %v8903
        %8907 = vmatprep.subr.bf16.mxu0 0
        %8908 = vmatpush1.bf16.msra.mxu0 0
        %8909 = vmatprep.subr.bf16.mxu0 0
        %8910 = vmatpush1.bf16.msra.mxu0 0
        %8911 = vmatprep.subr.bf16.mxu0 0
        %8912 = vmatpush1.bf16.msra.mxu0 0
        %8913 = vmatprep.subr.bf16.mxu0 0
        %8914 = vmatpush1.bf16.msra.mxu0 0
        %8915 = vmatprep.subr.bf16.mxu0 0
        %8916 = vmatpush1.bf16.msra.mxu0 0
        %8917 = vmatprep.subr.bf16.mxu0 0
        %8918 = vmatpush1.bf16.msra.mxu0 0
        %8919 = vmatprep.subr.bf16.mxu0 0
        %8920 = vmatpush1.bf16.msra.mxu0 0
        %8921 = vmatprep.subr.bf16.mxu0 0
        %8922 = vmatpush1.bf16.msra.mxu0 0
        %8923 = vmatprep.subr.bf16.mxu0 0
        %8924 = vmatpush1.bf16.msra.mxu0 0
        %8925 = vmatprep.subr.bf16.mxu0 0
        %8926 = vmatpush1.bf16.msra.mxu0 0
        %8927 = vmatprep.subr.bf16.mxu0 0
        %8928 = vmatpush1.bf16.msra.mxu0 0
        %8929 = vmatprep.subr.bf16.mxu0 0
        %8930 = vmatpush1.bf16.msra.mxu0 0
        %8931 = vmatprep.subr.bf16.mxu0 0
        %8932 = vmatpush1.bf16.msra.mxu0 0
        %8933 = vmatprep.subr.bf16.mxu0 0
        %8934 = vmatpush1.bf16.msra.mxu0 0
        %8935 = vmatprep.subr.bf16.mxu0 0
        %8936 = vmatpush1.bf16.msra.mxu0 0
        %8937 = vmatprep.mubr.bf16.mxu0 0
        %8938 = vmatmul.mubr.bf16.gmra.mrb[0].mxu0 %v8900
        %v8939 = vpop.f32.mrb[0].mxu0
        %v8940 = vadd.f32 0.0, %v8939
        %v8941 = vpop.f32.mrb[0].mxu0
        %v8942 = vpop.f32.mrb[0].mxu0
        %v8943 = vpop.f32.mrb[0].mxu0
        %8944 = vdwg.mxu0
        %8945 = vrot.lane.b32.xlu0 %v5659, 48
        %v8946 = vpop.permute.xlu0 %8945
        %v8948 = vsel %vm1647, %v8459, 0
        %v8951 = vsel %vm1845, %v8946, 0
        %8953 = vmatprep.subr.bf16.mxu0 0
        %8954 = vmatpush1.bf16.msra.mxu0 %v8951
        %8955 = vmatprep.subr.bf16.mxu0 0
        %8956 = vmatpush1.bf16.msra.mxu0 0
        %8957 = vmatprep.subr.bf16.mxu0 0
        %8958 = vmatpush1.bf16.msra.mxu0 0
        %8959 = vmatprep.subr.bf16.mxu0 0
        %8960 = vmatpush1.bf16.msra.mxu0 0
        %8961 = vmatprep.subr.bf16.mxu0 0
        %8962 = vmatpush1.bf16.msra.mxu0 0
        %8963 = vmatprep.subr.bf16.mxu0 0
        %8964 = vmatpush1.bf16.msra.mxu0 0
        %8965 = vmatprep.subr.bf16.mxu0 0
        %8966 = vmatpush1.bf16.msra.mxu0 0
        %8967 = vmatprep.subr.bf16.mxu0 0
        %8968 = vmatpush1.bf16.msra.mxu0 0
        %8969 = vmatprep.subr.bf16.mxu0 0
        %8970 = vmatpush1.bf16.msra.mxu0 0
        %8971 = vmatprep.subr.bf16.mxu0 0
        %8972 = vmatpush1.bf16.msra.mxu0 0
        %8973 = vmatprep.subr.bf16.mxu0 0
        %8974 = vmatpush1.bf16.msra.mxu0 0
        %8975 = vmatprep.subr.bf16.mxu0 0
        %8976 = vmatpush1.bf16.msra.mxu0 0
        %8977 = vmatprep.subr.bf16.mxu0 0
        %8978 = vmatpush1.bf16.msra.mxu0 0
        %8979 = vmatprep.subr.bf16.mxu0 0
        %8980 = vmatpush1.bf16.msra.mxu0 0
        %8981 = vmatprep.subr.bf16.mxu0 0
        %8982 = vmatpush1.bf16.msra.mxu0 0
        %8983 = vmatprep.subr.bf16.mxu0 0
        %8984 = vmatpush1.bf16.msra.mxu0 0
        %8985 = vmatprep.mubr.bf16.mxu0 0
        %8986 = vmatmul.mubr.bf16.gmra.mrb[0].mxu0 %v8948
        %v8987 = vpop.f32.mrb[0].mxu0
        %v8988 = vadd.f32 0.0, %v8987
        %v8989 = vpop.f32.mrb[0].mxu0
        %v8990 = vpop.f32.mrb[0].mxu0
        %v8991 = vpop.f32.mrb[0].mxu0
        %8992 = vdwg.mxu0
        %8993 = vrot.lane.b32.xlu0 %v5660, 48
        %v8994 = vpop.permute.xlu0 %8993
        %v8996 = vsel %vm1647, %v8460, 0
        %v8999 = vsel %vm1845, %v8994, 0
        %9001 = vmatprep.subr.bf16.mxu0 0
        %9002 = vmatpush1.bf16.msra.mxu0 %v8999
        %9003 = vmatprep.subr.bf16.mxu0 0
        %9004 = vmatpush1.bf16.msra.mxu0 0
        %9005 = vmatprep.subr.bf16.mxu0 0
        %9006 = vmatpush1.bf16.msra.mxu0 0
        %9007 = vmatprep.subr.bf16.mxu0 0
        %9008 = vmatpush1.bf16.msra.mxu0 0
        %9009 = vmatprep.subr.bf16.mxu0 0
        %9010 = vmatpush1.bf16.msra.mxu0 0
        %9011 = vmatprep.subr.bf16.mxu0 0
        %9012 = vmatpush1.bf16.msra.mxu0 0
        %9013 = vmatprep.subr.bf16.mxu0 0
        %9014 = vmatpush1.bf16.msra.mxu0 0
        %9015 = vmatprep.subr.bf16.mxu0 0
        %9016 = vmatpush1.bf16.msra.mxu0 0
        %9017 = vmatprep.subr.bf16.mxu0 0
        %9018 = vmatpush1.bf16.msra.mxu0 0
        %9019 = vmatprep.subr.bf16.mxu0 0
        %9020 = vmatpush1.bf16.msra.mxu0 0
        %9021 = vmatprep.subr.bf16.mxu0 0
        %9022 = vmatpush1.bf16.msra.mxu0 0
        %9023 = vmatprep.subr.bf16.mxu0 0
        %9024 = vmatpush1.bf16.msra.mxu0 0
        %9025 = vmatprep.subr.bf16.mxu0 0
        %9026 = vmatpush1.bf16.msra.mxu0 0
        %9027 = vmatprep.subr.bf16.mxu0 0
        %9028 = vmatpush1.bf16.msra.mxu0 0
        %9029 = vmatprep.subr.bf16.mxu0 0
        %9030 = vmatpush1.bf16.msra.mxu0 0
        %9031 = vmatprep.subr.bf16.mxu0 0
        %9032 = vmatpush1.bf16.msra.mxu0 0
        %9033 = vmatprep.mubr.bf16.mxu0 0
        %9034 = vmatmul.mubr.bf16.gmra.mrb[0].mxu0 %v8996
        %v9035 = vpop.f32.mrb[0].mxu0
        %v9036 = vadd.f32 0.0, %v9035
        %v9037 = vpop.f32.mrb[0].mxu0
        %v9038 = vpop.f32.mrb[0].mxu0
        %v9039 = vpop.f32.mrb[0].mxu0
        %9040 = vdwg.mxu0
        %9041 = vrot.lane.b32.xlu0 %v5661, 48
        %v9042 = vpop.permute.xlu0 %9041
        %v9044 = vsel %vm1647, %v8461, 0
        %v9047 = vsel %vm1845, %v9042, 0
        %9049 = vmatprep.subr.bf16.mxu0 0
        %9050 = vmatpush1.bf16.msra.mxu0 %v9047
        %9051 = vmatprep.subr.bf16.mxu0 0
        %9052 = vmatpush1.bf16.msra.mxu0 0
        %9053 = vmatprep.subr.bf16.mxu0 0
        %9054 = vmatpush1.bf16.msra.mxu0 0
        %9055 = vmatprep.subr.bf16.mxu0 0
        %9056 = vmatpush1.bf16.msra.mxu0 0
        %9057 = vmatprep.subr.bf16.mxu0 0
        %9058 = vmatpush1.bf16.msra.mxu0 0
        %9059 = vmatprep.subr.bf16.mxu0 0
        %9060 = vmatpush1.bf16.msra.mxu0 0
        %9061 = vmatprep.subr.bf16.mxu0 0
        %9062 = vmatpush1.bf16.msra.mxu0 0
        %9063 = vmatprep.subr.bf16.mxu0 0
        %9064 = vmatpush1.bf16.msra.mxu0 0
        %9065 = vmatprep.subr.bf16.mxu0 0
        %9066 = vmatpush1.bf16.msra.mxu0 0
        %9067 = vmatprep.subr.bf16.mxu0 0
        %9068 = vmatpush1.bf16.msra.mxu0 0
        %9069 = vmatprep.subr.bf16.mxu0 0
        %9070 = vmatpush1.bf16.msra.mxu0 0
        %9071 = vmatprep.subr.bf16.mxu0 0
        %9072 = vmatpush1.bf16.msra.mxu0 0
        %9073 = vmatprep.subr.bf16.mxu0 0
        %9074 = vmatpush1.bf16.msra.mxu0 0
        %9075 = vmatprep.subr.bf16.mxu0 0
        %9076 = vmatpush1.bf16.msra.mxu0 0
        %9077 = vmatprep.subr.bf16.mxu0 0
        %9078 = vmatpush1.bf16.msra.mxu0 0
        %9079 = vmatprep.subr.bf16.mxu0 0
        %9080 = vmatpush1.bf16.msra.mxu0 0
        %9081 = vmatprep.mubr.bf16.mxu0 0
        %9082 = vmatmul.mubr.bf16.gmra.mrb[0].mxu0 %v9044
        %v9083 = vpop.f32.mrb[0].mxu0
        %v9084 = vadd.f32 0.0, %v9083
        %v9085 = vpop.f32.mrb[0].mxu0
        %v9086 = vpop.f32.mrb[0].mxu0
        %v9087 = vpop.f32.mrb[0].mxu0
        %9088 = vdwg.mxu0
        %9089 = vrot.lane.b32.xlu0 %v5662, 48
        %v9090 = vpop.permute.xlu0 %9089
        %v9092 = vsel %vm1647, %v8462, 0
        %v9095 = vsel %vm1845, %v9090, 0
        %9097 = vmatprep.subr.bf16.mxu0 0
        %9098 = vmatpush1.bf16.msra.mxu0 %v9095
        %9099 = vmatprep.subr.bf16.mxu0 0
        %9100 = vmatpush1.bf16.msra.mxu0 0
        %9101 = vmatprep.subr.bf16.mxu0 0
        %9102 = vmatpush1.bf16.msra.mxu0 0
        %9103 = vmatprep.subr.bf16.mxu0 0
        %9104 = vmatpush1.bf16.msra.mxu0 0
        %9105 = vmatprep.subr.bf16.mxu0 0
        %9106 = vmatpush1.bf16.msra.mxu0 0
        %9107 = vmatprep.subr.bf16.mxu0 0
        %9108 = vmatpush1.bf16.msra.mxu0 0
        %9109 = vmatprep.subr.bf16.mxu0 0
        %9110 = vmatpush1.bf16.msra.mxu0 0
        %9111 = vmatprep.subr.bf16.mxu0 0
        %9112 = vmatpush1.bf16.msra.mxu0 0
        %9113 = vmatprep.subr.bf16.mxu0 0
        %9114 = vmatpush1.bf16.msra.mxu0 0
        %9115 = vmatprep.subr.bf16.mxu0 0
        %9116 = vmatpush1.bf16.msra.mxu0 0
        %9117 = vmatprep.subr.bf16.mxu0 0
        %9118 = vmatpush1.bf16.msra.mxu0 0
        %9119 = vmatprep.subr.bf16.mxu0 0
        %9120 = vmatpush1.bf16.msra.mxu0 0
        %9121 = vmatprep.subr.bf16.mxu0 0
        %9122 = vmatpush1.bf16.msra.mxu0 0
        %9123 = vmatprep.subr.bf16.mxu0 0
        %9124 = vmatpush1.bf16.msra.mxu0 0
        %9125 = vmatprep.subr.bf16.mxu0 0
        %9126 = vmatpush1.bf16.msra.mxu0 0
        %9127 = vmatprep.subr.bf16.mxu0 0
        %9128 = vmatpush1.bf16.msra.mxu0 0
        %9129 = vmatprep.mubr.bf16.mxu0 0
        %9130 = vmatmul.mubr.bf16.gmra.mrb[0].mxu0 %v9092
        %v9131 = vpop.f32.mrb[0].mxu0
        %v9132 = vadd.f32 0.0, %v9131
        %v9133 = vpop.f32.mrb[0].mxu0
        %v9134 = vpop.f32.mrb[0].mxu0
        %v9135 = vpop.f32.mrb[0].mxu0
        %9136 = vdwg.mxu0
        %9137 = vrot.lane.b32.xlu0 %v5663, 48
        %v9138 = vpop.permute.xlu0 %9137
        %v9140 = vsel %vm1647, %v8463, 0
        %v9143 = vsel %vm1845, %v9138, 0
        %9145 = vmatprep.subr.bf16.mxu0 0
        %9146 = vmatpush1.bf16.msra.mxu0 %v9143
        %9147 = vmatprep.subr.bf16.mxu0 0
        %9148 = vmatpush1.bf16.msra.mxu0 0
        %9149 = vmatprep.subr.bf16.mxu0 0
        %9150 = vmatpush1.bf16.msra.mxu0 0
        %9151 = vmatprep.subr.bf16.mxu0 0
        %9152 = vmatpush1.bf16.msra.mxu0 0
        %9153 = vmatprep.subr.bf16.mxu0 0
        %9154 = vmatpush1.bf16.msra.mxu0 0
        %9155 = vmatprep.subr.bf16.mxu0 0
        %9156 = vmatpush1.bf16.msra.mxu0 0
        %9157 = vmatprep.subr.bf16.mxu0 0
        %9158 = vmatpush1.bf16.msra.mxu0 0
        %9159 = vmatprep.subr.bf16.mxu0 0
        %9160 = vmatpush1.bf16.msra.mxu0 0
        %9161 = vmatprep.subr.bf16.mxu0 0
        %9162 = vmatpush1.bf16.msra.mxu0 0
        %9163 = vmatprep.subr.bf16.mxu0 0
        %9164 = vmatpush1.bf16.msra.mxu0 0
        %9165 = vmatprep.subr.bf16.mxu0 0
        %9166 = vmatpush1.bf16.msra.mxu0 0
        %9167 = vmatprep.subr.bf16.mxu0 0
        %9168 = vmatpush1.bf16.msra.mxu0 0
        %9169 = vmatprep.subr.bf16.mxu0 0
        %9170 = vmatpush1.bf16.msra.mxu0 0
        %9171 = vmatprep.subr.bf16.mxu0 0
        %9172 = vmatpush1.bf16.msra.mxu0 0
        %9173 = vmatprep.subr.bf16.mxu0 0
        %9174 = vmatpush1.bf16.msra.mxu0 0
        %9175 = vmatprep.subr.bf16.mxu0 0
        %9176 = vmatpush1.bf16.msra.mxu0 0
        %9177 = vmatprep.mubr.bf16.mxu0 0
        %9178 = vmatmul.mubr.bf16.gmra.mrb[0].mxu0 %v9140
        %v9179 = vpop.f32.mrb[0].mxu0
        %v9180 = vadd.f32 0.0, %v9179
        %v9181 = vpop.f32.mrb[0].mxu0
        %v9182 = vpop.f32.mrb[0].mxu0
        %v9183 = vpop.f32.mrb[0].mxu0
        %9184 = vdwg.mxu0
        %9185 = vrot.lane.b32.xlu0 %v5664, 48
        %v9186 = vpop.permute.xlu0 %9185
        %v9188 = vsel %vm1647, %v8464, 0
        %v9191 = vsel %vm1845, %v9186, 0
        %9193 = vmatprep.subr.bf16.mxu0 0
        %9194 = vmatpush1.bf16.msra.mxu0 %v9191
        %9195 = vmatprep.subr.bf16.mxu0 0
        %9196 = vmatpush1.bf16.msra.mxu0 0
        %9197 = vmatprep.subr.bf16.mxu0 0
        %9198 = vmatpush1.bf16.msra.mxu0 0
        %9199 = vmatprep.subr.bf16.mxu0 0
        %9200 = vmatpush1.bf16.msra.mxu0 0
        %9201 = vmatprep.subr.bf16.mxu0 0
        %9202 = vmatpush1.bf16.msra.mxu0 0
        %9203 = vmatprep.subr.bf16.mxu0 0
        %9204 = vmatpush1.bf16.msra.mxu0 0
        %9205 = vmatprep.subr.bf16.mxu0 0
        %9206 = vmatpush1.bf16.msra.mxu0 0
        %9207 = vmatprep.subr.bf16.mxu0 0
        %9208 = vmatpush1.bf16.msra.mxu0 0
        %9209 = vmatprep.subr.bf16.mxu0 0
        %9210 = vmatpush1.bf16.msra.mxu0 0
        %9211 = vmatprep.subr.bf16.mxu0 0
        %9212 = vmatpush1.bf16.msra.mxu0 0
        %9213 = vmatprep.subr.bf16.mxu0 0
        %9214 = vmatpush1.bf16.msra.mxu0 0
        %9215 = vmatprep.subr.bf16.mxu0 0
        %9216 = vmatpush1.bf16.msra.mxu0 0
        %9217 = vmatprep.subr.bf16.mxu0 0
        %9218 = vmatpush1.bf16.msra.mxu0 0
        %9219 = vmatprep.subr.bf16.mxu0 0
        %9220 = vmatpush1.bf16.msra.mxu0 0
        %9221 = vmatprep.subr.bf16.mxu0 0
        %9222 = vmatpush1.bf16.msra.mxu0 0
        %9223 = vmatprep.subr.bf16.mxu0 0
        %9224 = vmatpush1.bf16.msra.mxu0 0
        %9225 = vmatprep.mubr.bf16.mxu0 0
        %9226 = vmatmul.mubr.bf16.gmra.mrb[0].mxu0 %v9188
        %v9227 = vpop.f32.mrb[0].mxu0
        %v9228 = vadd.f32 0.0, %v9227
        %v9229 = vpop.f32.mrb[0].mxu0
        %v9230 = vpop.f32.mrb[0].mxu0
        %v9231 = vpop.f32.mrb[0].mxu0
        %9232 = vdwg.mxu0
        %9249 = vrot.lane.b32.xlu0 %v8508, 16
        %v9250 = vpop.permute.xlu0 %9249
        %9251 = vrot.lane.b32.xlu0 %v8556, 16
        %v9252 = vpop.permute.xlu0 %9251
        %9253 = vrot.lane.b32.xlu0 %v8604, 16
        %v9254 = vpop.permute.xlu0 %9253
        %9255 = vrot.lane.b32.xlu0 %v8652, 16
        %v9256 = vpop.permute.xlu0 %9255
        %9257 = vrot.lane.b32.xlu0 %v8700, 16
        %v9258 = vpop.permute.xlu0 %9257
        %9259 = vrot.lane.b32.xlu0 %v8748, 16
        %v9260 = vpop.permute.xlu0 %9259
        %9261 = vrot.lane.b32.xlu0 %v8796, 16
        %v9262 = vpop.permute.xlu0 %9261
        %9263 = vrot.lane.b32.xlu0 %v8844, 16
        %v9264 = vpop.permute.xlu0 %9263
        %9265 = vrot.lane.b32.xlu0 %v8892, 16
        %v9266 = vpop.permute.xlu0 %9265
        %9267 = vrot.lane.b32.xlu0 %v8940, 16
        %v9268 = vpop.permute.xlu0 %9267
        %9269 = vrot.lane.b32.xlu0 %v8988, 16
        %v9270 = vpop.permute.xlu0 %9269
        %9271 = vrot.lane.b32.xlu0 %v9036, 16
        %v9272 = vpop.permute.xlu0 %9271
        %9273 = vrot.lane.b32.xlu0 %v9084, 16
        %v9274 = vpop.permute.xlu0 %9273
        %9275 = vrot.lane.b32.xlu0 %v9132, 16
        %v9276 = vpop.permute.xlu0 %9275
        %9277 = vrot.lane.b32.xlu0 %v9180, 16
        %v9278 = vpop.permute.xlu0 %9277
        %9279 = vrot.lane.b32.xlu0 %v9228, 16
        %v9280 = vpop.permute.xlu0 %9279
        %v9297 = vsel %vm833, %v6716, %v9250
        %v9298 = vsel %vm833, %v6764, %v9252
        %v9299 = vsel %vm833, %v6812, %v9254
        %v9300 = vsel %vm833, %v6860, %v9256
        %v9301 = vsel %vm833, %v6908, %v9258
        %v9302 = vsel %vm833, %v6956, %v9260
        %v9303 = vsel %vm833, %v7004, %v9262
        %v9304 = vsel %vm833, %v7052, %v9264
        %v9305 = vsel %vm833, %v7100, %v9266
        %v9306 = vsel %vm833, %v7148, %v9268
        %v9307 = vsel %vm833, %v7196, %v9270
        %v9308 = vsel %vm833, %v7244, %v9272
        %v9309 = vsel %vm833, %v7292, %v9274
        %v9310 = vsel %vm833, %v7340, %v9276
        %v9311 = vsel %vm833, %v7388, %v9278
        %v9312 = vsel %vm833, %v7436, %v9280
        %v9313 = vpack.c.bf16 %v9298, %v9297
        %v9314 = vpack.c.bf16 %v9300, %v9299
        %v9315 = vpack.c.bf16 %v9302, %v9301
        %v9316 = vpack.c.bf16 %v9304, %v9303
        %v9317 = vpack.c.bf16 %v9306, %v9305
        %v9318 = vpack.c.bf16 %v9308, %v9307
        %v9319 = vpack.c.bf16 %v9310, %v9309
        %v9320 = vpack.c.bf16 %v9312, %v9311
        %s9321 = scalar_lea.vmem %s4, 16
        %v9322 = vld [vmem:[%s9321] sm:$0xf]
        %v9323 = vld [vmem:[%s9321 + $0x4] sm:$0xf]
        %v9324 = vld [vmem:[%s9321 + $0x8] sm:$0xf]
        %v9325 = vld [vmem:[%s9321 + $0xc] sm:$0xf]
        %v9326 = vlaneseq
        %v9327 = vshrl.u32 %v9326, 7
        %v9328 = vsub.s32 1, %v9327
        %v9329 = vrot.slane %v5498, %v9328
        %v9334 = vunpack.c.l.b16 %v9322
        %v9335 = vunpack.c.l.b16 %v9323
        %v9336 = vunpack.c.l.b16 %v9324
        %v9337 = vunpack.c.l.b16 %v9325
        %v9338 = vpack.c.b16 %v9335, %v9334
        %v9339 = vpack.c.b16 %v9337, %v9336
        %v9343 = vsel %vm692, %v9313, 0
        %v9346 = vsel %vm692, %v9314, 0
        %v9349 = vsel %vm692, %v9315, 0
        %v9352 = vsel %vm692, %v9316, 0
        %v9355 = vsel %vm692, %v9317, 0
        %v9358 = vsel %vm692, %v9318, 0
        %v9361 = vsel %vm692, %v9319, 0
        %v9364 = vsel %vm692, %v9320, 0
        %9366 = vmatprep.subr.bf16.mxu0 0
        %9367 = vmatpush1.bf16.msra.mxu0 %v9338
        %9368 = vmatprep.subr.bf16.mxu0 0
        %9369 = vmatpush1.bf16.msra.mxu0 %v9339
        %9370 = vmatprep.subr.bf16.mxu0 0
        %9371 = vmatpush1.bf16.msra.mxu0 0
        %9372 = vmatprep.subr.bf16.mxu0 0
        %9373 = vmatpush1.bf16.msra.mxu0 0
        %9374 = vmatprep.subr.bf16.mxu0 0
        %9375 = vmatpush1.bf16.msra.mxu0 0
        %9376 = vmatprep.subr.bf16.mxu0 0
        %9377 = vmatpush1.bf16.msra.mxu0 0
        %9378 = vmatprep.subr.bf16.mxu0 0
        %9379 = vmatpush1.bf16.msra.mxu0 0
        %9380 = vmatprep.subr.bf16.mxu0 0
        %9381 = vmatpush1.bf16.msra.mxu0 0
        %9382 = vmatprep.subr.bf16.mxu0 0
        %9383 = vmatpush1.bf16.msra.mxu0 0
        %9384 = vmatprep.subr.bf16.mxu0 0
        %9385 = vmatpush1.bf16.msra.mxu0 0
        %9386 = vmatprep.subr.bf16.mxu0 0
        %9387 = vmatpush1.bf16.msra.mxu0 0
        %9388 = vmatprep.subr.bf16.mxu0 0
        %9389 = vmatpush1.bf16.msra.mxu0 0
        %9390 = vmatprep.subr.bf16.mxu0 0
        %9391 = vmatpush1.bf16.msra.mxu0 0
        %9392 = vmatprep.subr.bf16.mxu0 0
        %9393 = vmatpush1.bf16.msra.mxu0 0
        %9394 = vmatprep.subr.bf16.mxu0 0
        %9395 = vmatpush1.bf16.msra.mxu0 0
        %9396 = vmatprep.subr.bf16.mxu0 0
        %9397 = vmatpush1.bf16.msra.mxu0 0
        %9398 = vmatprep.mubr.bf16.mxu0 0
        %9399 = vmatmul.mubr.bf16.gmra.mrb[0].mxu0 %v9343
        %v9400 = vpop.f32.mrb[0].mxu0
        %v9401 = vadd.f32 %v9329, %v9400
        %v9402 = vpop.f32.mrb[0].mxu0
        %v9403 = vpop.f32.mrb[0].mxu0
        %v9404 = vadd.f32 %v9329, %v9403
        %v9405 = vpop.f32.mrb[0].mxu0
        %9406 = vmatprep.mubr.bf16.mxu0 0
        %9407 = vmatmul.mubr.bf16.gmra.mrb[0].mxu0 %v9346
        %v9408 = vpop.f32.mrb[0].mxu0
        %v9409 = vadd.f32 %v9329, %v9408
        %v9410 = vpop.f32.mrb[0].mxu0
        %v9411 = vpop.f32.mrb[0].mxu0
        %v9412 = vadd.f32 %v9329, %v9411
        %v9413 = vpop.f32.mrb[0].mxu0
        %9414 = vmatprep.mubr.bf16.mxu0 0
        %9415 = vmatmul.mubr.bf16.gmra.mrb[0].mxu0 %v9349
        %v9416 = vpop.f32.mrb[0].mxu0
        %v9417 = vadd.f32 %v9329, %v9416
        %v9418 = vpop.f32.mrb[0].mxu0
        %v9419 = vpop.f32.mrb[0].mxu0
        %v9420 = vadd.f32 %v9329, %v9419
        %v9421 = vpop.f32.mrb[0].mxu0
        %9422 = vmatprep.mubr.bf16.mxu0 0
        %9423 = vmatmul.mubr.bf16.gmra.mrb[0].mxu0 %v9352
        %v9424 = vpop.f32.mrb[0].mxu0
        %v9425 = vadd.f32 %v9329, %v9424
        %v9426 = vpop.f32.mrb[0].mxu0
        %v9427 = vpop.f32.mrb[0].mxu0
        %v9428 = vadd.f32 %v9329, %v9427
        %v9429 = vpop.f32.mrb[0].mxu0
        %9430 = vmatprep.mubr.bf16.mxu0 0
        %9431 = vmatmul.mubr.bf16.gmra.mrb[0].mxu0 %v9355
        %v9432 = vpop.f32.mrb[0].mxu0
        %v9433 = vadd.f32 %v9329, %v9432
        %v9434 = vpop.f32.mrb[0].mxu0
        %v9435 = vpop.f32.mrb[0].mxu0
        %v9436 = vadd.f32 %v9329, %v9435
        %v9437 = vpop.f32.mrb[0].mxu0
        %9438 = vmatprep.mubr.bf16.mxu0 0
        %9439 = vmatmul.mubr.bf16.gmra.mrb[0].mxu0 %v9358
        %v9440 = vpop.f32.mrb[0].mxu0
        %v9441 = vadd.f32 %v9329, %v9440
        %v9442 = vpop.f32.mrb[0].mxu0
        %v9443 = vpop.f32.mrb[0].mxu0
        %v9444 = vadd.f32 %v9329, %v9443
        %v9445 = vpop.f32.mrb[0].mxu0
        %9446 = vmatprep.mubr.bf16.mxu0 0
        %9447 = vmatmul.mubr.bf16.gmra.mrb[0].mxu0 %v9361
        %v9448 = vpop.f32.mrb[0].mxu0
        %v9449 = vadd.f32 %v9329, %v9448
        %v9450 = vpop.f32.mrb[0].mxu0
        %v9451 = vpop.f32.mrb[0].mxu0
        %v9452 = vadd.f32 %v9329, %v9451
        %v9453 = vpop.f32.mrb[0].mxu0
        %9454 = vmatprep.mubr.bf16.mxu0 0
        %9455 = vmatmul.mubr.bf16.gmra.mrb[0].mxu0 %v9364
        %v9456 = vpop.f32.mrb[0].mxu0
        %v9457 = vadd.f32 %v9329, %v9456
        %v9458 = vpop.f32.mrb[0].mxu0
        %v9459 = vpop.f32.mrb[0].mxu0
        %v9460 = vadd.f32 %v9329, %v9459
        %v9461 = vpop.f32.mrb[0].mxu0
        %9462 = vdwg.mxu0
        %v9463 = vadd.f32 %v5481, %v9401
        %v9464 = vadd.f32 %v5482, %v9404
        %v9465 = vadd.f32 %v5483, %v9409
        %v9466 = vadd.f32 %v5484, %v9412
        %v9467 = vadd.f32 %v5485, %v9417
        %v9468 = vadd.f32 %v5486, %v9420
        %v9469 = vadd.f32 %v5487, %v9425
        %v9470 = vadd.f32 %v5488, %v9428
        %v9471 = vadd.f32 %v5489, %v9433
        %v9472 = vadd.f32 %v5490, %v9436
        %v9473 = vadd.f32 %v5491, %v9441
        %v9474 = vadd.f32 %v5492, %v9444
        %v9475 = vadd.f32 %v5493, %v9449
        %v9476 = vadd.f32 %v5494, %v9452
        %v9477 = vadd.f32 %v5495, %v9457
        %v9478 = vadd.f32 %v5496, %v9460
        %v9479 = vsel %vm692, %v9463, 0.0
        %9480 = vadd.xlane.f32.xlu0 %v9479
        %v9481 = vpop.xlane.xlu0 %9480
        %v9482 = vsel %vm692, %v9464, 0.0
        %9483 = vadd.xlane.f32.xlu0 %v9482
        %v9484 = vpop.xlane.xlu0 %9483
        %v9485 = vsel %vm692, %v9465, 0.0
        %9486 = vadd.xlane.f32.xlu0 %v9485
        %v9487 = vpop.xlane.xlu0 %9486
        %v9488 = vsel %vm692, %v9466, 0.0
        %9489 = vadd.xlane.f32.xlu0 %v9488
        %v9490 = vpop.xlane.xlu0 %9489
        %v9491 = vsel %vm692, %v9467, 0.0
        %9492 = vadd.xlane.f32.xlu0 %v9491
        %v9493 = vpop.xlane.xlu0 %9492
        %v9494 = vsel %vm692, %v9468, 0.0
        %9495 = vadd.xlane.f32.xlu0 %v9494
        %v9496 = vpop.xlane.xlu0 %9495
        %v9497 = vsel %vm692, %v9469, 0.0
        %9498 = vadd.xlane.f32.xlu0 %v9497
        %v9499 = vpop.xlane.xlu0 %9498
        %v9500 = vsel %vm692, %v9470, 0.0
        %9501 = vadd.xlane.f32.xlu0 %v9500
        %v9502 = vpop.xlane.xlu0 %9501
        %v9503 = vsel %vm692, %v9471, 0.0
        %9504 = vadd.xlane.f32.xlu0 %v9503
        %v9505 = vpop.xlane.xlu0 %9504
        %v9506 = vsel %vm692, %v9472, 0.0
        %9507 = vadd.xlane.f32.xlu0 %v9506
        %v9508 = vpop.xlane.xlu0 %9507
        %v9509 = vsel %vm692, %v9473, 0.0
        %9510 = vadd.xlane.f32.xlu0 %v9509
        %v9511 = vpop.xlane.xlu0 %9510
        %v9512 = vsel %vm692, %v9474, 0.0
        %9513 = vadd.xlane.f32.xlu0 %v9512
        %v9514 = vpop.xlane.xlu0 %9513
        %v9515 = vsel %vm692, %v9475, 0.0
        %9516 = vadd.xlane.f32.xlu0 %v9515
        %v9517 = vpop.xlane.xlu0 %9516
        %v9518 = vsel %vm692, %v9476, 0.0
        %9519 = vadd.xlane.f32.xlu0 %v9518
        %v9520 = vpop.xlane.xlu0 %9519
        %v9521 = vsel %vm692, %v9477, 0.0
        %9522 = vadd.xlane.f32.xlu0 %v9521
        %v9523 = vpop.xlane.xlu0 %9522
        %v9524 = vsel %vm692, %v9478, 0.0
        %9525 = vadd.xlane.f32.xlu0 %v9524
        %v9526 = vpop.xlane.xlu0 %9525
        %v9527 = vmul.f32 %v9481, %v4694
        %v9528 = vmul.f32 %v9484, %v4694
        %v9529 = vmul.f32 %v9487, %v4694
        %v9530 = vmul.f32 %v9490, %v4694
        %v9531 = vmul.f32 %v9493, %v4694
        %v9532 = vmul.f32 %v9496, %v4694
        %v9533 = vmul.f32 %v9499, %v4694
        %v9534 = vmul.f32 %v9502, %v4694
        %v9535 = vmul.f32 %v9505, %v4694
        %v9536 = vmul.f32 %v9508, %v4694
        %v9537 = vmul.f32 %v9511, %v4694
        %v9538 = vmul.f32 %v9514, %v4694
        %v9539 = vmul.f32 %v9517, %v4694
        %v9540 = vmul.f32 %v9520, %v4694
        %v9541 = vmul.f32 %v9523, %v4694
        %v9542 = vmul.f32 %v9526, %v4694
        %v9543 = vsub.f32 %v9463, %v9527
        %v9544 = vsub.f32 %v9464, %v9528
        %v9545 = vsub.f32 %v9465, %v9529
        %v9546 = vsub.f32 %v9466, %v9530
        %v9547 = vsub.f32 %v9467, %v9531
        %v9548 = vsub.f32 %v9468, %v9532
        %v9549 = vsub.f32 %v9469, %v9533
        %v9550 = vsub.f32 %v9470, %v9534
        %v9551 = vsub.f32 %v9471, %v9535
        %v9552 = vsub.f32 %v9472, %v9536
        %v9553 = vsub.f32 %v9473, %v9537
        %v9554 = vsub.f32 %v9474, %v9538
        %v9555 = vsub.f32 %v9475, %v9539
        %v9556 = vsub.f32 %v9476, %v9540
        %v9557 = vsub.f32 %v9477, %v9541
        %v9558 = vsub.f32 %v9478, %v9542
        %v9559 = vmul.f32 %v9543, %v9543
        %v9560 = vmul.f32 %v9544, %v9544
        %v9561 = vmul.f32 %v9545, %v9545
        %v9562 = vmul.f32 %v9546, %v9546
        %v9563 = vmul.f32 %v9547, %v9547
        %v9564 = vmul.f32 %v9548, %v9548
        %v9565 = vmul.f32 %v9549, %v9549
        %v9566 = vmul.f32 %v9550, %v9550
        %v9567 = vmul.f32 %v9551, %v9551
        %v9568 = vmul.f32 %v9552, %v9552
        %v9569 = vmul.f32 %v9553, %v9553
        %v9570 = vmul.f32 %v9554, %v9554
        %v9571 = vmul.f32 %v9555, %v9555
        %v9572 = vmul.f32 %v9556, %v9556
        %v9573 = vmul.f32 %v9557, %v9557
        %v9574 = vmul.f32 %v9558, %v9558
        %v9575 = vsel %vm692, %v9559, 0.0
        %9576 = vadd.xlane.f32.xlu0 %v9575
        %v9577 = vpop.xlane.xlu0 %9576
        %v9578 = vsel %vm692, %v9560, 0.0
        %9579 = vadd.xlane.f32.xlu0 %v9578
        %v9580 = vpop.xlane.xlu0 %9579
        %v9581 = vsel %vm692, %v9561, 0.0
        %9582 = vadd.xlane.f32.xlu0 %v9581
        %v9583 = vpop.xlane.xlu0 %9582
        %v9584 = vsel %vm692, %v9562, 0.0
        %9585 = vadd.xlane.f32.xlu0 %v9584
        %v9586 = vpop.xlane.xlu0 %9585
        %v9587 = vsel %vm692, %v9563, 0.0
        %9588 = vadd.xlane.f32.xlu0 %v9587
        %v9589 = vpop.xlane.xlu0 %9588
        %v9590 = vsel %vm692, %v9564, 0.0
        %9591 = vadd.xlane.f32.xlu0 %v9590
        %v9592 = vpop.xlane.xlu0 %9591
        %v9593 = vsel %vm692, %v9565, 0.0
        %9594 = vadd.xlane.f32.xlu0 %v9593
        %v9595 = vpop.xlane.xlu0 %9594
        %v9596 = vsel %vm692, %v9566, 0.0
        %9597 = vadd.xlane.f32.xlu0 %v9596
        %v9598 = vpop.xlane.xlu0 %9597
        %v9599 = vsel %vm692, %v9567, 0.0
        %9600 = vadd.xlane.f32.xlu0 %v9599
        %v9601 = vpop.xlane.xlu0 %9600
        %v9602 = vsel %vm692, %v9568, 0.0
        %9603 = vadd.xlane.f32.xlu0 %v9602
        %v9604 = vpop.xlane.xlu0 %9603
        %v9605 = vsel %vm692, %v9569, 0.0
        %9606 = vadd.xlane.f32.xlu0 %v9605
        %v9607 = vpop.xlane.xlu0 %9606
        %v9608 = vsel %vm692, %v9570, 0.0
        %9609 = vadd.xlane.f32.xlu0 %v9608
        %v9610 = vpop.xlane.xlu0 %9609
        %v9611 = vsel %vm692, %v9571, 0.0
        %9612 = vadd.xlane.f32.xlu0 %v9611
        %v9613 = vpop.xlane.xlu0 %9612
        %v9614 = vsel %vm692, %v9572, 0.0
        %9615 = vadd.xlane.f32.xlu0 %v9614
        %v9616 = vpop.xlane.xlu0 %9615
        %v9617 = vsel %vm692, %v9573, 0.0
        %9618 = vadd.xlane.f32.xlu0 %v9617
        %v9619 = vpop.xlane.xlu0 %9618
        %v9620 = vsel %vm692, %v9574, 0.0
        %9621 = vadd.xlane.f32.xlu0 %v9620
        %v9622 = vpop.xlane.xlu0 %9621
        %v9623 = vmul.f32 %v9577, %v4694
        %v9624 = vmul.f32 %v9580, %v4694
        %v9625 = vmul.f32 %v9583, %v4694
        %v9626 = vmul.f32 %v9586, %v4694
        %v9627 = vmul.f32 %v9589, %v4694
        %v9628 = vmul.f32 %v9592, %v4694
        %v9629 = vmul.f32 %v9595, %v4694
        %v9630 = vmul.f32 %v9598, %v4694
        %v9631 = vmul.f32 %v9601, %v4694
        %v9632 = vmul.f32 %v9604, %v4694
        %v9633 = vmul.f32 %v9607, %v4694
        %v9634 = vmul.f32 %v9610, %v4694
        %v9635 = vmul.f32 %v9613, %v4694
        %v9636 = vmul.f32 %v9616, %v4694
        %v9637 = vmul.f32 %v9619, %v4694
        %v9638 = vmul.f32 %v9622, %v4694
        %v9639 = vadd.f32 %v9623, 1e-05
        %v9640 = vadd.f32 %v9624, 1e-05
        %v9641 = vadd.f32 %v9625, 1e-05
        %v9642 = vadd.f32 %v9626, 1e-05
        %v9643 = vadd.f32 %v9627, 1e-05
        %v9644 = vadd.f32 %v9628, 1e-05
        %v9645 = vadd.f32 %v9629, 1e-05
        %v9646 = vadd.f32 %v9630, 1e-05
        %v9647 = vadd.f32 %v9631, 1e-05
        %v9648 = vadd.f32 %v9632, 1e-05
        %v9649 = vadd.f32 %v9633, 1e-05
        %v9650 = vadd.f32 %v9634, 1e-05
        %v9651 = vadd.f32 %v9635, 1e-05
        %v9652 = vadd.f32 %v9636, 1e-05
        %v9653 = vadd.f32 %v9637, 1e-05
        %v9654 = vadd.f32 %v9638, 1e-05
        %v9655 = vrsqrt.pop %v9639
        %v9656 = vrsqrt.pop %v9640
        %v9657 = vrsqrt.pop %v9641
        %v9658 = vrsqrt.pop %v9642
        %v9659 = vrsqrt.pop %v9643
        %v9660 = vrsqrt.pop %v9644
        %v9661 = vrsqrt.pop %v9645
        %v9662 = vrsqrt.pop %v9646
        %v9663 = vrsqrt.pop %v9647
        %v9664 = vrsqrt.pop %v9648
        %v9665 = vrsqrt.pop %v9649
        %v9666 = vrsqrt.pop %v9650
        %v9667 = vrsqrt.pop %v9651
        %v9668 = vrsqrt.pop %v9652
        %v9669 = vrsqrt.pop %v9653
        %v9670 = vrsqrt.pop %v9654
        %v9671 = vmul.f32 %v9543, %v9655
        %v9672 = vmul.f32 %v9544, %v9656
        %v9673 = vmul.f32 %v9545, %v9657
        %v9674 = vmul.f32 %v9546, %v9658
        %v9675 = vmul.f32 %v9547, %v9659
        %v9676 = vmul.f32 %v9548, %v9660
        %v9677 = vmul.f32 %v9549, %v9661
        %v9678 = vmul.f32 %v9550, %v9662
        %v9679 = vmul.f32 %v9551, %v9663
        %v9680 = vmul.f32 %v9552, %v9664
        %v9681 = vmul.f32 %v9553, %v9665
        %v9682 = vmul.f32 %v9554, %v9666
        %v9683 = vmul.f32 %v9555, %v9667
        %v9684 = vmul.f32 %v9556, %v9668
        %v9685 = vmul.f32 %v9557, %v9669
        %v9686 = vmul.f32 %v9558, %v9670
        %v9687 = vlaneseq
        %v9688 = vshrl.u32 %v9687, 7
        %v9689 = vsub.s32 2, %v9688
        %v9690 = vrot.slane %v5498, %v9689
        %v9691 = vmul.f32 %v9671, %v9690
        %v9692 = vmul.f32 %v9672, %v9690
        %v9693 = vmul.f32 %v9673, %v9690
        %v9694 = vmul.f32 %v9674, %v9690
        %v9695 = vmul.f32 %v9675, %v9690
        %v9696 = vmul.f32 %v9676, %v9690
        %v9697 = vmul.f32 %v9677, %v9690
        %v9698 = vmul.f32 %v9678, %v9690
        %v9699 = vmul.f32 %v9679, %v9690
        %v9700 = vmul.f32 %v9680, %v9690
        %v9701 = vmul.f32 %v9681, %v9690
        %v9702 = vmul.f32 %v9682, %v9690
        %v9703 = vmul.f32 %v9683, %v9690
        %v9704 = vmul.f32 %v9684, %v9690
        %v9705 = vmul.f32 %v9685, %v9690
        %v9706 = vmul.f32 %v9686, %v9690
        %v9707 = vlaneseq
        %v9708 = vshrl.u32 %v9707, 7
        %v9709 = vsub.s32 3, %v9708
        %v9710 = vrot.slane %v5498, %v9709
        %v9711 = vadd.f32 %v9691, %v9710
        %v9712 = vadd.f32 %v9692, %v9710
        %v9713 = vadd.f32 %v9693, %v9710
        %v9714 = vadd.f32 %v9694, %v9710
        %v9715 = vadd.f32 %v9695, %v9710
        %v9716 = vadd.f32 %v9696, %v9710
        %v9717 = vadd.f32 %v9697, %v9710
        %v9718 = vadd.f32 %v9698, %v9710
        %v9719 = vadd.f32 %v9699, %v9710
        %v9720 = vadd.f32 %v9700, %v9710
        %v9721 = vadd.f32 %v9701, %v9710
        %v9722 = vadd.f32 %v9702, %v9710
        %v9723 = vadd.f32 %v9703, %v9710
        %v9724 = vadd.f32 %v9704, %v9710
        %v9725 = vadd.f32 %v9705, %v9710
        %v9726 = vadd.f32 %v9706, %v9710
        %v9727 = vpack.c.bf16 %v9712, %v9711
        %v9728 = vpack.c.bf16 %v9714, %v9713
        %v9729 = vpack.c.bf16 %v9716, %v9715
        %v9730 = vpack.c.bf16 %v9718, %v9717
        %v9731 = vpack.c.bf16 %v9720, %v9719
        %v9732 = vpack.c.bf16 %v9722, %v9721
        %v9733 = vpack.c.bf16 %v9724, %v9723
        %v9734 = vpack.c.bf16 %v9726, %v9725
        %s9735 = scalar_lea.vmem %s5, 16
        %v9736 = vld [vmem:[%s9735] sm:$0xf]
        %v9737 = vld [vmem:[%s9735 + $0x4] sm:$0xf]
        %v9738 = vld [vmem:[%s9735 + $0x8] sm:$0xf]
        %v9739 = vld [vmem:[%s9735 + $0xc] sm:$0xf]
        %v9740 = vlaneseq
        %v9741 = vshrl.u32 %v9740, 7
        %v9742 = vsub.s32 6, %v9741
        %v9743 = vrot.slane %v5498, %v9742
        %v9748 = vunpack.c.l.b16 %v9736
        %v9749 = vunpack.c.l.b16 %v9737
        %v9750 = vunpack.c.l.b16 %v9738
        %v9751 = vunpack.c.l.b16 %v9739
        %v9752 = vpack.c.b16 %v9749, %v9748
        %v9753 = vpack.c.b16 %v9751, %v9750
        %v9757 = vsel %vm692, %v9727, 0
        %v9760 = vsel %vm692, %v9728, 0
        %v9763 = vsel %vm692, %v9729, 0
        %v9766 = vsel %vm692, %v9730, 0
        %v9769 = vsel %vm692, %v9731, 0
        %v9772 = vsel %vm692, %v9732, 0
        %v9775 = vsel %vm692, %v9733, 0
        %v9778 = vsel %vm692, %v9734, 0
        %9780 = vmatprep.subr.bf16.mxu0 0
        %9781 = vmatpush1.bf16.msra.mxu0 %v9752
        %9782 = vmatprep.subr.bf16.mxu0 0
        %9783 = vmatpush1.bf16.msra.mxu0 %v9753
        %9784 = vmatprep.subr.bf16.mxu0 0
        %9785 = vmatpush1.bf16.msra.mxu0 0
        %9786 = vmatprep.subr.bf16.mxu0 0
        %9787 = vmatpush1.bf16.msra.mxu0 0
        %9788 = vmatprep.subr.bf16.mxu0 0
        %9789 = vmatpush1.bf16.msra.mxu0 0
        %9790 = vmatprep.subr.bf16.mxu0 0
        %9791 = vmatpush1.bf16.msra.mxu0 0
        %9792 = vmatprep.subr.bf16.mxu0 0
        %9793 = vmatpush1.bf16.msra.mxu0 0
        %9794 = vmatprep.subr.bf16.mxu0 0
        %9795 = vmatpush1.bf16.msra.mxu0 0
        %9796 = vmatprep.subr.bf16.mxu0 0
        %9797 = vmatpush1.bf16.msra.mxu0 0
        %9798 = vmatprep.subr.bf16.mxu0 0
        %9799 = vmatpush1.bf16.msra.mxu0 0
        %9800 = vmatprep.subr.bf16.mxu0 0
        %9801 = vmatpush1.bf16.msra.mxu0 0
        %9802 = vmatprep.subr.bf16.mxu0 0
        %9803 = vmatpush1.bf16.msra.mxu0 0
        %9804 = vmatprep.subr.bf16.mxu0 0
        %9805 = vmatpush1.bf16.msra.mxu0 0
        %9806 = vmatprep.subr.bf16.mxu0 0
        %9807 = vmatpush1.bf16.msra.mxu0 0
        %9808 = vmatprep.subr.bf16.mxu0 0
        %9809 = vmatpush1.bf16.msra.mxu0 0
        %9810 = vmatprep.subr.bf16.mxu0 0
        %9811 = vmatpush1.bf16.msra.mxu0 0
        %9812 = vmatprep.mubr.bf16.mxu0 0
        %9813 = vmatmul.mubr.bf16.gmra.mrb[0].mxu0 %v9757
        %v9814 = vpop.f32.mrb[0].mxu0
        %v9815 = vadd.f32 %v9743, %v9814
        %v9816 = vpop.f32.mrb[0].mxu0
        %v9817 = vpop.f32.mrb[0].mxu0
        %v9818 = vadd.f32 %v9743, %v9817
        %v9819 = vpop.f32.mrb[0].mxu0
        %9820 = vmatprep.mubr.bf16.mxu0 0
        %9821 = vmatmul.mubr.bf16.gmra.mrb[0].mxu0 %v9760
        %v9822 = vpop.f32.mrb[0].mxu0
        %v9823 = vadd.f32 %v9743, %v9822
        %v9824 = vpop.f32.mrb[0].mxu0
        %v9825 = vpop.f32.mrb[0].mxu0
        %v9826 = vadd.f32 %v9743, %v9825
        %v9827 = vpop.f32.mrb[0].mxu0
        %9828 = vmatprep.mubr.bf16.mxu0 0
        %9829 = vmatmul.mubr.bf16.gmra.mrb[0].mxu0 %v9763
        %v9830 = vpop.f32.mrb[0].mxu0
        %v9831 = vadd.f32 %v9743, %v9830
        %v9832 = vpop.f32.mrb[0].mxu0
        %v9833 = vpop.f32.mrb[0].mxu0
        %v9834 = vadd.f32 %v9743, %v9833
        %v9835 = vpop.f32.mrb[0].mxu0
        %9836 = vmatprep.mubr.bf16.mxu0 0
        %9837 = vmatmul.mubr.bf16.gmra.mrb[0].mxu0 %v9766
        %v9838 = vpop.f32.mrb[0].mxu0
        %v9839 = vadd.f32 %v9743, %v9838
        %v9840 = vpop.f32.mrb[0].mxu0
        %v9841 = vpop.f32.mrb[0].mxu0
        %v9842 = vadd.f32 %v9743, %v9841
        %v9843 = vpop.f32.mrb[0].mxu0
        %9844 = vmatprep.mubr.bf16.mxu0 0
        %9845 = vmatmul.mubr.bf16.gmra.mrb[0].mxu0 %v9769
        %v9846 = vpop.f32.mrb[0].mxu0
        %v9847 = vadd.f32 %v9743, %v9846
        %v9848 = vpop.f32.mrb[0].mxu0
        %v9849 = vpop.f32.mrb[0].mxu0
        %v9850 = vadd.f32 %v9743, %v9849
        %v9851 = vpop.f32.mrb[0].mxu0
        %9852 = vmatprep.mubr.bf16.mxu0 0
        %9853 = vmatmul.mubr.bf16.gmra.mrb[0].mxu0 %v9772
        %v9854 = vpop.f32.mrb[0].mxu0
        %v9855 = vadd.f32 %v9743, %v9854
        %v9856 = vpop.f32.mrb[0].mxu0
        %v9857 = vpop.f32.mrb[0].mxu0
        %v9858 = vadd.f32 %v9743, %v9857
        %v9859 = vpop.f32.mrb[0].mxu0
        %9860 = vmatprep.mubr.bf16.mxu0 0
        %9861 = vmatmul.mubr.bf16.gmra.mrb[0].mxu0 %v9775
        %v9862 = vpop.f32.mrb[0].mxu0
        %v9863 = vadd.f32 %v9743, %v9862
        %v9864 = vpop.f32.mrb[0].mxu0
        %v9865 = vpop.f32.mrb[0].mxu0
        %v9866 = vadd.f32 %v9743, %v9865
        %v9867 = vpop.f32.mrb[0].mxu0
        %9868 = vmatprep.mubr.bf16.mxu0 0
        %9869 = vmatmul.mubr.bf16.gmra.mrb[0].mxu0 %v9778
        %v9870 = vpop.f32.mrb[0].mxu0
        %v9871 = vadd.f32 %v9743, %v9870
        %v9872 = vpop.f32.mrb[0].mxu0
        %v9873 = vpop.f32.mrb[0].mxu0
        %v9874 = vadd.f32 %v9743, %v9873
        %v9875 = vpop.f32.mrb[0].mxu0
        %9876 = vdwg.mxu0
        %v9877 = vmax.f32 %v9815, 0.0
        %v9878 = vmax.f32 %v9818, 0.0
        %v9879 = vmax.f32 %v9823, 0.0
        %v9880 = vmax.f32 %v9826, 0.0
        %v9881 = vmax.f32 %v9831, 0.0
        %v9882 = vmax.f32 %v9834, 0.0
        %v9883 = vmax.f32 %v9839, 0.0
        %v9884 = vmax.f32 %v9842, 0.0
        %v9885 = vmax.f32 %v9847, 0.0
        %v9886 = vmax.f32 %v9850, 0.0
        %v9887 = vmax.f32 %v9855, 0.0
        %v9888 = vmax.f32 %v9858, 0.0
        %v9889 = vmax.f32 %v9863, 0.0
        %v9890 = vmax.f32 %v9866, 0.0
        %v9891 = vmax.f32 %v9871, 0.0
        %v9892 = vmax.f32 %v9874, 0.0
        %v9893 = vpack.c.bf16 %v9878, %v9877
        %v9894 = vpack.c.bf16 %v9880, %v9879
        %v9895 = vpack.c.bf16 %v9882, %v9881
        %v9896 = vpack.c.bf16 %v9884, %v9883
        %v9897 = vpack.c.bf16 %v9886, %v9885
        %v9898 = vpack.c.bf16 %v9888, %v9887
        %v9899 = vpack.c.bf16 %v9890, %v9889
        %v9900 = vpack.c.bf16 %v9892, %v9891
        %s9901 = scalar_lea.vmem %s6, 64
        %v9902 = vld [vmem:[%s9901] sm:$0xf]
        %v9903 = vld [vmem:[%s9901 + $0x4] sm:$0xf]
        %v9904 = vld [vmem:[%s9901 + $0x8] sm:$0xf]
        %v9905 = vld [vmem:[%s9901 + $0xc] sm:$0xf]
        %v9906 = vld [vmem:[%s9901 + $0x10] sm:$0xf]
        %v9907 = vld [vmem:[%s9901 + $0x14] sm:$0xf]
        %v9908 = vld [vmem:[%s9901 + $0x18] sm:$0xf]
        %v9909 = vld [vmem:[%s9901 + $0x1c] sm:$0xf]
        %v9910 = vld [vmem:[%s9901 + $0x20] sm:$0xf]
        %v9911 = vld [vmem:[%s9901 + $0x24] sm:$0xf]
        %v9912 = vld [vmem:[%s9901 + $0x28] sm:$0xf]
        %v9913 = vld [vmem:[%s9901 + $0x2c] sm:$0xf]
        %v9914 = vld [vmem:[%s9901 + $0x30] sm:$0xf]
        %v9915 = vld [vmem:[%s9901 + $0x34] sm:$0xf]
        %v9916 = vld [vmem:[%s9901 + $0x38] sm:$0xf]
        %v9917 = vld [vmem:[%s9901 + $0x3c] sm:$0xf]
        %v9918 = vlaneseq
        %v9919 = vshrl.u32 %v9918, 7
        %v9920 = vsub.s32 7, %v9919
        %v9921 = vrot.slane %v5498, %v9920
        %v9938 = vunpack.c.l.b16 %v9902
        %v9939 = vunpack.c.l.b16 %v9903
        %v9940 = vunpack.c.l.b16 %v9904
        %v9941 = vunpack.c.l.b16 %v9905
        %v9942 = vunpack.c.l.b16 %v9906
        %v9943 = vunpack.c.l.b16 %v9907
        %v9944 = vunpack.c.l.b16 %v9908
        %v9945 = vunpack.c.l.b16 %v9909
        %v9946 = vunpack.c.l.b16 %v9910
        %v9947 = vunpack.c.l.b16 %v9911
        %v9948 = vunpack.c.l.b16 %v9912
        %v9949 = vunpack.c.l.b16 %v9913
        %v9950 = vunpack.c.l.b16 %v9914
        %v9951 = vunpack.c.l.b16 %v9915
        %v9952 = vunpack.c.l.b16 %v9916
        %v9953 = vunpack.c.l.b16 %v9917
        %v9954 = vpack.c.b16 %v9939, %v9938
        %v9955 = vpack.c.b16 %v9941, %v9940
        %v9956 = vpack.c.b16 %v9943, %v9942
        %v9957 = vpack.c.b16 %v9945, %v9944
        %v9958 = vpack.c.b16 %v9947, %v9946
        %v9959 = vpack.c.b16 %v9949, %v9948
        %v9960 = vpack.c.b16 %v9951, %v9950
        %v9961 = vpack.c.b16 %v9953, %v9952
        %9970 = vmatprep.subr.bf16.mxu0 0
        %9971 = vmatpush1.bf16.msra.mxu0 %v9954
        %9972 = vmatprep.subr.bf16.mxu0 0
        %9973 = vmatpush1.bf16.msra.mxu0 %v9955
        %9974 = vmatprep.subr.bf16.mxu0 0
        %9975 = vmatpush1.bf16.msra.mxu0 %v9956
        %9976 = vmatprep.subr.bf16.mxu0 0
        %9977 = vmatpush1.bf16.msra.mxu0 %v9957
        %9978 = vmatprep.subr.bf16.mxu0 0
        %9979 = vmatpush1.bf16.msra.mxu0 %v9958
        %9980 = vmatprep.subr.bf16.mxu0 0
        %9981 = vmatpush1.bf16.msra.mxu0 %v9959
        %9982 = vmatprep.subr.bf16.mxu0 0
        %9983 = vmatpush1.bf16.msra.mxu0 %v9960
        %9984 = vmatprep.subr.bf16.mxu0 0
        %9985 = vmatpush1.bf16.msra.mxu0 %v9961
        %9986 = vmatprep.subr.bf16.mxu0 0
        %9987 = vmatpush1.bf16.msra.mxu0 0
        %9988 = vmatprep.subr.bf16.mxu0 0
        %9989 = vmatpush1.bf16.msra.mxu0 0
        %9990 = vmatprep.subr.bf16.mxu0 0
        %9991 = vmatpush1.bf16.msra.mxu0 0
        %9992 = vmatprep.subr.bf16.mxu0 0
        %9993 = vmatpush1.bf16.msra.mxu0 0
        %9994 = vmatprep.subr.bf16.mxu0 0
        %9995 = vmatpush1.bf16.msra.mxu0 0
        %9996 = vmatprep.subr.bf16.mxu0 0
        %9997 = vmatpush1.bf16.msra.mxu0 0
        %9998 = vmatprep.subr.bf16.mxu0 0
        %9999 = vmatpush1.bf16.msra.mxu0 0
        %10000 = vmatprep.subr.bf16.mxu0 0
        %10001 = vmatpush1.bf16.msra.mxu0 0
        %10002 = vmatprep.mubr.bf16.mxu0 0
        %10003 = vmatmul.mubr.bf16.gmra.mrb[0].mxu0 %v9893
        %v10004 = vpop.f32.mrb[0].mxu0
        %v10005 = vadd.f32 %v9921, %v10004
        %v10006 = vpop.f32.mrb[0].mxu0
        %v10007 = vpop.f32.mrb[0].mxu0
        %v10008 = vadd.f32 %v9921, %v10007
        %v10009 = vpop.f32.mrb[0].mxu0
        %10010 = vmatprep.mubr.bf16.mxu0 0
        %10011 = vmatmul.mubr.bf16.gmra.mrb[0].mxu0 %v9894
        %v10012 = vpop.f32.mrb[0].mxu0
        %v10013 = vadd.f32 %v9921, %v10012
        %v10014 = vpop.f32.mrb[0].mxu0
        %v10015 = vpop.f32.mrb[0].mxu0
        %v10016 = vadd.f32 %v9921, %v10015
        %v10017 = vpop.f32.mrb[0].mxu0
        %10018 = vmatprep.mubr.bf16.mxu0 0
        %10019 = vmatmul.mubr.bf16.gmra.mrb[0].mxu0 %v9895
        %v10020 = vpop.f32.mrb[0].mxu0
        %v10021 = vadd.f32 %v9921, %v10020
        %v10022 = vpop.f32.mrb[0].mxu0
        %v10023 = vpop.f32.mrb[0].mxu0
        %v10024 = vadd.f32 %v9921, %v10023
        %v10025 = vpop.f32.mrb[0].mxu0
        %10026 = vmatprep.mubr.bf16.mxu0 0
        %10027 = vmatmul.mubr.bf16.gmra.mrb[0].mxu0 %v9896
        %v10028 = vpop.f32.mrb[0].mxu0
        %v10029 = vadd.f32 %v9921, %v10028
        %v10030 = vpop.f32.mrb[0].mxu0
        %v10031 = vpop.f32.mrb[0].mxu0
        %v10032 = vadd.f32 %v9921, %v10031
        %v10033 = vpop.f32.mrb[0].mxu0
        %10034 = vmatprep.mubr.bf16.mxu0 0
        %10035 = vmatmul.mubr.bf16.gmra.mrb[0].mxu0 %v9897
        %v10036 = vpop.f32.mrb[0].mxu0
        %v10037 = vadd.f32 %v9921, %v10036
        %v10038 = vpop.f32.mrb[0].mxu0
        %v10039 = vpop.f32.mrb[0].mxu0
        %v10040 = vadd.f32 %v9921, %v10039
        %v10041 = vpop.f32.mrb[0].mxu0
        %10042 = vmatprep.mubr.bf16.mxu0 0
        %10043 = vmatmul.mubr.bf16.gmra.mrb[0].mxu0 %v9898
        %v10044 = vpop.f32.mrb[0].mxu0
        %v10045 = vadd.f32 %v9921, %v10044
        %v10046 = vpop.f32.mrb[0].mxu0
        %v10047 = vpop.f32.mrb[0].mxu0
        %v10048 = vadd.f32 %v9921, %v10047
        %v10049 = vpop.f32.mrb[0].mxu0
        %10050 = vmatprep.mubr.bf16.mxu0 0
        %10051 = vmatmul.mubr.bf16.gmra.mrb[0].mxu0 %v9899
        %v10052 = vpop.f32.mrb[0].mxu0
        %v10053 = vadd.f32 %v9921, %v10052
        %v10054 = vpop.f32.mrb[0].mxu0
        %v10055 = vpop.f32.mrb[0].mxu0
        %v10056 = vadd.f32 %v9921, %v10055
        %v10057 = vpop.f32.mrb[0].mxu0
        %10058 = vmatprep.mubr.bf16.mxu0 0
        %10059 = vmatmul.mubr.bf16.gmra.mrb[0].mxu0 %v9900
        %v10060 = vpop.f32.mrb[0].mxu0
        %v10061 = vadd.f32 %v9921, %v10060
        %v10062 = vpop.f32.mrb[0].mxu0
        %v10063 = vpop.f32.mrb[0].mxu0
        %v10064 = vadd.f32 %v9921, %v10063
        %v10065 = vpop.f32.mrb[0].mxu0
        %10066 = vdwg.mxu0
        %v10067 = vadd.f32 %v9711, %v10005
        %v10068 = vadd.f32 %v9712, %v10008
        %v10069 = vadd.f32 %v9713, %v10013
        %v10070 = vadd.f32 %v9714, %v10016
        %v10071 = vadd.f32 %v9715, %v10021
        %v10072 = vadd.f32 %v9716, %v10024
        %v10073 = vadd.f32 %v9717, %v10029
        %v10074 = vadd.f32 %v9718, %v10032
        %v10075 = vadd.f32 %v9719, %v10037
        %v10076 = vadd.f32 %v9720, %v10040
        %v10077 = vadd.f32 %v9721, %v10045
        %v10078 = vadd.f32 %v9722, %v10048
        %v10079 = vadd.f32 %v9723, %v10053
        %v10080 = vadd.f32 %v9724, %v10056
        %v10081 = vadd.f32 %v9725, %v10061
        %v10082 = vadd.f32 %v9726, %v10064
        %v10083 = vsel %vm692, %v10067, 0.0
        %10084 = vadd.xlane.f32.xlu0 %v10083
        %v10085 = vpop.xlane.xlu0 %10084
        %v10086 = vsel %vm692, %v10068, 0.0
        %10087 = vadd.xlane.f32.xlu0 %v10086
        %v10088 = vpop.xlane.xlu0 %10087
        %v10089 = vsel %vm692, %v10069, 0.0
        %10090 = vadd.xlane.f32.xlu0 %v10089
        %v10091 = vpop.xlane.xlu0 %10090
        %v10092 = vsel %vm692, %v10070, 0.0
        %10093 = vadd.xlane.f32.xlu0 %v10092
        %v10094 = vpop.xlane.xlu0 %10093
        %v10095 = vsel %vm692, %v10071, 0.0
        %10096 = vadd.xlane.f32.xlu0 %v10095
        %v10097 = vpop.xlane.xlu0 %10096
        %v10098 = vsel %vm692, %v10072, 0.0
        %10099 = vadd.xlane.f32.xlu0 %v10098
        %v10100 = vpop.xlane.xlu0 %10099
        %v10101 = vsel %vm692, %v10073, 0.0
        %10102 = vadd.xlane.f32.xlu0 %v10101
        %v10103 = vpop.xlane.xlu0 %10102
        %v10104 = vsel %vm692, %v10074, 0.0
        %10105 = vadd.xlane.f32.xlu0 %v10104
        %v10106 = vpop.xlane.xlu0 %10105
        %v10107 = vsel %vm692, %v10075, 0.0
        %10108 = vadd.xlane.f32.xlu0 %v10107
        %v10109 = vpop.xlane.xlu0 %10108
        %v10110 = vsel %vm692, %v10076, 0.0
        %10111 = vadd.xlane.f32.xlu0 %v10110
        %v10112 = vpop.xlane.xlu0 %10111
        %v10113 = vsel %vm692, %v10077, 0.0
        %10114 = vadd.xlane.f32.xlu0 %v10113
        %v10115 = vpop.xlane.xlu0 %10114
        %v10116 = vsel %vm692, %v10078, 0.0
        %10117 = vadd.xlane.f32.xlu0 %v10116
        %v10118 = vpop.xlane.xlu0 %10117
        %v10119 = vsel %vm692, %v10079, 0.0
        %10120 = vadd.xlane.f32.xlu0 %v10119
        %v10121 = vpop.xlane.xlu0 %10120
        %v10122 = vsel %vm692, %v10080, 0.0
        %10123 = vadd.xlane.f32.xlu0 %v10122
        %v10124 = vpop.xlane.xlu0 %10123
        %v10125 = vsel %vm692, %v10081, 0.0
        %10126 = vadd.xlane.f32.xlu0 %v10125
        %v10127 = vpop.xlane.xlu0 %10126
        %v10128 = vsel %vm692, %v10082, 0.0
        %10129 = vadd.xlane.f32.xlu0 %v10128
        %v10130 = vpop.xlane.xlu0 %10129
        %v10131 = vmul.f32 %v10085, %v4694
        %v10132 = vmul.f32 %v10088, %v4694
        %v10133 = vmul.f32 %v10091, %v4694
        %v10134 = vmul.f32 %v10094, %v4694
        %v10135 = vmul.f32 %v10097, %v4694
        %v10136 = vmul.f32 %v10100, %v4694
        %v10137 = vmul.f32 %v10103, %v4694
        %v10138 = vmul.f32 %v10106, %v4694
        %v10139 = vmul.f32 %v10109, %v4694
        %v10140 = vmul.f32 %v10112, %v4694
        %v10141 = vmul.f32 %v10115, %v4694
        %v10142 = vmul.f32 %v10118, %v4694
        %v10143 = vmul.f32 %v10121, %v4694
        %v10144 = vmul.f32 %v10124, %v4694
        %v10145 = vmul.f32 %v10127, %v4694
        %v10146 = vmul.f32 %v10130, %v4694
        %v10147 = vsub.f32 %v10067, %v10131
        %v10148 = vsub.f32 %v10068, %v10132
        %v10149 = vsub.f32 %v10069, %v10133
        %v10150 = vsub.f32 %v10070, %v10134
        %v10151 = vsub.f32 %v10071, %v10135
        %v10152 = vsub.f32 %v10072, %v10136
        %v10153 = vsub.f32 %v10073, %v10137
        %v10154 = vsub.f32 %v10074, %v10138
        %v10155 = vsub.f32 %v10075, %v10139
        %v10156 = vsub.f32 %v10076, %v10140
        %v10157 = vsub.f32 %v10077, %v10141
        %v10158 = vsub.f32 %v10078, %v10142
        %v10159 = vsub.f32 %v10079, %v10143
        %v10160 = vsub.f32 %v10080, %v10144
        %v10161 = vsub.f32 %v10081, %v10145
        %v10162 = vsub.f32 %v10082, %v10146
        %v10163 = vmul.f32 %v10147, %v10147
        %v10164 = vmul.f32 %v10148, %v10148
        %v10165 = vmul.f32 %v10149, %v10149
        %v10166 = vmul.f32 %v10150, %v10150
        %v10167 = vmul.f32 %v10151, %v10151
        %v10168 = vmul.f32 %v10152, %v10152
        %v10169 = vmul.f32 %v10153, %v10153
        %v10170 = vmul.f32 %v10154, %v10154
        %v10171 = vmul.f32 %v10155, %v10155
        %v10172 = vmul.f32 %v10156, %v10156
        %v10173 = vmul.f32 %v10157, %v10157
        %v10174 = vmul.f32 %v10158, %v10158
        %v10175 = vmul.f32 %v10159, %v10159
        %v10176 = vmul.f32 %v10160, %v10160
        %v10177 = vmul.f32 %v10161, %v10161
        %v10178 = vmul.f32 %v10162, %v10162
        %v10179 = vsel %vm692, %v10163, 0.0
        %10180 = vadd.xlane.f32.xlu0 %v10179
        %v10181 = vpop.xlane.xlu0 %10180
        %v10182 = vsel %vm692, %v10164, 0.0
        %10183 = vadd.xlane.f32.xlu0 %v10182
        %v10184 = vpop.xlane.xlu0 %10183
        %v10185 = vsel %vm692, %v10165, 0.0
        %10186 = vadd.xlane.f32.xlu0 %v10185
        %v10187 = vpop.xlane.xlu0 %10186
        %v10188 = vsel %vm692, %v10166, 0.0
        %10189 = vadd.xlane.f32.xlu0 %v10188
        %v10190 = vpop.xlane.xlu0 %10189
        %v10191 = vsel %vm692, %v10167, 0.0
        %10192 = vadd.xlane.f32.xlu0 %v10191
        %v10193 = vpop.xlane.xlu0 %10192
        %v10194 = vsel %vm692, %v10168, 0.0
        %10195 = vadd.xlane.f32.xlu0 %v10194
        %v10196 = vpop.xlane.xlu0 %10195
        %v10197 = vsel %vm692, %v10169, 0.0
        %10198 = vadd.xlane.f32.xlu0 %v10197
        %v10199 = vpop.xlane.xlu0 %10198
        %v10200 = vsel %vm692, %v10170, 0.0
        %10201 = vadd.xlane.f32.xlu0 %v10200
        %v10202 = vpop.xlane.xlu0 %10201
        %v10203 = vsel %vm692, %v10171, 0.0
        %10204 = vadd.xlane.f32.xlu0 %v10203
        %v10205 = vpop.xlane.xlu0 %10204
        %v10206 = vsel %vm692, %v10172, 0.0
        %10207 = vadd.xlane.f32.xlu0 %v10206
        %v10208 = vpop.xlane.xlu0 %10207
        %v10209 = vsel %vm692, %v10173, 0.0
        %10210 = vadd.xlane.f32.xlu0 %v10209
        %v10211 = vpop.xlane.xlu0 %10210
        %v10212 = vsel %vm692, %v10174, 0.0
        %10213 = vadd.xlane.f32.xlu0 %v10212
        %v10214 = vpop.xlane.xlu0 %10213
        %v10215 = vsel %vm692, %v10175, 0.0
        %10216 = vadd.xlane.f32.xlu0 %v10215
        %v10217 = vpop.xlane.xlu0 %10216
        %v10218 = vsel %vm692, %v10176, 0.0
        %10219 = vadd.xlane.f32.xlu0 %v10218
        %v10220 = vpop.xlane.xlu0 %10219
        %v10221 = vsel %vm692, %v10177, 0.0
        %10222 = vadd.xlane.f32.xlu0 %v10221
        %v10223 = vpop.xlane.xlu0 %10222
        %v10224 = vsel %vm692, %v10178, 0.0
        %10225 = vadd.xlane.f32.xlu0 %v10224
        %v10226 = vpop.xlane.xlu0 %10225
        %v10227 = vmul.f32 %v10181, %v4694
        %v10228 = vmul.f32 %v10184, %v4694
        %v10229 = vmul.f32 %v10187, %v4694
        %v10230 = vmul.f32 %v10190, %v4694
        %v10231 = vmul.f32 %v10193, %v4694
        %v10232 = vmul.f32 %v10196, %v4694
        %v10233 = vmul.f32 %v10199, %v4694
        %v10234 = vmul.f32 %v10202, %v4694
        %v10235 = vmul.f32 %v10205, %v4694
        %v10236 = vmul.f32 %v10208, %v4694
        %v10237 = vmul.f32 %v10211, %v4694
        %v10238 = vmul.f32 %v10214, %v4694
        %v10239 = vmul.f32 %v10217, %v4694
        %v10240 = vmul.f32 %v10220, %v4694
        %v10241 = vmul.f32 %v10223, %v4694
        %v10242 = vmul.f32 %v10226, %v4694
        %v10243 = vadd.f32 %v10227, 1e-05
        %v10244 = vadd.f32 %v10228, 1e-05
        %v10245 = vadd.f32 %v10229, 1e-05
        %v10246 = vadd.f32 %v10230, 1e-05
        %v10247 = vadd.f32 %v10231, 1e-05
        %v10248 = vadd.f32 %v10232, 1e-05
        %v10249 = vadd.f32 %v10233, 1e-05
        %v10250 = vadd.f32 %v10234, 1e-05
        %v10251 = vadd.f32 %v10235, 1e-05
        %v10252 = vadd.f32 %v10236, 1e-05
        %v10253 = vadd.f32 %v10237, 1e-05
        %v10254 = vadd.f32 %v10238, 1e-05
        %v10255 = vadd.f32 %v10239, 1e-05
        %v10256 = vadd.f32 %v10240, 1e-05
        %v10257 = vadd.f32 %v10241, 1e-05
        %v10258 = vadd.f32 %v10242, 1e-05
        %v10259 = vrsqrt.pop %v10243
        %v10260 = vrsqrt.pop %v10244
        %v10261 = vrsqrt.pop %v10245
        %v10262 = vrsqrt.pop %v10246
        %v10263 = vrsqrt.pop %v10247
        %v10264 = vrsqrt.pop %v10248
        %v10265 = vrsqrt.pop %v10249
        %v10266 = vrsqrt.pop %v10250
        %v10267 = vrsqrt.pop %v10251
        %v10268 = vrsqrt.pop %v10252
        %v10269 = vrsqrt.pop %v10253
        %v10270 = vrsqrt.pop %v10254
        %v10271 = vrsqrt.pop %v10255
        %v10272 = vrsqrt.pop %v10256
        %v10273 = vrsqrt.pop %v10257
        %v10274 = vrsqrt.pop %v10258
        %v10275 = vmul.f32 %v10147, %v10259
        %v10276 = vmul.f32 %v10148, %v10260
        %v10277 = vmul.f32 %v10149, %v10261
        %v10278 = vmul.f32 %v10150, %v10262
        %v10279 = vmul.f32 %v10151, %v10263
        %v10280 = vmul.f32 %v10152, %v10264
        %v10281 = vmul.f32 %v10153, %v10265
        %v10282 = vmul.f32 %v10154, %v10266
        %v10283 = vmul.f32 %v10155, %v10267
        %v10284 = vmul.f32 %v10156, %v10268
        %v10285 = vmul.f32 %v10157, %v10269
        %v10286 = vmul.f32 %v10158, %v10270
        %v10287 = vmul.f32 %v10159, %v10271
        %v10288 = vmul.f32 %v10160, %v10272
        %v10289 = vmul.f32 %v10161, %v10273
        %v10290 = vmul.f32 %v10162, %v10274
        %v10291 = vlaneseq
        %v10292 = vshrl.u32 %v10291, 7
        %v10293 = vsub.s32 4, %v10292
        %v10294 = vrot.slane %v5498, %v10293
        %v10295 = vmul.f32 %v10275, %v10294
        %v10296 = vmul.f32 %v10276, %v10294
        %v10297 = vmul.f32 %v10277, %v10294
        %v10298 = vmul.f32 %v10278, %v10294
        %v10299 = vmul.f32 %v10279, %v10294
        %v10300 = vmul.f32 %v10280, %v10294
        %v10301 = vmul.f32 %v10281, %v10294
        %v10302 = vmul.f32 %v10282, %v10294
        %v10303 = vmul.f32 %v10283, %v10294
        %v10304 = vmul.f32 %v10284, %v10294
        %v10305 = vmul.f32 %v10285, %v10294
        %v10306 = vmul.f32 %v10286, %v10294
        %v10307 = vmul.f32 %v10287, %v10294
        %v10308 = vmul.f32 %v10288, %v10294
        %v10309 = vmul.f32 %v10289, %v10294
        %v10310 = vmul.f32 %v10290, %v10294
        %v10311 = vlaneseq
        %v10312 = vshrl.u32 %v10311, 7
        %v10313 = vsub.s32 5, %v10312
        %v10314 = vrot.slane %v5498, %v10313
        %v10315 = vadd.f32 %v10295, %v10314
        %v10316 = vadd.f32 %v10296, %v10314
        %v10317 = vadd.f32 %v10297, %v10314
        %v10318 = vadd.f32 %v10298, %v10314
        %v10319 = vadd.f32 %v10299, %v10314
        %v10320 = vadd.f32 %v10300, %v10314
        %v10321 = vadd.f32 %v10301, %v10314
        %v10322 = vadd.f32 %v10302, %v10314
        %v10323 = vadd.f32 %v10303, %v10314
        %v10324 = vadd.f32 %v10304, %v10314
        %v10325 = vadd.f32 %v10305, %v10314
        %v10326 = vadd.f32 %v10306, %v10314
        %v10327 = vadd.f32 %v10307, %v10314
        %v10328 = vadd.f32 %v10308, %v10314
        %v10329 = vadd.f32 %v10309, %v10314
        %v10330 = vadd.f32 %v10310, %v10314
        %v10331 = vpack.c.bf16 %v10316, %v10315
        %v10332 = vpack.c.bf16 %v10318, %v10317
        %v10333 = vpack.c.bf16 %v10320, %v10319
        %v10334 = vpack.c.bf16 %v10322, %v10321
        %v10335 = vpack.c.bf16 %v10324, %v10323
        %v10336 = vpack.c.bf16 %v10326, %v10325
        %v10337 = vpack.c.bf16 %v10328, %v10327
        %v10338 = vpack.c.bf16 %v10330, %v10329
        %v10339 = vld [vmem:[%s8] sm:$0xf]
        %v10340 = vld [vmem:[%s8 + $0x4] sm:$0xf]
        %v10341 = vld [vmem:[%s8 + $0x8] sm:$0xf]
        %v10342 = vld [vmem:[%s8 + $0xc] sm:$0xf]
        %v10343 = vld [vmem:[%s9] sm:$0x1]
        %v10345 = vlaneseq
        %v10346 = vshrl.u32 %v10345, 7
        %v10347 = vsub.s32 0, %v10346
        %v10348 = vrot.slane %v10343, %v10347
        %v10354 = vunpack.c.l.b16 %v10339
        %v10355 = vunpack.c.l.b16 %v10340
        %v10356 = vunpack.c.l.b16 %v10341
        %v10357 = vunpack.c.l.b16 %v10342
        %v10358 = vpack.c.b16 %v10355, %v10354
        %v10359 = vpack.c.b16 %v10357, %v10356
        %v10363 = vsel %vm692, %v10331, 0
        %v10366 = vsel %vm692, %v10332, 0
        %v10369 = vsel %vm692, %v10333, 0
        %v10372 = vsel %vm692, %v10334, 0
        %v10375 = vsel %vm692, %v10335, 0
        %v10378 = vsel %vm692, %v10336, 0
        %v10381 = vsel %vm692, %v10337, 0
        %v10384 = vsel %vm692, %v10338, 0
        %10386 = vmatprep.subr.bf16.mxu0 0
        %10387 = vmatpush1.bf16.msra.mxu0 %v10358
        %10388 = vmatprep.subr.bf16.mxu0 0
        %10389 = vmatpush1.bf16.msra.mxu0 %v10359
        %10390 = vmatprep.subr.bf16.mxu0 0
        %10391 = vmatpush1.bf16.msra.mxu0 0
        %10392 = vmatprep.subr.bf16.mxu0 0
        %10393 = vmatpush1.bf16.msra.mxu0 0
        %10394 = vmatprep.subr.bf16.mxu0 0
        %10395 = vmatpush1.bf16.msra.mxu0 0
        %10396 = vmatprep.subr.bf16.mxu0 0
        %10397 = vmatpush1.bf16.msra.mxu0 0
        %10398 = vmatprep.subr.bf16.mxu0 0
        %10399 = vmatpush1.bf16.msra.mxu0 0
        %10400 = vmatprep.subr.bf16.mxu0 0
        %10401 = vmatpush1.bf16.msra.mxu0 0
        %10402 = vmatprep.subr.bf16.mxu0 0
        %10403 = vmatpush1.bf16.msra.mxu0 0
        %10404 = vmatprep.subr.bf16.mxu0 0
        %10405 = vmatpush1.bf16.msra.mxu0 0
        %10406 = vmatprep.subr.bf16.mxu0 0
        %10407 = vmatpush1.bf16.msra.mxu0 0
        %10408 = vmatprep.subr.bf16.mxu0 0
        %10409 = vmatpush1.bf16.msra.mxu0 0
        %10410 = vmatprep.subr.bf16.mxu0 0
        %10411 = vmatpush1.bf16.msra.mxu0 0
        %10412 = vmatprep.subr.bf16.mxu0 0
        %10413 = vmatpush1.bf16.msra.mxu0 0
        %10414 = vmatprep.subr.bf16.mxu0 0
        %10415 = vmatpush1.bf16.msra.mxu0 0
        %10416 = vmatprep.subr.bf16.mxu0 0
        %10417 = vmatpush1.bf16.msra.mxu0 0
        %10418 = vmatprep.mubr.bf16.mxu0 0
        %10419 = vmatmul.mubr.bf16.gmra.mrb[0].mxu0 %v10363
        %v10420 = vpop.f32.mrb[0].mxu0
        %v10421 = vadd.f32 %v10348, %v10420
        %v10422 = vpop.f32.mrb[0].mxu0
        %v10423 = vpop.f32.mrb[0].mxu0
        %v10424 = vadd.f32 %v10348, %v10423
        %v10425 = vpop.f32.mrb[0].mxu0
        %10426 = vmatprep.mubr.bf16.mxu0 0
        %10427 = vmatmul.mubr.bf16.gmra.mrb[0].mxu0 %v10366
        %v10428 = vpop.f32.mrb[0].mxu0
        %v10429 = vadd.f32 %v10348, %v10428
        %v10430 = vpop.f32.mrb[0].mxu0
        %v10431 = vpop.f32.mrb[0].mxu0
        %v10432 = vadd.f32 %v10348, %v10431
        %v10433 = vpop.f32.mrb[0].mxu0
        %10434 = vmatprep.mubr.bf16.mxu0 0
        %10435 = vmatmul.mubr.bf16.gmra.mrb[0].mxu0 %v10369
        %v10436 = vpop.f32.mrb[0].mxu0
        %v10437 = vadd.f32 %v10348, %v10436
        %v10438 = vpop.f32.mrb[0].mxu0
        %v10439 = vpop.f32.mrb[0].mxu0
        %v10440 = vadd.f32 %v10348, %v10439
        %v10441 = vpop.f32.mrb[0].mxu0
        %10442 = vmatprep.mubr.bf16.mxu0 0
        %10443 = vmatmul.mubr.bf16.gmra.mrb[0].mxu0 %v10372
        %v10444 = vpop.f32.mrb[0].mxu0
        %v10445 = vadd.f32 %v10348, %v10444
        %v10446 = vpop.f32.mrb[0].mxu0
        %v10447 = vpop.f32.mrb[0].mxu0
        %v10448 = vadd.f32 %v10348, %v10447
        %v10449 = vpop.f32.mrb[0].mxu0
        %10450 = vmatprep.mubr.bf16.mxu0 0
        %10451 = vmatmul.mubr.bf16.gmra.mrb[0].mxu0 %v10375
        %v10452 = vpop.f32.mrb[0].mxu0
        %v10453 = vadd.f32 %v10348, %v10452
        %v10454 = vpop.f32.mrb[0].mxu0
        %v10455 = vpop.f32.mrb[0].mxu0
        %v10456 = vadd.f32 %v10348, %v10455
        %v10457 = vpop.f32.mrb[0].mxu0
        %10458 = vmatprep.mubr.bf16.mxu0 0
        %10459 = vmatmul.mubr.bf16.gmra.mrb[0].mxu0 %v10378
        %v10460 = vpop.f32.mrb[0].mxu0
        %v10461 = vadd.f32 %v10348, %v10460
        %v10462 = vpop.f32.mrb[0].mxu0
        %v10463 = vpop.f32.mrb[0].mxu0
        %v10464 = vadd.f32 %v10348, %v10463
        %v10465 = vpop.f32.mrb[0].mxu0
        %10466 = vmatprep.mubr.bf16.mxu0 0
        %10467 = vmatmul.mubr.bf16.gmra.mrb[0].mxu0 %v10381
        %v10468 = vpop.f32.mrb[0].mxu0
        %v10469 = vadd.f32 %v10348, %v10468
        %v10470 = vpop.f32.mrb[0].mxu0
        %v10471 = vpop.f32.mrb[0].mxu0
        %v10472 = vadd.f32 %v10348, %v10471
        %v10473 = vpop.f32.mrb[0].mxu0
        %10474 = vmatprep.mubr.bf16.mxu0 0
        %10475 = vmatmul.mubr.bf16.gmra.mrb[0].mxu0 %v10384
        %v10476 = vpop.f32.mrb[0].mxu0
        %v10477 = vadd.f32 %v10348, %v10476
        %v10478 = vpop.f32.mrb[0].mxu0
        %v10479 = vpop.f32.mrb[0].mxu0
        %v10480 = vadd.f32 %v10348, %v10479
        %v10481 = vpop.f32.mrb[0].mxu0
        %10482 = vdwg.mxu0
        %10483 = vmax.xlane.f32.xlu0 %v10421
        %v10484 = vpop.xlane.xlu0 %10483
        %10485 = vmax.xlane.f32.xlu0 %v10424
        %v10486 = vpop.xlane.xlu0 %10485
        %10487 = vmax.xlane.f32.xlu0 %v10429
        %v10488 = vpop.xlane.xlu0 %10487
        %10489 = vmax.xlane.f32.xlu0 %v10432
        %v10490 = vpop.xlane.xlu0 %10489
        %10491 = vmax.xlane.f32.xlu0 %v10437
        %v10492 = vpop.xlane.xlu0 %10491
        %10493 = vmax.xlane.f32.xlu0 %v10440
        %v10494 = vpop.xlane.xlu0 %10493
        %10495 = vmax.xlane.f32.xlu0 %v10445
        %v10496 = vpop.xlane.xlu0 %10495
        %10497 = vmax.xlane.f32.xlu0 %v10448
        %v10498 = vpop.xlane.xlu0 %10497
        %10499 = vmax.xlane.f32.xlu0 %v10453
        %v10500 = vpop.xlane.xlu0 %10499
        %10501 = vmax.xlane.f32.xlu0 %v10456
        %v10502 = vpop.xlane.xlu0 %10501
        %10503 = vmax.xlane.f32.xlu0 %v10461
        %v10504 = vpop.xlane.xlu0 %10503
        %10505 = vmax.xlane.f32.xlu0 %v10464
        %v10506 = vpop.xlane.xlu0 %10505
        %10507 = vmax.xlane.f32.xlu0 %v10469
        %v10508 = vpop.xlane.xlu0 %10507
        %10509 = vmax.xlane.f32.xlu0 %v10472
        %v10510 = vpop.xlane.xlu0 %10509
        %10511 = vmax.xlane.f32.xlu0 %v10477
        %v10512 = vpop.xlane.xlu0 %10511
        %10513 = vmax.xlane.f32.xlu0 %v10480
        %v10514 = vpop.xlane.xlu0 %10513
        %v10515 = vsub.f32 %v10421, %v10484
        %v10516 = vsub.f32 %v10424, %v10486
        %v10517 = vsub.f32 %v10429, %v10488
        %v10518 = vsub.f32 %v10432, %v10490
        %v10519 = vsub.f32 %v10437, %v10492
        %v10520 = vsub.f32 %v10440, %v10494
        %v10521 = vsub.f32 %v10445, %v10496
        %v10522 = vsub.f32 %v10448, %v10498
        %v10523 = vsub.f32 %v10453, %v10500
        %v10524 = vsub.f32 %v10456, %v10502
        %v10525 = vsub.f32 %v10461, %v10504
        %v10526 = vsub.f32 %v10464, %v10506
        %v10527 = vsub.f32 %v10469, %v10508
        %v10528 = vsub.f32 %v10472, %v10510
        %v10529 = vsub.f32 %v10477, %v10512
        %v10530 = vsub.f32 %v10480, %v10514
        %v10531 = vmul.f32 %v10515, 1.442695
        %v10532 = vpow.pop %v10531
        %v10533 = vmul.f32 %v10516, 1.442695
        %v10534 = vpow.pop %v10533
        %v10535 = vmul.f32 %v10517, 1.442695
        %v10536 = vpow.pop %v10535
        %v10537 = vmul.f32 %v10518, 1.442695
        %v10538 = vpow.pop %v10537
        %v10539 = vmul.f32 %v10519, 1.442695
        %v10540 = vpow.pop %v10539
        %v10541 = vmul.f32 %v10520, 1.442695
        %v10542 = vpow.pop %v10541
        %v10543 = vmul.f32 %v10521, 1.442695
        %v10544 = vpow.pop %v10543
        %v10545 = vmul.f32 %v10522, 1.442695
        %v10546 = vpow.pop %v10545
        %v10547 = vmul.f32 %v10523, 1.442695
        %v10548 = vpow.pop %v10547
        %v10549 = vmul.f32 %v10524, 1.442695
        %v10550 = vpow.pop %v10549
        %v10551 = vmul.f32 %v10525, 1.442695
        %v10552 = vpow.pop %v10551
        %v10553 = vmul.f32 %v10526, 1.442695
        %v10554 = vpow.pop %v10553
        %v10555 = vmul.f32 %v10527, 1.442695
        %v10556 = vpow.pop %v10555
        %v10557 = vmul.f32 %v10528, 1.442695
        %v10558 = vpow.pop %v10557
        %v10559 = vmul.f32 %v10529, 1.442695
        %v10560 = vpow.pop %v10559
        %v10561 = vmul.f32 %v10530, 1.442695
        %v10562 = vpow.pop %v10561
        %10563 = vadd.xlane.f32.xlu0 %v10532
        %v10564 = vpop.xlane.xlu0 %10563
        %10565 = vadd.xlane.f32.xlu0 %v10534
        %v10566 = vpop.xlane.xlu0 %10565
        %10567 = vadd.xlane.f32.xlu0 %v10536
        %v10568 = vpop.xlane.xlu0 %10567
        %10569 = vadd.xlane.f32.xlu0 %v10538
        %v10570 = vpop.xlane.xlu0 %10569
        %10571 = vadd.xlane.f32.xlu0 %v10540
        %v10572 = vpop.xlane.xlu0 %10571
        %10573 = vadd.xlane.f32.xlu0 %v10542
        %v10574 = vpop.xlane.xlu0 %10573
        %10575 = vadd.xlane.f32.xlu0 %v10544
        %v10576 = vpop.xlane.xlu0 %10575
        %10577 = vadd.xlane.f32.xlu0 %v10546
        %v10578 = vpop.xlane.xlu0 %10577
        %10579 = vadd.xlane.f32.xlu0 %v10548
        %v10580 = vpop.xlane.xlu0 %10579
        %10581 = vadd.xlane.f32.xlu0 %v10550
        %v10582 = vpop.xlane.xlu0 %10581
        %10583 = vadd.xlane.f32.xlu0 %v10552
        %v10584 = vpop.xlane.xlu0 %10583
        %10585 = vadd.xlane.f32.xlu0 %v10554
        %v10586 = vpop.xlane.xlu0 %10585
        %10587 = vadd.xlane.f32.xlu0 %v10556
        %v10588 = vpop.xlane.xlu0 %10587
        %10589 = vadd.xlane.f32.xlu0 %v10558
        %v10590 = vpop.xlane.xlu0 %10589
        %10591 = vadd.xlane.f32.xlu0 %v10560
        %v10592 = vpop.xlane.xlu0 %10591
        %10593 = vadd.xlane.f32.xlu0 %v10562
        %v10594 = vpop.xlane.xlu0 %10593
        %v10595 = vlog2.pop %v10564
        %v10596 = vmul.f32 %v10595, 0.6931472
        %v10597 = vlog2.pop %v10566
        %v10598 = vmul.f32 %v10597, 0.6931472
        %v10599 = vlog2.pop %v10568
        %v10600 = vmul.f32 %v10599, 0.6931472
        %v10601 = vlog2.pop %v10570
        %v10602 = vmul.f32 %v10601, 0.6931472
        %v10603 = vlog2.pop %v10572
        %v10604 = vmul.f32 %v10603, 0.6931472
        %v10605 = vlog2.pop %v10574
        %v10606 = vmul.f32 %v10605, 0.6931472
        %v10607 = vlog2.pop %v10576
        %v10608 = vmul.f32 %v10607, 0.6931472
        %v10609 = vlog2.pop %v10578
        %v10610 = vmul.f32 %v10609, 0.6931472
        %v10611 = vlog2.pop %v10580
        %v10612 = vmul.f32 %v10611, 0.6931472
        %v10613 = vlog2.pop %v10582
        %v10614 = vmul.f32 %v10613, 0.6931472
        %v10615 = vlog2.pop %v10584
        %v10616 = vmul.f32 %v10615, 0.6931472
        %v10617 = vlog2.pop %v10586
        %v10618 = vmul.f32 %v10617, 0.6931472
        %v10619 = vlog2.pop %v10588
        %v10620 = vmul.f32 %v10619, 0.6931472
        %v10621 = vlog2.pop %v10590
        %v10622 = vmul.f32 %v10621, 0.6931472
        %v10623 = vlog2.pop %v10592
        %v10624 = vmul.f32 %v10623, 0.6931472
        %v10625 = vlog2.pop %v10594
        %v10626 = vmul.f32 %v10625, 0.6931472
        %v10627 = vadd.f32 %v10484, %v10596
        %v10628 = vadd.f32 %v10486, %v10598
        %v10629 = vadd.f32 %v10488, %v10600
        %v10630 = vadd.f32 %v10490, %v10602
        %v10631 = vadd.f32 %v10492, %v10604
        %v10632 = vadd.f32 %v10494, %v10606
        %v10633 = vadd.f32 %v10496, %v10608
        %v10634 = vadd.f32 %v10498, %v10610
        %v10635 = vadd.f32 %v10500, %v10612
        %v10636 = vadd.f32 %v10502, %v10614
        %v10637 = vadd.f32 %v10504, %v10616
        %v10638 = vadd.f32 %v10506, %v10618
        %v10639 = vadd.f32 %v10508, %v10620
        %v10640 = vadd.f32 %v10510, %v10622
        %v10641 = vadd.f32 %v10512, %v10624
        %v10642 = vadd.f32 %v10514, %v10626
        %v10643 = vsub.f32 %v10421, %v10627
        %v10644 = vsub.f32 %v10424, %v10628
        %v10645 = vsub.f32 %v10429, %v10629
        %v10646 = vsub.f32 %v10432, %v10630
        %v10647 = vsub.f32 %v10437, %v10631
        %v10648 = vsub.f32 %v10440, %v10632
        %v10649 = vsub.f32 %v10445, %v10633
        %v10650 = vsub.f32 %v10448, %v10634
        %v10651 = vsub.f32 %v10453, %v10635
        %v10652 = vsub.f32 %v10456, %v10636
        %v10653 = vsub.f32 %v10461, %v10637
        %v10654 = vsub.f32 %v10464, %v10638
        %v10655 = vsub.f32 %v10469, %v10639
        %v10656 = vsub.f32 %v10472, %v10640
        %v10657 = vsub.f32 %v10477, %v10641
        %v10658 = vsub.f32 %v10480, %v10642
        %10659 = vst [vmem:[%s352] sm:$0xff] %v10643
        %10660 = vst [vmem:[%s352 + $0x8] sm:$0xff] %v10644
        %10661 = vst [vmem:[%s352 + $0x10] sm:$0xff] %v10645
        %10662 = vst [vmem:[%s352 + $0x18] sm:$0xff] %v10646
        %10663 = vst [vmem:[%s352 + $0x20] sm:$0xff] %v10647
        %10664 = vst [vmem:[%s352 + $0x28] sm:$0xff] %v10648
        %10665 = vst [vmem:[%s352 + $0x30] sm:$0xff] %v10649
        %10666 = vst [vmem:[%s352 + $0x38] sm:$0xff] %v10650
        %10667 = vst [vmem:[%s352 + $0x40] sm:$0xff] %v10651
        %10668 = vst [vmem:[%s352 + $0x48] sm:$0xff] %v10652
        %10669 = vst [vmem:[%s352 + $0x50] sm:$0xff] %v10653
        %10670 = vst [vmem:[%s352 + $0x58] sm:$0xff] %v10654
        %10671 = vst [vmem:[%s352 + $0x60] sm:$0xff] %v10655
        %10672 = vst [vmem:[%s352 + $0x68] sm:$0xff] %v10656
        %10673 = vst [vmem:[%s352 + $0x70] sm:$0xff] %v10657
        %10674 = vst [vmem:[%s352 + $0x78] sm:$0xff] %v10658
        %s10675 = sand.u32 %s247, 1
        %s10676 = scalar_lea.sflag [#allocation3], %s10675
        %s10677 = sand.u32 %s247, 1
        %s10678 = smul.addr %s10677, 128
        %s10679 = scalar_lea.vmem [#allocation2], %s10678
        // Predicated region
        $region61: #{tpu_custom_call.1} parent=59 // pred_check
          %p10680 = pneg %p257
        $region62: #{tpu_custom_call.1} parent=59 // pred_check_branch
          %10682 = sbr.rel (%p10680) target = $region64
        $region63: #{tpu_custom_call.1} parent=59 // pred_region
          %s10684 = ssub.s32 2048, 2048
          %10685 = vsyncadd %s10676, %s10684
          %s10686 = smul.addr %s24, 16
          %s10687 = smul.addr %s10686, 128
          %s10688 = scalar_lea.hbm %s10, %s10687
          %s10689 = sshll.u32 %s10679, 4
          %s10690 = int_to_ptr.vmem [resolvable:$true] %s10689
          %10695 = dma.vmem_to_hbm [thread:$0]  %s10690, 2048, %s10688, %s10676, 128, 128, 8
        $region64: #{tpu_custom_call.1} parent=59 // pred_fallthru
          _
      $region60: #{tpu_custom_call.1} parent=5 // pred_fallthru
        _
      %p10696 = scmp.le.s32.totalorder 2, %s19
      // Predicated region
      $region65: #{tpu_custom_call.1} parent=5 // pred_check
        %p10697 = pneg %p10696
      $region66: #{tpu_custom_call.1} parent=5 // pred_check_branch
        %10699 = sbr.rel (%p10697) target = $region68
      $region67: #{tpu_custom_call.1} parent=5 // pred_region
        %s10700 = ssub.s32 %s19, 2
        // Predicated region
        $region69: #{tpu_custom_call.1} parent=67 // pred_check
          %p10701 = pneg %p263
        $region70: #{tpu_custom_call.1} parent=67 // pred_check_branch
          %10703 = sbr.rel (%p10701) target = $region72
        $region71: #{tpu_custom_call.1} parent=67 // pred_region
          %s10704 = sand.u32 %s248, 1
          %s10705 = scalar_lea.sflag [#allocation3], %s10704
          %s10706 = sand.u32 %s248, 1
          %s10707 = smul.addr %s10706, 128
          %s10708 = scalar_lea.vmem [#allocation2], %s10707
          %10709 = dma.done %s10705, 2048
        $region72: #{tpu_custom_call.1} parent=67 // pred_fallthru
          _
      $region68: #{tpu_custom_call.1} parent=5 // pred_fallthru
        _
    $region6: #{tpu_custom_call.1} parent=1 // loop_footer
      %s23 = sadd.s32 1, %s19
    $region7: #{tpu_custom_call.1} parent=1 // loop_footer_branch
      %18 = sbr.rel target = $region3
    $region8: #{tpu_custom_call.1} parent=1 // loop_exit
      _
    %10710 = vsyncpa [#allocation3], 1
    %s10711 = scalar_lea.sflag [#allocation3], 1
    %10712 = vsyncpa %s10711, 1

</llo_original>
